<compile_context>
chip_gen: v7x
topology: tpu7x:2x2x1
jax: 0.10.0
libtpu: 0.0.40
codegen_flags: <defaults>
</compile_context>

<pallas_src>
import numpy as np
import jax
import jax.numpy as jnp
from jax.experimental import pallas as pl
from jax.experimental.pallas import tpu as pltpu


# ----------------------- architecture constants ----------------------------
H1 = 26                    # input spatial (26 x 26)
F1 = H1 * H1               # 676 flat spatial positions (lane axis)
PAD = 896                  # padded flat width (>= 676 + 216 max shift, mult of 128)
TAIL0 = (F1 // 128) * 128  # 640: lane-aligned start for tail zeroing
CIN, C1, C2, C3 = 1024, 64, 8, 10
K2, K3 = 7, 5              # conv kernel sizes
FC1, FC2 = 32, 6
FCP = 128                  # fc1 hidden padded to one lane-aligned block / channel
T2 = K2 * K2 * C2          # 392 rows of the tap-stacked conv2 weight
T3 = K3 * K3 * C2          # 200 rows of the K-stacked conv3 operand


# ----------------------------- Pallas kernel -------------------------------

def _locnet_kernel(x_ref, w1_ref, b1_ref, w2_ref, b2_ref, w3_ref, b3_ref,
                   fw1_ref, fb1_ref, fw2_ref, fb2_ref, o_ref,
                   y1_s, t2_s, a2_s, p1_s, ks_s):
    # Zero only the padded tail columns once per grid step; the valid [:, :F1]
    # region is fully rewritten for every sample (the [TAIL0:F1) overlap is
    # rewritten before it is read).  Do NOT hoist under program_id==0: with a
    # megacore-parallel grid the other TensorCore never runs iteration 0.
    y1_s[:, TAIL0:] = jnp.zeros((C1, PAD - TAIL0), jnp.bfloat16)
    a2_s[:, TAIL0:] = jnp.zeros((C2, PAD - TAIL0), jnp.float32)
    p1_s[:, TAIL0:] = jnp.zeros((C2, PAD - TAIL0), jnp.bfloat16)
    ks_s[:, TAIL0:] = jnp.zeros((T3, PAD - TAIL0), jnp.bfloat16)

    nb = x_ref.shape[0]                                       # samples per step
    for b in range(nb):
        # ---- conv1 (1x1): channel matmul; f32 -> bf16 cast folded in-kernel.
        x = x_ref[b].astype(jnp.bfloat16)                     # (1024, 676)
        y1 = jnp.dot(w1_ref[...], x, preferred_element_type=jnp.float32)
        y1 = y1 + b1_ref[...]                                 # (64, 676) f32
        y1_s[:, :F1] = y1.astype(jnp.bfloat16)

        # ---- conv2 (7x7 valid): ONE (392,64)@(64,896) matmul, then 49 small
        # shifted slice-adds of the per-tap (8,676) rows into an accumulator.
        # Zero-padded y1 tail keeps out-of-range tap columns finite (zero).
        t2_s[...] = jnp.dot(w2_ref[...], y1_s[...],
                            preferred_element_type=jnp.float32)
        acc2 = jnp.zeros((C2, F1), jnp.float32)
        for t in range(K2 * K2):
            s = (t // K2) * H1 + (t % K2)                     # flat shift 26*i + j
            acc2 = acc2 + t2_s[t * C2:(t + 1) * C2, s:s + F1]
        a2_s[:, :F1] = acc2 + b2_ref[...]

        # ---- maxpool 2x2 + ReLU (valid results land on the stride-2 subgrid)
        p1 = jnp.maximum(jnp.maximum(a2_s[:, 0:F1], a2_s[:, 1:F1 + 1]),
                         jnp.maximum(a2_s[:, H1:F1 + H1],
                                     a2_s[:, H1 + 1:F1 + H1 + 1]))
        p1_s[:, :F1] = jnp.maximum(p1, 0.0).astype(jnp.bfloat16)

        # ---- conv3 (5x5 valid on the stride-2 subgrid): K-stack the 25
        # shifted slices, then ONE (10,200)@(200,896) matmul.
        for t in range(K3 * K3):
            s = (t // K3) * (2 * H1) + (t % K3) * 2           # flat shift 52*i + 2*j
            ks_s[t * C2:(t + 1) * C2, :F1] = p1_s[:, s:s + F1]
        z = jnp.dot(w3_ref[...], ks_s[...],
                    preferred_element_type=jnp.float32) + b3_ref[...]   # (10, PAD)

        # ---- maxpool 2x2 + ReLU over all 10 channels at once (taps 0,2,52,54)
        pooled = jnp.maximum(jnp.maximum(z[:, 0:F1], z[:, 2:F1 + 2]),
                             jnp.maximum(z[:, 2 * H1:F1 + 2 * H1],
                                         z[:, 2 * H1 + 2:F1 + 2 * H1 + 2]))
        pooled = jnp.maximum(pooled, 0.0).astype(jnp.bfloat16)          # (10, 676)

        # ---- flatten + fc1: ONE (10,676)@(676,1280) matmul against the
        # block-expanded fc1 weight (zero except at the 9 valid flat positions,
        # so the matmul performs the gather); sum the 10 lane-aligned diagonal
        # 128-wide blocks (channel c's contribution lives at lanes [c*128,(c+1)*128)).
        r = jnp.dot(pooled, fw1_ref[...], preferred_element_type=jnp.float32)
        h = fb1_ref[...]                                      # (1, 128), zero beyond 32
        for c in range(C3):
            h = h + r[c:c + 1, c * FCP:(c + 1) * FCP]
        h = jnp.maximum(h, 0.0)

        # ---- fc2 -> theta ----
        theta = jnp.dot(h, fw2_ref[...],
                        preferred_element_type=jnp.float32) + fb2_ref[...]
        o_ref[b] = theta                                      # (1, 6)


# ------------------------------- wrapper ------------------------------------

def _pick_block(n):
    """Samples per grid step: <=4 (v7x VMEM-safe), divides n, grid length >=2
    when possible (keeps both v7x TensorCores busy for small n)."""
    for b in (4, 2, 1):
        if n % b == 0 and n // b >= 2:
            return b
    return 1


@jax.jit
def localization_forward(x, p):
    """x: (N, 1024, 26, 26) float32 -> theta: (N, 2, 3)."""
    N = x.shape[0]
    B = _pick_block(N)
    xf = x.reshape(N, CIN, F1)                                # stays f32; cast in-kernel

    w1 = p["w1"].reshape(C1, CIN).astype(jnp.bfloat16)
    b1 = p["b1"].reshape(C1, 1).astype(jnp.float32)
    # tap-stacked conv2 weight: rows [8t:8t+8] = w2[:, :, i, j], t = 7*i + j
    w2s = p["w2"].transpose(2, 3, 0, 1).reshape(T2, C1).astype(jnp.bfloat16)
    b2 = p["b2"].reshape(C2, 1).astype(jnp.float32)
    # K-stacked conv3 weight: cols [8t:8t+8] = w3[:, :, i, j], t = 5*i + j
    w3s = p["w3"].transpose(0, 2, 3, 1).reshape(C3, T3).astype(jnp.bfloat16)
    b3 = p["b3"].reshape(C3, 1).astype(jnp.float32)

    # fc1 weight expanded over the flat 676 domain, one 128-lane block per
    # channel: nonzero only at the 9 flat positions 104*ph + 4*pw that carry
    # the valid pooled 3x3 activations (flatten order c*9 + ph*3 + pw).
    idx = np.array([4 * H1 * ph + 4 * pw for ph in range(3) for pw in range(3)],
                   np.int32)
    fw1_k = p["fw1"].reshape(FC1, C3, 9).transpose(2, 1, 0)   # (9, 10, 32): [k, c, o]
    fw1_blk = (jnp.zeros((F1, C3, FCP), jnp.float32)
               .at[idx, :, :FC1].set(fw1_k)
               .reshape(F1, C3 * FCP).astype(jnp.bfloat16))   # (676, 1280)
    fb1 = jnp.zeros((1, FCP), jnp.float32).at[0, :FC1].set(p["fb1"])
    fw2 = jnp.zeros((FCP, FC2), jnp.float32).at[:FC1, :].set(p["fw2"].T)
    fb2 = p["fb2"].reshape(1, FC2).astype(jnp.float32)

    theta = pl.pallas_call(
        _locnet_kernel,
        out_shape=jax.ShapeDtypeStruct((N, 1, FC2), jnp.float32),
        grid=(N // B,),
        in_specs=[
            pl.BlockSpec((B, CIN, F1), lambda n: (n, 0, 0)),         # x (f32)
            pl.BlockSpec((C1, CIN), lambda n: (0, 0)),               # w1
            pl.BlockSpec((C1, 1), lambda n: (0, 0)),                 # b1
            pl.BlockSpec((T2, C1), lambda n: (0, 0)),                # w2 (tap-stacked)
            pl.BlockSpec((C2, 1), lambda n: (0, 0)),                 # b2
            pl.BlockSpec((C3, T3), lambda n: (0, 0)),                # w3 (K-stacked)
            pl.BlockSpec((C3, 1), lambda n: (0, 0)),                 # b3
            pl.BlockSpec((F1, C3 * FCP), lambda n: (0, 0)),          # fc1 (block-expanded)
            pl.BlockSpec((1, FCP), lambda n: (0, 0)),                # fb1 (padded)
            pl.BlockSpec((FCP, FC2), lambda n: (0, 0)),              # fc2 (padded)
            pl.BlockSpec((1, FC2), lambda n: (0, 0)),                # fb2
        ],
        out_specs=pl.BlockSpec((B, 1, FC2), lambda n: (n, 0, 0)),
        scratch_shapes=[
            pltpu.VMEM((C1, PAD), jnp.bfloat16),   # conv1 activation (padded flat)
            pltpu.VMEM((T2, PAD), jnp.float32),    # conv2 per-tap partial sums
            pltpu.VMEM((C2, PAD), jnp.float32),    # conv2 pre-pool
            pltpu.VMEM((C2, PAD), jnp.bfloat16),   # pool1 activation
            pltpu.VMEM((T3, PAD), jnp.bfloat16),   # conv3 K-stacked operand
        ],
        compiler_params=pltpu.CompilerParams(
            dimension_semantics=("parallel",),
            vmem_limit_bytes=48 * 1024 * 1024),
    )(xf, w1, b1, w2s, b2, w3s, b3, fw1_blk, fb1, fw2, fb2)
    return theta.reshape(N, 2, 3)


# ----------------------------- model params ---------------------------------

def init_params(key):
    ks = jax.random.split(key, 10)

    def u(k, shape, fan_in):
        bound = 1.0 / float(np.sqrt(fan_in))
        return jax.random.uniform(k, shape, jnp.float32, -bound, bound)

    return {
        # nn.Conv2d(1024, 64, 1)
        "w1": u(ks[0], (64, 1024, 1, 1), 1024), "b1": u(ks[1], (64,), 1024),
        # nn.Conv2d(64, 8, 7)
        "w2": u(ks[2], (8, 64, 7, 7), 64 * 49), "b2": u(ks[3], (8,), 64 * 49),
        # nn.Conv2d(8, 10, 5)
        "w3": u(ks[4], (10, 8, 5, 5), 8 * 25),  "b3": u(ks[5], (10,), 8 * 25),
        # nn.Linear(90, 32), nn.Linear(32, 6)   (torch Linear weight: (out, in))
        "fw1": u(ks[6], (32, 90), 90),          "fb1": u(ks[7], (32,), 90),
        "fw2": u(ks[8], (6, 32), 32),           "fb2": u(ks[9], (6,), 32),
    }


# ------------------------------ pure-JAX ref ---------------------------------

def ref_forward(x, p):
    dn = ("NCHW", "OIHW", "NCHW")

    def conv(x, w, b):
        y = jax.lax.conv_general_dilated(x, w, (1, 1), "VALID", dimension_numbers=dn)
        return y + b[None, :, None, None]

    def pool(x):
        return jax.lax.reduce_window(x, -jnp.inf, jax.lax.max,
                                     (1, 1, 2, 2), (1, 1, 2, 2), "VALID")

    y = conv(x, p["w1"], p["b1"])
    y = conv(y, p["w2"], p["b2"])
    y = jax.nn.relu(pool(y))
    y = conv(y, p["w3"], p["b3"])
    y = jax.nn.relu(pool(y))
    xs = y.reshape(x.shape[0], 90)
    h = jax.nn.relu(xs @ p["fw1"].T + p["fb1"])
    theta = h @ p["fw2"].T + p["fb2"]
    return theta.reshape(x.shape[0], 2, 3)


if __name__ == "__main__":
    key = jax.random.PRNGKey(0)
    kx, kp = jax.random.split(key)
    # Smallest shape consistent with the module (flatten to 10*3*3 fixes 26x26).
    x = jax.random.normal(kx, (2, 1024, 26, 26), jnp.float32)
    params = init_params(kp)

    theta = jax.block_until_ready(localization_forward(x, params))
    assert theta.shape == (2, 2, 3) and theta.dtype == jnp.float32

    ref = jax.block_until_ready(ref_forward(x, params))
    # bf16 MXU operands with f32 accumulation vs full-f32 XLA reference
    np.testing.assert_allclose(np.asarray(theta), np.asarray(ref), rtol=2e-2, atol=2e-2)

    print("KERNEL_OK")
</pallas_src>

<mosaic_0001>
module attributes {stable_mosaic.version = 11 : i64} {
  func.func @_locnet_kernel(%arg0: i32, %arg1: memref<1x1024x676xf32, #tpu.memory_space<vmem>>, %arg2: memref<64x1024xbf16, #tpu.memory_space<vmem>>, %arg3: memref<64x1xf32, #tpu.memory_space<vmem>>, %arg4: memref<392x64xbf16, #tpu.memory_space<vmem>>, %arg5: memref<8x1xf32, #tpu.memory_space<vmem>>, %arg6: memref<10x200xbf16, #tpu.memory_space<vmem>>, %arg7: memref<10x1xf32, #tpu.memory_space<vmem>>, %arg8: memref<676x1280xbf16, #tpu.memory_space<vmem>>, %arg9: memref<1x128xf32, #tpu.memory_space<vmem>>, %arg10: memref<128x6xf32, #tpu.memory_space<vmem>>, %arg11: memref<1x6xf32, #tpu.memory_space<vmem>>, %arg12: memref<1x1x6xf32, #tpu.memory_space<vmem>>, %arg13: memref<64x896xbf16, #tpu.memory_space<vmem>>, %arg14: memref<392x896xf32, #tpu.memory_space<vmem>>, %arg15: memref<8x896xf32, #tpu.memory_space<vmem>>, %arg16: memref<8x896xbf16, #tpu.memory_space<vmem>>, %arg17: memref<200x896xbf16, #tpu.memory_space<vmem>>) attributes {dimension_semantics = [#tpu.dimension_semantics<parallel>], iteration_bounds = array<i64: 2>, scalar_prefetch = 0 : i64, scratch_operands = 5 : i64, tpu.core_type = #tpu.core_type<tc>, window_params = [{transform_indices = @transform_0, window_bounds = array<i64: 1, 1024, 676>}, {pipeline_mode = #tpu.pipeline_mode<synchronous>, transform_indices = @transform_1, window_bounds = array<i64: 64, 1024>}, {pipeline_mode = #tpu.pipeline_mode<synchronous>, transform_indices = @transform_2, window_bounds = array<i64: 64, 1>}, {pipeline_mode = #tpu.pipeline_mode<synchronous>, transform_indices = @transform_3, window_bounds = array<i64: 392, 64>}, {pipeline_mode = #tpu.pipeline_mode<synchronous>, transform_indices = @transform_4, window_bounds = array<i64: 8, 1>}, {pipeline_mode = #tpu.pipeline_mode<synchronous>, transform_indices = @transform_5, window_bounds = array<i64: 10, 200>}, {pipeline_mode = #tpu.pipeline_mode<synchronous>, transform_indices = @transform_6, window_bounds = array<i64: 10, 1>}, {pipeline_mode = #tpu.pipeline_mode<synchronous>, transform_indices = @transform_7, window_bounds = array<i64: 676, 1280>}, {pipeline_mode = #tpu.pipeline_mode<synchronous>, transform_indices = @transform_8, window_bounds = array<i64: 1, 128>}, {pipeline_mode = #tpu.pipeline_mode<synchronous>, transform_indices = @transform_9, window_bounds = array<i64: 128, 6>}, {pipeline_mode = #tpu.pipeline_mode<synchronous>, transform_indices = @transform_10, window_bounds = array<i64: 1, 6>}, {transform_indices = @transform_11, window_bounds = array<i64: 1, 1, 6>}]} {
    %cst = arith.constant 0.000000e+00 : bf16
    %0 = vector.broadcast %cst : bf16 to vector<64x256xbf16>
    %c0 = arith.constant 0 : index
    %c640 = arith.constant 640 : index
    %1 = vector.load %arg13[%c0, %c640] : memref<64x896xbf16, #tpu.memory_space<vmem>>, vector<64x256xbf16>
    tpu.vector_store %arg13[%c0, %c640], %0 {strides = array<i32>} : memref<64x896xbf16, #tpu.memory_space<vmem>>, vector<64x256xbf16>,
    %cst_0 = arith.constant 0.000000e+00 : f32
    %2 = vector.broadcast %cst_0 : f32 to vector<8x256xf32>
    %c0_1 = arith.constant 0 : index
    %c640_2 = arith.constant 640 : index
    %3 = vector.load %arg15[%c0_1, %c640_2] : memref<8x896xf32, #tpu.memory_space<vmem>>, vector<8x256xf32>
    tpu.vector_store %arg15[%c0_1, %c640_2], %2 {strides = array<i32>} : memref<8x896xf32, #tpu.memory_space<vmem>>, vector<8x256xf32>,
    %cst_3 = arith.constant 0.000000e+00 : bf16
    %4 = vector.broadcast %cst_3 : bf16 to vector<8x256xbf16>
    %c0_4 = arith.constant 0 : index
    %c640_5 = arith.constant 640 : index
    %5 = vector.load %arg16[%c0_4, %c640_5] : memref<8x896xbf16, #tpu.memory_space<vmem>>, vector<8x256xbf16>
    tpu.vector_store %arg16[%c0_4, %c640_5], %4 {strides = array<i32>} : memref<8x896xbf16, #tpu.memory_space<vmem>>, vector<8x256xbf16>,
    %cst_6 = arith.constant 0.000000e+00 : bf16
    %6 = vector.broadcast %cst_6 : bf16 to vector<200x256xbf16>
    %c0_7 = arith.constant 0 : index
    %c640_8 = arith.constant 640 : index
    %7 = vector.load %arg17[%c0_7, %c640_8] : memref<200x896xbf16, #tpu.memory_space<vmem>>, vector<200x256xbf16>
    tpu.vector_store %arg17[%c0_7, %c640_8], %6 {strides = array<i32>} : memref<200x896xbf16, #tpu.memory_space<vmem>>, vector<200x256xbf16>,
    %c0_9 = arith.constant 0 : index
    %c0_10 = arith.constant 0 : index
    %c0_11 = arith.constant 0 : index
    %8 = vector.load %arg1[%c0_9, %c0_10, %c0_11] : memref<1x1024x676xf32, #tpu.memory_space<vmem>>, vector<1x1024x676xf32>
    %9 = vector.shape_cast %8 : vector<1x1024x676xf32> to vector<1024x676xf32>
    %10 = arith.truncf %9 : vector<1024x676xf32> to vector<1024x676xbf16>
    %c0_12 = arith.constant 0 : index
    %c0_13 = arith.constant 0 : index
    %11 = vector.load %arg2[%c0_12, %c0_13] : memref<64x1024xbf16, #tpu.memory_space<vmem>>, vector<64x1024xbf16>
    %cst_14 = arith.constant dense<0.000000e+00> : vector<64x676xf32>
    %12 = tpu.matmul %11, %10, %cst_14 {dimension_numbers = #tpu.dot_dimension_numbers<[1], [0], [0], [1], [0, 0, 1, 1], [], []>} : vector<64x1024xbf16>, vector<1024x676xbf16>, vector<64x676xf32> -> vector<64x676xf32>
    %c0_15 = arith.constant 0 : index
    %c0_16 = arith.constant 0 : index
    %13 = vector.load %arg3[%c0_15, %c0_16] : memref<64x1xf32, #tpu.memory_space<vmem>>, vector<64x1xf32>
    %14 = vector.broadcast %13 : vector<64x1xf32> to vector<64x676xf32>
    %15 = arith.addf %12, %14 : vector<64x676xf32>
    %16 = arith.truncf %15 : vector<64x676xf32> to vector<64x676xbf16>
    %c0_17 = arith.constant 0 : index
    %c0_18 = arith.constant 0 : index
    %17 = vector.load %arg13[%c0_17, %c0_18] : memref<64x896xbf16, #tpu.memory_space<vmem>>, vector<64x676xbf16>
    tpu.vector_store %arg13[%c0_17, %c0_18], %16 {strides = array<i32>} : memref<64x896xbf16, #tpu.memory_space<vmem>>, vector<64x676xbf16>,
    %c0_19 = arith.constant 0 : index
    %c0_20 = arith.constant 0 : index
    %18 = vector.load %arg4[%c0_19, %c0_20] : memref<392x64xbf16, #tpu.memory_space<vmem>>, vector<392x64xbf16>
    %c0_21 = arith.constant 0 : index
    %c0_22 = arith.constant 0 : index
    %19 = vector.load %arg13[%c0_21, %c0_22] : memref<64x896xbf16, #tpu.memory_space<vmem>>, vector<64x896xbf16>
    %cst_23 = arith.constant dense<0.000000e+00> : vector<392x896xf32>
    %20 = tpu.matmul %18, %19, %cst_23 {dimension_numbers = #tpu.dot_dimension_numbers<[1], [0], [0], [1], [0, 0, 1, 1], [], []>} : vector<392x64xbf16>, vector<64x896xbf16>, vector<392x896xf32> -> vector<392x896xf32>
    %c0_24 = arith.constant 0 : index
    %c0_25 = arith.constant 0 : index
    %21 = vector.load %arg14[%c0_24, %c0_25] : memref<392x896xf32, #tpu.memory_space<vmem>>, vector<392x896xf32>
    tpu.vector_store %arg14[%c0_24, %c0_25], %20 {strides = array<i32>} : memref<392x896xf32, #tpu.memory_space<vmem>>, vector<392x896xf32>,
    %cst_26 = arith.constant 0.000000e+00 : f32
    %22 = vector.broadcast %cst_26 : f32 to vector<8x676xf32>
    %c0_27 = arith.constant 0 : index
    %c0_28 = arith.constant 0 : index
    %23 = vector.load %arg14[%c0_27, %c0_28] : memref<392x896xf32, #tpu.memory_space<vmem>>, vector<8x676xf32>
    %24 = arith.addf %22, %23 : vector<8x676xf32>
    %c8 = arith.constant 8 : index
    %c1 = arith.constant 1 : index
    %25 = vector.load %arg14[%c8, %c1] : memref<392x896xf32, #tpu.memory_space<vmem>>, vector<8x676xf32>
    %26 = arith.addf %24, %25 : vector<8x676xf32>
    %c16 = arith.constant 16 : index
    %c2 = arith.constant 2 : index
    %27 = vector.load %arg14[%c16, %c2] : memref<392x896xf32, #tpu.memory_space<vmem>>, vector<8x676xf32>
    %28 = arith.addf %26, %27 : vector<8x676xf32>
    %c24 = arith.constant 24 : index
    %c3 = arith.constant 3 : index
    %29 = vector.load %arg14[%c24, %c3] : memref<392x896xf32, #tpu.memory_space<vmem>>, vector<8x676xf32>
    %30 = arith.addf %28, %29 : vector<8x676xf32>
    %c32 = arith.constant 32 : index
    %c4 = arith.constant 4 : index
    %31 = vector.load %arg14[%c32, %c4] : memref<392x896xf32, #tpu.memory_space<vmem>>, vector<8x676xf32>
    %32 = arith.addf %30, %31 : vector<8x676xf32>
    %c40 = arith.constant 40 : index
    %c5 = arith.constant 5 : index
    %33 = vector.load %arg14[%c40, %c5] : memref<392x896xf32, #tpu.memory_space<vmem>>, vector<8x676xf32>
    %34 = arith.addf %32, %33 : vector<8x676xf32>
    %c48 = arith.constant 48 : index
    %c6 = arith.constant 6 : index
    %35 = vector.load %arg14[%c48, %c6] : memref<392x896xf32, #tpu.memory_space<vmem>>, vector<8x676xf32>
    %36 = arith.addf %34, %35 : vector<8x676xf32>
    %c56 = arith.constant 56 : index
    %c26 = arith.constant 26 : index
    %37 = vector.load %arg14[%c56, %c26] : memref<392x896xf32, #tpu.memory_space<vmem>>, vector<8x676xf32>
    %38 = arith.addf %36, %37 : vector<8x676xf32>
    %c64 = arith.constant 64 : index
    %c27 = arith.constant 27 : index
    %39 = vector.load %arg14[%c64, %c27] : memref<392x896xf32, #tpu.memory_space<vmem>>, vector<8x676xf32>
    %40 = arith.addf %38, %39 : vector<8x676xf32>
    %c72 = arith.constant 72 : index
    %c28 = arith.constant 28 : index
    %41 = vector.load %arg14[%c72, %c28] : memref<392x896xf32, #tpu.memory_space<vmem>>, vector<8x676xf32>
    %42 = arith.addf %40, %41 : vector<8x676xf32>
    %c80 = arith.constant 80 : index
    %c29 = arith.constant 29 : index
    %43 = vector.load %arg14[%c80, %c29] : memref<392x896xf32, #tpu.memory_space<vmem>>, vector<8x676xf32>
    %44 = arith.addf %42, %43 : vector<8x676xf32>
    %c88 = arith.constant 88 : index
    %c30 = arith.constant 30 : index
    %45 = vector.load %arg14[%c88, %c30] : memref<392x896xf32, #tpu.memory_space<vmem>>, vector<8x676xf32>
    %46 = arith.addf %44, %45 : vector<8x676xf32>
    %c96 = arith.constant 96 : index
    %c31 = arith.constant 31 : index
    %47 = vector.load %arg14[%c96, %c31] : memref<392x896xf32, #tpu.memory_space<vmem>>, vector<8x676xf32>
    %48 = arith.addf %46, %47 : vector<8x676xf32>
    %c104 = arith.constant 104 : index
    %c32_29 = arith.constant 32 : index
    %49 = vector.load %arg14[%c104, %c32_29] : memref<392x896xf32, #tpu.memory_space<vmem>>, vector<8x676xf32>
    %50 = arith.addf %48, %49 : vector<8x676xf32>
    %c112 = arith.constant 112 : index
    %c52 = arith.constant 52 : index
    %51 = vector.load %arg14[%c112, %c52] : memref<392x896xf32, #tpu.memory_space<vmem>>, vector<8x676xf32>
    %52 = arith.addf %50, %51 : vector<8x676xf32>
    %c120 = arith.constant 120 : index
    %c53 = arith.constant 53 : index
    %53 = vector.load %arg14[%c120, %c53] : memref<392x896xf32, #tpu.memory_space<vmem>>, vector<8x676xf32>
    %54 = arith.addf %52, %53 : vector<8x676xf32>
    %c128 = arith.constant 128 : index
    %c54 = arith.constant 54 : index
    %55 = vector.load %arg14[%c128, %c54] : memref<392x896xf32, #tpu.memory_space<vmem>>, vector<8x676xf32>
    %56 = arith.addf %54, %55 : vector<8x676xf32>
    %c136 = arith.constant 136 : index
    %c55 = arith.constant 55 : index
    %57 = vector.load %arg14[%c136, %c55] : memref<392x896xf32, #tpu.memory_space<vmem>>, vector<8x676xf32>
    %58 = arith.addf %56, %57 : vector<8x676xf32>
    %c144 = arith.constant 144 : index
    %c56_30 = arith.constant 56 : index
    %59 = vector.load %arg14[%c144, %c56_30] : memref<392x896xf32, #tpu.memory_space<vmem>>, vector<8x676xf32>
    %60 = arith.addf %58, %59 : vector<8x676xf32>
    %c152 = arith.constant 152 : index
    %c57 = arith.constant 57 : index
    %61 = vector.load %arg14[%c152, %c57] : memref<392x896xf32, #tpu.memory_space<vmem>>, vector<8x676xf32>
    %62 = arith.addf %60, %61 : vector<8x676xf32>
    %c160 = arith.constant 160 : index
    %c58 = arith.constant 58 : index
    %63 = vector.load %arg14[%c160, %c58] : memref<392x896xf32, #tpu.memory_space<vmem>>, vector<8x676xf32>
    %64 = arith.addf %62, %63 : vector<8x676xf32>
    %c168 = arith.constant 168 : index
    %c78 = arith.constant 78 : index
    %65 = vector.load %arg14[%c168, %c78] : memref<392x896xf32, #tpu.memory_space<vmem>>, vector<8x676xf32>
    %66 = arith.addf %64, %65 : vector<8x676xf32>
    %c176 = arith.constant 176 : index
    %c79 = arith.constant 79 : index
    %67 = vector.load %arg14[%c176, %c79] : memref<392x896xf32, #tpu.memory_space<vmem>>, vector<8x676xf32>
    %68 = arith.addf %66, %67 : vector<8x676xf32>
    %c184 = arith.constant 184 : index
    %c80_31 = arith.constant 80 : index
    %69 = vector.load %arg14[%c184, %c80_31] : memref<392x896xf32, #tpu.memory_space<vmem>>, vector<8x676xf32>
    %70 = arith.addf %68, %69 : vector<8x676xf32>
    %c192 = arith.constant 192 : index
    %c81 = arith.constant 81 : index
    %71 = vector.load %arg14[%c192, %c81] : memref<392x896xf32, #tpu.memory_space<vmem>>, vector<8x676xf32>
    %72 = arith.addf %70, %71 : vector<8x676xf32>
    %c200 = arith.constant 200 : index
    %c82 = arith.constant 82 : index
    %73 = vector.load %arg14[%c200, %c82] : memref<392x896xf32, #tpu.memory_space<vmem>>, vector<8x676xf32>
    %74 = arith.addf %72, %73 : vector<8x676xf32>
    %c208 = arith.constant 208 : index
    %c83 = arith.constant 83 : index
    %75 = vector.load %arg14[%c208, %c83] : memref<392x896xf32, #tpu.memory_space<vmem>>, vector<8x676xf32>
    %76 = arith.addf %74, %75 : vector<8x676xf32>
    %c216 = arith.constant 216 : index
    %c84 = arith.constant 84 : index
    %77 = vector.load %arg14[%c216, %c84] : memref<392x896xf32, #tpu.memory_space<vmem>>, vector<8x676xf32>
    %78 = arith.addf %76, %77 : vector<8x676xf32>
    %c224 = arith.constant 224 : index
    %c104_32 = arith.constant 104 : index
    %79 = vector.load %arg14[%c224, %c104_32] : memref<392x896xf32, #tpu.memory_space<vmem>>, vector<8x676xf32>
    %80 = arith.addf %78, %79 : vector<8x676xf32>
    %c232 = arith.constant 232 : index
    %c105 = arith.constant 105 : index
    %81 = vector.load %arg14[%c232, %c105] : memref<392x896xf32, #tpu.memory_space<vmem>>, vector<8x676xf32>
    %82 = arith.addf %80, %81 : vector<8x676xf32>
    %c240 = arith.constant 240 : index
    %c106 = arith.constant 106 : index
    %83 = vector.load %arg14[%c240, %c106] : memref<392x896xf32, #tpu.memory_space<vmem>>, vector<8x676xf32>
    %84 = arith.addf %82, %83 : vector<8x676xf32>
    %c248 = arith.constant 248 : index
    %c107 = arith.constant 107 : index
    %85 = vector.load %arg14[%c248, %c107] : memref<392x896xf32, #tpu.memory_space<vmem>>, vector<8x676xf32>
    %86 = arith.addf %84, %85 : vector<8x676xf32>
    %c256 = arith.constant 256 : index
    %c108 = arith.constant 108 : index
    %87 = vector.load %arg14[%c256, %c108] : memref<392x896xf32, #tpu.memory_space<vmem>>, vector<8x676xf32>
    %88 = arith.addf %86, %87 : vector<8x676xf32>
    %c264 = arith.constant 264 : index
    %c109 = arith.constant 109 : index
    %89 = vector.load %arg14[%c264, %c109] : memref<392x896xf32, #tpu.memory_space<vmem>>, vector<8x676xf32>
    %90 = arith.addf %88, %89 : vector<8x676xf32>
    %c272 = arith.constant 272 : index
    %c110 = arith.constant 110 : index
    %91 = vector.load %arg14[%c272, %c110] : memref<392x896xf32, #tpu.memory_space<vmem>>, vector<8x676xf32>
    %92 = arith.addf %90, %91 : vector<8x676xf32>
    %c280 = arith.constant 280 : index
    %c130 = arith.constant 130 : index
    %93 = vector.load %arg14[%c280, %c130] : memref<392x896xf32, #tpu.memory_space<vmem>>, vector<8x676xf32>
    %94 = arith.addf %92, %93 : vector<8x676xf32>
    %c288 = arith.constant 288 : index
    %c131 = arith.constant 131 : index
    %95 = vector.load %arg14[%c288, %c131] : memref<392x896xf32, #tpu.memory_space<vmem>>, vector<8x676xf32>
    %96 = arith.addf %94, %95 : vector<8x676xf32>
    %c296 = arith.constant 296 : index
    %c132 = arith.constant 132 : index
    %97 = vector.load %arg14[%c296, %c132] : memref<392x896xf32, #tpu.memory_space<vmem>>, vector<8x676xf32>
    %98 = arith.addf %96, %97 : vector<8x676xf32>
    %c304 = arith.constant 304 : index
    %c133 = arith.constant 133 : index
    %99 = vector.load %arg14[%c304, %c133] : memref<392x896xf32, #tpu.memory_space<vmem>>, vector<8x676xf32>
    %100 = arith.addf %98, %99 : vector<8x676xf32>
    %c312 = arith.constant 312 : index
    %c134 = arith.constant 134 : index
    %101 = vector.load %arg14[%c312, %c134] : memref<392x896xf32, #tpu.memory_space<vmem>>, vector<8x676xf32>
    %102 = arith.addf %100, %101 : vector<8x676xf32>
    %c320 = arith.constant 320 : index
    %c135 = arith.constant 135 : index
    %103 = vector.load %arg14[%c320, %c135] : memref<392x896xf32, #tpu.memory_space<vmem>>, vector<8x676xf32>
    %104 = arith.addf %102, %103 : vector<8x676xf32>
    %c328 = arith.constant 328 : index
    %c136_33 = arith.constant 136 : index
    %105 = vector.load %arg14[%c328, %c136_33] : memref<392x896xf32, #tpu.memory_space<vmem>>, vector<8x676xf32>
    %106 = arith.addf %104, %105 : vector<8x676xf32>
    %c336 = arith.constant 336 : index
    %c156 = arith.constant 156 : index
    %107 = vector.load %arg14[%c336, %c156] : memref<392x896xf32, #tpu.memory_space<vmem>>, vector<8x676xf32>
    %108 = arith.addf %106, %107 : vector<8x676xf32>
    %c344 = arith.constant 344 : index
    %c157 = arith.constant 157 : index
    %109 = vector.load %arg14[%c344, %c157] : memref<392x896xf32, #tpu.memory_space<vmem>>, vector<8x676xf32>
    %110 = arith.addf %108, %109 : vector<8x676xf32>
    %c352 = arith.constant 352 : index
    %c158 = arith.constant 158 : index
    %111 = vector.load %arg14[%c352, %c158] : memref<392x896xf32, #tpu.memory_space<vmem>>, vector<8x676xf32>
    %112 = arith.addf %110, %111 : vector<8x676xf32>
    %c360 = arith.constant 360 : index
    %c159 = arith.constant 159 : index
    %113 = vector.load %arg14[%c360, %c159] : memref<392x896xf32, #tpu.memory_space<vmem>>, vector<8x676xf32>
    %114 = arith.addf %112, %113 : vector<8x676xf32>
    %c368 = arith.constant 368 : index
    %c160_34 = arith.constant 160 : index
    %115 = vector.load %arg14[%c368, %c160_34] : memref<392x896xf32, #tpu.memory_space<vmem>>, vector<8x676xf32>
    %116 = arith.addf %114, %115 : vector<8x676xf32>
    %c376 = arith.constant 376 : index
    %c161 = arith.constant 161 : index
    %117 = vector.load %arg14[%c376, %c161] : memref<392x896xf32, #tpu.memory_space<vmem>>, vector<8x676xf32>
    %118 = arith.addf %116, %117 : vector<8x676xf32>
    %c384 = arith.constant 384 : index
    %c162 = arith.constant 162 : index
    %119 = vector.load %arg14[%c384, %c162] : memref<392x896xf32, #tpu.memory_space<vmem>>, vector<8x676xf32>
    %120 = arith.addf %118, %119 : vector<8x676xf32>
    %c0_35 = arith.constant 0 : index
    %c0_36 = arith.constant 0 : index
    %121 = vector.load %arg5[%c0_35, %c0_36] : memref<8x1xf32, #tpu.memory_space<vmem>>, vector<8x1xf32>
    %122 = vector.broadcast %121 : vector<8x1xf32> to vector<8x676xf32>
    %123 = arith.addf %120, %122 : vector<8x676xf32>
    %c0_37 = arith.constant 0 : index
    %c0_38 = arith.constant 0 : index
    %124 = vector.load %arg15[%c0_37, %c0_38] : memref<8x896xf32, #tpu.memory_space<vmem>>, vector<8x676xf32>
    tpu.vector_store %arg15[%c0_37, %c0_38], %123 {strides = array<i32>} : memref<8x896xf32, #tpu.memory_space<vmem>>, vector<8x676xf32>,
    %c0_39 = arith.constant 0 : index
    %c0_40 = arith.constant 0 : index
    %125 = vector.load %arg15[%c0_39, %c0_40] : memref<8x896xf32, #tpu.memory_space<vmem>>, vector<8x676xf32>
    %c0_41 = arith.constant 0 : index
    %c1_42 = arith.constant 1 : index
    %126 = vector.load %arg15[%c0_41, %c1_42] : memref<8x896xf32, #tpu.memory_space<vmem>>, vector<8x676xf32>
    %127 = arith.maximumf %125, %126 : vector<8x676xf32>
    %c0_43 = arith.constant 0 : index
    %c26_44 = arith.constant 26 : index
    %128 = vector.load %arg15[%c0_43, %c26_44] : memref<8x896xf32, #tpu.memory_space<vmem>>, vector<8x676xf32>
    %c0_45 = arith.constant 0 : index
    %c27_46 = arith.constant 27 : index
    %129 = vector.load %arg15[%c0_45, %c27_46] : memref<8x896xf32, #tpu.memory_space<vmem>>, vector<8x676xf32>
    %130 = arith.maximumf %128, %129 : vector<8x676xf32>
    %131 = arith.maximumf %127, %130 : vector<8x676xf32>
    %cst_47 = arith.constant 0.000000e+00 : f32
    %132 = vector.broadcast %cst_47 : f32 to vector<8x676xf32>
    %133 = arith.maximumf %131, %132 : vector<8x676xf32>
    %134 = arith.truncf %133 : vector<8x676xf32> to vector<8x676xbf16>
    %c0_48 = arith.constant 0 : index
    %c0_49 = arith.constant 0 : index
    %135 = vector.load %arg16[%c0_48, %c0_49] : memref<8x896xbf16, #tpu.memory_space<vmem>>, vector<8x676xbf16>
    tpu.vector_store %arg16[%c0_48, %c0_49], %134 {strides = array<i32>} : memref<8x896xbf16, #tpu.memory_space<vmem>>, vector<8x676xbf16>,
    %c0_50 = arith.constant 0 : index
    %c0_51 = arith.constant 0 : index
    %136 = vector.load %arg16[%c0_50, %c0_51] : memref<8x896xbf16, #tpu.memory_space<vmem>>, vector<8x676xbf16>
    %c0_52 = arith.constant 0 : index
    %c0_53 = arith.constant 0 : index
    %137 = vector.load %arg17[%c0_52, %c0_53] : memref<200x896xbf16, #tpu.memory_space<vmem>>, vector<8x676xbf16>
    tpu.vector_store %arg17[%c0_52, %c0_53], %136 {strides = array<i32>} : memref<200x896xbf16, #tpu.memory_space<vmem>>, vector<8x676xbf16>,
    %c0_54 = arith.constant 0 : index
    %c2_55 = arith.constant 2 : index
    %138 = vector.load %arg16[%c0_54, %c2_55] : memref<8x896xbf16, #tpu.memory_space<vmem>>, vector<8x676xbf16>
    %c8_56 = arith.constant 8 : index
    %c0_57 = arith.constant 0 : index
    %139 = vector.load %arg17[%c8_56, %c0_57] : memref<200x896xbf16, #tpu.memory_space<vmem>>, vector<8x676xbf16>
    tpu.vector_store %arg17[%c8_56, %c0_57], %138 {strides = array<i32>} : memref<200x896xbf16, #tpu.memory_space<vmem>>, vector<8x676xbf16>,
    %c0_58 = arith.constant 0 : index
    %c4_59 = arith.constant 4 : index
    %140 = vector.load %arg16[%c0_58, %c4_59] : memref<8x896xbf16, #tpu.memory_space<vmem>>, vector<8x676xbf16>
    %c16_60 = arith.constant 16 : index
    %c0_61 = arith.constant 0 : index
    %141 = vector.load %arg17[%c16_60, %c0_61] : memref<200x896xbf16, #tpu.memory_space<vmem>>, vector<8x676xbf16>
    tpu.vector_store %arg17[%c16_60, %c0_61], %140 {strides = array<i32>} : memref<200x896xbf16, #tpu.memory_space<vmem>>, vector<8x676xbf16>,
    %c0_62 = arith.constant 0 : index
    %c6_63 = arith.constant 6 : index
    %142 = vector.load %arg16[%c0_62, %c6_63] : memref<8x896xbf16, #tpu.memory_space<vmem>>, vector<8x676xbf16>
    %c24_64 = arith.constant 24 : index
    %c0_65 = arith.constant 0 : index
    %143 = vector.load %arg17[%c24_64, %c0_65] : memref<200x896xbf16, #tpu.memory_space<vmem>>, vector<8x676xbf16>
    tpu.vector_store %arg17[%c24_64, %c0_65], %142 {strides = array<i32>} : memref<200x896xbf16, #tpu.memory_space<vmem>>, vector<8x676xbf16>,
    %c0_66 = arith.constant 0 : index
    %c8_67 = arith.constant 8 : index
    %144 = vector.load %arg16[%c0_66, %c8_67] : memref<8x896xbf16, #tpu.memory_space<vmem>>, vector<8x676xbf16>
    %c32_68 = arith.constant 32 : index
    %c0_69 = arith.constant 0 : index
    %145 = vector.load %arg17[%c32_68, %c0_69] : memref<200x896xbf16, #tpu.memory_space<vmem>>, vector<8x676xbf16>
    tpu.vector_store %arg17[%c32_68, %c0_69], %144 {strides = array<i32>} : memref<200x896xbf16, #tpu.memory_space<vmem>>, vector<8x676xbf16>,
    %c0_70 = arith.constant 0 : index
    %c52_71 = arith.constant 52 : index
    %146 = vector.load %arg16[%c0_70, %c52_71] : memref<8x896xbf16, #tpu.memory_space<vmem>>, vector<8x676xbf16>
    %c40_72 = arith.constant 40 : index
    %c0_73 = arith.constant 0 : index
    %147 = vector.load %arg17[%c40_72, %c0_73] : memref<200x896xbf16, #tpu.memory_space<vmem>>, vector<8x676xbf16>
    tpu.vector_store %arg17[%c40_72, %c0_73], %146 {strides = array<i32>} : memref<200x896xbf16, #tpu.memory_space<vmem>>, vector<8x676xbf16>,
    %c0_74 = arith.constant 0 : index
    %c54_75 = arith.constant 54 : index
    %148 = vector.load %arg16[%c0_74, %c54_75] : memref<8x896xbf16, #tpu.memory_space<vmem>>, vector<8x676xbf16>
    %c48_76 = arith.constant 48 : index
    %c0_77 = arith.constant 0 : index
    %149 = vector.load %arg17[%c48_76, %c0_77] : memref<200x896xbf16, #tpu.memory_space<vmem>>, vector<8x676xbf16>
    tpu.vector_store %arg17[%c48_76, %c0_77], %148 {strides = array<i32>} : memref<200x896xbf16, #tpu.memory_space<vmem>>, vector<8x676xbf16>,
    %c0_78 = arith.constant 0 : index
    %c56_79 = arith.constant 56 : index
    %150 = vector.load %arg16[%c0_78, %c56_79] : memref<8x896xbf16, #tpu.memory_space<vmem>>, vector<8x676xbf16>
    %c56_80 = arith.constant 56 : index
    %c0_81 = arith.constant 0 : index
    %151 = vector.load %arg17[%c56_80, %c0_81] : memref<200x896xbf16, #tpu.memory_space<vmem>>, vector<8x676xbf16>
    tpu.vector_store %arg17[%c56_80, %c0_81], %150 {strides = array<i32>} : memref<200x896xbf16, #tpu.memory_space<vmem>>, vector<8x676xbf16>,
    %c0_82 = arith.constant 0 : index
    %c58_83 = arith.constant 58 : index
    %152 = vector.load %arg16[%c0_82, %c58_83] : memref<8x896xbf16, #tpu.memory_space<vmem>>, vector<8x676xbf16>
    %c64_84 = arith.constant 64 : index
    %c0_85 = arith.constant 0 : index
    %153 = vector.load %arg17[%c64_84, %c0_85] : memref<200x896xbf16, #tpu.memory_space<vmem>>, vector<8x676xbf16>
    tpu.vector_store %arg17[%c64_84, %c0_85], %152 {strides = array<i32>} : memref<200x896xbf16, #tpu.memory_space<vmem>>, vector<8x676xbf16>,
    %c0_86 = arith.constant 0 : index
    %c60 = arith.constant 60 : index
    %154 = vector.load %arg16[%c0_86, %c60] : memref<8x896xbf16, #tpu.memory_space<vmem>>, vector<8x676xbf16>
    %c72_87 = arith.constant 72 : index
    %c0_88 = arith.constant 0 : index
    %155 = vector.load %arg17[%c72_87, %c0_88] : memref<200x896xbf16, #tpu.memory_space<vmem>>, vector<8x676xbf16>
    tpu.vector_store %arg17[%c72_87, %c0_88], %154 {strides = array<i32>} : memref<200x896xbf16, #tpu.memory_space<vmem>>, vector<8x676xbf16>,
    %c0_89 = arith.constant 0 : index
    %c104_90 = arith.constant 104 : index
    %156 = vector.load %arg16[%c0_89, %c104_90] : memref<8x896xbf16, #tpu.memory_space<vmem>>, vector<8x676xbf16>
    %c80_91 = arith.constant 80 : index
    %c0_92 = arith.constant 0 : index
    %157 = vector.load %arg17[%c80_91, %c0_92] : memref<200x896xbf16, #tpu.memory_space<vmem>>, vector<8x676xbf16>
    tpu.vector_store %arg17[%c80_91, %c0_92], %156 {strides = array<i32>} : memref<200x896xbf16, #tpu.memory_space<vmem>>, vector<8x676xbf16>,
    %c0_93 = arith.constant 0 : index
    %c106_94 = arith.constant 106 : index
    %158 = vector.load %arg16[%c0_93, %c106_94] : memref<8x896xbf16, #tpu.memory_space<vmem>>, vector<8x676xbf16>
    %c88_95 = arith.constant 88 : index
    %c0_96 = arith.constant 0 : index
    %159 = vector.load %arg17[%c88_95, %c0_96] : memref<200x896xbf16, #tpu.memory_space<vmem>>, vector<8x676xbf16>
    tpu.vector_store %arg17[%c88_95, %c0_96], %158 {strides = array<i32>} : memref<200x896xbf16, #tpu.memory_space<vmem>>, vector<8x676xbf16>,
    %c0_97 = arith.constant 0 : index
    %c108_98 = arith.constant 108 : index
    %160 = vector.load %arg16[%c0_97, %c108_98] : memref<8x896xbf16, #tpu.memory_space<vmem>>, vector<8x676xbf16>
    %c96_99 = arith.constant 96 : index
    %c0_100 = arith.constant 0 : index
    %161 = vector.load %arg17[%c96_99, %c0_100] : memref<200x896xbf16, #tpu.memory_space<vmem>>, vector<8x676xbf16>
    tpu.vector_store %arg17[%c96_99, %c0_100], %160 {strides = array<i32>} : memref<200x896xbf16, #tpu.memory_space<vmem>>, vector<8x676xbf16>,
    %c0_101 = arith.constant 0 : index
    %c110_102 = arith.constant 110 : index
    %162 = vector.load %arg16[%c0_101, %c110_102] : memref<8x896xbf16, #tpu.memory_space<vmem>>, vector<8x676xbf16>
    %c104_103 = arith.constant 104 : index
    %c0_104 = arith.constant 0 : index
    %163 = vector.load %arg17[%c104_103, %c0_104] : memref<200x896xbf16, #tpu.memory_space<vmem>>, vector<8x676xbf16>
    tpu.vector_store %arg17[%c104_103, %c0_104], %162 {strides = array<i32>} : memref<200x896xbf16, #tpu.memory_space<vmem>>, vector<8x676xbf16>,
    %c0_105 = arith.constant 0 : index
    %c112_106 = arith.constant 112 : index
    %164 = vector.load %arg16[%c0_105, %c112_106] : memref<8x896xbf16, #tpu.memory_space<vmem>>, vector<8x676xbf16>
    %c112_107 = arith.constant 112 : index
    %c0_108 = arith.constant 0 : index
    %165 = vector.load %arg17[%c112_107, %c0_108] : memref<200x896xbf16, #tpu.memory_space<vmem>>, vector<8x676xbf16>
    tpu.vector_store %arg17[%c112_107, %c0_108], %164 {strides = array<i32>} : memref<200x896xbf16, #tpu.memory_space<vmem>>, vector<8x676xbf16>,
    %c0_109 = arith.constant 0 : index
    %c156_110 = arith.constant 156 : index
    %166 = vector.load %arg16[%c0_109, %c156_110] : memref<8x896xbf16, #tpu.memory_space<vmem>>, vector<8x676xbf16>
    %c120_111 = arith.constant 120 : index
    %c0_112 = arith.constant 0 : index
    %167 = vector.load %arg17[%c120_111, %c0_112] : memref<200x896xbf16, #tpu.memory_space<vmem>>, vector<8x676xbf16>
    tpu.vector_store %arg17[%c120_111, %c0_112], %166 {strides = array<i32>} : memref<200x896xbf16, #tpu.memory_space<vmem>>, vector<8x676xbf16>,
    %c0_113 = arith.constant 0 : index
    %c158_114 = arith.constant 158 : index
    %168 = vector.load %arg16[%c0_113, %c158_114] : memref<8x896xbf16, #tpu.memory_space<vmem>>, vector<8x676xbf16>
    %c128_115 = arith.constant 128 : index
    %c0_116 = arith.constant 0 : index
    %169 = vector.load %arg17[%c128_115, %c0_116] : memref<200x896xbf16, #tpu.memory_space<vmem>>, vector<8x676xbf16>
    tpu.vector_store %arg17[%c128_115, %c0_116], %168 {strides = array<i32>} : memref<200x896xbf16, #tpu.memory_space<vmem>>, vector<8x676xbf16>,
    %c0_117 = arith.constant 0 : index
    %c160_118 = arith.constant 160 : index
    %170 = vector.load %arg16[%c0_117, %c160_118] : memref<8x896xbf16, #tpu.memory_space<vmem>>, vector<8x676xbf16>
    %c136_119 = arith.constant 136 : index
    %c0_120 = arith.constant 0 : index
    %171 = vector.load %arg17[%c136_119, %c0_120] : memref<200x896xbf16, #tpu.memory_space<vmem>>, vector<8x676xbf16>
    tpu.vector_store %arg17[%c136_119, %c0_120], %170 {strides = array<i32>} : memref<200x896xbf16, #tpu.memory_space<vmem>>, vector<8x676xbf16>,
    %c0_121 = arith.constant 0 : index
    %c162_122 = arith.constant 162 : index
    %172 = vector.load %arg16[%c0_121, %c162_122] : memref<8x896xbf16, #tpu.memory_space<vmem>>, vector<8x676xbf16>
    %c144_123 = arith.constant 144 : index
    %c0_124 = arith.constant 0 : index
    %173 = vector.load %arg17[%c144_123, %c0_124] : memref<200x896xbf16, #tpu.memory_space<vmem>>, vector<8x676xbf16>
    tpu.vector_store %arg17[%c144_123, %c0_124], %172 {strides = array<i32>} : memref<200x896xbf16, #tpu.memory_space<vmem>>, vector<8x676xbf16>,
    %c0_125 = arith.constant 0 : index
    %c164 = arith.constant 164 : index
    %174 = vector.load %arg16[%c0_125, %c164] : memref<8x896xbf16, #tpu.memory_space<vmem>>, vector<8x676xbf16>
    %c152_126 = arith.constant 152 : index
    %c0_127 = arith.constant 0 : index
    %175 = vector.load %arg17[%c152_126, %c0_127] : memref<200x896xbf16, #tpu.memory_space<vmem>>, vector<8x676xbf16>
    tpu.vector_store %arg17[%c152_126, %c0_127], %174 {strides = array<i32>} : memref<200x896xbf16, #tpu.memory_space<vmem>>, vector<8x676xbf16>,
    %c0_128 = arith.constant 0 : index
    %c208_129 = arith.constant 208 : index
    %176 = vector.load %arg16[%c0_128, %c208_129] : memref<8x896xbf16, #tpu.memory_space<vmem>>, vector<8x676xbf16>
    %c160_130 = arith.constant 160 : index
    %c0_131 = arith.constant 0 : index
    %177 = vector.load %arg17[%c160_130, %c0_131] : memref<200x896xbf16, #tpu.memory_space<vmem>>, vector<8x676xbf16>
    tpu.vector_store %arg17[%c160_130, %c0_131], %176 {strides = array<i32>} : memref<200x896xbf16, #tpu.memory_space<vmem>>, vector<8x676xbf16>,
    %c0_132 = arith.constant 0 : index
    %c210 = arith.constant 210 : index
    %178 = vector.load %arg16[%c0_132, %c210] : memref<8x896xbf16, #tpu.memory_space<vmem>>, vector<8x676xbf16>
    %c168_133 = arith.constant 168 : index
    %c0_134 = arith.constant 0 : index
    %179 = vector.load %arg17[%c168_133, %c0_134] : memref<200x896xbf16, #tpu.memory_space<vmem>>, vector<8x676xbf16>
    tpu.vector_store %arg17[%c168_133, %c0_134], %178 {strides = array<i32>} : memref<200x896xbf16, #tpu.memory_space<vmem>>, vector<8x676xbf16>,
    %c0_135 = arith.constant 0 : index
    %c212 = arith.constant 212 : index
    %180 = vector.load %arg16[%c0_135, %c212] : memref<8x896xbf16, #tpu.memory_space<vmem>>, vector<8x676xbf16>
    %c176_136 = arith.constant 176 : index
    %c0_137 = arith.constant 0 : index
    %181 = vector.load %arg17[%c176_136, %c0_137] : memref<200x896xbf16, #tpu.memory_space<vmem>>, vector<8x676xbf16>
    tpu.vector_store %arg17[%c176_136, %c0_137], %180 {strides = array<i32>} : memref<200x896xbf16, #tpu.memory_space<vmem>>, vector<8x676xbf16>,
    %c0_138 = arith.constant 0 : index
    %c214 = arith.constant 214 : index
    %182 = vector.load %arg16[%c0_138, %c214] : memref<8x896xbf16, #tpu.memory_space<vmem>>, vector<8x676xbf16>
    %c184_139 = arith.constant 184 : index
    %c0_140 = arith.constant 0 : index
    %183 = vector.load %arg17[%c184_139, %c0_140] : memref<200x896xbf16, #tpu.memory_space<vmem>>, vector<8x676xbf16>
    tpu.vector_store %arg17[%c184_139, %c0_140], %182 {strides = array<i32>} : memref<200x896xbf16, #tpu.memory_space<vmem>>, vector<8x676xbf16>,
    %c0_141 = arith.constant 0 : index
    %c216_142 = arith.constant 216 : index
    %184 = vector.load %arg16[%c0_141, %c216_142] : memref<8x896xbf16, #tpu.memory_space<vmem>>, vector<8x676xbf16>
    %c192_143 = arith.constant 192 : index
    %c0_144 = arith.constant 0 : index
    %185 = vector.load %arg17[%c192_143, %c0_144] : memref<200x896xbf16, #tpu.memory_space<vmem>>, vector<8x676xbf16>
    tpu.vector_store %arg17[%c192_143, %c0_144], %184 {strides = array<i32>} : memref<200x896xbf16, #tpu.memory_space<vmem>>, vector<8x676xbf16>,
    %c0_145 = arith.constant 0 : index
    %c0_146 = arith.constant 0 : index
    %186 = vector.load %arg6[%c0_145, %c0_146] : memref<10x200xbf16, #tpu.memory_space<vmem>>, vector<10x200xbf16>
    %c0_147 = arith.constant 0 : index
    %c0_148 = arith.constant 0 : index
    %187 = vector.load %arg17[%c0_147, %c0_148] : memref<200x896xbf16, #tpu.memory_space<vmem>>, vector<200x896xbf16>
    %cst_149 = arith.constant dense<0.000000e+00> : vector<10x896xf32>
    %188 = tpu.matmul %186, %187, %cst_149 {dimension_numbers = #tpu.dot_dimension_numbers<[1], [0], [0], [1], [0, 0, 1, 1], [], []>} : vector<10x200xbf16>, vector<200x896xbf16>, vector<10x896xf32> -> vector<10x896xf32>
    %c0_150 = arith.constant 0 : index
    %c0_151 = arith.constant 0 : index
    %189 = vector.load %arg7[%c0_150, %c0_151] : memref<10x1xf32, #tpu.memory_space<vmem>>, vector<10x1xf32>
    %190 = vector.broadcast %189 : vector<10x1xf32> to vector<10x896xf32>
    %191 = arith.addf %188, %190 : vector<10x896xf32>
    %192 = vector.extract_strided_slice %191 {offsets = [0, 0], sizes = [10, 676], strides = [1, 1]} : vector<10x896xf32> to vector<10x676xf32>
    %193 = vector.extract_strided_slice %191 {offsets = [0, 2], sizes = [10, 676], strides = [1, 1]} : vector<10x896xf32> to vector<10x676xf32>
    %194 = arith.maximumf %192, %193 : vector<10x676xf32>
    %195 = vector.extract_strided_slice %191 {offsets = [0, 52], sizes = [10, 676], strides = [1, 1]} : vector<10x896xf32> to vector<10x676xf32>
    %196 = vector.extract_strided_slice %191 {offsets = [0, 54], sizes = [10, 676], strides = [1, 1]} : vector<10x896xf32> to vector<10x676xf32>
    %197 = arith.maximumf %195, %196 : vector<10x676xf32>
    %198 = arith.maximumf %194, %197 : vector<10x676xf32>
    %cst_152 = arith.constant 0.000000e+00 : f32
    %199 = vector.broadcast %cst_152 : f32 to vector<10x676xf32>
    %200 = arith.maximumf %198, %199 : vector<10x676xf32>
    %201 = arith.truncf %200 : vector<10x676xf32> to vector<10x676xbf16>
    %c0_153 = arith.constant 0 : index
    %c0_154 = arith.constant 0 : index
    %202 = vector.load %arg8[%c0_153, %c0_154] : memref<676x1280xbf16, #tpu.memory_space<vmem>>, vector<676x1280xbf16>
    %cst_155 = arith.constant dense<0.000000e+00> : vector<10x1280xf32>
    %203 = tpu.matmul %201, %202, %cst_155 {dimension_numbers = #tpu.dot_dimension_numbers<[1], [0], [0], [1], [0, 0, 1, 1], [], []>} : vector<10x676xbf16>, vector<676x1280xbf16>, vector<10x1280xf32> -> vector<10x1280xf32>
    %c0_156 = arith.constant 0 : index
    %c0_157 = arith.constant 0 : index
    %204 = vector.load %arg9[%c0_156, %c0_157] : memref<1x128xf32, #tpu.memory_space<vmem>>, vector<1x128xf32>
    %205 = vector.extract_strided_slice %203 {offsets = [0, 0], sizes = [1, 128], strides = [1, 1]} : vector<10x1280xf32> to vector<1x128xf32>
    %206 = arith.addf %204, %205 : vector<1x128xf32>
    %207 = vector.extract_strided_slice %203 {offsets = [1, 128], sizes = [1, 128], strides = [1, 1]} : vector<10x1280xf32> to vector<1x128xf32>
    %208 = arith.addf %206, %207 : vector<1x128xf32>
    %209 = vector.extract_strided_slice %203 {offsets = [2, 256], sizes = [1, 128], strides = [1, 1]} : vector<10x1280xf32> to vector<1x128xf32>
    %210 = arith.addf %208, %209 : vector<1x128xf32>
    %211 = vector.extract_strided_slice %203 {offsets = [3, 384], sizes = [1, 128], strides = [1, 1]} : vector<10x1280xf32> to vector<1x128xf32>
    %212 = arith.addf %210, %211 : vector<1x128xf32>
    %213 = vector.extract_strided_slice %203 {offsets = [4, 512], sizes = [1, 128], strides = [1, 1]} : vector<10x1280xf32> to vector<1x128xf32>
    %214 = arith.addf %212, %213 : vector<1x128xf32>
    %215 = vector.extract_strided_slice %203 {offsets = [5, 640], sizes = [1, 128], strides = [1, 1]} : vector<10x1280xf32> to vector<1x128xf32>
    %216 = arith.addf %214, %215 : vector<1x128xf32>
    %217 = vector.extract_strided_slice %203 {offsets = [6, 768], sizes = [1, 128], strides = [1, 1]} : vector<10x1280xf32> to vector<1x128xf32>
    %218 = arith.addf %216, %217 : vector<1x128xf32>
    %219 = vector.extract_strided_slice %203 {offsets = [7, 896], sizes = [1, 128], strides = [1, 1]} : vector<10x1280xf32> to vector<1x128xf32>
    %220 = arith.addf %218, %219 : vector<1x128xf32>
    %221 = vector.extract_strided_slice %203 {offsets = [8, 1024], sizes = [1, 128], strides = [1, 1]} : vector<10x1280xf32> to vector<1x128xf32>
    %222 = arith.addf %220, %221 : vector<1x128xf32>
    %223 = vector.extract_strided_slice %203 {offsets = [9, 1152], sizes = [1, 128], strides = [1, 1]} : vector<10x1280xf32> to vector<1x128xf32>
    %224 = arith.addf %222, %223 : vector<1x128xf32>
    %cst_158 = arith.constant 0.000000e+00 : f32
    %225 = vector.broadcast %cst_158 : f32 to vector<1x128xf32>
    %226 = arith.maximumf %224, %225 : vector<1x128xf32>
    %c0_159 = arith.constant 0 : index
    %c0_160 = arith.constant 0 : index
    %227 = vector.load %arg10[%c0_159, %c0_160] : memref<128x6xf32, #tpu.memory_space<vmem>>, vector<128x6xf32>
    %cst_161 = arith.constant dense<0.000000e+00> : vector<1x6xf32>
    %228 = tpu.matmul %226, %227, %cst_161 {dimension_numbers = #tpu.dot_dimension_numbers<[1], [0], [0], [1], [0, 0, 1, 1], [], []>} : vector<1x128xf32>, vector<128x6xf32>, vector<1x6xf32> -> vector<1x6xf32>
    %c0_162 = arith.constant 0 : index
    %c0_163 = arith.constant 0 : index
    %229 = vector.load %arg11[%c0_162, %c0_163] : memref<1x6xf32, #tpu.memory_space<vmem>>, vector<1x6xf32>
    %230 = arith.addf %228, %229 : vector<1x6xf32>
    %c0_164 = arith.constant 0 : index
    %c0_165 = arith.constant 0 : index
    %c0_166 = arith.constant 0 : index
    %231 = vector.load %arg12[%c0_164, %c0_165, %c0_166] : memref<1x1x6xf32, #tpu.memory_space<vmem>>, vector<1x1x6xf32>
    %232 = vector.shape_cast %231 : vector<1x1x6xf32> to vector<1x6xf32>
    %233 = vector.shape_cast %230 : vector<1x6xf32> to vector<1x1x6xf32>
    tpu.vector_store %arg12[%c0_164, %c0_165, %c0_166], %233 {strides = array<i32>} : memref<1x1x6xf32, #tpu.memory_space<vmem>>, vector<1x1x6xf32>,
    return
  }
  func.func @transform_0(%arg0: i32) -> (i32, i32, i32) {
    %c0_i32 = arith.constant 0 : i32
    %c0_i32_0 = arith.constant 0 : i32
    %c0_i32_1 = arith.constant 0 : i32
    return %arg0, %c0_i32, %c0_i32_0 : i32, i32, i32
  }
  func.func @transform_1(%arg0: i32) -> (i32, i32) {
    %c0_i32 = arith.constant 0 : i32
    %c0_i32_0 = arith.constant 0 : i32
    %c0_i32_1 = arith.constant 0 : i32
    return %c0_i32, %c0_i32_0 : i32, i32
  }
  func.func @transform_2(%arg0: i32) -> (i32, i32) {
    %c0_i32 = arith.constant 0 : i32
    %c0_i32_0 = arith.constant 0 : i32
    %c0_i32_1 = arith.constant 0 : i32
    return %c0_i32, %c0_i32_0 : i32, i32
  }
  func.func @transform_3(%arg0: i32) -> (i32, i32) {
    %c0_i32 = arith.constant 0 : i32
    %c0_i32_0 = arith.constant 0 : i32
    %c0_i32_1 = arith.constant 0 : i32
    return %c0_i32, %c0_i32_0 : i32, i32
  }
  func.func @transform_4(%arg0: i32) -> (i32, i32) {
    %c0_i32 = arith.constant 0 : i32
    %c0_i32_0 = arith.constant 0 : i32
    %c0_i32_1 = arith.constant 0 : i32
    return %c0_i32, %c0_i32_0 : i32, i32
  }
  func.func @transform_5(%arg0: i32) -> (i32, i32) {
    %c0_i32 = arith.constant 0 : i32
    %c0_i32_0 = arith.constant 0 : i32
    %c0_i32_1 = arith.constant 0 : i32
    return %c0_i32, %c0_i32_0 : i32, i32
  }
  func.func @transform_6(%arg0: i32) -> (i32, i32) {
    %c0_i32 = arith.constant 0 : i32
    %c0_i32_0 = arith.constant 0 : i32
    %c0_i32_1 = arith.constant 0 : i32
    return %c0_i32, %c0_i32_0 : i32, i32
  }
  func.func @transform_7(%arg0: i32) -> (i32, i32) {
    %c0_i32 = arith.constant 0 : i32
    %c0_i32_0 = arith.constant 0 : i32
    %c0_i32_1 = arith.constant 0 : i32
    return %c0_i32, %c0_i32_0 : i32, i32
  }
  func.func @transform_8(%arg0: i32) -> (i32, i32) {
    %c0_i32 = arith.constant 0 : i32
    %c0_i32_0 = arith.constant 0 : i32
    %c0_i32_1 = arith.constant 0 : i32
    return %c0_i32, %c0_i32_0 : i32, i32
  }
  func.func @transform_9(%arg0: i32) -> (i32, i32) {
    %c0_i32 = arith.constant 0 : i32
    %c0_i32_0 = arith.constant 0 : i32
    %c0_i32_1 = arith.constant 0 : i32
    return %c0_i32, %c0_i32_0 : i32, i32
  }
  func.func @transform_10(%arg0: i32) -> (i32, i32) {
    %c0_i32 = arith.constant 0 : i32
    %c0_i32_0 = arith.constant 0 : i32
    %c0_i32_1 = arith.constant 0 : i32
    return %c0_i32, %c0_i32_0 : i32, i32
  }
  func.func @transform_11(%arg0: i32) -> (i32, i32, i32) {
    %c0_i32 = arith.constant 0 : i32
    %c0_i32_0 = arith.constant 0 : i32
    %c0_i32_1 = arith.constant 0 : i32
    return %arg0, %c0_i32, %c0_i32_0 : i32, i32, i32
  }
}

</mosaic_0001>

<llo_original>
// kernel: localization_forward.1
$region0: #{localization_forward.1}
  #allocation0 [shape = 'u32[]', space=smem, size = 0x4, offset = 0x4, fixed_abs, tag = 'smem constant byte address 0x4 - core index']
  #allocation1 [shape = 'u32[144,128]{1,0:T(1,128)}', space=vmem, size = 0x12000, scoped, tag = 'internal scratch']
  #allocation2 [shape = 'bf16[64,896]{1,0:T(16,128)(2,1)}', space=vmem, size = 0x1c000, scoped, tag = 'scratch operand']
  #allocation3 [shape = 'f32[392,896]{1,0:T(8,128)}', space=vmem, size = 0x157000, scoped, tag = 'scratch operand']
  #allocation4 [shape = 'f32[8,896]{1,0:T(8,128)}', space=vmem, size = 0x7000, scoped, tag = 'scratch operand']
  #allocation5 [shape = 'bf16[8,896]{1,0:T(8,128)(2,1)}', space=vmem, size = 0x3800, scoped, tag = 'scratch operand']
  #allocation6 [shape = 'bf16[200,896]{1,0:T(8,128)(2,1)}', space=vmem, size = 0x57800, scoped, tag = 'scratch operand']
  %s0 = inlined_call_operand.vmem [shape: f32[2,1024,676], index: 0, kind: input, shape index: {}]
  %s1 = inlined_call_operand.vmem [shape: bf16[64,1024], index: 1, kind: input, shape index: {}]
  %s2 = inlined_call_operand.vmem [shape: f32[64,1], index: 2, kind: input, shape index: {}]
  %s3 = inlined_call_operand.vmem [shape: bf16[392,64], index: 3, kind: input, shape index: {}]
  %s4 = inlined_call_operand.vmem [shape: f32[8,1], index: 4, kind: input, shape index: {}]
  %s5 = inlined_call_operand.vmem [shape: bf16[10,200], index: 5, kind: input, shape index: {}]
  %s6 = inlined_call_operand.vmem [shape: f32[10,1], index: 6, kind: input, shape index: {}]
  %s7 = inlined_call_operand.vmem [shape: bf16[676,1280], index: 7, kind: input, shape index: {}]
  %s8 = inlined_call_operand.vmem [shape: f32[1,128], index: 8, kind: input, shape index: {}]
  %s9 = inlined_call_operand.vmem [shape: f32[128,6], index: 9, kind: input, shape index: {}]
  %s10 = inlined_call_operand.vmem [shape: f32[1,6], index: 10, kind: input, shape index: {}]
  %s11 = inlined_call_operand.vmem [shape: f32[2,1,6], index: 11, kind: output, shape index: {}]
  %s12 = sld [smem:[#allocation0]]
  $region77: #{localization_forward.1} parent=0
    _
  %s14 = ssub.s32 1, %s12
  %s15 = scalar_select 0, %s14, %s12
  loop: start=0, step=1, limit=4
  $region2: #{localization_forward.1} parent=0 // loop_pre_header
    _
  $region3: #{localization_forward.1} parent=0 // loop_header
    %s17 = sphi 0, %s21
    %p18 = scmp.ge.s32.totalorder %s17, 4
    %s27 = sphi 0, %s29
    %s30 = sphi 0, %s27
    %s31 = sphi 0, %s30
    %s47 = sphi 0, %s31
    %s51 = sphi 0, %s51
    %s53 = sphi 0, %s51
    %s54 = sphi 0, %s53
    %s68 = sphi 0, %s54
    %s72 = sphi 0, %s72
    %s74 = sphi 0, %s72
    %s75 = sphi 0, %s74
    %s89 = sphi 0, %s75
    %s93 = sphi 0, %s93
    %s95 = sphi 0, %s93
    %s96 = sphi 0, %s95
    %s110 = sphi 0, %s96
    %s114 = sphi 0, %s114
    %s116 = sphi 0, %s114
    %s117 = sphi 0, %s116
    %s131 = sphi 0, %s117
    %s135 = sphi 0, %s135
    %s137 = sphi 0, %s135
    %s138 = sphi 0, %s137
    %s152 = sphi 0, %s138
    %s156 = sphi 0, %s156
    %s158 = sphi 0, %s156
    %s159 = sphi 0, %s158
    %s173 = sphi 0, %s159
    %s177 = sphi 0, %s177
    %s179 = sphi 0, %s177
    %s180 = sphi 0, %s179
    %s194 = sphi 0, %s180
    %s198 = sphi 0, %s198
    %s200 = sphi 0, %s198
    %s201 = sphi 0, %s200
    %s215 = sphi 0, %s201
    %s219 = sphi 0, %s219
    %s221 = sphi 0, %s219
    %s222 = sphi 0, %s221
    %s236 = sphi 0, %s222
    %s240 = sphi 0, %s240
    %s242 = sphi 0, %s240
    %s243 = sphi 0, %s242
    %s257 = sphi 0, %s243
    %s263 = sphi 0, %s265
    %s266 = sphi 0, %s263
    %s267 = sphi 0, %s266
    %s283 = sphi 0, %s267
  $region4: #{localization_forward.1} parent=0 // loop_header_branch
    %20 = sbr.rel (%p18) target = $region8
  $region5: #{localization_forward.1} parent=0 // loop_body
    %s22 = ssub.s32 %s17, 1
    %s23 = ssub.s32 %s17, 2
    %s24 = sadd.s32 %s17, 1
    %s25 = ssub.s32 %s17, %s24
    %p26 = scmp.eq.s32.totalorder %s25, 0
    %s28 = sadd.s32 %s27, 1
    %s29 = scalar_select %p26, %s27, %s28
    %p32 = pneg %p26
    %p33 = scmp.eq.s32.totalorder %s17, 1
    %p34 = por %p32, %p33
    %p35 = scmp.ne.s32.totalorder %s27, %s30
    %p36 = scmp.eq.s32.totalorder %s17, 0
    %p37 = por %p35, %p36
    %p38 = scmp.ne.s32.totalorder %s27, %s30
    %p39 = scmp.eq.s32.totalorder %s22, 1
    %p40 = por %p38, %p39
    %p41 = scmp.ne.s32.totalorder %s30, %s31
    %p42 = scmp.eq.s32.totalorder %s22, 0
    %p43 = por %p41, %p42
    %p44 = scmp.ne.s32.totalorder %s30, %s31
    %p45 = scmp.eq.s32.totalorder %s23, 1
    %p46 = por %p44, %p45
    %p48 = scmp.ne.s32.totalorder %s31, %s47
    %p49 = scmp.eq.s32.totalorder %s23, 0
    %p50 = por %p48, %p49
    %s52 = sadd.s32 %s51, 1
    %p55 = scmp.eq.s32.totalorder %s17, 1
    %p56 = scmp.ne.s32.totalorder %s51, %s53
    %p57 = scmp.eq.s32.totalorder %s17, 0
    %p58 = por %p56, %p57
    %p59 = scmp.ne.s32.totalorder %s51, %s53
    %p60 = scmp.eq.s32.totalorder %s22, 1
    %p61 = por %p59, %p60
    %p62 = scmp.ne.s32.totalorder %s53, %s54
    %p63 = scmp.eq.s32.totalorder %s22, 0
    %p64 = por %p62, %p63
    %p65 = scmp.ne.s32.totalorder %s53, %s54
    %p66 = scmp.eq.s32.totalorder %s23, 1
    %p67 = por %p65, %p66
    %p69 = scmp.ne.s32.totalorder %s54, %s68
    %p70 = scmp.eq.s32.totalorder %s23, 0
    %p71 = por %p69, %p70
    %s73 = sadd.s32 %s72, 1
    %p76 = scmp.eq.s32.totalorder %s17, 1
    %p77 = scmp.ne.s32.totalorder %s72, %s74
    %p78 = scmp.eq.s32.totalorder %s17, 0
    %p79 = por %p77, %p78
    %p80 = scmp.ne.s32.totalorder %s72, %s74
    %p81 = scmp.eq.s32.totalorder %s22, 1
    %p82 = por %p80, %p81
    %p83 = scmp.ne.s32.totalorder %s74, %s75
    %p84 = scmp.eq.s32.totalorder %s22, 0
    %p85 = por %p83, %p84
    %p86 = scmp.ne.s32.totalorder %s74, %s75
    %p87 = scmp.eq.s32.totalorder %s23, 1
    %p88 = por %p86, %p87
    %p90 = scmp.ne.s32.totalorder %s75, %s89
    %p91 = scmp.eq.s32.totalorder %s23, 0
    %p92 = por %p90, %p91
    %s94 = sadd.s32 %s93, 1
    %p97 = scmp.eq.s32.totalorder %s17, 1
    %p98 = scmp.ne.s32.totalorder %s93, %s95
    %p99 = scmp.eq.s32.totalorder %s17, 0
    %p100 = por %p98, %p99
    %p101 = scmp.ne.s32.totalorder %s93, %s95
    %p102 = scmp.eq.s32.totalorder %s22, 1
    %p103 = por %p101, %p102
    %p104 = scmp.ne.s32.totalorder %s95, %s96
    %p105 = scmp.eq.s32.totalorder %s22, 0
    %p106 = por %p104, %p105
    %p107 = scmp.ne.s32.totalorder %s95, %s96
    %p108 = scmp.eq.s32.totalorder %s23, 1
    %p109 = por %p107, %p108
    %p111 = scmp.ne.s32.totalorder %s96, %s110
    %p112 = scmp.eq.s32.totalorder %s23, 0
    %p113 = por %p111, %p112
    %s115 = sadd.s32 %s114, 1
    %p118 = scmp.eq.s32.totalorder %s17, 1
    %p119 = scmp.ne.s32.totalorder %s114, %s116
    %p120 = scmp.eq.s32.totalorder %s17, 0
    %p121 = por %p119, %p120
    %p122 = scmp.ne.s32.totalorder %s114, %s116
    %p123 = scmp.eq.s32.totalorder %s22, 1
    %p124 = por %p122, %p123
    %p125 = scmp.ne.s32.totalorder %s116, %s117
    %p126 = scmp.eq.s32.totalorder %s22, 0
    %p127 = por %p125, %p126
    %p128 = scmp.ne.s32.totalorder %s116, %s117
    %p129 = scmp.eq.s32.totalorder %s23, 1
    %p130 = por %p128, %p129
    %p132 = scmp.ne.s32.totalorder %s117, %s131
    %p133 = scmp.eq.s32.totalorder %s23, 0
    %p134 = por %p132, %p133
    %s136 = sadd.s32 %s135, 1
    %p139 = scmp.eq.s32.totalorder %s17, 1
    %p140 = scmp.ne.s32.totalorder %s135, %s137
    %p141 = scmp.eq.s32.totalorder %s17, 0
    %p142 = por %p140, %p141
    %p143 = scmp.ne.s32.totalorder %s135, %s137
    %p144 = scmp.eq.s32.totalorder %s22, 1
    %p145 = por %p143, %p144
    %p146 = scmp.ne.s32.totalorder %s137, %s138
    %p147 = scmp.eq.s32.totalorder %s22, 0
    %p148 = por %p146, %p147
    %p149 = scmp.ne.s32.totalorder %s137, %s138
    %p150 = scmp.eq.s32.totalorder %s23, 1
    %p151 = por %p149, %p150
    %p153 = scmp.ne.s32.totalorder %s138, %s152
    %p154 = scmp.eq.s32.totalorder %s23, 0
    %p155 = por %p153, %p154
    %s157 = sadd.s32 %s156, 1
    %p160 = scmp.eq.s32.totalorder %s17, 1
    %p161 = scmp.ne.s32.totalorder %s156, %s158
    %p162 = scmp.eq.s32.totalorder %s17, 0
    %p163 = por %p161, %p162
    %p164 = scmp.ne.s32.totalorder %s156, %s158
    %p165 = scmp.eq.s32.totalorder %s22, 1
    %p166 = por %p164, %p165
    %p167 = scmp.ne.s32.totalorder %s158, %s159
    %p168 = scmp.eq.s32.totalorder %s22, 0
    %p169 = por %p167, %p168
    %p170 = scmp.ne.s32.totalorder %s158, %s159
    %p171 = scmp.eq.s32.totalorder %s23, 1
    %p172 = por %p170, %p171
    %p174 = scmp.ne.s32.totalorder %s159, %s173
    %p175 = scmp.eq.s32.totalorder %s23, 0
    %p176 = por %p174, %p175
    %s178 = sadd.s32 %s177, 1
    %p181 = scmp.eq.s32.totalorder %s17, 1
    %p182 = scmp.ne.s32.totalorder %s177, %s179
    %p183 = scmp.eq.s32.totalorder %s17, 0
    %p184 = por %p182, %p183
    %p185 = scmp.ne.s32.totalorder %s177, %s179
    %p186 = scmp.eq.s32.totalorder %s22, 1
    %p187 = por %p185, %p186
    %p188 = scmp.ne.s32.totalorder %s179, %s180
    %p189 = scmp.eq.s32.totalorder %s22, 0
    %p190 = por %p188, %p189
    %p191 = scmp.ne.s32.totalorder %s179, %s180
    %p192 = scmp.eq.s32.totalorder %s23, 1
    %p193 = por %p191, %p192
    %p195 = scmp.ne.s32.totalorder %s180, %s194
    %p196 = scmp.eq.s32.totalorder %s23, 0
    %p197 = por %p195, %p196
    %s199 = sadd.s32 %s198, 1
    %p202 = scmp.eq.s32.totalorder %s17, 1
    %p203 = scmp.ne.s32.totalorder %s198, %s200
    %p204 = scmp.eq.s32.totalorder %s17, 0
    %p205 = por %p203, %p204
    %p206 = scmp.ne.s32.totalorder %s198, %s200
    %p207 = scmp.eq.s32.totalorder %s22, 1
    %p208 = por %p206, %p207
    %p209 = scmp.ne.s32.totalorder %s200, %s201
    %p210 = scmp.eq.s32.totalorder %s22, 0
    %p211 = por %p209, %p210
    %p212 = scmp.ne.s32.totalorder %s200, %s201
    %p213 = scmp.eq.s32.totalorder %s23, 1
    %p214 = por %p212, %p213
    %p216 = scmp.ne.s32.totalorder %s201, %s215
    %p217 = scmp.eq.s32.totalorder %s23, 0
    %p218 = por %p216, %p217
    %s220 = sadd.s32 %s219, 1
    %p223 = scmp.eq.s32.totalorder %s17, 1
    %p224 = scmp.ne.s32.totalorder %s219, %s221
    %p225 = scmp.eq.s32.totalorder %s17, 0
    %p226 = por %p224, %p225
    %p227 = scmp.ne.s32.totalorder %s219, %s221
    %p228 = scmp.eq.s32.totalorder %s22, 1
    %p229 = por %p227, %p228
    %p230 = scmp.ne.s32.totalorder %s221, %s222
    %p231 = scmp.eq.s32.totalorder %s22, 0
    %p232 = por %p230, %p231
    %p233 = scmp.ne.s32.totalorder %s221, %s222
    %p234 = scmp.eq.s32.totalorder %s23, 1
    %p235 = por %p233, %p234
    %p237 = scmp.ne.s32.totalorder %s222, %s236
    %p238 = scmp.eq.s32.totalorder %s23, 0
    %p239 = por %p237, %p238
    %s241 = sadd.s32 %s240, 1
    %p244 = scmp.eq.s32.totalorder %s17, 1
    %p245 = scmp.ne.s32.totalorder %s240, %s242
    %p246 = scmp.eq.s32.totalorder %s17, 0
    %p247 = por %p245, %p246
    %p248 = scmp.ne.s32.totalorder %s240, %s242
    %p249 = scmp.eq.s32.totalorder %s22, 1
    %p250 = por %p248, %p249
    %p251 = scmp.ne.s32.totalorder %s242, %s243
    %p252 = scmp.eq.s32.totalorder %s22, 0
    %p253 = por %p251, %p252
    %p254 = scmp.ne.s32.totalorder %s242, %s243
    %p255 = scmp.eq.s32.totalorder %s23, 1
    %p256 = por %p254, %p255
    %p258 = scmp.ne.s32.totalorder %s243, %s257
    %p259 = scmp.eq.s32.totalorder %s23, 0
    %p260 = por %p258, %p259
    %s261 = ssub.s32 %s17, %s24
    %p262 = scmp.eq.s32.totalorder %s261, 0
    %s264 = sadd.s32 %s263, 1
    %s265 = scalar_select %p262, %s263, %s264
    %p268 = pneg %p262
    %p269 = scmp.eq.s32.totalorder %s17, 1
    %p270 = por %p268, %p269
    %p271 = scmp.ne.s32.totalorder %s263, %s266
    %p272 = scmp.eq.s32.totalorder %s17, 0
    %p273 = por %p271, %p272
    %p274 = scmp.ne.s32.totalorder %s263, %s266
    %p275 = scmp.eq.s32.totalorder %s22, 1
    %p276 = por %p274, %p275
    %p277 = scmp.ne.s32.totalorder %s266, %s267
    %p278 = scmp.eq.s32.totalorder %s22, 0
    %p279 = por %p277, %p278
    %p280 = scmp.ne.s32.totalorder %s266, %s267
    %p281 = scmp.eq.s32.totalorder %s23, 1
    %p282 = por %p280, %p281
    %p284 = scmp.ne.s32.totalorder %s267, %s283
    %p285 = scmp.eq.s32.totalorder %s23, 0
    %p286 = por %p284, %p285
    %p287 = scmp.le.s32.totalorder 1, %s17
    %p288 = scmp.lt.s32.totalorder %s17, 3
    %p289 = pnand %p287, %p288
    %p290 = pneg %p289
    // Predicated region
    $region9: #{localization_forward.1} parent=5 // pred_check
      _
    $region10: #{localization_forward.1} parent=5 // pred_check_branch
      %292 = sbr.rel (%p289) target = $region12
    $region11: #{localization_forward.1} parent=5 // pred_region
      %s293 = ssub.s32 %s17, 1
      // Predicated region
      $region13: #{localization_forward.1} parent=11 // pred_check
        %p294 = pneg %p64
      $region14: #{localization_forward.1} parent=11 // pred_check_branch
        %296 = sbr.rel (%p294) target = $region16
      $region15: #{localization_forward.1} parent=11 // pred_region
        _
      $region16: #{localization_forward.1} parent=11 // pred_fallthru
        _
      // Predicated region
      $region17: #{localization_forward.1} parent=11 // pred_check
        %p297 = pneg %p85
      $region18: #{localization_forward.1} parent=11 // pred_check_branch
        %299 = sbr.rel (%p297) target = $region20
      $region19: #{localization_forward.1} parent=11 // pred_region
        _
      $region20: #{localization_forward.1} parent=11 // pred_fallthru
        _
      // Predicated region
      $region21: #{localization_forward.1} parent=11 // pred_check
        %p300 = pneg %p106
      $region22: #{localization_forward.1} parent=11 // pred_check_branch
        %302 = sbr.rel (%p300) target = $region24
      $region23: #{localization_forward.1} parent=11 // pred_region
        _
      $region24: #{localization_forward.1} parent=11 // pred_fallthru
        _
      // Predicated region
      $region25: #{localization_forward.1} parent=11 // pred_check
        %p303 = pneg %p127
      $region26: #{localization_forward.1} parent=11 // pred_check_branch
        %305 = sbr.rel (%p303) target = $region28
      $region27: #{localization_forward.1} parent=11 // pred_region
        _
      $region28: #{localization_forward.1} parent=11 // pred_fallthru
        _
      // Predicated region
      $region29: #{localization_forward.1} parent=11 // pred_check
        %p306 = pneg %p148
      $region30: #{localization_forward.1} parent=11 // pred_check_branch
        %308 = sbr.rel (%p306) target = $region32
      $region31: #{localization_forward.1} parent=11 // pred_region
        _
      $region32: #{localization_forward.1} parent=11 // pred_fallthru
        _
      // Predicated region
      $region33: #{localization_forward.1} parent=11 // pred_check
        %p309 = pneg %p169
      $region34: #{localization_forward.1} parent=11 // pred_check_branch
        %311 = sbr.rel (%p309) target = $region36
      $region35: #{localization_forward.1} parent=11 // pred_region
        _
      $region36: #{localization_forward.1} parent=11 // pred_fallthru
        _
      // Predicated region
      $region37: #{localization_forward.1} parent=11 // pred_check
        %p312 = pneg %p190
      $region38: #{localization_forward.1} parent=11 // pred_check_branch
        %314 = sbr.rel (%p312) target = $region40
      $region39: #{localization_forward.1} parent=11 // pred_region
        _
      $region40: #{localization_forward.1} parent=11 // pred_fallthru
        _
      // Predicated region
      $region41: #{localization_forward.1} parent=11 // pred_check
        %p315 = pneg %p211
      $region42: #{localization_forward.1} parent=11 // pred_check_branch
        %317 = sbr.rel (%p315) target = $region44
      $region43: #{localization_forward.1} parent=11 // pred_region
        _
      $region44: #{localization_forward.1} parent=11 // pred_fallthru
        _
      // Predicated region
      $region45: #{localization_forward.1} parent=11 // pred_check
        %p318 = pneg %p232
      $region46: #{localization_forward.1} parent=11 // pred_check_branch
        %320 = sbr.rel (%p318) target = $region48
      $region47: #{localization_forward.1} parent=11 // pred_region
        _
      $region48: #{localization_forward.1} parent=11 // pred_fallthru
        _
      // Predicated region
      $region49: #{localization_forward.1} parent=11 // pred_check
        %p321 = pneg %p253
      $region50: #{localization_forward.1} parent=11 // pred_check_branch
        %323 = sbr.rel (%p321) target = $region52
      $region51: #{localization_forward.1} parent=11 // pred_region
        _
      $region52: #{localization_forward.1} parent=11 // pred_fallthru
        _
    $region12: #{localization_forward.1} parent=5 // pred_fallthru
      _
    %p324 = scmp.lt.s32.totalorder %s17, 2
    // Predicated region
    $region53: #{localization_forward.1} parent=5 // pred_check
      %p325 = pneg %p324
    $region54: #{localization_forward.1} parent=5 // pred_check_branch
      %327 = sbr.rel (%p325) target = $region56
    $region55: #{localization_forward.1} parent=5 // pred_region
      // Predicated region
      $region57: #{localization_forward.1} parent=55 // pred_check
        %p328 = pneg %p37
      $region58: #{localization_forward.1} parent=55 // pred_check_branch
        %330 = sbr.rel (%p328) target = $region60
      $region59: #{localization_forward.1} parent=55 // pred_region
        %p331 = scmp.lt.s32.totalorder %s17, 1
        %s332 = scalar_select %p331, %s17, 1
        %s333 = smul.addr %s332, 768
        %s334 = smul.addr %s333, 8
        %s335 = scalar_lea.vmem %s0, %s334
      $region60: #{localization_forward.1} parent=55 // pred_fallthru
        _
    $region56: #{localization_forward.1} parent=5 // pred_fallthru
      _
    %p336 = scmp.le.s32.totalorder 1, %s17
    %p337 = scmp.lt.s32.totalorder %s17, 3
    %p338 = pnand %p336, %p337
    %p339 = pneg %p338
    // Predicated region
    $region61: #{localization_forward.1} parent=5 // pred_check
      _
    $region62: #{localization_forward.1} parent=5 // pred_check_branch
      %341 = sbr.rel (%p338) target = $region64
    $region63: #{localization_forward.1} parent=5 // pred_region
      %s342 = ssub.s32 %s17, 1
      %p343 = scmp.lt.s32.totalorder %s22, 1
      %s344 = scalar_select %p343, %s22, 1
      %s345 = smul.addr %s344, 768
      %s346 = smul.addr %s345, 8
      %s347 = scalar_lea.vmem %s0, %s346
      %p348 = pneg %p43
      %p349 = pneg %p40
      %p350 = pneg %p64
      %p351 = pneg %p61
      %p352 = pneg %p85
      %p353 = pneg %p82
      %p354 = pneg %p106
      %p355 = pneg %p103
      %p356 = pneg %p127
      %p357 = pneg %p124
      %p358 = pneg %p148
      %p359 = pneg %p145
      %p360 = pneg %p169
      %p361 = pneg %p166
      %p362 = pneg %p190
      %p363 = pneg %p187
      %p364 = pneg %p211
      %p365 = pneg %p208
      %p366 = pneg %p232
      %p367 = pneg %p229
      %p368 = pneg %p253
      %p369 = pneg %p250
      %p370 = pneg %p279
      %p371 = pneg %p276
      %p372 = scmp.lt.s32.totalorder %s22, 1
      %s373 = scalar_select %p372, %s22, 1
      %s374 = scalar_lea.vmem %s11, %s373
      %p375 = scmp.lt.s32.totalorder %s22, 1
      %s376 = scalar_select %p375, %s22, 1
      %s377 = smul.addr %s376, 768
      %s378 = smul.addr %s377, 8
      %s379 = scalar_lea.vmem %s0, %s378
      %p380 = scmp.lt.s32.totalorder %s22, 1
      %s381 = scalar_select %p380, %s22, 1
      %s382 = scalar_lea.vmem %s11, %s381
      %384 = vst [vmem:[#allocation2 + $0x28] sm:$0xff] 0
      %385 = vst [vmem:[#allocation2 + $0x30] sm:$0xff] 0
      %386 = vst [vmem:[#allocation2 + $0x60] sm:$0xff] 0
      %387 = vst [vmem:[#allocation2 + $0x68] sm:$0xff] 0
      %388 = vst [vmem:[#allocation2 + $0x98] sm:$0xff] 0
      %389 = vst [vmem:[#allocation2 + $0xa0] sm:$0xff] 0
      %390 = vst [vmem:[#allocation2 + $0xd0] sm:$0xff] 0
      %391 = vst [vmem:[#allocation2 + $0xd8] sm:$0xff] 0
      %392 = vst [vmem:[#allocation4 + $0x28] sm:$0xff] 0.0
      %393 = vst [vmem:[#allocation4 + $0x30] sm:$0xff] 0.0
      %394 = vst [vmem:[#allocation5 + $0x14] sm:$0xff] 0
      %395 = vst [vmem:[#allocation6 + $0x14] sm:$0xff] 0
      %396 = vst [vmem:[#allocation6 + $0x30] sm:$0xff] 0
      %397 = vst [vmem:[#allocation6 + $0x4c] sm:$0xff] 0
      %398 = vst [vmem:[#allocation6 + $0x68] sm:$0xff] 0
      %399 = vst [vmem:[#allocation6 + $0x84] sm:$0xff] 0
      %400 = vst [vmem:[#allocation6 + $0xa0] sm:$0xff] 0
      %401 = vst [vmem:[#allocation6 + $0xbc] sm:$0xff] 0
      %402 = vst [vmem:[#allocation6 + $0xd8] sm:$0xff] 0
      %403 = vst [vmem:[#allocation6 + $0xf4] sm:$0xff] 0
      %404 = vst [vmem:[#allocation6 + $0x110] sm:$0xff] 0
      %405 = vst [vmem:[#allocation6 + $0x12c] sm:$0xff] 0
      %406 = vst [vmem:[#allocation6 + $0x148] sm:$0xff] 0
      %407 = vst [vmem:[#allocation6 + $0x164] sm:$0xff] 0
      %408 = vst [vmem:[#allocation6 + $0x180] sm:$0xff] 0
      %409 = vst [vmem:[#allocation6 + $0x19c] sm:$0xff] 0
      %410 = vst [vmem:[#allocation6 + $0x1b8] sm:$0xff] 0
      %411 = vst [vmem:[#allocation6 + $0x1d4] sm:$0xff] 0
      %412 = vst [vmem:[#allocation6 + $0x1f0] sm:$0xff] 0
      %413 = vst [vmem:[#allocation6 + $0x20c] sm:$0xff] 0
      %414 = vst [vmem:[#allocation6 + $0x228] sm:$0xff] 0
      %415 = vst [vmem:[#allocation6 + $0x244] sm:$0xff] 0
      %416 = vst [vmem:[#allocation6 + $0x260] sm:$0xff] 0
      %417 = vst [vmem:[#allocation6 + $0x27c] sm:$0xff] 0
      %418 = vst [vmem:[#allocation6 + $0x298] sm:$0xff] 0
      %419 = vst [vmem:[#allocation6 + $0x2b4] sm:$0xff] 0
      %v420 = vld [vmem:[%s379] sm:$0xff]
      %v421 = vld [vmem:[%s379 + $0x8] sm:$0xff]
      %v422 = vld [vmem:[%s379 + $0x10] sm:$0xff]
      %v423 = vld [vmem:[%s379 + $0x18] sm:$0xff]
      %v424 = vld [vmem:[%s379 + $0x20] sm:$0xff]
      %v425 = vld [vmem:[%s379 + $0x28] sm:$0xff]
      %v426 = vld [vmem:[%s379 + $0x30] sm:$0xff]
      %v427 = vld [vmem:[%s379 + $0x38] sm:$0xff]
      %v428 = vld [vmem:[%s379 + $0x40] sm:$0xff]
      %v429 = vld [vmem:[%s379 + $0x48] sm:$0xff]
      %v430 = vld [vmem:[%s379 + $0x50] sm:$0xff]
      %v431 = vld [vmem:[%s379 + $0x58] sm:$0xff]
      %v432 = vld [vmem:[%s379 + $0x60] sm:$0xff]
      %v433 = vld [vmem:[%s379 + $0x68] sm:$0xff]
      %v434 = vld [vmem:[%s379 + $0x70] sm:$0xff]
      %v435 = vld [vmem:[%s379 + $0x78] sm:$0xff]
      %v436 = vld [vmem:[%s379 + $0x80] sm:$0xff]
      %v437 = vld [vmem:[%s379 + $0x88] sm:$0xff]
      %v438 = vld [vmem:[%s379 + $0x90] sm:$0xff]
      %v439 = vld [vmem:[%s379 + $0x98] sm:$0xff]
      %v440 = vld [vmem:[%s379 + $0xa0] sm:$0xff]
      %v441 = vld [vmem:[%s379 + $0xa8] sm:$0xff]
      %v442 = vld [vmem:[%s379 + $0xb0] sm:$0xff]
      %v443 = vld [vmem:[%s379 + $0xb8] sm:$0xff]
      %v444 = vld [vmem:[%s379 + $0xc0] sm:$0xff]
      %v445 = vld [vmem:[%s379 + $0xc8] sm:$0xff]
      %v446 = vld [vmem:[%s379 + $0xd0] sm:$0xff]
      %v447 = vld [vmem:[%s379 + $0xd8] sm:$0xff]
      %v448 = vld [vmem:[%s379 + $0xe0] sm:$0xff]
      %v449 = vld [vmem:[%s379 + $0xe8] sm:$0xff]
      %v450 = vld [vmem:[%s379 + $0xf0] sm:$0xff]
      %v451 = vld [vmem:[%s379 + $0xf8] sm:$0xff]
      %v452 = vld [vmem:[%s379 + $0x100] sm:$0xff]
      %v453 = vld [vmem:[%s379 + $0x108] sm:$0xff]
      %v454 = vld [vmem:[%s379 + $0x110] sm:$0xff]
      %v455 = vld [vmem:[%s379 + $0x118] sm:$0xff]
      %v456 = vld [vmem:[%s379 + $0x120] sm:$0xff]
      %v457 = vld [vmem:[%s379 + $0x128] sm:$0xff]
      %v458 = vld [vmem:[%s379 + $0x130] sm:$0xff]
      %v459 = vld [vmem:[%s379 + $0x138] sm:$0xff]
      %v460 = vld [vmem:[%s379 + $0x140] sm:$0xff]
      %v461 = vld [vmem:[%s379 + $0x148] sm:$0xff]
      %v462 = vld [vmem:[%s379 + $0x150] sm:$0xff]
      %v463 = vld [vmem:[%s379 + $0x158] sm:$0xff]
      %v464 = vld [vmem:[%s379 + $0x160] sm:$0xff]
      %v465 = vld [vmem:[%s379 + $0x168] sm:$0xff]
      %v466 = vld [vmem:[%s379 + $0x170] sm:$0xff]
      %v467 = vld [vmem:[%s379 + $0x178] sm:$0xff]
      %v468 = vld [vmem:[%s379 + $0x180] sm:$0xff]
      %v469 = vld [vmem:[%s379 + $0x188] sm:$0xff]
      %v470 = vld [vmem:[%s379 + $0x190] sm:$0xff]
      %v471 = vld [vmem:[%s379 + $0x198] sm:$0xff]
      %v472 = vld [vmem:[%s379 + $0x1a0] sm:$0xff]
      %v473 = vld [vmem:[%s379 + $0x1a8] sm:$0xff]
      %v474 = vld [vmem:[%s379 + $0x1b0] sm:$0xff]
      %v475 = vld [vmem:[%s379 + $0x1b8] sm:$0xff]
      %v476 = vld [vmem:[%s379 + $0x1c0] sm:$0xff]
      %v477 = vld [vmem:[%s379 + $0x1c8] sm:$0xff]
      %v478 = vld [vmem:[%s379 + $0x1d0] sm:$0xff]
      %v479 = vld [vmem:[%s379 + $0x1d8] sm:$0xff]
      %v480 = vld [vmem:[%s379 + $0x1e0] sm:$0xff]
      %v481 = vld [vmem:[%s379 + $0x1e8] sm:$0xff]
      %v482 = vld [vmem:[%s379 + $0x1f0] sm:$0xff]
      %v483 = vld [vmem:[%s379 + $0x1f8] sm:$0xff]
      %v484 = vld [vmem:[%s379 + $0x200] sm:$0xff]
      %v485 = vld [vmem:[%s379 + $0x208] sm:$0xff]
      %v486 = vld [vmem:[%s379 + $0x210] sm:$0xff]
      %v487 = vld [vmem:[%s379 + $0x218] sm:$0xff]
      %v488 = vld [vmem:[%s379 + $0x220] sm:$0xff]
      %v489 = vld [vmem:[%s379 + $0x228] sm:$0xff]
      %v490 = vld [vmem:[%s379 + $0x230] sm:$0xff]
      %v491 = vld [vmem:[%s379 + $0x238] sm:$0xff]
      %v492 = vld [vmem:[%s379 + $0x240] sm:$0xff]
      %v493 = vld [vmem:[%s379 + $0x248] sm:$0xff]
      %v494 = vld [vmem:[%s379 + $0x250] sm:$0xff]
      %v495 = vld [vmem:[%s379 + $0x258] sm:$0xff]
      %v496 = vld [vmem:[%s379 + $0x260] sm:$0xff]
      %v497 = vld [vmem:[%s379 + $0x268] sm:$0xff]
      %v498 = vld [vmem:[%s379 + $0x270] sm:$0xff]
      %v499 = vld [vmem:[%s379 + $0x278] sm:$0xff]
      %v500 = vld [vmem:[%s379 + $0x280] sm:$0xff]
      %v501 = vld [vmem:[%s379 + $0x288] sm:$0xff]
      %v502 = vld [vmem:[%s379 + $0x290] sm:$0xff]
      %v503 = vld [vmem:[%s379 + $0x298] sm:$0xff]
      %v504 = vld [vmem:[%s379 + $0x2a0] sm:$0xff]
      %v505 = vld [vmem:[%s379 + $0x2a8] sm:$0xff]
      %v506 = vld [vmem:[%s379 + $0x2b0] sm:$0xff]
      %v507 = vld [vmem:[%s379 + $0x2b8] sm:$0xff]
      %v508 = vld [vmem:[%s379 + $0x2c0] sm:$0xff]
      %v509 = vld [vmem:[%s379 + $0x2c8] sm:$0xff]
      %v510 = vld [vmem:[%s379 + $0x2d0] sm:$0xff]
      %v511 = vld [vmem:[%s379 + $0x2d8] sm:$0xff]
      %v512 = vld [vmem:[%s379 + $0x2e0] sm:$0xff]
      %v513 = vld [vmem:[%s379 + $0x2e8] sm:$0xff]
      %v514 = vld [vmem:[%s379 + $0x2f0] sm:$0xff]
      %v515 = vld [vmem:[%s379 + $0x2f8] sm:$0xff]
      %v516 = vld [vmem:[%s379 + $0x300] sm:$0xff]
      %v517 = vld [vmem:[%s379 + $0x308] sm:$0xff]
      %v518 = vld [vmem:[%s379 + $0x310] sm:$0xff]
      %v519 = vld [vmem:[%s379 + $0x318] sm:$0xff]
      %v520 = vld [vmem:[%s379 + $0x320] sm:$0xff]
      %v521 = vld [vmem:[%s379 + $0x328] sm:$0xff]
      %v522 = vld [vmem:[%s379 + $0x330] sm:$0xff]
      %v523 = vld [vmem:[%s379 + $0x338] sm:$0xff]
      %v524 = vld [vmem:[%s379 + $0x340] sm:$0xff]
      %v525 = vld [vmem:[%s379 + $0x348] sm:$0xff]
      %v526 = vld [vmem:[%s379 + $0x350] sm:$0xff]
      %v527 = vld [vmem:[%s379 + $0x358] sm:$0xff]
      %v528 = vld [vmem:[%s379 + $0x360] sm:$0xff]
      %v529 = vld [vmem:[%s379 + $0x368] sm:$0xff]
      %v530 = vld [vmem:[%s379 + $0x370] sm:$0xff]
      %v531 = vld [vmem:[%s379 + $0x378] sm:$0xff]
      %v532 = vld [vmem:[%s379 + $0x380] sm:$0xff]
      %v533 = vld [vmem:[%s379 + $0x388] sm:$0xff]
      %v534 = vld [vmem:[%s379 + $0x390] sm:$0xff]
      %v535 = vld [vmem:[%s379 + $0x398] sm:$0xff]
      %v536 = vld [vmem:[%s379 + $0x3a0] sm:$0xff]
      %v537 = vld [vmem:[%s379 + $0x3a8] sm:$0xff]
      %v538 = vld [vmem:[%s379 + $0x3b0] sm:$0xff]
      %v539 = vld [vmem:[%s379 + $0x3b8] sm:$0xff]
      %v540 = vld [vmem:[%s379 + $0x3c0] sm:$0xff]
      %v541 = vld [vmem:[%s379 + $0x3c8] sm:$0xff]
      %v542 = vld [vmem:[%s379 + $0x3d0] sm:$0xff]
      %v543 = vld [vmem:[%s379 + $0x3d8] sm:$0xff]
      %v544 = vld [vmem:[%s379 + $0x3e0] sm:$0xff]
      %v545 = vld [vmem:[%s379 + $0x3e8] sm:$0xff]
      %v546 = vld [vmem:[%s379 + $0x3f0] sm:$0xff]
      %v547 = vld [vmem:[%s379 + $0x3f8] sm:$0xff]
      %v548 = vld [vmem:[%s379 + $0x400] sm:$0xff]
      %v549 = vld [vmem:[%s379 + $0x408] sm:$0xff]
      %v550 = vld [vmem:[%s379 + $0x410] sm:$0xff]
      %v551 = vld [vmem:[%s379 + $0x418] sm:$0xff]
      %v552 = vld [vmem:[%s379 + $0x420] sm:$0xff]
      %v553 = vld [vmem:[%s379 + $0x428] sm:$0xff]
      %v554 = vld [vmem:[%s379 + $0x430] sm:$0xff]
      %v555 = vld [vmem:[%s379 + $0x438] sm:$0xff]
      %v556 = vld [vmem:[%s379 + $0x440] sm:$0xff]
      %v557 = vld [vmem:[%s379 + $0x448] sm:$0xff]
      %v558 = vld [vmem:[%s379 + $0x450] sm:$0xff]
      %v559 = vld [vmem:[%s379 + $0x458] sm:$0xff]
      %v560 = vld [vmem:[%s379 + $0x460] sm:$0xff]
      %v561 = vld [vmem:[%s379 + $0x468] sm:$0xff]
      %v562 = vld [vmem:[%s379 + $0x470] sm:$0xff]
      %v563 = vld [vmem:[%s379 + $0x478] sm:$0xff]
      %v564 = vld [vmem:[%s379 + $0x480] sm:$0xff]
      %v565 = vld [vmem:[%s379 + $0x488] sm:$0xff]
      %v566 = vld [vmem:[%s379 + $0x490] sm:$0xff]
      %v567 = vld [vmem:[%s379 + $0x498] sm:$0xff]
      %v568 = vld [vmem:[%s379 + $0x4a0] sm:$0xff]
      %v569 = vld [vmem:[%s379 + $0x4a8] sm:$0xff]
      %v570 = vld [vmem:[%s379 + $0x4b0] sm:$0xff]
      %v571 = vld [vmem:[%s379 + $0x4b8] sm:$0xff]
      %v572 = vld [vmem:[%s379 + $0x4c0] sm:$0xff]
      %v573 = vld [vmem:[%s379 + $0x4c8] sm:$0xff]
      %v574 = vld [vmem:[%s379 + $0x4d0] sm:$0xff]
      %v575 = vld [vmem:[%s379 + $0x4d8] sm:$0xff]
      %v576 = vld [vmem:[%s379 + $0x4e0] sm:$0xff]
      %v577 = vld [vmem:[%s379 + $0x4e8] sm:$0xff]
      %v578 = vld [vmem:[%s379 + $0x4f0] sm:$0xff]
      %v579 = vld [vmem:[%s379 + $0x4f8] sm:$0xff]
      %v580 = vld [vmem:[%s379 + $0x500] sm:$0xff]
      %v581 = vld [vmem:[%s379 + $0x508] sm:$0xff]
      %v582 = vld [vmem:[%s379 + $0x510] sm:$0xff]
      %v583 = vld [vmem:[%s379 + $0x518] sm:$0xff]
      %v584 = vld [vmem:[%s379 + $0x520] sm:$0xff]
      %v585 = vld [vmem:[%s379 + $0x528] sm:$0xff]
      %v586 = vld [vmem:[%s379 + $0x530] sm:$0xff]
      %v587 = vld [vmem:[%s379 + $0x538] sm:$0xff]
      %v588 = vld [vmem:[%s379 + $0x540] sm:$0xff]
      %v589 = vld [vmem:[%s379 + $0x548] sm:$0xff]
      %v590 = vld [vmem:[%s379 + $0x550] sm:$0xff]
      %v591 = vld [vmem:[%s379 + $0x558] sm:$0xff]
      %v592 = vld [vmem:[%s379 + $0x560] sm:$0xff]
      %v593 = vld [vmem:[%s379 + $0x568] sm:$0xff]
      %v594 = vld [vmem:[%s379 + $0x570] sm:$0xff]
      %v595 = vld [vmem:[%s379 + $0x578] sm:$0xff]
      %v596 = vld [vmem:[%s379 + $0x580] sm:$0xff]
      %v597 = vld [vmem:[%s379 + $0x588] sm:$0xff]
      %v598 = vld [vmem:[%s379 + $0x590] sm:$0xff]
      %v599 = vld [vmem:[%s379 + $0x598] sm:$0xff]
      %v600 = vld [vmem:[%s379 + $0x5a0] sm:$0xff]
      %v601 = vld [vmem:[%s379 + $0x5a8] sm:$0xff]
      %v602 = vld [vmem:[%s379 + $0x5b0] sm:$0xff]
      %v603 = vld [vmem:[%s379 + $0x5b8] sm:$0xff]
      %v604 = vld [vmem:[%s379 + $0x5c0] sm:$0xff]
      %v605 = vld [vmem:[%s379 + $0x5c8] sm:$0xff]
      %v606 = vld [vmem:[%s379 + $0x5d0] sm:$0xff]
      %v607 = vld [vmem:[%s379 + $0x5d8] sm:$0xff]
      %v608 = vld [vmem:[%s379 + $0x5e0] sm:$0xff]
      %v609 = vld [vmem:[%s379 + $0x5e8] sm:$0xff]
      %v610 = vld [vmem:[%s379 + $0x5f0] sm:$0xff]
      %v611 = vld [vmem:[%s379 + $0x5f8] sm:$0xff]
      %v612 = vld [vmem:[%s379 + $0x600] sm:$0xff]
      %v613 = vld [vmem:[%s379 + $0x608] sm:$0xff]
      %v614 = vld [vmem:[%s379 + $0x610] sm:$0xff]
      %v615 = vld [vmem:[%s379 + $0x618] sm:$0xff]
      %v616 = vld [vmem:[%s379 + $0x620] sm:$0xff]
      %v617 = vld [vmem:[%s379 + $0x628] sm:$0xff]
      %v618 = vld [vmem:[%s379 + $0x630] sm:$0xff]
      %v619 = vld [vmem:[%s379 + $0x638] sm:$0xff]
      %v620 = vld [vmem:[%s379 + $0x640] sm:$0xff]
      %v621 = vld [vmem:[%s379 + $0x648] sm:$0xff]
      %v622 = vld [vmem:[%s379 + $0x650] sm:$0xff]
      %v623 = vld [vmem:[%s379 + $0x658] sm:$0xff]
      %v624 = vld [vmem:[%s379 + $0x660] sm:$0xff]
      %v625 = vld [vmem:[%s379 + $0x668] sm:$0xff]
      %v626 = vld [vmem:[%s379 + $0x670] sm:$0xff]
      %v627 = vld [vmem:[%s379 + $0x678] sm:$0xff]
      %v628 = vld [vmem:[%s379 + $0x680] sm:$0xff]
      %v629 = vld [vmem:[%s379 + $0x688] sm:$0xff]
      %v630 = vld [vmem:[%s379 + $0x690] sm:$0xff]
      %v631 = vld [vmem:[%s379 + $0x698] sm:$0xff]
      %v632 = vld [vmem:[%s379 + $0x6a0] sm:$0xff]
      %v633 = vld [vmem:[%s379 + $0x6a8] sm:$0xff]
      %v634 = vld [vmem:[%s379 + $0x6b0] sm:$0xff]
      %v635 = vld [vmem:[%s379 + $0x6b8] sm:$0xff]
      %v636 = vld [vmem:[%s379 + $0x6c0] sm:$0xff]
      %v637 = vld [vmem:[%s379 + $0x6c8] sm:$0xff]
      %v638 = vld [vmem:[%s379 + $0x6d0] sm:$0xff]
      %v639 = vld [vmem:[%s379 + $0x6d8] sm:$0xff]
      %v640 = vld [vmem:[%s379 + $0x6e0] sm:$0xff]
      %v641 = vld [vmem:[%s379 + $0x6e8] sm:$0xff]
      %v642 = vld [vmem:[%s379 + $0x6f0] sm:$0xff]
      %v643 = vld [vmem:[%s379 + $0x6f8] sm:$0xff]
      %v644 = vld [vmem:[%s379 + $0x700] sm:$0xff]
      %v645 = vld [vmem:[%s379 + $0x708] sm:$0xff]
      %v646 = vld [vmem:[%s379 + $0x710] sm:$0xff]
      %v647 = vld [vmem:[%s379 + $0x718] sm:$0xff]
      %v648 = vld [vmem:[%s379 + $0x720] sm:$0xff]
      %v649 = vld [vmem:[%s379 + $0x728] sm:$0xff]
      %v650 = vld [vmem:[%s379 + $0x730] sm:$0xff]
      %v651 = vld [vmem:[%s379 + $0x738] sm:$0xff]
      %v652 = vld [vmem:[%s379 + $0x740] sm:$0xff]
      %v653 = vld [vmem:[%s379 + $0x748] sm:$0xff]
      %v654 = vld [vmem:[%s379 + $0x750] sm:$0xff]
      %v655 = vld [vmem:[%s379 + $0x758] sm:$0xff]
      %v656 = vld [vmem:[%s379 + $0x760] sm:$0xff]
      %v657 = vld [vmem:[%s379 + $0x768] sm:$0xff]
      %v658 = vld [vmem:[%s379 + $0x770] sm:$0xff]
      %v659 = vld [vmem:[%s379 + $0x778] sm:$0xff]
      %v660 = vld [vmem:[%s379 + $0x780] sm:$0xff]
      %v661 = vld [vmem:[%s379 + $0x788] sm:$0xff]
      %v662 = vld [vmem:[%s379 + $0x790] sm:$0xff]
      %v663 = vld [vmem:[%s379 + $0x798] sm:$0xff]
      %v664 = vld [vmem:[%s379 + $0x7a0] sm:$0xff]
      %v665 = vld [vmem:[%s379 + $0x7a8] sm:$0xff]
      %v666 = vld [vmem:[%s379 + $0x7b0] sm:$0xff]
      %v667 = vld [vmem:[%s379 + $0x7b8] sm:$0xff]
      %v668 = vld [vmem:[%s379 + $0x7c0] sm:$0xff]
      %v669 = vld [vmem:[%s379 + $0x7c8] sm:$0xff]
      %v670 = vld [vmem:[%s379 + $0x7d0] sm:$0xff]
      %v671 = vld [vmem:[%s379 + $0x7d8] sm:$0xff]
      %v672 = vld [vmem:[%s379 + $0x7e0] sm:$0xff]
      %v673 = vld [vmem:[%s379 + $0x7e8] sm:$0xff]
      %v674 = vld [vmem:[%s379 + $0x7f0] sm:$0xff]
      %v675 = vld [vmem:[%s379 + $0x7f8] sm:$0xff]
      %v676 = vld [vmem:[%s379 + $0x800] sm:$0xff]
      %v677 = vld [vmem:[%s379 + $0x808] sm:$0xff]
      %v678 = vld [vmem:[%s379 + $0x810] sm:$0xff]
      %v679 = vld [vmem:[%s379 + $0x818] sm:$0xff]
      %v680 = vld [vmem:[%s379 + $0x820] sm:$0xff]
      %v681 = vld [vmem:[%s379 + $0x828] sm:$0xff]
      %v682 = vld [vmem:[%s379 + $0x830] sm:$0xff]
      %v683 = vld [vmem:[%s379 + $0x838] sm:$0xff]
      %v684 = vld [vmem:[%s379 + $0x840] sm:$0xff]
      %v685 = vld [vmem:[%s379 + $0x848] sm:$0xff]
      %v686 = vld [vmem:[%s379 + $0x850] sm:$0xff]
      %v687 = vld [vmem:[%s379 + $0x858] sm:$0xff]
      %v688 = vld [vmem:[%s379 + $0x860] sm:$0xff]
      %v689 = vld [vmem:[%s379 + $0x868] sm:$0xff]
      %v690 = vld [vmem:[%s379 + $0x870] sm:$0xff]
      %v691 = vld [vmem:[%s379 + $0x878] sm:$0xff]
      %v692 = vld [vmem:[%s379 + $0x880] sm:$0xff]
      %v693 = vld [vmem:[%s379 + $0x888] sm:$0xff]
      %v694 = vld [vmem:[%s379 + $0x890] sm:$0xff]
      %v695 = vld [vmem:[%s379 + $0x898] sm:$0xff]
      %v696 = vld [vmem:[%s379 + $0x8a0] sm:$0xff]
      %v697 = vld [vmem:[%s379 + $0x8a8] sm:$0xff]
      %v698 = vld [vmem:[%s379 + $0x8b0] sm:$0xff]
      %v699 = vld [vmem:[%s379 + $0x8b8] sm:$0xff]
      %v700 = vld [vmem:[%s379 + $0x8c0] sm:$0xff]
      %v701 = vld [vmem:[%s379 + $0x8c8] sm:$0xff]
      %v702 = vld [vmem:[%s379 + $0x8d0] sm:$0xff]
      %v703 = vld [vmem:[%s379 + $0x8d8] sm:$0xff]
      %v704 = vld [vmem:[%s379 + $0x8e0] sm:$0xff]
      %v705 = vld [vmem:[%s379 + $0x8e8] sm:$0xff]
      %v706 = vld [vmem:[%s379 + $0x8f0] sm:$0xff]
      %v707 = vld [vmem:[%s379 + $0x8f8] sm:$0xff]
      %v708 = vld [vmem:[%s379 + $0x900] sm:$0xff]
      %v709 = vld [vmem:[%s379 + $0x908] sm:$0xff]
      %v710 = vld [vmem:[%s379 + $0x910] sm:$0xff]
      %v711 = vld [vmem:[%s379 + $0x918] sm:$0xff]
      %v712 = vld [vmem:[%s379 + $0x920] sm:$0xff]
      %v713 = vld [vmem:[%s379 + $0x928] sm:$0xff]
      %v714 = vld [vmem:[%s379 + $0x930] sm:$0xff]
      %v715 = vld [vmem:[%s379 + $0x938] sm:$0xff]
      %v716 = vld [vmem:[%s379 + $0x940] sm:$0xff]
      %v717 = vld [vmem:[%s379 + $0x948] sm:$0xff]
      %v718 = vld [vmem:[%s379 + $0x950] sm:$0xff]
      %v719 = vld [vmem:[%s379 + $0x958] sm:$0xff]
      %v720 = vld [vmem:[%s379 + $0x960] sm:$0xff]
      %v721 = vld [vmem:[%s379 + $0x968] sm:$0xff]
      %v722 = vld [vmem:[%s379 + $0x970] sm:$0xff]
      %v723 = vld [vmem:[%s379 + $0x978] sm:$0xff]
      %v724 = vld [vmem:[%s379 + $0x980] sm:$0xff]
      %v725 = vld [vmem:[%s379 + $0x988] sm:$0xff]
      %v726 = vld [vmem:[%s379 + $0x990] sm:$0xff]
      %v727 = vld [vmem:[%s379 + $0x998] sm:$0xff]
      %v728 = vld [vmem:[%s379 + $0x9a0] sm:$0xff]
      %v729 = vld [vmem:[%s379 + $0x9a8] sm:$0xff]
      %v730 = vld [vmem:[%s379 + $0x9b0] sm:$0xff]
      %v731 = vld [vmem:[%s379 + $0x9b8] sm:$0xff]
      %v732 = vld [vmem:[%s379 + $0x9c0] sm:$0xff]
      %v733 = vld [vmem:[%s379 + $0x9c8] sm:$0xff]
      %v734 = vld [vmem:[%s379 + $0x9d0] sm:$0xff]
      %v735 = vld [vmem:[%s379 + $0x9d8] sm:$0xff]
      %v736 = vld [vmem:[%s379 + $0x9e0] sm:$0xff]
      %v737 = vld [vmem:[%s379 + $0x9e8] sm:$0xff]
      %v738 = vld [vmem:[%s379 + $0x9f0] sm:$0xff]
      %v739 = vld [vmem:[%s379 + $0x9f8] sm:$0xff]
      %v740 = vld [vmem:[%s379 + $0xa00] sm:$0xff]
      %v741 = vld [vmem:[%s379 + $0xa08] sm:$0xff]
      %v742 = vld [vmem:[%s379 + $0xa10] sm:$0xff]
      %v743 = vld [vmem:[%s379 + $0xa18] sm:$0xff]
      %v744 = vld [vmem:[%s379 + $0xa20] sm:$0xff]
      %v745 = vld [vmem:[%s379 + $0xa28] sm:$0xff]
      %v746 = vld [vmem:[%s379 + $0xa30] sm:$0xff]
      %v747 = vld [vmem:[%s379 + $0xa38] sm:$0xff]
      %v748 = vld [vmem:[%s379 + $0xa40] sm:$0xff]
      %v749 = vld [vmem:[%s379 + $0xa48] sm:$0xff]
      %v750 = vld [vmem:[%s379 + $0xa50] sm:$0xff]
      %v751 = vld [vmem:[%s379 + $0xa58] sm:$0xff]
      %v752 = vld [vmem:[%s379 + $0xa60] sm:$0xff]
      %v753 = vld [vmem:[%s379 + $0xa68] sm:$0xff]
      %v754 = vld [vmem:[%s379 + $0xa70] sm:$0xff]
      %v755 = vld [vmem:[%s379 + $0xa78] sm:$0xff]
      %v756 = vld [vmem:[%s379 + $0xa80] sm:$0xff]
      %v757 = vld [vmem:[%s379 + $0xa88] sm:$0xff]
      %v758 = vld [vmem:[%s379 + $0xa90] sm:$0xff]
      %v759 = vld [vmem:[%s379 + $0xa98] sm:$0xff]
      %v760 = vld [vmem:[%s379 + $0xaa0] sm:$0xff]
      %v761 = vld [vmem:[%s379 + $0xaa8] sm:$0xff]
      %v762 = vld [vmem:[%s379 + $0xab0] sm:$0xff]
      %v763 = vld [vmem:[%s379 + $0xab8] sm:$0xff]
      %v764 = vld [vmem:[%s379 + $0xac0] sm:$0xff]
      %v765 = vld [vmem:[%s379 + $0xac8] sm:$0xff]
      %v766 = vld [vmem:[%s379 + $0xad0] sm:$0xff]
      %v767 = vld [vmem:[%s379 + $0xad8] sm:$0xff]
      %v768 = vld [vmem:[%s379 + $0xae0] sm:$0xff]
      %v769 = vld [vmem:[%s379 + $0xae8] sm:$0xff]
      %v770 = vld [vmem:[%s379 + $0xaf0] sm:$0xff]
      %v771 = vld [vmem:[%s379 + $0xaf8] sm:$0xff]
      %v772 = vld [vmem:[%s379 + $0xb00] sm:$0xff]
      %v773 = vld [vmem:[%s379 + $0xb08] sm:$0xff]
      %v774 = vld [vmem:[%s379 + $0xb10] sm:$0xff]
      %v775 = vld [vmem:[%s379 + $0xb18] sm:$0xff]
      %v776 = vld [vmem:[%s379 + $0xb20] sm:$0xff]
      %v777 = vld [vmem:[%s379 + $0xb28] sm:$0xff]
      %v778 = vld [vmem:[%s379 + $0xb30] sm:$0xff]
      %v779 = vld [vmem:[%s379 + $0xb38] sm:$0xff]
      %v780 = vld [vmem:[%s379 + $0xb40] sm:$0xff]
      %v781 = vld [vmem:[%s379 + $0xb48] sm:$0xff]
      %v782 = vld [vmem:[%s379 + $0xb50] sm:$0xff]
      %v783 = vld [vmem:[%s379 + $0xb58] sm:$0xff]
      %v784 = vld [vmem:[%s379 + $0xb60] sm:$0xff]
      %v785 = vld [vmem:[%s379 + $0xb68] sm:$0xff]
      %v786 = vld [vmem:[%s379 + $0xb70] sm:$0xff]
      %v787 = vld [vmem:[%s379 + $0xb78] sm:$0xff]
      %v788 = vld [vmem:[%s379 + $0xb80] sm:$0xff]
      %v789 = vld [vmem:[%s379 + $0xb88] sm:$0xff]
      %v790 = vld [vmem:[%s379 + $0xb90] sm:$0xff]
      %v791 = vld [vmem:[%s379 + $0xb98] sm:$0xff]
      %v792 = vld [vmem:[%s379 + $0xba0] sm:$0xff]
      %v793 = vld [vmem:[%s379 + $0xba8] sm:$0xff]
      %v794 = vld [vmem:[%s379 + $0xbb0] sm:$0xff]
      %v795 = vld [vmem:[%s379 + $0xbb8] sm:$0xff]
      %v796 = vld [vmem:[%s379 + $0xbc0] sm:$0xff]
      %v797 = vld [vmem:[%s379 + $0xbc8] sm:$0xff]
      %v798 = vld [vmem:[%s379 + $0xbd0] sm:$0xff]
      %v799 = vld [vmem:[%s379 + $0xbd8] sm:$0xff]
      %v800 = vld [vmem:[%s379 + $0xbe0] sm:$0xff]
      %v801 = vld [vmem:[%s379 + $0xbe8] sm:$0xff]
      %v802 = vld [vmem:[%s379 + $0xbf0] sm:$0xff]
      %v803 = vld [vmem:[%s379 + $0xbf8] sm:$0xff]
      %v804 = vld [vmem:[%s379 + $0xc00] sm:$0xff]
      %v805 = vld [vmem:[%s379 + $0xc08] sm:$0xff]
      %v806 = vld [vmem:[%s379 + $0xc10] sm:$0xff]
      %v807 = vld [vmem:[%s379 + $0xc18] sm:$0xff]
      %v808 = vld [vmem:[%s379 + $0xc20] sm:$0xff]
      %v809 = vld [vmem:[%s379 + $0xc28] sm:$0xff]
      %v810 = vld [vmem:[%s379 + $0xc30] sm:$0xff]
      %v811 = vld [vmem:[%s379 + $0xc38] sm:$0xff]
      %v812 = vld [vmem:[%s379 + $0xc40] sm:$0xff]
      %v813 = vld [vmem:[%s379 + $0xc48] sm:$0xff]
      %v814 = vld [vmem:[%s379 + $0xc50] sm:$0xff]
      %v815 = vld [vmem:[%s379 + $0xc58] sm:$0xff]
      %v816 = vld [vmem:[%s379 + $0xc60] sm:$0xff]
      %v817 = vld [vmem:[%s379 + $0xc68] sm:$0xff]
      %v818 = vld [vmem:[%s379 + $0xc70] sm:$0xff]
      %v819 = vld [vmem:[%s379 + $0xc78] sm:$0xff]
      %v820 = vld [vmem:[%s379 + $0xc80] sm:$0xff]
      %v821 = vld [vmem:[%s379 + $0xc88] sm:$0xff]
      %v822 = vld [vmem:[%s379 + $0xc90] sm:$0xff]
      %v823 = vld [vmem:[%s379 + $0xc98] sm:$0xff]
      %v824 = vld [vmem:[%s379 + $0xca0] sm:$0xff]
      %v825 = vld [vmem:[%s379 + $0xca8] sm:$0xff]
      %v826 = vld [vmem:[%s379 + $0xcb0] sm:$0xff]
      %v827 = vld [vmem:[%s379 + $0xcb8] sm:$0xff]
      %v828 = vld [vmem:[%s379 + $0xcc0] sm:$0xff]
      %v829 = vld [vmem:[%s379 + $0xcc8] sm:$0xff]
      %v830 = vld [vmem:[%s379 + $0xcd0] sm:$0xff]
      %v831 = vld [vmem:[%s379 + $0xcd8] sm:$0xff]
      %v832 = vld [vmem:[%s379 + $0xce0] sm:$0xff]
      %v833 = vld [vmem:[%s379 + $0xce8] sm:$0xff]
      %v834 = vld [vmem:[%s379 + $0xcf0] sm:$0xff]
      %v835 = vld [vmem:[%s379 + $0xcf8] sm:$0xff]
      %v836 = vld [vmem:[%s379 + $0xd00] sm:$0xff]
      %v837 = vld [vmem:[%s379 + $0xd08] sm:$0xff]
      %v838 = vld [vmem:[%s379 + $0xd10] sm:$0xff]
      %v839 = vld [vmem:[%s379 + $0xd18] sm:$0xff]
      %v840 = vld [vmem:[%s379 + $0xd20] sm:$0xff]
      %v841 = vld [vmem:[%s379 + $0xd28] sm:$0xff]
      %v842 = vld [vmem:[%s379 + $0xd30] sm:$0xff]
      %v843 = vld [vmem:[%s379 + $0xd38] sm:$0xff]
      %v844 = vld [vmem:[%s379 + $0xd40] sm:$0xff]
      %v845 = vld [vmem:[%s379 + $0xd48] sm:$0xff]
      %v846 = vld [vmem:[%s379 + $0xd50] sm:$0xff]
      %v847 = vld [vmem:[%s379 + $0xd58] sm:$0xff]
      %v848 = vld [vmem:[%s379 + $0xd60] sm:$0xff]
      %v849 = vld [vmem:[%s379 + $0xd68] sm:$0xff]
      %v850 = vld [vmem:[%s379 + $0xd70] sm:$0xff]
      %v851 = vld [vmem:[%s379 + $0xd78] sm:$0xff]
      %v852 = vld [vmem:[%s379 + $0xd80] sm:$0xff]
      %v853 = vld [vmem:[%s379 + $0xd88] sm:$0xff]
      %v854 = vld [vmem:[%s379 + $0xd90] sm:$0xff]
      %v855 = vld [vmem:[%s379 + $0xd98] sm:$0xff]
      %v856 = vld [vmem:[%s379 + $0xda0] sm:$0xff]
      %v857 = vld [vmem:[%s379 + $0xda8] sm:$0xff]
      %v858 = vld [vmem:[%s379 + $0xdb0] sm:$0xff]
      %v859 = vld [vmem:[%s379 + $0xdb8] sm:$0xff]
      %v860 = vld [vmem:[%s379 + $0xdc0] sm:$0xff]
      %v861 = vld [vmem:[%s379 + $0xdc8] sm:$0xff]
      %v862 = vld [vmem:[%s379 + $0xdd0] sm:$0xff]
      %v863 = vld [vmem:[%s379 + $0xdd8] sm:$0xff]
      %v864 = vld [vmem:[%s379 + $0xde0] sm:$0xff]
      %v865 = vld [vmem:[%s379 + $0xde8] sm:$0xff]
      %v866 = vld [vmem:[%s379 + $0xdf0] sm:$0xff]
      %v867 = vld [vmem:[%s379 + $0xdf8] sm:$0xff]
      %v868 = vld [vmem:[%s379 + $0xe00] sm:$0xff]
      %v869 = vld [vmem:[%s379 + $0xe08] sm:$0xff]
      %v870 = vld [vmem:[%s379 + $0xe10] sm:$0xff]
      %v871 = vld [vmem:[%s379 + $0xe18] sm:$0xff]
      %v872 = vld [vmem:[%s379 + $0xe20] sm:$0xff]
      %v873 = vld [vmem:[%s379 + $0xe28] sm:$0xff]
      %v874 = vld [vmem:[%s379 + $0xe30] sm:$0xff]
      %v875 = vld [vmem:[%s379 + $0xe38] sm:$0xff]
      %v876 = vld [vmem:[%s379 + $0xe40] sm:$0xff]
      %v877 = vld [vmem:[%s379 + $0xe48] sm:$0xff]
      %v878 = vld [vmem:[%s379 + $0xe50] sm:$0xff]
      %v879 = vld [vmem:[%s379 + $0xe58] sm:$0xff]
      %v880 = vld [vmem:[%s379 + $0xe60] sm:$0xff]
      %v881 = vld [vmem:[%s379 + $0xe68] sm:$0xff]
      %v882 = vld [vmem:[%s379 + $0xe70] sm:$0xff]
      %v883 = vld [vmem:[%s379 + $0xe78] sm:$0xff]
      %v884 = vld [vmem:[%s379 + $0xe80] sm:$0xff]
      %v885 = vld [vmem:[%s379 + $0xe88] sm:$0xff]
      %v886 = vld [vmem:[%s379 + $0xe90] sm:$0xff]
      %v887 = vld [vmem:[%s379 + $0xe98] sm:$0xff]
      %v888 = vld [vmem:[%s379 + $0xea0] sm:$0xff]
      %v889 = vld [vmem:[%s379 + $0xea8] sm:$0xff]
      %v890 = vld [vmem:[%s379 + $0xeb0] sm:$0xff]
      %v891 = vld [vmem:[%s379 + $0xeb8] sm:$0xff]
      %v892 = vld [vmem:[%s379 + $0xec0] sm:$0xff]
      %v893 = vld [vmem:[%s379 + $0xec8] sm:$0xff]
      %v894 = vld [vmem:[%s379 + $0xed0] sm:$0xff]
      %v895 = vld [vmem:[%s379 + $0xed8] sm:$0xff]
      %v896 = vld [vmem:[%s379 + $0xee0] sm:$0xff]
      %v897 = vld [vmem:[%s379 + $0xee8] sm:$0xff]
      %v898 = vld [vmem:[%s379 + $0xef0] sm:$0xff]
      %v899 = vld [vmem:[%s379 + $0xef8] sm:$0xff]
      %v900 = vld [vmem:[%s379 + $0xf00] sm:$0xff]
      %v901 = vld [vmem:[%s379 + $0xf08] sm:$0xff]
      %v902 = vld [vmem:[%s379 + $0xf10] sm:$0xff]
      %v903 = vld [vmem:[%s379 + $0xf18] sm:$0xff]
      %v904 = vld [vmem:[%s379 + $0xf20] sm:$0xff]
      %v905 = vld [vmem:[%s379 + $0xf28] sm:$0xff]
      %v906 = vld [vmem:[%s379 + $0xf30] sm:$0xff]
      %v907 = vld [vmem:[%s379 + $0xf38] sm:$0xff]
      %v908 = vld [vmem:[%s379 + $0xf40] sm:$0xff]
      %v909 = vld [vmem:[%s379 + $0xf48] sm:$0xff]
      %v910 = vld [vmem:[%s379 + $0xf50] sm:$0xff]
      %v911 = vld [vmem:[%s379 + $0xf58] sm:$0xff]
      %v912 = vld [vmem:[%s379 + $0xf60] sm:$0xff]
      %v913 = vld [vmem:[%s379 + $0xf68] sm:$0xff]
      %v914 = vld [vmem:[%s379 + $0xf70] sm:$0xff]
      %v915 = vld [vmem:[%s379 + $0xf78] sm:$0xff]
      %v916 = vld [vmem:[%s379 + $0xf80] sm:$0xff]
      %v917 = vld [vmem:[%s379 + $0xf88] sm:$0xff]
      %v918 = vld [vmem:[%s379 + $0xf90] sm:$0xff]
      %v919 = vld [vmem:[%s379 + $0xf98] sm:$0xff]
      %v920 = vld [vmem:[%s379 + $0xfa0] sm:$0xff]
      %v921 = vld [vmem:[%s379 + $0xfa8] sm:$0xff]
      %v922 = vld [vmem:[%s379 + $0xfb0] sm:$0xff]
      %v923 = vld [vmem:[%s379 + $0xfb8] sm:$0xff]
      %v924 = vld [vmem:[%s379 + $0xfc0] sm:$0xff]
      %v925 = vld [vmem:[%s379 + $0xfc8] sm:$0xff]
      %v926 = vld [vmem:[%s379 + $0xfd0] sm:$0xff]
      %v927 = vld [vmem:[%s379 + $0xfd8] sm:$0xff]
      %v928 = vld [vmem:[%s379 + $0xfe0] sm:$0xff]
      %v929 = vld [vmem:[%s379 + $0xfe8] sm:$0xff]
      %v930 = vld [vmem:[%s379 + $0xff0] sm:$0xff]
      %v931 = vld [vmem:[%s379 + $0xff8] sm:$0xff]
      %v932 = vld [vmem:[%s379 + $0x1000] sm:$0xff]
      %v933 = vld [vmem:[%s379 + $0x1008] sm:$0xff]
      %v934 = vld [vmem:[%s379 + $0x1010] sm:$0xff]
      %v935 = vld [vmem:[%s379 + $0x1018] sm:$0xff]
      %v936 = vld [vmem:[%s379 + $0x1020] sm:$0xff]
      %v937 = vld [vmem:[%s379 + $0x1028] sm:$0xff]
      %v938 = vld [vmem:[%s379 + $0x1030] sm:$0xff]
      %v939 = vld [vmem:[%s379 + $0x1038] sm:$0xff]
      %v940 = vld [vmem:[%s379 + $0x1040] sm:$0xff]
      %v941 = vld [vmem:[%s379 + $0x1048] sm:$0xff]
      %v942 = vld [vmem:[%s379 + $0x1050] sm:$0xff]
      %v943 = vld [vmem:[%s379 + $0x1058] sm:$0xff]
      %v944 = vld [vmem:[%s379 + $0x1060] sm:$0xff]
      %v945 = vld [vmem:[%s379 + $0x1068] sm:$0xff]
      %v946 = vld [vmem:[%s379 + $0x1070] sm:$0xff]
      %v947 = vld [vmem:[%s379 + $0x1078] sm:$0xff]
      %v948 = vld [vmem:[%s379 + $0x1080] sm:$0xff]
      %v949 = vld [vmem:[%s379 + $0x1088] sm:$0xff]
      %v950 = vld [vmem:[%s379 + $0x1090] sm:$0xff]
      %v951 = vld [vmem:[%s379 + $0x1098] sm:$0xff]
      %v952 = vld [vmem:[%s379 + $0x10a0] sm:$0xff]
      %v953 = vld [vmem:[%s379 + $0x10a8] sm:$0xff]
      %v954 = vld [vmem:[%s379 + $0x10b0] sm:$0xff]
      %v955 = vld [vmem:[%s379 + $0x10b8] sm:$0xff]
      %v956 = vld [vmem:[%s379 + $0x10c0] sm:$0xff]
      %v957 = vld [vmem:[%s379 + $0x10c8] sm:$0xff]
      %v958 = vld [vmem:[%s379 + $0x10d0] sm:$0xff]
      %v959 = vld [vmem:[%s379 + $0x10d8] sm:$0xff]
      %v960 = vld [vmem:[%s379 + $0x10e0] sm:$0xff]
      %v961 = vld [vmem:[%s379 + $0x10e8] sm:$0xff]
      %v962 = vld [vmem:[%s379 + $0x10f0] sm:$0xff]
      %v963 = vld [vmem:[%s379 + $0x10f8] sm:$0xff]
      %v964 = vld [vmem:[%s379 + $0x1100] sm:$0xff]
      %v965 = vld [vmem:[%s379 + $0x1108] sm:$0xff]
      %v966 = vld [vmem:[%s379 + $0x1110] sm:$0xff]
      %v967 = vld [vmem:[%s379 + $0x1118] sm:$0xff]
      %v968 = vld [vmem:[%s379 + $0x1120] sm:$0xff]
      %v969 = vld [vmem:[%s379 + $0x1128] sm:$0xff]
      %v970 = vld [vmem:[%s379 + $0x1130] sm:$0xff]
      %v971 = vld [vmem:[%s379 + $0x1138] sm:$0xff]
      %v972 = vld [vmem:[%s379 + $0x1140] sm:$0xff]
      %v973 = vld [vmem:[%s379 + $0x1148] sm:$0xff]
      %v974 = vld [vmem:[%s379 + $0x1150] sm:$0xff]
      %v975 = vld [vmem:[%s379 + $0x1158] sm:$0xff]
      %v976 = vld [vmem:[%s379 + $0x1160] sm:$0xff]
      %v977 = vld [vmem:[%s379 + $0x1168] sm:$0xff]
      %v978 = vld [vmem:[%s379 + $0x1170] sm:$0xff]
      %v979 = vld [vmem:[%s379 + $0x1178] sm:$0xff]
      %v980 = vld [vmem:[%s379 + $0x1180] sm:$0xff]
      %v981 = vld [vmem:[%s379 + $0x1188] sm:$0xff]
      %v982 = vld [vmem:[%s379 + $0x1190] sm:$0xff]
      %v983 = vld [vmem:[%s379 + $0x1198] sm:$0xff]
      %v984 = vld [vmem:[%s379 + $0x11a0] sm:$0xff]
      %v985 = vld [vmem:[%s379 + $0x11a8] sm:$0xff]
      %v986 = vld [vmem:[%s379 + $0x11b0] sm:$0xff]
      %v987 = vld [vmem:[%s379 + $0x11b8] sm:$0xff]
      %v988 = vld [vmem:[%s379 + $0x11c0] sm:$0xff]
      %v989 = vld [vmem:[%s379 + $0x11c8] sm:$0xff]
      %v990 = vld [vmem:[%s379 + $0x11d0] sm:$0xff]
      %v991 = vld [vmem:[%s379 + $0x11d8] sm:$0xff]
      %v992 = vld [vmem:[%s379 + $0x11e0] sm:$0xff]
      %v993 = vld [vmem:[%s379 + $0x11e8] sm:$0xff]
      %v994 = vld [vmem:[%s379 + $0x11f0] sm:$0xff]
      %v995 = vld [vmem:[%s379 + $0x11f8] sm:$0xff]
      %v996 = vld [vmem:[%s379 + $0x1200] sm:$0xff]
      %v997 = vld [vmem:[%s379 + $0x1208] sm:$0xff]
      %v998 = vld [vmem:[%s379 + $0x1210] sm:$0xff]
      %v999 = vld [vmem:[%s379 + $0x1218] sm:$0xff]
      %v1000 = vld [vmem:[%s379 + $0x1220] sm:$0xff]
      %v1001 = vld [vmem:[%s379 + $0x1228] sm:$0xff]
      %v1002 = vld [vmem:[%s379 + $0x1230] sm:$0xff]
      %v1003 = vld [vmem:[%s379 + $0x1238] sm:$0xff]
      %v1004 = vld [vmem:[%s379 + $0x1240] sm:$0xff]
      %v1005 = vld [vmem:[%s379 + $0x1248] sm:$0xff]
      %v1006 = vld [vmem:[%s379 + $0x1250] sm:$0xff]
      %v1007 = vld [vmem:[%s379 + $0x1258] sm:$0xff]
      %v1008 = vld [vmem:[%s379 + $0x1260] sm:$0xff]
      %v1009 = vld [vmem:[%s379 + $0x1268] sm:$0xff]
      %v1010 = vld [vmem:[%s379 + $0x1270] sm:$0xff]
      %v1011 = vld [vmem:[%s379 + $0x1278] sm:$0xff]
      %v1012 = vld [vmem:[%s379 + $0x1280] sm:$0xff]
      %v1013 = vld [vmem:[%s379 + $0x1288] sm:$0xff]
      %v1014 = vld [vmem:[%s379 + $0x1290] sm:$0xff]
      %v1015 = vld [vmem:[%s379 + $0x1298] sm:$0xff]
      %v1016 = vld [vmem:[%s379 + $0x12a0] sm:$0xff]
      %v1017 = vld [vmem:[%s379 + $0x12a8] sm:$0xff]
      %v1018 = vld [vmem:[%s379 + $0x12b0] sm:$0xff]
      %v1019 = vld [vmem:[%s379 + $0x12b8] sm:$0xff]
      %v1020 = vld [vmem:[%s379 + $0x12c0] sm:$0xff]
      %v1021 = vld [vmem:[%s379 + $0x12c8] sm:$0xff]
      %v1022 = vld [vmem:[%s379 + $0x12d0] sm:$0xff]
      %v1023 = vld [vmem:[%s379 + $0x12d8] sm:$0xff]
      %v1024 = vld [vmem:[%s379 + $0x12e0] sm:$0xff]
      %v1025 = vld [vmem:[%s379 + $0x12e8] sm:$0xff]
      %v1026 = vld [vmem:[%s379 + $0x12f0] sm:$0xff]
      %v1027 = vld [vmem:[%s379 + $0x12f8] sm:$0xff]
      %v1028 = vld [vmem:[%s379 + $0x1300] sm:$0xff]
      %v1029 = vld [vmem:[%s379 + $0x1308] sm:$0xff]
      %v1030 = vld [vmem:[%s379 + $0x1310] sm:$0xff]
      %v1031 = vld [vmem:[%s379 + $0x1318] sm:$0xff]
      %v1032 = vld [vmem:[%s379 + $0x1320] sm:$0xff]
      %v1033 = vld [vmem:[%s379 + $0x1328] sm:$0xff]
      %v1034 = vld [vmem:[%s379 + $0x1330] sm:$0xff]
      %v1035 = vld [vmem:[%s379 + $0x1338] sm:$0xff]
      %v1036 = vld [vmem:[%s379 + $0x1340] sm:$0xff]
      %v1037 = vld [vmem:[%s379 + $0x1348] sm:$0xff]
      %v1038 = vld [vmem:[%s379 + $0x1350] sm:$0xff]
      %v1039 = vld [vmem:[%s379 + $0x1358] sm:$0xff]
      %v1040 = vld [vmem:[%s379 + $0x1360] sm:$0xff]
      %v1041 = vld [vmem:[%s379 + $0x1368] sm:$0xff]
      %v1042 = vld [vmem:[%s379 + $0x1370] sm:$0xff]
      %v1043 = vld [vmem:[%s379 + $0x1378] sm:$0xff]
      %v1044 = vld [vmem:[%s379 + $0x1380] sm:$0xff]
      %v1045 = vld [vmem:[%s379 + $0x1388] sm:$0xff]
      %v1046 = vld [vmem:[%s379 + $0x1390] sm:$0xff]
      %v1047 = vld [vmem:[%s379 + $0x1398] sm:$0xff]
      %v1048 = vld [vmem:[%s379 + $0x13a0] sm:$0xff]
      %v1049 = vld [vmem:[%s379 + $0x13a8] sm:$0xff]
      %v1050 = vld [vmem:[%s379 + $0x13b0] sm:$0xff]
      %v1051 = vld [vmem:[%s379 + $0x13b8] sm:$0xff]
      %v1052 = vld [vmem:[%s379 + $0x13c0] sm:$0xff]
      %v1053 = vld [vmem:[%s379 + $0x13c8] sm:$0xff]
      %v1054 = vld [vmem:[%s379 + $0x13d0] sm:$0xff]
      %v1055 = vld [vmem:[%s379 + $0x13d8] sm:$0xff]
      %v1056 = vld [vmem:[%s379 + $0x13e0] sm:$0xff]
      %v1057 = vld [vmem:[%s379 + $0x13e8] sm:$0xff]
      %v1058 = vld [vmem:[%s379 + $0x13f0] sm:$0xff]
      %v1059 = vld [vmem:[%s379 + $0x13f8] sm:$0xff]
      %v1060 = vld [vmem:[%s379 + $0x1400] sm:$0xff]
      %v1061 = vld [vmem:[%s379 + $0x1408] sm:$0xff]
      %v1062 = vld [vmem:[%s379 + $0x1410] sm:$0xff]
      %v1063 = vld [vmem:[%s379 + $0x1418] sm:$0xff]
      %v1064 = vld [vmem:[%s379 + $0x1420] sm:$0xff]
      %v1065 = vld [vmem:[%s379 + $0x1428] sm:$0xff]
      %v1066 = vld [vmem:[%s379 + $0x1430] sm:$0xff]
      %v1067 = vld [vmem:[%s379 + $0x1438] sm:$0xff]
      %v1068 = vld [vmem:[%s379 + $0x1440] sm:$0xff]
      %v1069 = vld [vmem:[%s379 + $0x1448] sm:$0xff]
      %v1070 = vld [vmem:[%s379 + $0x1450] sm:$0xff]
      %v1071 = vld [vmem:[%s379 + $0x1458] sm:$0xff]
      %v1072 = vld [vmem:[%s379 + $0x1460] sm:$0xff]
      %v1073 = vld [vmem:[%s379 + $0x1468] sm:$0xff]
      %v1074 = vld [vmem:[%s379 + $0x1470] sm:$0xff]
      %v1075 = vld [vmem:[%s379 + $0x1478] sm:$0xff]
      %v1076 = vld [vmem:[%s379 + $0x1480] sm:$0xff]
      %v1077 = vld [vmem:[%s379 + $0x1488] sm:$0xff]
      %v1078 = vld [vmem:[%s379 + $0x1490] sm:$0xff]
      %v1079 = vld [vmem:[%s379 + $0x1498] sm:$0xff]
      %v1080 = vld [vmem:[%s379 + $0x14a0] sm:$0xff]
      %v1081 = vld [vmem:[%s379 + $0x14a8] sm:$0xff]
      %v1082 = vld [vmem:[%s379 + $0x14b0] sm:$0xff]
      %v1083 = vld [vmem:[%s379 + $0x14b8] sm:$0xff]
      %v1084 = vld [vmem:[%s379 + $0x14c0] sm:$0xff]
      %v1085 = vld [vmem:[%s379 + $0x14c8] sm:$0xff]
      %v1086 = vld [vmem:[%s379 + $0x14d0] sm:$0xff]
      %v1087 = vld [vmem:[%s379 + $0x14d8] sm:$0xff]
      %v1088 = vld [vmem:[%s379 + $0x14e0] sm:$0xff]
      %v1089 = vld [vmem:[%s379 + $0x14e8] sm:$0xff]
      %v1090 = vld [vmem:[%s379 + $0x14f0] sm:$0xff]
      %v1091 = vld [vmem:[%s379 + $0x14f8] sm:$0xff]
      %v1092 = vld [vmem:[%s379 + $0x1500] sm:$0xff]
      %v1093 = vld [vmem:[%s379 + $0x1508] sm:$0xff]
      %v1094 = vld [vmem:[%s379 + $0x1510] sm:$0xff]
      %v1095 = vld [vmem:[%s379 + $0x1518] sm:$0xff]
      %v1096 = vld [vmem:[%s379 + $0x1520] sm:$0xff]
      %v1097 = vld [vmem:[%s379 + $0x1528] sm:$0xff]
      %v1098 = vld [vmem:[%s379 + $0x1530] sm:$0xff]
      %v1099 = vld [vmem:[%s379 + $0x1538] sm:$0xff]
      %v1100 = vld [vmem:[%s379 + $0x1540] sm:$0xff]
      %v1101 = vld [vmem:[%s379 + $0x1548] sm:$0xff]
      %v1102 = vld [vmem:[%s379 + $0x1550] sm:$0xff]
      %v1103 = vld [vmem:[%s379 + $0x1558] sm:$0xff]
      %v1104 = vld [vmem:[%s379 + $0x1560] sm:$0xff]
      %v1105 = vld [vmem:[%s379 + $0x1568] sm:$0xff]
      %v1106 = vld [vmem:[%s379 + $0x1570] sm:$0xff]
      %v1107 = vld [vmem:[%s379 + $0x1578] sm:$0xff]
      %v1108 = vld [vmem:[%s379 + $0x1580] sm:$0xff]
      %v1109 = vld [vmem:[%s379 + $0x1588] sm:$0xff]
      %v1110 = vld [vmem:[%s379 + $0x1590] sm:$0xff]
      %v1111 = vld [vmem:[%s379 + $0x1598] sm:$0xff]
      %v1112 = vld [vmem:[%s379 + $0x15a0] sm:$0xff]
      %v1113 = vld [vmem:[%s379 + $0x15a8] sm:$0xff]
      %v1114 = vld [vmem:[%s379 + $0x15b0] sm:$0xff]
      %v1115 = vld [vmem:[%s379 + $0x15b8] sm:$0xff]
      %v1116 = vld [vmem:[%s379 + $0x15c0] sm:$0xff]
      %v1117 = vld [vmem:[%s379 + $0x15c8] sm:$0xff]
      %v1118 = vld [vmem:[%s379 + $0x15d0] sm:$0xff]
      %v1119 = vld [vmem:[%s379 + $0x15d8] sm:$0xff]
      %v1120 = vld [vmem:[%s379 + $0x15e0] sm:$0xff]
      %v1121 = vld [vmem:[%s379 + $0x15e8] sm:$0xff]
      %v1122 = vld [vmem:[%s379 + $0x15f0] sm:$0xff]
      %v1123 = vld [vmem:[%s379 + $0x15f8] sm:$0xff]
      %v1124 = vld [vmem:[%s379 + $0x1600] sm:$0xff]
      %v1125 = vld [vmem:[%s379 + $0x1608] sm:$0xff]
      %v1126 = vld [vmem:[%s379 + $0x1610] sm:$0xff]
      %v1127 = vld [vmem:[%s379 + $0x1618] sm:$0xff]
      %v1128 = vld [vmem:[%s379 + $0x1620] sm:$0xff]
      %v1129 = vld [vmem:[%s379 + $0x1628] sm:$0xff]
      %v1130 = vld [vmem:[%s379 + $0x1630] sm:$0xff]
      %v1131 = vld [vmem:[%s379 + $0x1638] sm:$0xff]
      %v1132 = vld [vmem:[%s379 + $0x1640] sm:$0xff]
      %v1133 = vld [vmem:[%s379 + $0x1648] sm:$0xff]
      %v1134 = vld [vmem:[%s379 + $0x1650] sm:$0xff]
      %v1135 = vld [vmem:[%s379 + $0x1658] sm:$0xff]
      %v1136 = vld [vmem:[%s379 + $0x1660] sm:$0xff]
      %v1137 = vld [vmem:[%s379 + $0x1668] sm:$0xff]
      %v1138 = vld [vmem:[%s379 + $0x1670] sm:$0xff]
      %v1139 = vld [vmem:[%s379 + $0x1678] sm:$0xff]
      %v1140 = vld [vmem:[%s379 + $0x1680] sm:$0xff]
      %v1141 = vld [vmem:[%s379 + $0x1688] sm:$0xff]
      %v1142 = vld [vmem:[%s379 + $0x1690] sm:$0xff]
      %v1143 = vld [vmem:[%s379 + $0x1698] sm:$0xff]
      %v1144 = vld [vmem:[%s379 + $0x16a0] sm:$0xff]
      %v1145 = vld [vmem:[%s379 + $0x16a8] sm:$0xff]
      %v1146 = vld [vmem:[%s379 + $0x16b0] sm:$0xff]
      %v1147 = vld [vmem:[%s379 + $0x16b8] sm:$0xff]
      %v1148 = vld [vmem:[%s379 + $0x16c0] sm:$0xff]
      %v1149 = vld [vmem:[%s379 + $0x16c8] sm:$0xff]
      %v1150 = vld [vmem:[%s379 + $0x16d0] sm:$0xff]
      %v1151 = vld [vmem:[%s379 + $0x16d8] sm:$0xff]
      %v1152 = vld [vmem:[%s379 + $0x16e0] sm:$0xff]
      %v1153 = vld [vmem:[%s379 + $0x16e8] sm:$0xff]
      %v1154 = vld [vmem:[%s379 + $0x16f0] sm:$0xff]
      %v1155 = vld [vmem:[%s379 + $0x16f8] sm:$0xff]
      %v1156 = vld [vmem:[%s379 + $0x1700] sm:$0xff]
      %v1157 = vld [vmem:[%s379 + $0x1708] sm:$0xff]
      %v1158 = vld [vmem:[%s379 + $0x1710] sm:$0xff]
      %v1159 = vld [vmem:[%s379 + $0x1718] sm:$0xff]
      %v1160 = vld [vmem:[%s379 + $0x1720] sm:$0xff]
      %v1161 = vld [vmem:[%s379 + $0x1728] sm:$0xff]
      %v1162 = vld [vmem:[%s379 + $0x1730] sm:$0xff]
      %v1163 = vld [vmem:[%s379 + $0x1738] sm:$0xff]
      %v1164 = vld [vmem:[%s379 + $0x1740] sm:$0xff]
      %v1165 = vld [vmem:[%s379 + $0x1748] sm:$0xff]
      %v1166 = vld [vmem:[%s379 + $0x1750] sm:$0xff]
      %v1167 = vld [vmem:[%s379 + $0x1758] sm:$0xff]
      %v1168 = vld [vmem:[%s379 + $0x1760] sm:$0xff]
      %v1169 = vld [vmem:[%s379 + $0x1768] sm:$0xff]
      %v1170 = vld [vmem:[%s379 + $0x1770] sm:$0xff]
      %v1171 = vld [vmem:[%s379 + $0x1778] sm:$0xff]
      %v1172 = vld [vmem:[%s379 + $0x1780] sm:$0xff]
      %v1173 = vld [vmem:[%s379 + $0x1788] sm:$0xff]
      %v1174 = vld [vmem:[%s379 + $0x1790] sm:$0xff]
      %v1175 = vld [vmem:[%s379 + $0x1798] sm:$0xff]
      %v1176 = vld [vmem:[%s379 + $0x17a0] sm:$0xff]
      %v1177 = vld [vmem:[%s379 + $0x17a8] sm:$0xff]
      %v1178 = vld [vmem:[%s379 + $0x17b0] sm:$0xff]
      %v1179 = vld [vmem:[%s379 + $0x17b8] sm:$0xff]
      %v1180 = vld [vmem:[%s379 + $0x17c0] sm:$0xff]
      %v1181 = vld [vmem:[%s379 + $0x17c8] sm:$0xff]
      %v1182 = vld [vmem:[%s379 + $0x17d0] sm:$0xff]
      %v1183 = vld [vmem:[%s379 + $0x17d8] sm:$0xff]
      %v1184 = vld [vmem:[%s379 + $0x17e0] sm:$0xff]
      %v1185 = vld [vmem:[%s379 + $0x17e8] sm:$0xff]
      %v1186 = vld [vmem:[%s379 + $0x17f0] sm:$0xff]
      %v1187 = vld [vmem:[%s379 + $0x17f8] sm:$0xff]
      %v1188 = vpack.c.bf16 %v426, %v420
      %v1189 = vpack.c.bf16 %v427, %v421
      %v1190 = vpack.c.bf16 %v428, %v422
      %v1191 = vpack.c.bf16 %v429, %v423
      %v1192 = vpack.c.bf16 %v430, %v424
      %v1193 = vpack.c.bf16 %v431, %v425
      %v1194 = vpack.c.bf16 %v438, %v432
      %v1195 = vpack.c.bf16 %v439, %v433
      %v1196 = vpack.c.bf16 %v440, %v434
      %v1197 = vpack.c.bf16 %v441, %v435
      %v1198 = vpack.c.bf16 %v442, %v436
      %v1199 = vpack.c.bf16 %v443, %v437
      %v1200 = vpack.c.bf16 %v450, %v444
      %v1201 = vpack.c.bf16 %v451, %v445
      %v1202 = vpack.c.bf16 %v452, %v446
      %v1203 = vpack.c.bf16 %v453, %v447
      %v1204 = vpack.c.bf16 %v454, %v448
      %v1205 = vpack.c.bf16 %v455, %v449
      %v1206 = vpack.c.bf16 %v462, %v456
      %v1207 = vpack.c.bf16 %v463, %v457
      %v1208 = vpack.c.bf16 %v464, %v458
      %v1209 = vpack.c.bf16 %v465, %v459
      %v1210 = vpack.c.bf16 %v466, %v460
      %v1211 = vpack.c.bf16 %v467, %v461
      %v1212 = vpack.c.bf16 %v474, %v468
      %v1213 = vpack.c.bf16 %v475, %v469
      %v1214 = vpack.c.bf16 %v476, %v470
      %v1215 = vpack.c.bf16 %v477, %v471
      %v1216 = vpack.c.bf16 %v478, %v472
      %v1217 = vpack.c.bf16 %v479, %v473
      %v1218 = vpack.c.bf16 %v486, %v480
      %v1219 = vpack.c.bf16 %v487, %v481
      %v1220 = vpack.c.bf16 %v488, %v482
      %v1221 = vpack.c.bf16 %v489, %v483
      %v1222 = vpack.c.bf16 %v490, %v484
      %v1223 = vpack.c.bf16 %v491, %v485
      %v1224 = vpack.c.bf16 %v498, %v492
      %v1225 = vpack.c.bf16 %v499, %v493
      %v1226 = vpack.c.bf16 %v500, %v494
      %v1227 = vpack.c.bf16 %v501, %v495
      %v1228 = vpack.c.bf16 %v502, %v496
      %v1229 = vpack.c.bf16 %v503, %v497
      %v1230 = vpack.c.bf16 %v510, %v504
      %v1231 = vpack.c.bf16 %v511, %v505
      %v1232 = vpack.c.bf16 %v512, %v506
      %v1233 = vpack.c.bf16 %v513, %v507
      %v1234 = vpack.c.bf16 %v514, %v508
      %v1235 = vpack.c.bf16 %v515, %v509
      %v1236 = vpack.c.bf16 %v522, %v516
      %v1237 = vpack.c.bf16 %v523, %v517
      %v1238 = vpack.c.bf16 %v524, %v518
      %v1239 = vpack.c.bf16 %v525, %v519
      %v1240 = vpack.c.bf16 %v526, %v520
      %v1241 = vpack.c.bf16 %v527, %v521
      %v1242 = vpack.c.bf16 %v534, %v528
      %v1243 = vpack.c.bf16 %v535, %v529
      %v1244 = vpack.c.bf16 %v536, %v530
      %v1245 = vpack.c.bf16 %v537, %v531
      %v1246 = vpack.c.bf16 %v538, %v532
      %v1247 = vpack.c.bf16 %v539, %v533
      %v1248 = vpack.c.bf16 %v546, %v540
      %v1249 = vpack.c.bf16 %v547, %v541
      %v1250 = vpack.c.bf16 %v548, %v542
      %v1251 = vpack.c.bf16 %v549, %v543
      %v1252 = vpack.c.bf16 %v550, %v544
      %v1253 = vpack.c.bf16 %v551, %v545
      %v1254 = vpack.c.bf16 %v558, %v552
      %v1255 = vpack.c.bf16 %v559, %v553
      %v1256 = vpack.c.bf16 %v560, %v554
      %v1257 = vpack.c.bf16 %v561, %v555
      %v1258 = vpack.c.bf16 %v562, %v556
      %v1259 = vpack.c.bf16 %v563, %v557
      %v1260 = vpack.c.bf16 %v570, %v564
      %v1261 = vpack.c.bf16 %v571, %v565
      %v1262 = vpack.c.bf16 %v572, %v566
      %v1263 = vpack.c.bf16 %v573, %v567
      %v1264 = vpack.c.bf16 %v574, %v568
      %v1265 = vpack.c.bf16 %v575, %v569
      %v1266 = vpack.c.bf16 %v582, %v576
      %v1267 = vpack.c.bf16 %v583, %v577
      %v1268 = vpack.c.bf16 %v584, %v578
      %v1269 = vpack.c.bf16 %v585, %v579
      %v1270 = vpack.c.bf16 %v586, %v580
      %v1271 = vpack.c.bf16 %v587, %v581
      %v1272 = vpack.c.bf16 %v594, %v588
      %v1273 = vpack.c.bf16 %v595, %v589
      %v1274 = vpack.c.bf16 %v596, %v590
      %v1275 = vpack.c.bf16 %v597, %v591
      %v1276 = vpack.c.bf16 %v598, %v592
      %v1277 = vpack.c.bf16 %v599, %v593
      %v1278 = vpack.c.bf16 %v606, %v600
      %v1279 = vpack.c.bf16 %v607, %v601
      %v1280 = vpack.c.bf16 %v608, %v602
      %v1281 = vpack.c.bf16 %v609, %v603
      %v1282 = vpack.c.bf16 %v610, %v604
      %v1283 = vpack.c.bf16 %v611, %v605
      %v1284 = vpack.c.bf16 %v618, %v612
      %v1285 = vpack.c.bf16 %v619, %v613
      %v1286 = vpack.c.bf16 %v620, %v614
      %v1287 = vpack.c.bf16 %v621, %v615
      %v1288 = vpack.c.bf16 %v622, %v616
      %v1289 = vpack.c.bf16 %v623, %v617
      %v1290 = vpack.c.bf16 %v630, %v624
      %v1291 = vpack.c.bf16 %v631, %v625
      %v1292 = vpack.c.bf16 %v632, %v626
      %v1293 = vpack.c.bf16 %v633, %v627
      %v1294 = vpack.c.bf16 %v634, %v628
      %v1295 = vpack.c.bf16 %v635, %v629
      %v1296 = vpack.c.bf16 %v642, %v636
      %v1297 = vpack.c.bf16 %v643, %v637
      %v1298 = vpack.c.bf16 %v644, %v638
      %v1299 = vpack.c.bf16 %v645, %v639
      %v1300 = vpack.c.bf16 %v646, %v640
      %v1301 = vpack.c.bf16 %v647, %v641
      %v1302 = vpack.c.bf16 %v654, %v648
      %v1303 = vpack.c.bf16 %v655, %v649
      %v1304 = vpack.c.bf16 %v656, %v650
      %v1305 = vpack.c.bf16 %v657, %v651
      %v1306 = vpack.c.bf16 %v658, %v652
      %v1307 = vpack.c.bf16 %v659, %v653
      %v1308 = vpack.c.bf16 %v666, %v660
      %v1309 = vpack.c.bf16 %v667, %v661
      %v1310 = vpack.c.bf16 %v668, %v662
      %v1311 = vpack.c.bf16 %v669, %v663
      %v1312 = vpack.c.bf16 %v670, %v664
      %v1313 = vpack.c.bf16 %v671, %v665
      %v1314 = vpack.c.bf16 %v678, %v672
      %v1315 = vpack.c.bf16 %v679, %v673
      %v1316 = vpack.c.bf16 %v680, %v674
      %v1317 = vpack.c.bf16 %v681, %v675
      %v1318 = vpack.c.bf16 %v682, %v676
      %v1319 = vpack.c.bf16 %v683, %v677
      %v1320 = vpack.c.bf16 %v690, %v684
      %v1321 = vpack.c.bf16 %v691, %v685
      %v1322 = vpack.c.bf16 %v692, %v686
      %v1323 = vpack.c.bf16 %v693, %v687
      %v1324 = vpack.c.bf16 %v694, %v688
      %v1325 = vpack.c.bf16 %v695, %v689
      %v1326 = vpack.c.bf16 %v702, %v696
      %v1327 = vpack.c.bf16 %v703, %v697
      %v1328 = vpack.c.bf16 %v704, %v698
      %v1329 = vpack.c.bf16 %v705, %v699
      %v1330 = vpack.c.bf16 %v706, %v700
      %v1331 = vpack.c.bf16 %v707, %v701
      %v1332 = vpack.c.bf16 %v714, %v708
      %v1333 = vpack.c.bf16 %v715, %v709
      %v1334 = vpack.c.bf16 %v716, %v710
      %v1335 = vpack.c.bf16 %v717, %v711
      %v1336 = vpack.c.bf16 %v718, %v712
      %v1337 = vpack.c.bf16 %v719, %v713
      %v1338 = vpack.c.bf16 %v726, %v720
      %v1339 = vpack.c.bf16 %v727, %v721
      %v1340 = vpack.c.bf16 %v728, %v722
      %v1341 = vpack.c.bf16 %v729, %v723
      %v1342 = vpack.c.bf16 %v730, %v724
      %v1343 = vpack.c.bf16 %v731, %v725
      %v1344 = vpack.c.bf16 %v738, %v732
      %v1345 = vpack.c.bf16 %v739, %v733
      %v1346 = vpack.c.bf16 %v740, %v734
      %v1347 = vpack.c.bf16 %v741, %v735
      %v1348 = vpack.c.bf16 %v742, %v736
      %v1349 = vpack.c.bf16 %v743, %v737
      %v1350 = vpack.c.bf16 %v750, %v744
      %v1351 = vpack.c.bf16 %v751, %v745
      %v1352 = vpack.c.bf16 %v752, %v746
      %v1353 = vpack.c.bf16 %v753, %v747
      %v1354 = vpack.c.bf16 %v754, %v748
      %v1355 = vpack.c.bf16 %v755, %v749
      %v1356 = vpack.c.bf16 %v762, %v756
      %v1357 = vpack.c.bf16 %v763, %v757
      %v1358 = vpack.c.bf16 %v764, %v758
      %v1359 = vpack.c.bf16 %v765, %v759
      %v1360 = vpack.c.bf16 %v766, %v760
      %v1361 = vpack.c.bf16 %v767, %v761
      %v1362 = vpack.c.bf16 %v774, %v768
      %v1363 = vpack.c.bf16 %v775, %v769
      %v1364 = vpack.c.bf16 %v776, %v770
      %v1365 = vpack.c.bf16 %v777, %v771
      %v1366 = vpack.c.bf16 %v778, %v772
      %v1367 = vpack.c.bf16 %v779, %v773
      %v1368 = vpack.c.bf16 %v786, %v780
      %v1369 = vpack.c.bf16 %v787, %v781
      %v1370 = vpack.c.bf16 %v788, %v782
      %v1371 = vpack.c.bf16 %v789, %v783
      %v1372 = vpack.c.bf16 %v790, %v784
      %v1373 = vpack.c.bf16 %v791, %v785
      %v1374 = vpack.c.bf16 %v798, %v792
      %v1375 = vpack.c.bf16 %v799, %v793
      %v1376 = vpack.c.bf16 %v800, %v794
      %v1377 = vpack.c.bf16 %v801, %v795
      %v1378 = vpack.c.bf16 %v802, %v796
      %v1379 = vpack.c.bf16 %v803, %v797
      %v1380 = vpack.c.bf16 %v810, %v804
      %v1381 = vpack.c.bf16 %v811, %v805
      %v1382 = vpack.c.bf16 %v812, %v806
      %v1383 = vpack.c.bf16 %v813, %v807
      %v1384 = vpack.c.bf16 %v814, %v808
      %v1385 = vpack.c.bf16 %v815, %v809
      %v1386 = vpack.c.bf16 %v822, %v816
      %v1387 = vpack.c.bf16 %v823, %v817
      %v1388 = vpack.c.bf16 %v824, %v818
      %v1389 = vpack.c.bf16 %v825, %v819
      %v1390 = vpack.c.bf16 %v826, %v820
      %v1391 = vpack.c.bf16 %v827, %v821
      %v1392 = vpack.c.bf16 %v834, %v828
      %v1393 = vpack.c.bf16 %v835, %v829
      %v1394 = vpack.c.bf16 %v836, %v830
      %v1395 = vpack.c.bf16 %v837, %v831
      %v1396 = vpack.c.bf16 %v838, %v832
      %v1397 = vpack.c.bf16 %v839, %v833
      %v1398 = vpack.c.bf16 %v846, %v840
      %v1399 = vpack.c.bf16 %v847, %v841
      %v1400 = vpack.c.bf16 %v848, %v842
      %v1401 = vpack.c.bf16 %v849, %v843
      %v1402 = vpack.c.bf16 %v850, %v844
      %v1403 = vpack.c.bf16 %v851, %v845
      %v1404 = vpack.c.bf16 %v858, %v852
      %v1405 = vpack.c.bf16 %v859, %v853
      %v1406 = vpack.c.bf16 %v860, %v854
      %v1407 = vpack.c.bf16 %v861, %v855
      %v1408 = vpack.c.bf16 %v862, %v856
      %v1409 = vpack.c.bf16 %v863, %v857
      %v1410 = vpack.c.bf16 %v870, %v864
      %v1411 = vpack.c.bf16 %v871, %v865
      %v1412 = vpack.c.bf16 %v872, %v866
      %v1413 = vpack.c.bf16 %v873, %v867
      %v1414 = vpack.c.bf16 %v874, %v868
      %v1415 = vpack.c.bf16 %v875, %v869
      %v1416 = vpack.c.bf16 %v882, %v876
      %v1417 = vpack.c.bf16 %v883, %v877
      %v1418 = vpack.c.bf16 %v884, %v878
      %v1419 = vpack.c.bf16 %v885, %v879
      %v1420 = vpack.c.bf16 %v886, %v880
      %v1421 = vpack.c.bf16 %v887, %v881
      %v1422 = vpack.c.bf16 %v894, %v888
      %v1423 = vpack.c.bf16 %v895, %v889
      %v1424 = vpack.c.bf16 %v896, %v890
      %v1425 = vpack.c.bf16 %v897, %v891
      %v1426 = vpack.c.bf16 %v898, %v892
      %v1427 = vpack.c.bf16 %v899, %v893
      %v1428 = vpack.c.bf16 %v906, %v900
      %v1429 = vpack.c.bf16 %v907, %v901
      %v1430 = vpack.c.bf16 %v908, %v902
      %v1431 = vpack.c.bf16 %v909, %v903
      %v1432 = vpack.c.bf16 %v910, %v904
      %v1433 = vpack.c.bf16 %v911, %v905
      %v1434 = vpack.c.bf16 %v918, %v912
      %v1435 = vpack.c.bf16 %v919, %v913
      %v1436 = vpack.c.bf16 %v920, %v914
      %v1437 = vpack.c.bf16 %v921, %v915
      %v1438 = vpack.c.bf16 %v922, %v916
      %v1439 = vpack.c.bf16 %v923, %v917
      %v1440 = vpack.c.bf16 %v930, %v924
      %v1441 = vpack.c.bf16 %v931, %v925
      %v1442 = vpack.c.bf16 %v932, %v926
      %v1443 = vpack.c.bf16 %v933, %v927
      %v1444 = vpack.c.bf16 %v934, %v928
      %v1445 = vpack.c.bf16 %v935, %v929
      %v1446 = vpack.c.bf16 %v942, %v936
      %v1447 = vpack.c.bf16 %v943, %v937
      %v1448 = vpack.c.bf16 %v944, %v938
      %v1449 = vpack.c.bf16 %v945, %v939
      %v1450 = vpack.c.bf16 %v946, %v940
      %v1451 = vpack.c.bf16 %v947, %v941
      %v1452 = vpack.c.bf16 %v954, %v948
      %v1453 = vpack.c.bf16 %v955, %v949
      %v1454 = vpack.c.bf16 %v956, %v950
      %v1455 = vpack.c.bf16 %v957, %v951
      %v1456 = vpack.c.bf16 %v958, %v952
      %v1457 = vpack.c.bf16 %v959, %v953
      %v1458 = vpack.c.bf16 %v966, %v960
      %v1459 = vpack.c.bf16 %v967, %v961
      %v1460 = vpack.c.bf16 %v968, %v962
      %v1461 = vpack.c.bf16 %v969, %v963
      %v1462 = vpack.c.bf16 %v970, %v964
      %v1463 = vpack.c.bf16 %v971, %v965
      %v1464 = vpack.c.bf16 %v978, %v972
      %v1465 = vpack.c.bf16 %v979, %v973
      %v1466 = vpack.c.bf16 %v980, %v974
      %v1467 = vpack.c.bf16 %v981, %v975
      %v1468 = vpack.c.bf16 %v982, %v976
      %v1469 = vpack.c.bf16 %v983, %v977
      %v1470 = vpack.c.bf16 %v990, %v984
      %v1471 = vpack.c.bf16 %v991, %v985
      %v1472 = vpack.c.bf16 %v992, %v986
      %v1473 = vpack.c.bf16 %v993, %v987
      %v1474 = vpack.c.bf16 %v994, %v988
      %v1475 = vpack.c.bf16 %v995, %v989
      %v1476 = vpack.c.bf16 %v1002, %v996
      %v1477 = vpack.c.bf16 %v1003, %v997
      %v1478 = vpack.c.bf16 %v1004, %v998
      %v1479 = vpack.c.bf16 %v1005, %v999
      %v1480 = vpack.c.bf16 %v1006, %v1000
      %v1481 = vpack.c.bf16 %v1007, %v1001
      %v1482 = vpack.c.bf16 %v1014, %v1008
      %v1483 = vpack.c.bf16 %v1015, %v1009
      %v1484 = vpack.c.bf16 %v1016, %v1010
      %v1485 = vpack.c.bf16 %v1017, %v1011
      %v1486 = vpack.c.bf16 %v1018, %v1012
      %v1487 = vpack.c.bf16 %v1019, %v1013
      %v1488 = vpack.c.bf16 %v1026, %v1020
      %v1489 = vpack.c.bf16 %v1027, %v1021
      %v1490 = vpack.c.bf16 %v1028, %v1022
      %v1491 = vpack.c.bf16 %v1029, %v1023
      %v1492 = vpack.c.bf16 %v1030, %v1024
      %v1493 = vpack.c.bf16 %v1031, %v1025
      %v1494 = vpack.c.bf16 %v1038, %v1032
      %v1495 = vpack.c.bf16 %v1039, %v1033
      %v1496 = vpack.c.bf16 %v1040, %v1034
      %v1497 = vpack.c.bf16 %v1041, %v1035
      %v1498 = vpack.c.bf16 %v1042, %v1036
      %v1499 = vpack.c.bf16 %v1043, %v1037
      %v1500 = vpack.c.bf16 %v1050, %v1044
      %v1501 = vpack.c.bf16 %v1051, %v1045
      %v1502 = vpack.c.bf16 %v1052, %v1046
      %v1503 = vpack.c.bf16 %v1053, %v1047
      %v1504 = vpack.c.bf16 %v1054, %v1048
      %v1505 = vpack.c.bf16 %v1055, %v1049
      %v1506 = vpack.c.bf16 %v1062, %v1056
      %v1507 = vpack.c.bf16 %v1063, %v1057
      %v1508 = vpack.c.bf16 %v1064, %v1058
      %v1509 = vpack.c.bf16 %v1065, %v1059
      %v1510 = vpack.c.bf16 %v1066, %v1060
      %v1511 = vpack.c.bf16 %v1067, %v1061
      %v1512 = vpack.c.bf16 %v1074, %v1068
      %v1513 = vpack.c.bf16 %v1075, %v1069
      %v1514 = vpack.c.bf16 %v1076, %v1070
      %v1515 = vpack.c.bf16 %v1077, %v1071
      %v1516 = vpack.c.bf16 %v1078, %v1072
      %v1517 = vpack.c.bf16 %v1079, %v1073
      %v1518 = vpack.c.bf16 %v1086, %v1080
      %v1519 = vpack.c.bf16 %v1087, %v1081
      %v1520 = vpack.c.bf16 %v1088, %v1082
      %v1521 = vpack.c.bf16 %v1089, %v1083
      %v1522 = vpack.c.bf16 %v1090, %v1084
      %v1523 = vpack.c.bf16 %v1091, %v1085
      %v1524 = vpack.c.bf16 %v1098, %v1092
      %v1525 = vpack.c.bf16 %v1099, %v1093
      %v1526 = vpack.c.bf16 %v1100, %v1094
      %v1527 = vpack.c.bf16 %v1101, %v1095
      %v1528 = vpack.c.bf16 %v1102, %v1096
      %v1529 = vpack.c.bf16 %v1103, %v1097
      %v1530 = vpack.c.bf16 %v1110, %v1104
      %v1531 = vpack.c.bf16 %v1111, %v1105
      %v1532 = vpack.c.bf16 %v1112, %v1106
      %v1533 = vpack.c.bf16 %v1113, %v1107
      %v1534 = vpack.c.bf16 %v1114, %v1108
      %v1535 = vpack.c.bf16 %v1115, %v1109
      %v1536 = vpack.c.bf16 %v1122, %v1116
      %v1537 = vpack.c.bf16 %v1123, %v1117
      %v1538 = vpack.c.bf16 %v1124, %v1118
      %v1539 = vpack.c.bf16 %v1125, %v1119
      %v1540 = vpack.c.bf16 %v1126, %v1120
      %v1541 = vpack.c.bf16 %v1127, %v1121
      %v1542 = vpack.c.bf16 %v1134, %v1128
      %v1543 = vpack.c.bf16 %v1135, %v1129
      %v1544 = vpack.c.bf16 %v1136, %v1130
      %v1545 = vpack.c.bf16 %v1137, %v1131
      %v1546 = vpack.c.bf16 %v1138, %v1132
      %v1547 = vpack.c.bf16 %v1139, %v1133
      %v1548 = vpack.c.bf16 %v1146, %v1140
      %v1549 = vpack.c.bf16 %v1147, %v1141
      %v1550 = vpack.c.bf16 %v1148, %v1142
      %v1551 = vpack.c.bf16 %v1149, %v1143
      %v1552 = vpack.c.bf16 %v1150, %v1144
      %v1553 = vpack.c.bf16 %v1151, %v1145
      %v1554 = vpack.c.bf16 %v1158, %v1152
      %v1555 = vpack.c.bf16 %v1159, %v1153
      %v1556 = vpack.c.bf16 %v1160, %v1154
      %v1557 = vpack.c.bf16 %v1161, %v1155
      %v1558 = vpack.c.bf16 %v1162, %v1156
      %v1559 = vpack.c.bf16 %v1163, %v1157
      %v1560 = vpack.c.bf16 %v1170, %v1164
      %v1561 = vpack.c.bf16 %v1171, %v1165
      %v1562 = vpack.c.bf16 %v1172, %v1166
      %v1563 = vpack.c.bf16 %v1173, %v1167
      %v1564 = vpack.c.bf16 %v1174, %v1168
      %v1565 = vpack.c.bf16 %v1175, %v1169
      %v1566 = vpack.c.bf16 %v1182, %v1176
      %v1567 = vpack.c.bf16 %v1183, %v1177
      %v1568 = vpack.c.bf16 %v1184, %v1178
      %v1569 = vpack.c.bf16 %v1185, %v1179
      %v1570 = vpack.c.bf16 %v1186, %v1180
      %v1571 = vpack.c.bf16 %v1187, %v1181
      %v1572 = vld [vmem:[%s1] sm:$0xff]
      %v1573 = vld [vmem:[%s1 + $0x8] sm:$0xff]
      %v1574 = vld [vmem:[%s1 + $0x10] sm:$0xff]
      %v1575 = vld [vmem:[%s1 + $0x18] sm:$0xff]
      %v1576 = vld [vmem:[%s1 + $0x20] sm:$0xff]
      %v1577 = vld [vmem:[%s1 + $0x28] sm:$0xff]
      %v1578 = vld [vmem:[%s1 + $0x30] sm:$0xff]
      %v1579 = vld [vmem:[%s1 + $0x38] sm:$0xff]
      %v1580 = vld [vmem:[%s1 + $0x40] sm:$0xff]
      %v1581 = vld [vmem:[%s1 + $0x48] sm:$0xff]
      %v1582 = vld [vmem:[%s1 + $0x50] sm:$0xff]
      %v1583 = vld [vmem:[%s1 + $0x58] sm:$0xff]
      %v1584 = vld [vmem:[%s1 + $0x60] sm:$0xff]
      %v1585 = vld [vmem:[%s1 + $0x68] sm:$0xff]
      %v1586 = vld [vmem:[%s1 + $0x70] sm:$0xff]
      %v1587 = vld [vmem:[%s1 + $0x78] sm:$0xff]
      %v1588 = vld [vmem:[%s1 + $0x80] sm:$0xff]
      %v1589 = vld [vmem:[%s1 + $0x88] sm:$0xff]
      %v1590 = vld [vmem:[%s1 + $0x90] sm:$0xff]
      %v1591 = vld [vmem:[%s1 + $0x98] sm:$0xff]
      %v1592 = vld [vmem:[%s1 + $0xa0] sm:$0xff]
      %v1593 = vld [vmem:[%s1 + $0xa8] sm:$0xff]
      %v1594 = vld [vmem:[%s1 + $0xb0] sm:$0xff]
      %v1595 = vld [vmem:[%s1 + $0xb8] sm:$0xff]
      %v1596 = vld [vmem:[%s1 + $0xc0] sm:$0xff]
      %v1597 = vld [vmem:[%s1 + $0xc8] sm:$0xff]
      %v1598 = vld [vmem:[%s1 + $0xd0] sm:$0xff]
      %v1599 = vld [vmem:[%s1 + $0xd8] sm:$0xff]
      %v1600 = vld [vmem:[%s1 + $0xe0] sm:$0xff]
      %v1601 = vld [vmem:[%s1 + $0xe8] sm:$0xff]
      %v1602 = vld [vmem:[%s1 + $0xf0] sm:$0xff]
      %v1603 = vld [vmem:[%s1 + $0xf8] sm:$0xff]
      %v1604 = vld [vmem:[%s2] sm:$0xff]
      %v1605 = vld [vmem:[%s2 + $0x8] sm:$0xff]
      %v1606 = vld [vmem:[%s2 + $0x10] sm:$0xff]
      %v1607 = vld [vmem:[%s2 + $0x18] sm:$0xff]
      %v1608 = vld [vmem:[%s2 + $0x20] sm:$0xff]
      %v1609 = vld [vmem:[%s2 + $0x28] sm:$0xff]
      %v1610 = vld [vmem:[%s2 + $0x30] sm:$0xff]
      %v1611 = vld [vmem:[%s2 + $0x38] sm:$0xff]
      %1613 = vset.pattern.permute.xlu0 0
      %1614 = vperm.xlu0 %1613, %v1604
      %v1615 = vpop.permute.xlu0 %1614
      %1618 = vset.pattern.permute.xlu0 0
      %1619 = vperm.xlu0 %1618, %v1605
      %v1620 = vpop.permute.xlu0 %1619
      %1623 = vset.pattern.permute.xlu0 0
      %1624 = vperm.xlu0 %1623, %v1606
      %v1625 = vpop.permute.xlu0 %1624
      %1628 = vset.pattern.permute.xlu0 0
      %1629 = vperm.xlu0 %1628, %v1607
      %v1630 = vpop.permute.xlu0 %1629
      %1633 = vset.pattern.permute.xlu0 0
      %1634 = vperm.xlu0 %1633, %v1608
      %v1635 = vpop.permute.xlu0 %1634
      %1638 = vset.pattern.permute.xlu0 0
      %1639 = vperm.xlu0 %1638, %v1609
      %v1640 = vpop.permute.xlu0 %1639
      %1643 = vset.pattern.permute.xlu0 0
      %1644 = vperm.xlu0 %1643, %v1610
      %v1645 = vpop.permute.xlu0 %1644
      %1648 = vset.pattern.permute.xlu0 0
      %1649 = vperm.xlu0 %1648, %v1611
      %v1650 = vpop.permute.xlu0 %1649
      %v1684 = vunpack.c.l.b16 %v1572
      %v1685 = vunpack.c.h.b16 %v1572
      %v1686 = vunpack.c.l.b16 %v1573
      %v1687 = vunpack.c.h.b16 %v1573
      %v1688 = vunpack.c.l.b16 %v1574
      %v1689 = vunpack.c.h.b16 %v1574
      %v1690 = vunpack.c.l.b16 %v1575
      %v1691 = vunpack.c.h.b16 %v1575
      %v1692 = vunpack.c.l.b16 %v1576
      %v1693 = vunpack.c.h.b16 %v1576
      %v1694 = vunpack.c.l.b16 %v1577
      %v1695 = vunpack.c.h.b16 %v1577
      %v1696 = vunpack.c.l.b16 %v1578
      %v1697 = vunpack.c.h.b16 %v1578
      %v1698 = vunpack.c.l.b16 %v1579
      %v1699 = vunpack.c.h.b16 %v1579
      %v1700 = vunpack.c.l.b16 %v1580
      %v1701 = vunpack.c.h.b16 %v1580
      %v1702 = vunpack.c.l.b16 %v1581
      %v1703 = vunpack.c.h.b16 %v1581
      %v1704 = vunpack.c.l.b16 %v1582
      %v1705 = vunpack.c.h.b16 %v1582
      %v1706 = vunpack.c.l.b16 %v1583
      %v1707 = vunpack.c.h.b16 %v1583
      %v1708 = vunpack.c.l.b16 %v1584
      %v1709 = vunpack.c.h.b16 %v1584
      %v1710 = vunpack.c.l.b16 %v1585
      %v1711 = vunpack.c.h.b16 %v1585
      %v1712 = vunpack.c.l.b16 %v1586
      %v1713 = vunpack.c.h.b16 %v1586
      %v1714 = vunpack.c.l.b16 %v1587
      %v1715 = vunpack.c.h.b16 %v1587
      %v1716 = vunpack.c.l.b16 %v1588
      %v1717 = vunpack.c.h.b16 %v1588
      %v1718 = vunpack.c.l.b16 %v1589
      %v1719 = vunpack.c.h.b16 %v1589
      %v1720 = vunpack.c.l.b16 %v1590
      %v1721 = vunpack.c.h.b16 %v1590
      %v1722 = vunpack.c.l.b16 %v1591
      %v1723 = vunpack.c.h.b16 %v1591
      %v1724 = vunpack.c.l.b16 %v1592
      %v1725 = vunpack.c.h.b16 %v1592
      %v1726 = vunpack.c.l.b16 %v1593
      %v1727 = vunpack.c.h.b16 %v1593
      %v1728 = vunpack.c.l.b16 %v1594
      %v1729 = vunpack.c.h.b16 %v1594
      %v1730 = vunpack.c.l.b16 %v1595
      %v1731 = vunpack.c.h.b16 %v1595
      %v1732 = vunpack.c.l.b16 %v1596
      %v1733 = vunpack.c.h.b16 %v1596
      %v1734 = vunpack.c.l.b16 %v1597
      %v1735 = vunpack.c.h.b16 %v1597
      %v1736 = vunpack.c.l.b16 %v1598
      %v1737 = vunpack.c.h.b16 %v1598
      %v1738 = vunpack.c.l.b16 %v1599
      %v1739 = vunpack.c.h.b16 %v1599
      %v1740 = vunpack.c.l.b16 %v1600
      %v1741 = vunpack.c.h.b16 %v1600
      %v1742 = vunpack.c.l.b16 %v1601
      %v1743 = vunpack.c.h.b16 %v1601
      %v1744 = vunpack.c.l.b16 %v1602
      %v1745 = vunpack.c.h.b16 %v1602
      %v1746 = vunpack.c.l.b16 %v1603
      %v1747 = vunpack.c.h.b16 %v1603
      %v1748 = vpack.c.b16 %v1692, %v1684
      %v1749 = vpack.c.b16 %v1693, %v1685
      %v1750 = vpack.c.b16 %v1694, %v1686
      %v1751 = vpack.c.b16 %v1695, %v1687
      %v1752 = vpack.c.b16 %v1696, %v1688
      %v1753 = vpack.c.b16 %v1697, %v1689
      %v1754 = vpack.c.b16 %v1698, %v1690
      %v1755 = vpack.c.b16 %v1699, %v1691
      %v1756 = vpack.c.b16 %v1708, %v1700
      %v1757 = vpack.c.b16 %v1709, %v1701
      %v1758 = vpack.c.b16 %v1710, %v1702
      %v1759 = vpack.c.b16 %v1711, %v1703
      %v1760 = vpack.c.b16 %v1712, %v1704
      %v1761 = vpack.c.b16 %v1713, %v1705
      %v1762 = vpack.c.b16 %v1714, %v1706
      %v1763 = vpack.c.b16 %v1715, %v1707
      %v1764 = vpack.c.b16 %v1724, %v1716
      %v1765 = vpack.c.b16 %v1725, %v1717
      %v1766 = vpack.c.b16 %v1726, %v1718
      %v1767 = vpack.c.b16 %v1727, %v1719
      %v1768 = vpack.c.b16 %v1728, %v1720
      %v1769 = vpack.c.b16 %v1729, %v1721
      %v1770 = vpack.c.b16 %v1730, %v1722
      %v1771 = vpack.c.b16 %v1731, %v1723
      %v1772 = vpack.c.b16 %v1740, %v1732
      %v1773 = vpack.c.b16 %v1741, %v1733
      %v1774 = vpack.c.b16 %v1742, %v1734
      %v1775 = vpack.c.b16 %v1743, %v1735
      %v1776 = vpack.c.b16 %v1744, %v1736
      %v1777 = vpack.c.b16 %v1745, %v1737
      %v1778 = vpack.c.b16 %v1746, %v1738
      %v1779 = vpack.c.b16 %v1747, %v1739
      %1812 = vmatprep.subr.bf16.mxu0 %v1189
      %1813 = vmatpush1.bf16.msra.mxu0 %v1188
      %1814 = vmatprep.subr.bf16.mxu0 %v1195
      %1815 = vmatpush1.bf16.msra.mxu0 %v1194
      %1816 = vmatprep.subr.bf16.mxu0 %v1201
      %1817 = vmatpush1.bf16.msra.mxu0 %v1200
      %1818 = vmatprep.subr.bf16.mxu0 %v1207
      %1819 = vmatpush1.bf16.msra.mxu0 %v1206
      %1820 = vmatprep.subr.bf16.mxu0 %v1213
      %1821 = vmatpush1.bf16.msra.mxu0 %v1212
      %1822 = vmatprep.subr.bf16.mxu0 %v1219
      %1823 = vmatpush1.bf16.msra.mxu0 %v1218
      %1824 = vmatprep.subr.bf16.mxu0 %v1225
      %1825 = vmatpush1.bf16.msra.mxu0 %v1224
      %1826 = vmatprep.subr.bf16.mxu0 %v1231
      %1827 = vmatpush1.bf16.msra.mxu0 %v1230
      %1828 = vmatprep.subr.bf16.mxu0 %v1237
      %1829 = vmatpush1.bf16.msra.mxu0 %v1236
      %1830 = vmatprep.subr.bf16.mxu0 %v1243
      %1831 = vmatpush1.bf16.msra.mxu0 %v1242
      %1832 = vmatprep.subr.bf16.mxu0 %v1249
      %1833 = vmatpush1.bf16.msra.mxu0 %v1248
      %1834 = vmatprep.subr.bf16.mxu0 %v1255
      %1835 = vmatpush1.bf16.msra.mxu0 %v1254
      %1836 = vmatprep.subr.bf16.mxu0 %v1261
      %1837 = vmatpush1.bf16.msra.mxu0 %v1260
      %1838 = vmatprep.subr.bf16.mxu0 %v1267
      %1839 = vmatpush1.bf16.msra.mxu0 %v1266
      %1840 = vmatprep.subr.bf16.mxu0 %v1273
      %1841 = vmatpush1.bf16.msra.mxu0 %v1272
      %1842 = vmatprep.subr.bf16.mxu0 %v1279
      %1843 = vmatpush1.bf16.msra.mxu0 %v1278
      %1844 = vmatprep.mubr.bf16.mxu0 %v1749
      %1845 = vmatmul.mubr.bf16.gmra.mrb[0].mxu0 %v1748
      %v1846 = vpop.f32.mrb[0].mxu0
      %v1847 = vadd.f32 %v1615, %v1846
      %v1848 = vpop.f32.mrb[0].mxu0
      %v1849 = vadd.f32 %v1615, %v1848
      %v1850 = vpop.f32.mrb[0].mxu0
      %v1851 = vadd.f32 %v1620, %v1850
      %v1852 = vpop.f32.mrb[0].mxu0
      %v1853 = vadd.f32 %v1620, %v1852
      %1854 = vmatprep.mubr.bf16.mxu0 %v1757
      %1855 = vmatmul.mubr.bf16.gmra.mrb[0].mxu0 %v1756
      %v1856 = vpop.f32.mrb[0].mxu0
      %v1857 = vadd.f32 %v1625, %v1856
      %v1858 = vpop.f32.mrb[0].mxu0
      %v1859 = vadd.f32 %v1625, %v1858
      %v1860 = vpop.f32.mrb[0].mxu0
      %v1861 = vadd.f32 %v1630, %v1860
      %v1862 = vpop.f32.mrb[0].mxu0
      %v1863 = vadd.f32 %v1630, %v1862
      %1864 = vmatprep.mubr.bf16.mxu0 %v1765
      %1865 = vmatmul.mubr.bf16.gmra.mrb[0].mxu0 %v1764
      %v1866 = vpop.f32.mrb[0].mxu0
      %v1867 = vadd.f32 %v1635, %v1866
      %v1868 = vpop.f32.mrb[0].mxu0
      %v1869 = vadd.f32 %v1635, %v1868
      %v1870 = vpop.f32.mrb[0].mxu0
      %v1871 = vadd.f32 %v1640, %v1870
      %v1872 = vpop.f32.mrb[0].mxu0
      %v1873 = vadd.f32 %v1640, %v1872
      %1874 = vmatprep.mubr.bf16.mxu0 %v1773
      %1875 = vmatmul.mubr.bf16.gmra.mrb[0].mxu0 %v1772
      %v1876 = vpop.f32.mrb[0].mxu0
      %v1877 = vadd.f32 %v1645, %v1876
      %v1878 = vpop.f32.mrb[0].mxu0
      %v1879 = vadd.f32 %v1645, %v1878
      %v1880 = vpop.f32.mrb[0].mxu0
      %v1881 = vadd.f32 %v1650, %v1880
      %v1882 = vpop.f32.mrb[0].mxu0
      %v1883 = vadd.f32 %v1650, %v1882
      %1884 = vdwg.mxu0
      %1885 = vmatprep.subr.bf16.mxu0 %v1285
      %1886 = vmatpush1.bf16.msra.mxu0 %v1284
      %1887 = vmatprep.subr.bf16.mxu0 %v1291
      %1888 = vmatpush1.bf16.msra.mxu0 %v1290
      %1889 = vmatprep.subr.bf16.mxu0 %v1297
      %1890 = vmatpush1.bf16.msra.mxu0 %v1296
      %1891 = vmatprep.subr.bf16.mxu0 %v1303
      %1892 = vmatpush1.bf16.msra.mxu0 %v1302
      %1893 = vmatprep.subr.bf16.mxu0 %v1309
      %1894 = vmatpush1.bf16.msra.mxu0 %v1308
      %1895 = vmatprep.subr.bf16.mxu0 %v1315
      %1896 = vmatpush1.bf16.msra.mxu0 %v1314
      %1897 = vmatprep.subr.bf16.mxu0 %v1321
      %1898 = vmatpush1.bf16.msra.mxu0 %v1320
      %1899 = vmatprep.subr.bf16.mxu0 %v1327
      %1900 = vmatpush1.bf16.msra.mxu0 %v1326
      %1901 = vmatprep.subr.bf16.mxu0 %v1333
      %1902 = vmatpush1.bf16.msra.mxu0 %v1332
      %1903 = vmatprep.subr.bf16.mxu0 %v1339
      %1904 = vmatpush1.bf16.msra.mxu0 %v1338
      %1905 = vmatprep.subr.bf16.mxu0 %v1345
      %1906 = vmatpush1.bf16.msra.mxu0 %v1344
      %1907 = vmatprep.subr.bf16.mxu0 %v1351
      %1908 = vmatpush1.bf16.msra.mxu0 %v1350
      %1909 = vmatprep.subr.bf16.mxu0 %v1357
      %1910 = vmatpush1.bf16.msra.mxu0 %v1356
      %1911 = vmatprep.subr.bf16.mxu0 %v1363
      %1912 = vmatpush1.bf16.msra.mxu0 %v1362
      %1913 = vmatprep.subr.bf16.mxu0 %v1369
      %1914 = vmatpush1.bf16.msra.mxu0 %v1368
      %1915 = vmatprep.subr.bf16.mxu0 %v1375
      %1916 = vmatpush1.bf16.msra.mxu0 %v1374
      %1917 = vmatprep.mubr.bf16.mxu0 %v1751
      %1918 = vmatmul.mubr.bf16.gmra.mrb[0].mxu0 %v1750
      %v1919 = vpop.f32.mrb[0].mxu0
      %v1920 = vadd.f32 %v1847, %v1919
      %v1921 = vpop.f32.mrb[0].mxu0
      %v1922 = vadd.f32 %v1849, %v1921
      %v1923 = vpop.f32.mrb[0].mxu0
      %v1924 = vadd.f32 %v1851, %v1923
      %v1925 = vpop.f32.mrb[0].mxu0
      %v1926 = vadd.f32 %v1853, %v1925
      %1927 = vmatprep.mubr.bf16.mxu0 %v1759
      %1928 = vmatmul.mubr.bf16.gmra.mrb[0].mxu0 %v1758
      %v1929 = vpop.f32.mrb[0].mxu0
      %v1930 = vadd.f32 %v1857, %v1929
      %v1931 = vpop.f32.mrb[0].mxu0
      %v1932 = vadd.f32 %v1859, %v1931
      %v1933 = vpop.f32.mrb[0].mxu0
      %v1934 = vadd.f32 %v1861, %v1933
      %v1935 = vpop.f32.mrb[0].mxu0
      %v1936 = vadd.f32 %v1863, %v1935
      %1937 = vmatprep.mubr.bf16.mxu0 %v1767
      %1938 = vmatmul.mubr.bf16.gmra.mrb[0].mxu0 %v1766
      %v1939 = vpop.f32.mrb[0].mxu0
      %v1940 = vadd.f32 %v1867, %v1939
      %v1941 = vpop.f32.mrb[0].mxu0
      %v1942 = vadd.f32 %v1869, %v1941
      %v1943 = vpop.f32.mrb[0].mxu0
      %v1944 = vadd.f32 %v1871, %v1943
      %v1945 = vpop.f32.mrb[0].mxu0
      %v1946 = vadd.f32 %v1873, %v1945
      %1947 = vmatprep.mubr.bf16.mxu0 %v1775
      %1948 = vmatmul.mubr.bf16.gmra.mrb[0].mxu0 %v1774
      %v1949 = vpop.f32.mrb[0].mxu0
      %v1950 = vadd.f32 %v1877, %v1949
      %v1951 = vpop.f32.mrb[0].mxu0
      %v1952 = vadd.f32 %v1879, %v1951
      %v1953 = vpop.f32.mrb[0].mxu0
      %v1954 = vadd.f32 %v1881, %v1953
      %v1955 = vpop.f32.mrb[0].mxu0
      %v1956 = vadd.f32 %v1883, %v1955
      %1957 = vdwg.mxu0
      %1958 = vmatprep.subr.bf16.mxu0 %v1381
      %1959 = vmatpush1.bf16.msra.mxu0 %v1380
      %1960 = vmatprep.subr.bf16.mxu0 %v1387
      %1961 = vmatpush1.bf16.msra.mxu0 %v1386
      %1962 = vmatprep.subr.bf16.mxu0 %v1393
      %1963 = vmatpush1.bf16.msra.mxu0 %v1392
      %1964 = vmatprep.subr.bf16.mxu0 %v1399
      %1965 = vmatpush1.bf16.msra.mxu0 %v1398
      %1966 = vmatprep.subr.bf16.mxu0 %v1405
      %1967 = vmatpush1.bf16.msra.mxu0 %v1404
      %1968 = vmatprep.subr.bf16.mxu0 %v1411
      %1969 = vmatpush1.bf16.msra.mxu0 %v1410
      %1970 = vmatprep.subr.bf16.mxu0 %v1417
      %1971 = vmatpush1.bf16.msra.mxu0 %v1416
      %1972 = vmatprep.subr.bf16.mxu0 %v1423
      %1973 = vmatpush1.bf16.msra.mxu0 %v1422
      %1974 = vmatprep.subr.bf16.mxu0 %v1429
      %1975 = vmatpush1.bf16.msra.mxu0 %v1428
      %1976 = vmatprep.subr.bf16.mxu0 %v1435
      %1977 = vmatpush1.bf16.msra.mxu0 %v1434
      %1978 = vmatprep.subr.bf16.mxu0 %v1441
      %1979 = vmatpush1.bf16.msra.mxu0 %v1440
      %1980 = vmatprep.subr.bf16.mxu0 %v1447
      %1981 = vmatpush1.bf16.msra.mxu0 %v1446
      %1982 = vmatprep.subr.bf16.mxu0 %v1453
      %1983 = vmatpush1.bf16.msra.mxu0 %v1452
      %1984 = vmatprep.subr.bf16.mxu0 %v1459
      %1985 = vmatpush1.bf16.msra.mxu0 %v1458
      %1986 = vmatprep.subr.bf16.mxu0 %v1465
      %1987 = vmatpush1.bf16.msra.mxu0 %v1464
      %1988 = vmatprep.subr.bf16.mxu0 %v1471
      %1989 = vmatpush1.bf16.msra.mxu0 %v1470
      %1990 = vmatprep.mubr.bf16.mxu0 %v1753
      %1991 = vmatmul.mubr.bf16.gmra.mrb[0].mxu0 %v1752
      %v1992 = vpop.f32.mrb[0].mxu0
      %v1993 = vadd.f32 %v1920, %v1992
      %v1994 = vpop.f32.mrb[0].mxu0
      %v1995 = vadd.f32 %v1922, %v1994
      %v1996 = vpop.f32.mrb[0].mxu0
      %v1997 = vadd.f32 %v1924, %v1996
      %v1998 = vpop.f32.mrb[0].mxu0
      %v1999 = vadd.f32 %v1926, %v1998
      %2000 = vmatprep.mubr.bf16.mxu0 %v1761
      %2001 = vmatmul.mubr.bf16.gmra.mrb[0].mxu0 %v1760
      %v2002 = vpop.f32.mrb[0].mxu0
      %v2003 = vadd.f32 %v1930, %v2002
      %v2004 = vpop.f32.mrb[0].mxu0
      %v2005 = vadd.f32 %v1932, %v2004
      %v2006 = vpop.f32.mrb[0].mxu0
      %v2007 = vadd.f32 %v1934, %v2006
      %v2008 = vpop.f32.mrb[0].mxu0
      %v2009 = vadd.f32 %v1936, %v2008
      %2010 = vmatprep.mubr.bf16.mxu0 %v1769
      %2011 = vmatmul.mubr.bf16.gmra.mrb[0].mxu0 %v1768
      %v2012 = vpop.f32.mrb[0].mxu0
      %v2013 = vadd.f32 %v1940, %v2012
      %v2014 = vpop.f32.mrb[0].mxu0
      %v2015 = vadd.f32 %v1942, %v2014
      %v2016 = vpop.f32.mrb[0].mxu0
      %v2017 = vadd.f32 %v1944, %v2016
      %v2018 = vpop.f32.mrb[0].mxu0
      %v2019 = vadd.f32 %v1946, %v2018
      %2020 = vmatprep.mubr.bf16.mxu0 %v1777
      %2021 = vmatmul.mubr.bf16.gmra.mrb[0].mxu0 %v1776
      %v2022 = vpop.f32.mrb[0].mxu0
      %v2023 = vadd.f32 %v1950, %v2022
      %v2024 = vpop.f32.mrb[0].mxu0
      %v2025 = vadd.f32 %v1952, %v2024
      %v2026 = vpop.f32.mrb[0].mxu0
      %v2027 = vadd.f32 %v1954, %v2026
      %v2028 = vpop.f32.mrb[0].mxu0
      %v2029 = vadd.f32 %v1956, %v2028
      %2030 = vdwg.mxu0
      %2031 = vmatprep.subr.bf16.mxu0 %v1477
      %2032 = vmatpush1.bf16.msra.mxu0 %v1476
      %2033 = vmatprep.subr.bf16.mxu0 %v1483
      %2034 = vmatpush1.bf16.msra.mxu0 %v1482
      %2035 = vmatprep.subr.bf16.mxu0 %v1489
      %2036 = vmatpush1.bf16.msra.mxu0 %v1488
      %2037 = vmatprep.subr.bf16.mxu0 %v1495
      %2038 = vmatpush1.bf16.msra.mxu0 %v1494
      %2039 = vmatprep.subr.bf16.mxu0 %v1501
      %2040 = vmatpush1.bf16.msra.mxu0 %v1500
      %2041 = vmatprep.subr.bf16.mxu0 %v1507
      %2042 = vmatpush1.bf16.msra.mxu0 %v1506
      %2043 = vmatprep.subr.bf16.mxu0 %v1513
      %2044 = vmatpush1.bf16.msra.mxu0 %v1512
      %2045 = vmatprep.subr.bf16.mxu0 %v1519
      %2046 = vmatpush1.bf16.msra.mxu0 %v1518
      %2047 = vmatprep.subr.bf16.mxu0 %v1525
      %2048 = vmatpush1.bf16.msra.mxu0 %v1524
      %2049 = vmatprep.subr.bf16.mxu0 %v1531
      %2050 = vmatpush1.bf16.msra.mxu0 %v1530
      %2051 = vmatprep.subr.bf16.mxu0 %v1537
      %2052 = vmatpush1.bf16.msra.mxu0 %v1536
      %2053 = vmatprep.subr.bf16.mxu0 %v1543
      %2054 = vmatpush1.bf16.msra.mxu0 %v1542
      %2055 = vmatprep.subr.bf16.mxu0 %v1549
      %2056 = vmatpush1.bf16.msra.mxu0 %v1548
      %2057 = vmatprep.subr.bf16.mxu0 %v1555
      %2058 = vmatpush1.bf16.msra.mxu0 %v1554
      %2059 = vmatprep.subr.bf16.mxu0 %v1561
      %2060 = vmatpush1.bf16.msra.mxu0 %v1560
      %2061 = vmatprep.subr.bf16.mxu0 %v1567
      %2062 = vmatpush1.bf16.msra.mxu0 %v1566
      %2063 = vmatprep.mubr.bf16.mxu0 %v1755
      %2064 = vmatmul.mubr.bf16.gmra.mrb[0].mxu0 %v1754
      %v2065 = vpop.f32.mrb[0].mxu0
      %v2066 = vadd.f32 %v1993, %v2065
      %v2067 = vpop.f32.mrb[0].mxu0
      %v2068 = vadd.f32 %v1995, %v2067
      %v2069 = vpop.f32.mrb[0].mxu0
      %v2070 = vadd.f32 %v1997, %v2069
      %v2071 = vpop.f32.mrb[0].mxu0
      %v2072 = vadd.f32 %v1999, %v2071
      %2073 = vmatprep.mubr.bf16.mxu0 %v1763
      %2074 = vmatmul.mubr.bf16.gmra.mrb[0].mxu0 %v1762
      %v2075 = vpop.f32.mrb[0].mxu0
      %v2076 = vadd.f32 %v2003, %v2075
      %v2077 = vpop.f32.mrb[0].mxu0
      %v2078 = vadd.f32 %v2005, %v2077
      %v2079 = vpop.f32.mrb[0].mxu0
      %v2080 = vadd.f32 %v2007, %v2079
      %v2081 = vpop.f32.mrb[0].mxu0
      %v2082 = vadd.f32 %v2009, %v2081
      %2083 = vmatprep.mubr.bf16.mxu0 %v1771
      %2084 = vmatmul.mubr.bf16.gmra.mrb[0].mxu0 %v1770
      %v2085 = vpop.f32.mrb[0].mxu0
      %v2086 = vadd.f32 %v2013, %v2085
      %v2087 = vpop.f32.mrb[0].mxu0
      %v2088 = vadd.f32 %v2015, %v2087
      %v2089 = vpop.f32.mrb[0].mxu0
      %v2090 = vadd.f32 %v2017, %v2089
      %v2091 = vpop.f32.mrb[0].mxu0
      %v2092 = vadd.f32 %v2019, %v2091
      %2093 = vmatprep.mubr.bf16.mxu0 %v1779
      %2094 = vmatmul.mubr.bf16.gmra.mrb[0].mxu0 %v1778
      %v2095 = vpop.f32.mrb[0].mxu0
      %v2096 = vadd.f32 %v2023, %v2095
      %v2097 = vpop.f32.mrb[0].mxu0
      %v2098 = vadd.f32 %v2025, %v2097
      %v2099 = vpop.f32.mrb[0].mxu0
      %v2100 = vadd.f32 %v2027, %v2099
      %v2101 = vpop.f32.mrb[0].mxu0
      %v2102 = vadd.f32 %v2029, %v2101
      %2103 = vdwg.mxu0
      %2104 = vmatprep.subr.bf16.mxu0 %v1191
      %2105 = vmatpush1.bf16.msra.mxu0 %v1190
      %2106 = vmatprep.subr.bf16.mxu0 %v1197
      %2107 = vmatpush1.bf16.msra.mxu0 %v1196
      %2108 = vmatprep.subr.bf16.mxu0 %v1203
      %2109 = vmatpush1.bf16.msra.mxu0 %v1202
      %2110 = vmatprep.subr.bf16.mxu0 %v1209
      %2111 = vmatpush1.bf16.msra.mxu0 %v1208
      %2112 = vmatprep.subr.bf16.mxu0 %v1215
      %2113 = vmatpush1.bf16.msra.mxu0 %v1214
      %2114 = vmatprep.subr.bf16.mxu0 %v1221
      %2115 = vmatpush1.bf16.msra.mxu0 %v1220
      %2116 = vmatprep.subr.bf16.mxu0 %v1227
      %2117 = vmatpush1.bf16.msra.mxu0 %v1226
      %2118 = vmatprep.subr.bf16.mxu0 %v1233
      %2119 = vmatpush1.bf16.msra.mxu0 %v1232
      %2120 = vmatprep.subr.bf16.mxu0 %v1239
      %2121 = vmatpush1.bf16.msra.mxu0 %v1238
      %2122 = vmatprep.subr.bf16.mxu0 %v1245
      %2123 = vmatpush1.bf16.msra.mxu0 %v1244
      %2124 = vmatprep.subr.bf16.mxu0 %v1251
      %2125 = vmatpush1.bf16.msra.mxu0 %v1250
      %2126 = vmatprep.subr.bf16.mxu0 %v1257
      %2127 = vmatpush1.bf16.msra.mxu0 %v1256
      %2128 = vmatprep.subr.bf16.mxu0 %v1263
      %2129 = vmatpush1.bf16.msra.mxu0 %v1262
      %2130 = vmatprep.subr.bf16.mxu0 %v1269
      %2131 = vmatpush1.bf16.msra.mxu0 %v1268
      %2132 = vmatprep.subr.bf16.mxu0 %v1275
      %2133 = vmatpush1.bf16.msra.mxu0 %v1274
      %2134 = vmatprep.subr.bf16.mxu0 %v1281
      %2135 = vmatpush1.bf16.msra.mxu0 %v1280
      %2136 = vmatprep.mubr.bf16.mxu0 %v1749
      %2137 = vmatmul.mubr.bf16.gmra.mrb[0].mxu0 %v1748
      %v2138 = vpop.f32.mrb[0].mxu0
      %v2139 = vadd.f32 %v1615, %v2138
      %v2140 = vpop.f32.mrb[0].mxu0
      %v2141 = vadd.f32 %v1615, %v2140
      %v2142 = vpop.f32.mrb[0].mxu0
      %v2143 = vadd.f32 %v1620, %v2142
      %v2144 = vpop.f32.mrb[0].mxu0
      %v2145 = vadd.f32 %v1620, %v2144
      %2146 = vmatprep.mubr.bf16.mxu0 %v1757
      %2147 = vmatmul.mubr.bf16.gmra.mrb[0].mxu0 %v1756
      %v2148 = vpop.f32.mrb[0].mxu0
      %v2149 = vadd.f32 %v1625, %v2148
      %v2150 = vpop.f32.mrb[0].mxu0
      %v2151 = vadd.f32 %v1625, %v2150
      %v2152 = vpop.f32.mrb[0].mxu0
      %v2153 = vadd.f32 %v1630, %v2152
      %v2154 = vpop.f32.mrb[0].mxu0
      %v2155 = vadd.f32 %v1630, %v2154
      %2156 = vmatprep.mubr.bf16.mxu0 %v1765
      %2157 = vmatmul.mubr.bf16.gmra.mrb[0].mxu0 %v1764
      %v2158 = vpop.f32.mrb[0].mxu0
      %v2159 = vadd.f32 %v1635, %v2158
      %v2160 = vpop.f32.mrb[0].mxu0
      %v2161 = vadd.f32 %v1635, %v2160
      %v2162 = vpop.f32.mrb[0].mxu0
      %v2163 = vadd.f32 %v1640, %v2162
      %v2164 = vpop.f32.mrb[0].mxu0
      %v2165 = vadd.f32 %v1640, %v2164
      %2166 = vmatprep.mubr.bf16.mxu0 %v1773
      %2167 = vmatmul.mubr.bf16.gmra.mrb[0].mxu0 %v1772
      %v2168 = vpop.f32.mrb[0].mxu0
      %v2169 = vadd.f32 %v1645, %v2168
      %v2170 = vpop.f32.mrb[0].mxu0
      %v2171 = vadd.f32 %v1645, %v2170
      %v2172 = vpop.f32.mrb[0].mxu0
      %v2173 = vadd.f32 %v1650, %v2172
      %v2174 = vpop.f32.mrb[0].mxu0
      %v2175 = vadd.f32 %v1650, %v2174
      %2176 = vdwg.mxu0
      %2177 = vmatprep.subr.bf16.mxu0 %v1287
      %2178 = vmatpush1.bf16.msra.mxu0 %v1286
      %2179 = vmatprep.subr.bf16.mxu0 %v1293
      %2180 = vmatpush1.bf16.msra.mxu0 %v1292
      %2181 = vmatprep.subr.bf16.mxu0 %v1299
      %2182 = vmatpush1.bf16.msra.mxu0 %v1298
      %2183 = vmatprep.subr.bf16.mxu0 %v1305
      %2184 = vmatpush1.bf16.msra.mxu0 %v1304
      %2185 = vmatprep.subr.bf16.mxu0 %v1311
      %2186 = vmatpush1.bf16.msra.mxu0 %v1310
      %2187 = vmatprep.subr.bf16.mxu0 %v1317
      %2188 = vmatpush1.bf16.msra.mxu0 %v1316
      %2189 = vmatprep.subr.bf16.mxu0 %v1323
      %2190 = vmatpush1.bf16.msra.mxu0 %v1322
      %2191 = vmatprep.subr.bf16.mxu0 %v1329
      %2192 = vmatpush1.bf16.msra.mxu0 %v1328
      %2193 = vmatprep.subr.bf16.mxu0 %v1335
      %2194 = vmatpush1.bf16.msra.mxu0 %v1334
      %2195 = vmatprep.subr.bf16.mxu0 %v1341
      %2196 = vmatpush1.bf16.msra.mxu0 %v1340
      %2197 = vmatprep.subr.bf16.mxu0 %v1347
      %2198 = vmatpush1.bf16.msra.mxu0 %v1346
      %2199 = vmatprep.subr.bf16.mxu0 %v1353
      %2200 = vmatpush1.bf16.msra.mxu0 %v1352
      %2201 = vmatprep.subr.bf16.mxu0 %v1359
      %2202 = vmatpush1.bf16.msra.mxu0 %v1358
      %2203 = vmatprep.subr.bf16.mxu0 %v1365
      %2204 = vmatpush1.bf16.msra.mxu0 %v1364
      %2205 = vmatprep.subr.bf16.mxu0 %v1371
      %2206 = vmatpush1.bf16.msra.mxu0 %v1370
      %2207 = vmatprep.subr.bf16.mxu0 %v1377
      %2208 = vmatpush1.bf16.msra.mxu0 %v1376
      %2209 = vmatprep.mubr.bf16.mxu0 %v1751
      %2210 = vmatmul.mubr.bf16.gmra.mrb[0].mxu0 %v1750
      %v2211 = vpop.f32.mrb[0].mxu0
      %v2212 = vadd.f32 %v2139, %v2211
      %v2213 = vpop.f32.mrb[0].mxu0
      %v2214 = vadd.f32 %v2141, %v2213
      %v2215 = vpop.f32.mrb[0].mxu0
      %v2216 = vadd.f32 %v2143, %v2215
      %v2217 = vpop.f32.mrb[0].mxu0
      %v2218 = vadd.f32 %v2145, %v2217
      %2219 = vmatprep.mubr.bf16.mxu0 %v1759
      %2220 = vmatmul.mubr.bf16.gmra.mrb[0].mxu0 %v1758
      %v2221 = vpop.f32.mrb[0].mxu0
      %v2222 = vadd.f32 %v2149, %v2221
      %v2223 = vpop.f32.mrb[0].mxu0
      %v2224 = vadd.f32 %v2151, %v2223
      %v2225 = vpop.f32.mrb[0].mxu0
      %v2226 = vadd.f32 %v2153, %v2225
      %v2227 = vpop.f32.mrb[0].mxu0
      %v2228 = vadd.f32 %v2155, %v2227
      %2229 = vmatprep.mubr.bf16.mxu0 %v1767
      %2230 = vmatmul.mubr.bf16.gmra.mrb[0].mxu0 %v1766
      %v2231 = vpop.f32.mrb[0].mxu0
      %v2232 = vadd.f32 %v2159, %v2231
      %v2233 = vpop.f32.mrb[0].mxu0
      %v2234 = vadd.f32 %v2161, %v2233
      %v2235 = vpop.f32.mrb[0].mxu0
      %v2236 = vadd.f32 %v2163, %v2235
      %v2237 = vpop.f32.mrb[0].mxu0
      %v2238 = vadd.f32 %v2165, %v2237
      %2239 = vmatprep.mubr.bf16.mxu0 %v1775
      %2240 = vmatmul.mubr.bf16.gmra.mrb[0].mxu0 %v1774
      %v2241 = vpop.f32.mrb[0].mxu0
      %v2242 = vadd.f32 %v2169, %v2241
      %v2243 = vpop.f32.mrb[0].mxu0
      %v2244 = vadd.f32 %v2171, %v2243
      %v2245 = vpop.f32.mrb[0].mxu0
      %v2246 = vadd.f32 %v2173, %v2245
      %v2247 = vpop.f32.mrb[0].mxu0
      %v2248 = vadd.f32 %v2175, %v2247
      %2249 = vdwg.mxu0
      %2250 = vmatprep.subr.bf16.mxu0 %v1383
      %2251 = vmatpush1.bf16.msra.mxu0 %v1382
      %2252 = vmatprep.subr.bf16.mxu0 %v1389
      %2253 = vmatpush1.bf16.msra.mxu0 %v1388
      %2254 = vmatprep.subr.bf16.mxu0 %v1395
      %2255 = vmatpush1.bf16.msra.mxu0 %v1394
      %2256 = vmatprep.subr.bf16.mxu0 %v1401
      %2257 = vmatpush1.bf16.msra.mxu0 %v1400
      %2258 = vmatprep.subr.bf16.mxu0 %v1407
      %2259 = vmatpush1.bf16.msra.mxu0 %v1406
      %2260 = vmatprep.subr.bf16.mxu0 %v1413
      %2261 = vmatpush1.bf16.msra.mxu0 %v1412
      %2262 = vmatprep.subr.bf16.mxu0 %v1419
      %2263 = vmatpush1.bf16.msra.mxu0 %v1418
      %2264 = vmatprep.subr.bf16.mxu0 %v1425
      %2265 = vmatpush1.bf16.msra.mxu0 %v1424
      %2266 = vmatprep.subr.bf16.mxu0 %v1431
      %2267 = vmatpush1.bf16.msra.mxu0 %v1430
      %2268 = vmatprep.subr.bf16.mxu0 %v1437
      %2269 = vmatpush1.bf16.msra.mxu0 %v1436
      %2270 = vmatprep.subr.bf16.mxu0 %v1443
      %2271 = vmatpush1.bf16.msra.mxu0 %v1442
      %2272 = vmatprep.subr.bf16.mxu0 %v1449
      %2273 = vmatpush1.bf16.msra.mxu0 %v1448
      %2274 = vmatprep.subr.bf16.mxu0 %v1455
      %2275 = vmatpush1.bf16.msra.mxu0 %v1454
      %2276 = vmatprep.subr.bf16.mxu0 %v1461
      %2277 = vmatpush1.bf16.msra.mxu0 %v1460
      %2278 = vmatprep.subr.bf16.mxu0 %v1467
      %2279 = vmatpush1.bf16.msra.mxu0 %v1466
      %2280 = vmatprep.subr.bf16.mxu0 %v1473
      %2281 = vmatpush1.bf16.msra.mxu0 %v1472
      %2282 = vmatprep.mubr.bf16.mxu0 %v1753
      %2283 = vmatmul.mubr.bf16.gmra.mrb[0].mxu0 %v1752
      %v2284 = vpop.f32.mrb[0].mxu0
      %v2285 = vadd.f32 %v2212, %v2284
      %v2286 = vpop.f32.mrb[0].mxu0
      %v2287 = vadd.f32 %v2214, %v2286
      %v2288 = vpop.f32.mrb[0].mxu0
      %v2289 = vadd.f32 %v2216, %v2288
      %v2290 = vpop.f32.mrb[0].mxu0
      %v2291 = vadd.f32 %v2218, %v2290
      %2292 = vmatprep.mubr.bf16.mxu0 %v1761
      %2293 = vmatmul.mubr.bf16.gmra.mrb[0].mxu0 %v1760
      %v2294 = vpop.f32.mrb[0].mxu0
      %v2295 = vadd.f32 %v2222, %v2294
      %v2296 = vpop.f32.mrb[0].mxu0
      %v2297 = vadd.f32 %v2224, %v2296
      %v2298 = vpop.f32.mrb[0].mxu0
      %v2299 = vadd.f32 %v2226, %v2298
      %v2300 = vpop.f32.mrb[0].mxu0
      %v2301 = vadd.f32 %v2228, %v2300
      %2302 = vmatprep.mubr.bf16.mxu0 %v1769
      %2303 = vmatmul.mubr.bf16.gmra.mrb[0].mxu0 %v1768
      %v2304 = vpop.f32.mrb[0].mxu0
      %v2305 = vadd.f32 %v2232, %v2304
      %v2306 = vpop.f32.mrb[0].mxu0
      %v2307 = vadd.f32 %v2234, %v2306
      %v2308 = vpop.f32.mrb[0].mxu0
      %v2309 = vadd.f32 %v2236, %v2308
      %v2310 = vpop.f32.mrb[0].mxu0
      %v2311 = vadd.f32 %v2238, %v2310
      %2312 = vmatprep.mubr.bf16.mxu0 %v1777
      %2313 = vmatmul.mubr.bf16.gmra.mrb[0].mxu0 %v1776
      %v2314 = vpop.f32.mrb[0].mxu0
      %v2315 = vadd.f32 %v2242, %v2314
      %v2316 = vpop.f32.mrb[0].mxu0
      %v2317 = vadd.f32 %v2244, %v2316
      %v2318 = vpop.f32.mrb[0].mxu0
      %v2319 = vadd.f32 %v2246, %v2318
      %v2320 = vpop.f32.mrb[0].mxu0
      %v2321 = vadd.f32 %v2248, %v2320
      %2322 = vdwg.mxu0
      %2323 = vmatprep.subr.bf16.mxu0 %v1479
      %2324 = vmatpush1.bf16.msra.mxu0 %v1478
      %2325 = vmatprep.subr.bf16.mxu0 %v1485
      %2326 = vmatpush1.bf16.msra.mxu0 %v1484
      %2327 = vmatprep.subr.bf16.mxu0 %v1491
      %2328 = vmatpush1.bf16.msra.mxu0 %v1490
      %2329 = vmatprep.subr.bf16.mxu0 %v1497
      %2330 = vmatpush1.bf16.msra.mxu0 %v1496
      %2331 = vmatprep.subr.bf16.mxu0 %v1503
      %2332 = vmatpush1.bf16.msra.mxu0 %v1502
      %2333 = vmatprep.subr.bf16.mxu0 %v1509
      %2334 = vmatpush1.bf16.msra.mxu0 %v1508
      %2335 = vmatprep.subr.bf16.mxu0 %v1515
      %2336 = vmatpush1.bf16.msra.mxu0 %v1514
      %2337 = vmatprep.subr.bf16.mxu0 %v1521
      %2338 = vmatpush1.bf16.msra.mxu0 %v1520
      %2339 = vmatprep.subr.bf16.mxu0 %v1527
      %2340 = vmatpush1.bf16.msra.mxu0 %v1526
      %2341 = vmatprep.subr.bf16.mxu0 %v1533
      %2342 = vmatpush1.bf16.msra.mxu0 %v1532
      %2343 = vmatprep.subr.bf16.mxu0 %v1539
      %2344 = vmatpush1.bf16.msra.mxu0 %v1538
      %2345 = vmatprep.subr.bf16.mxu0 %v1545
      %2346 = vmatpush1.bf16.msra.mxu0 %v1544
      %2347 = vmatprep.subr.bf16.mxu0 %v1551
      %2348 = vmatpush1.bf16.msra.mxu0 %v1550
      %2349 = vmatprep.subr.bf16.mxu0 %v1557
      %2350 = vmatpush1.bf16.msra.mxu0 %v1556
      %2351 = vmatprep.subr.bf16.mxu0 %v1563
      %2352 = vmatpush1.bf16.msra.mxu0 %v1562
      %2353 = vmatprep.subr.bf16.mxu0 %v1569
      %2354 = vmatpush1.bf16.msra.mxu0 %v1568
      %2355 = vmatprep.mubr.bf16.mxu0 %v1755
      %2356 = vmatmul.mubr.bf16.gmra.mrb[0].mxu0 %v1754
      %v2357 = vpop.f32.mrb[0].mxu0
      %v2358 = vadd.f32 %v2285, %v2357
      %v2359 = vpop.f32.mrb[0].mxu0
      %v2360 = vadd.f32 %v2287, %v2359
      %v2361 = vpop.f32.mrb[0].mxu0
      %v2362 = vadd.f32 %v2289, %v2361
      %v2363 = vpop.f32.mrb[0].mxu0
      %v2364 = vadd.f32 %v2291, %v2363
      %2365 = vmatprep.mubr.bf16.mxu0 %v1763
      %2366 = vmatmul.mubr.bf16.gmra.mrb[0].mxu0 %v1762
      %v2367 = vpop.f32.mrb[0].mxu0
      %v2368 = vadd.f32 %v2295, %v2367
      %v2369 = vpop.f32.mrb[0].mxu0
      %v2370 = vadd.f32 %v2297, %v2369
      %v2371 = vpop.f32.mrb[0].mxu0
      %v2372 = vadd.f32 %v2299, %v2371
      %v2373 = vpop.f32.mrb[0].mxu0
      %v2374 = vadd.f32 %v2301, %v2373
      %2375 = vmatprep.mubr.bf16.mxu0 %v1771
      %2376 = vmatmul.mubr.bf16.gmra.mrb[0].mxu0 %v1770
      %v2377 = vpop.f32.mrb[0].mxu0
      %v2378 = vadd.f32 %v2305, %v2377
      %v2379 = vpop.f32.mrb[0].mxu0
      %v2380 = vadd.f32 %v2307, %v2379
      %v2381 = vpop.f32.mrb[0].mxu0
      %v2382 = vadd.f32 %v2309, %v2381
      %v2383 = vpop.f32.mrb[0].mxu0
      %v2384 = vadd.f32 %v2311, %v2383
      %2385 = vmatprep.mubr.bf16.mxu0 %v1779
      %2386 = vmatmul.mubr.bf16.gmra.mrb[0].mxu0 %v1778
      %v2387 = vpop.f32.mrb[0].mxu0
      %v2388 = vadd.f32 %v2315, %v2387
      %v2389 = vpop.f32.mrb[0].mxu0
      %v2390 = vadd.f32 %v2317, %v2389
      %v2391 = vpop.f32.mrb[0].mxu0
      %v2392 = vadd.f32 %v2319, %v2391
      %v2393 = vpop.f32.mrb[0].mxu0
      %v2394 = vadd.f32 %v2321, %v2393
      %2395 = vdwg.mxu0
      %2396 = vmatprep.subr.bf16.mxu0 %v1193
      %2397 = vmatpush1.bf16.msra.mxu0 %v1192
      %2398 = vmatprep.subr.bf16.mxu0 %v1199
      %2399 = vmatpush1.bf16.msra.mxu0 %v1198
      %2400 = vmatprep.subr.bf16.mxu0 %v1205
      %2401 = vmatpush1.bf16.msra.mxu0 %v1204
      %2402 = vmatprep.subr.bf16.mxu0 %v1211
      %2403 = vmatpush1.bf16.msra.mxu0 %v1210
      %2404 = vmatprep.subr.bf16.mxu0 %v1217
      %2405 = vmatpush1.bf16.msra.mxu0 %v1216
      %2406 = vmatprep.subr.bf16.mxu0 %v1223
      %2407 = vmatpush1.bf16.msra.mxu0 %v1222
      %2408 = vmatprep.subr.bf16.mxu0 %v1229
      %2409 = vmatpush1.bf16.msra.mxu0 %v1228
      %2410 = vmatprep.subr.bf16.mxu0 %v1235
      %2411 = vmatpush1.bf16.msra.mxu0 %v1234
      %2412 = vmatprep.subr.bf16.mxu0 %v1241
      %2413 = vmatpush1.bf16.msra.mxu0 %v1240
      %2414 = vmatprep.subr.bf16.mxu0 %v1247
      %2415 = vmatpush1.bf16.msra.mxu0 %v1246
      %2416 = vmatprep.subr.bf16.mxu0 %v1253
      %2417 = vmatpush1.bf16.msra.mxu0 %v1252
      %2418 = vmatprep.subr.bf16.mxu0 %v1259
      %2419 = vmatpush1.bf16.msra.mxu0 %v1258
      %2420 = vmatprep.subr.bf16.mxu0 %v1265
      %2421 = vmatpush1.bf16.msra.mxu0 %v1264
      %2422 = vmatprep.subr.bf16.mxu0 %v1271
      %2423 = vmatpush1.bf16.msra.mxu0 %v1270
      %2424 = vmatprep.subr.bf16.mxu0 %v1277
      %2425 = vmatpush1.bf16.msra.mxu0 %v1276
      %2426 = vmatprep.subr.bf16.mxu0 %v1283
      %2427 = vmatpush1.bf16.msra.mxu0 %v1282
      %2428 = vmatprep.mubr.bf16.mxu0 %v1749
      %2429 = vmatmul.mubr.bf16.gmra.mrb[0].mxu0 %v1748
      %v2430 = vpop.f32.mrb[0].mxu0
      %v2431 = vadd.f32 %v1615, %v2430
      %v2432 = vpop.f32.mrb[0].mxu0
      %v2433 = vadd.f32 %v1615, %v2432
      %v2434 = vpop.f32.mrb[0].mxu0
      %v2435 = vadd.f32 %v1620, %v2434
      %v2436 = vpop.f32.mrb[0].mxu0
      %v2437 = vadd.f32 %v1620, %v2436
      %2438 = vmatprep.mubr.bf16.mxu0 %v1757
      %2439 = vmatmul.mubr.bf16.gmra.mrb[0].mxu0 %v1756
      %v2440 = vpop.f32.mrb[0].mxu0
      %v2441 = vadd.f32 %v1625, %v2440
      %v2442 = vpop.f32.mrb[0].mxu0
      %v2443 = vadd.f32 %v1625, %v2442
      %v2444 = vpop.f32.mrb[0].mxu0
      %v2445 = vadd.f32 %v1630, %v2444
      %v2446 = vpop.f32.mrb[0].mxu0
      %v2447 = vadd.f32 %v1630, %v2446
      %2448 = vmatprep.mubr.bf16.mxu0 %v1765
      %2449 = vmatmul.mubr.bf16.gmra.mrb[0].mxu0 %v1764
      %v2450 = vpop.f32.mrb[0].mxu0
      %v2451 = vadd.f32 %v1635, %v2450
      %v2452 = vpop.f32.mrb[0].mxu0
      %v2453 = vadd.f32 %v1635, %v2452
      %v2454 = vpop.f32.mrb[0].mxu0
      %v2455 = vadd.f32 %v1640, %v2454
      %v2456 = vpop.f32.mrb[0].mxu0
      %v2457 = vadd.f32 %v1640, %v2456
      %2458 = vmatprep.mubr.bf16.mxu0 %v1773
      %2459 = vmatmul.mubr.bf16.gmra.mrb[0].mxu0 %v1772
      %v2460 = vpop.f32.mrb[0].mxu0
      %v2461 = vadd.f32 %v1645, %v2460
      %v2462 = vpop.f32.mrb[0].mxu0
      %v2463 = vadd.f32 %v1645, %v2462
      %v2464 = vpop.f32.mrb[0].mxu0
      %v2465 = vadd.f32 %v1650, %v2464
      %v2466 = vpop.f32.mrb[0].mxu0
      %v2467 = vadd.f32 %v1650, %v2466
      %2468 = vdwg.mxu0
      %2469 = vmatprep.subr.bf16.mxu0 %v1289
      %2470 = vmatpush1.bf16.msra.mxu0 %v1288
      %2471 = vmatprep.subr.bf16.mxu0 %v1295
      %2472 = vmatpush1.bf16.msra.mxu0 %v1294
      %2473 = vmatprep.subr.bf16.mxu0 %v1301
      %2474 = vmatpush1.bf16.msra.mxu0 %v1300
      %2475 = vmatprep.subr.bf16.mxu0 %v1307
      %2476 = vmatpush1.bf16.msra.mxu0 %v1306
      %2477 = vmatprep.subr.bf16.mxu0 %v1313
      %2478 = vmatpush1.bf16.msra.mxu0 %v1312
      %2479 = vmatprep.subr.bf16.mxu0 %v1319
      %2480 = vmatpush1.bf16.msra.mxu0 %v1318
      %2481 = vmatprep.subr.bf16.mxu0 %v1325
      %2482 = vmatpush1.bf16.msra.mxu0 %v1324
      %2483 = vmatprep.subr.bf16.mxu0 %v1331
      %2484 = vmatpush1.bf16.msra.mxu0 %v1330
      %2485 = vmatprep.subr.bf16.mxu0 %v1337
      %2486 = vmatpush1.bf16.msra.mxu0 %v1336
      %2487 = vmatprep.subr.bf16.mxu0 %v1343
      %2488 = vmatpush1.bf16.msra.mxu0 %v1342
      %2489 = vmatprep.subr.bf16.mxu0 %v1349
      %2490 = vmatpush1.bf16.msra.mxu0 %v1348
      %2491 = vmatprep.subr.bf16.mxu0 %v1355
      %2492 = vmatpush1.bf16.msra.mxu0 %v1354
      %2493 = vmatprep.subr.bf16.mxu0 %v1361
      %2494 = vmatpush1.bf16.msra.mxu0 %v1360
      %2495 = vmatprep.subr.bf16.mxu0 %v1367
      %2496 = vmatpush1.bf16.msra.mxu0 %v1366
      %2497 = vmatprep.subr.bf16.mxu0 %v1373
      %2498 = vmatpush1.bf16.msra.mxu0 %v1372
      %2499 = vmatprep.subr.bf16.mxu0 %v1379
      %2500 = vmatpush1.bf16.msra.mxu0 %v1378
      %2501 = vmatprep.mubr.bf16.mxu0 %v1751
      %2502 = vmatmul.mubr.bf16.gmra.mrb[0].mxu0 %v1750
      %v2503 = vpop.f32.mrb[0].mxu0
      %v2504 = vadd.f32 %v2431, %v2503
      %v2505 = vpop.f32.mrb[0].mxu0
      %v2506 = vadd.f32 %v2433, %v2505
      %v2507 = vpop.f32.mrb[0].mxu0
      %v2508 = vadd.f32 %v2435, %v2507
      %v2509 = vpop.f32.mrb[0].mxu0
      %v2510 = vadd.f32 %v2437, %v2509
      %2511 = vmatprep.mubr.bf16.mxu0 %v1759
      %2512 = vmatmul.mubr.bf16.gmra.mrb[0].mxu0 %v1758
      %v2513 = vpop.f32.mrb[0].mxu0
      %v2514 = vadd.f32 %v2441, %v2513
      %v2515 = vpop.f32.mrb[0].mxu0
      %v2516 = vadd.f32 %v2443, %v2515
      %v2517 = vpop.f32.mrb[0].mxu0
      %v2518 = vadd.f32 %v2445, %v2517
      %v2519 = vpop.f32.mrb[0].mxu0
      %v2520 = vadd.f32 %v2447, %v2519
      %2521 = vmatprep.mubr.bf16.mxu0 %v1767
      %2522 = vmatmul.mubr.bf16.gmra.mrb[0].mxu0 %v1766
      %v2523 = vpop.f32.mrb[0].mxu0
      %v2524 = vadd.f32 %v2451, %v2523
      %v2525 = vpop.f32.mrb[0].mxu0
      %v2526 = vadd.f32 %v2453, %v2525
      %v2527 = vpop.f32.mrb[0].mxu0
      %v2528 = vadd.f32 %v2455, %v2527
      %v2529 = vpop.f32.mrb[0].mxu0
      %v2530 = vadd.f32 %v2457, %v2529
      %2531 = vmatprep.mubr.bf16.mxu0 %v1775
      %2532 = vmatmul.mubr.bf16.gmra.mrb[0].mxu0 %v1774
      %v2533 = vpop.f32.mrb[0].mxu0
      %v2534 = vadd.f32 %v2461, %v2533
      %v2535 = vpop.f32.mrb[0].mxu0
      %v2536 = vadd.f32 %v2463, %v2535
      %v2537 = vpop.f32.mrb[0].mxu0
      %v2538 = vadd.f32 %v2465, %v2537
      %v2539 = vpop.f32.mrb[0].mxu0
      %v2540 = vadd.f32 %v2467, %v2539
      %2541 = vdwg.mxu0
      %2542 = vmatprep.subr.bf16.mxu0 %v1385
      %2543 = vmatpush1.bf16.msra.mxu0 %v1384
      %2544 = vmatprep.subr.bf16.mxu0 %v1391
      %2545 = vmatpush1.bf16.msra.mxu0 %v1390
      %2546 = vmatprep.subr.bf16.mxu0 %v1397
      %2547 = vmatpush1.bf16.msra.mxu0 %v1396
      %2548 = vmatprep.subr.bf16.mxu0 %v1403
      %2549 = vmatpush1.bf16.msra.mxu0 %v1402
      %2550 = vmatprep.subr.bf16.mxu0 %v1409
      %2551 = vmatpush1.bf16.msra.mxu0 %v1408
      %2552 = vmatprep.subr.bf16.mxu0 %v1415
      %2553 = vmatpush1.bf16.msra.mxu0 %v1414
      %2554 = vmatprep.subr.bf16.mxu0 %v1421
      %2555 = vmatpush1.bf16.msra.mxu0 %v1420
      %2556 = vmatprep.subr.bf16.mxu0 %v1427
      %2557 = vmatpush1.bf16.msra.mxu0 %v1426
      %2558 = vmatprep.subr.bf16.mxu0 %v1433
      %2559 = vmatpush1.bf16.msra.mxu0 %v1432
      %2560 = vmatprep.subr.bf16.mxu0 %v1439
      %2561 = vmatpush1.bf16.msra.mxu0 %v1438
      %2562 = vmatprep.subr.bf16.mxu0 %v1445
      %2563 = vmatpush1.bf16.msra.mxu0 %v1444
      %2564 = vmatprep.subr.bf16.mxu0 %v1451
      %2565 = vmatpush1.bf16.msra.mxu0 %v1450
      %2566 = vmatprep.subr.bf16.mxu0 %v1457
      %2567 = vmatpush1.bf16.msra.mxu0 %v1456
      %2568 = vmatprep.subr.bf16.mxu0 %v1463
      %2569 = vmatpush1.bf16.msra.mxu0 %v1462
      %2570 = vmatprep.subr.bf16.mxu0 %v1469
      %2571 = vmatpush1.bf16.msra.mxu0 %v1468
      %2572 = vmatprep.subr.bf16.mxu0 %v1475
      %2573 = vmatpush1.bf16.msra.mxu0 %v1474
      %2574 = vmatprep.mubr.bf16.mxu0 %v1753
      %2575 = vmatmul.mubr.bf16.gmra.mrb[0].mxu0 %v1752
      %v2576 = vpop.f32.mrb[0].mxu0
      %v2577 = vadd.f32 %v2504, %v2576
      %v2578 = vpop.f32.mrb[0].mxu0
      %v2579 = vadd.f32 %v2506, %v2578
      %v2580 = vpop.f32.mrb[0].mxu0
      %v2581 = vadd.f32 %v2508, %v2580
      %v2582 = vpop.f32.mrb[0].mxu0
      %v2583 = vadd.f32 %v2510, %v2582
      %2584 = vmatprep.mubr.bf16.mxu0 %v1761
      %2585 = vmatmul.mubr.bf16.gmra.mrb[0].mxu0 %v1760
      %v2586 = vpop.f32.mrb[0].mxu0
      %v2587 = vadd.f32 %v2514, %v2586
      %v2588 = vpop.f32.mrb[0].mxu0
      %v2589 = vadd.f32 %v2516, %v2588
      %v2590 = vpop.f32.mrb[0].mxu0
      %v2591 = vadd.f32 %v2518, %v2590
      %v2592 = vpop.f32.mrb[0].mxu0
      %v2593 = vadd.f32 %v2520, %v2592
      %2594 = vmatprep.mubr.bf16.mxu0 %v1769
      %2595 = vmatmul.mubr.bf16.gmra.mrb[0].mxu0 %v1768
      %v2596 = vpop.f32.mrb[0].mxu0
      %v2597 = vadd.f32 %v2524, %v2596
      %v2598 = vpop.f32.mrb[0].mxu0
      %v2599 = vadd.f32 %v2526, %v2598
      %v2600 = vpop.f32.mrb[0].mxu0
      %v2601 = vadd.f32 %v2528, %v2600
      %v2602 = vpop.f32.mrb[0].mxu0
      %v2603 = vadd.f32 %v2530, %v2602
      %2604 = vmatprep.mubr.bf16.mxu0 %v1777
      %2605 = vmatmul.mubr.bf16.gmra.mrb[0].mxu0 %v1776
      %v2606 = vpop.f32.mrb[0].mxu0
      %v2607 = vadd.f32 %v2534, %v2606
      %v2608 = vpop.f32.mrb[0].mxu0
      %v2609 = vadd.f32 %v2536, %v2608
      %v2610 = vpop.f32.mrb[0].mxu0
      %v2611 = vadd.f32 %v2538, %v2610
      %v2612 = vpop.f32.mrb[0].mxu0
      %v2613 = vadd.f32 %v2540, %v2612
      %2614 = vdwg.mxu0
      %2615 = vmatprep.subr.bf16.mxu0 %v1481
      %2616 = vmatpush1.bf16.msra.mxu0 %v1480
      %2617 = vmatprep.subr.bf16.mxu0 %v1487
      %2618 = vmatpush1.bf16.msra.mxu0 %v1486
      %2619 = vmatprep.subr.bf16.mxu0 %v1493
      %2620 = vmatpush1.bf16.msra.mxu0 %v1492
      %2621 = vmatprep.subr.bf16.mxu0 %v1499
      %2622 = vmatpush1.bf16.msra.mxu0 %v1498
      %2623 = vmatprep.subr.bf16.mxu0 %v1505
      %2624 = vmatpush1.bf16.msra.mxu0 %v1504
      %2625 = vmatprep.subr.bf16.mxu0 %v1511
      %2626 = vmatpush1.bf16.msra.mxu0 %v1510
      %2627 = vmatprep.subr.bf16.mxu0 %v1517
      %2628 = vmatpush1.bf16.msra.mxu0 %v1516
      %2629 = vmatprep.subr.bf16.mxu0 %v1523
      %2630 = vmatpush1.bf16.msra.mxu0 %v1522
      %2631 = vmatprep.subr.bf16.mxu0 %v1529
      %2632 = vmatpush1.bf16.msra.mxu0 %v1528
      %2633 = vmatprep.subr.bf16.mxu0 %v1535
      %2634 = vmatpush1.bf16.msra.mxu0 %v1534
      %2635 = vmatprep.subr.bf16.mxu0 %v1541
      %2636 = vmatpush1.bf16.msra.mxu0 %v1540
      %2637 = vmatprep.subr.bf16.mxu0 %v1547
      %2638 = vmatpush1.bf16.msra.mxu0 %v1546
      %2639 = vmatprep.subr.bf16.mxu0 %v1553
      %2640 = vmatpush1.bf16.msra.mxu0 %v1552
      %2641 = vmatprep.subr.bf16.mxu0 %v1559
      %2642 = vmatpush1.bf16.msra.mxu0 %v1558
      %2643 = vmatprep.subr.bf16.mxu0 %v1565
      %2644 = vmatpush1.bf16.msra.mxu0 %v1564
      %2645 = vmatprep.subr.bf16.mxu0 %v1571
      %2646 = vmatpush1.bf16.msra.mxu0 %v1570
      %2647 = vmatprep.mubr.bf16.mxu0 %v1755
      %2648 = vmatmul.mubr.bf16.gmra.mrb[0].mxu0 %v1754
      %v2649 = vpop.f32.mrb[0].mxu0
      %v2650 = vadd.f32 %v2577, %v2649
      %v2651 = vpop.f32.mrb[0].mxu0
      %v2652 = vadd.f32 %v2579, %v2651
      %v2653 = vpop.f32.mrb[0].mxu0
      %v2654 = vadd.f32 %v2581, %v2653
      %v2655 = vpop.f32.mrb[0].mxu0
      %v2656 = vadd.f32 %v2583, %v2655
      %2657 = vmatprep.mubr.bf16.mxu0 %v1763
      %2658 = vmatmul.mubr.bf16.gmra.mrb[0].mxu0 %v1762
      %v2659 = vpop.f32.mrb[0].mxu0
      %v2660 = vadd.f32 %v2587, %v2659
      %v2661 = vpop.f32.mrb[0].mxu0
      %v2662 = vadd.f32 %v2589, %v2661
      %v2663 = vpop.f32.mrb[0].mxu0
      %v2664 = vadd.f32 %v2591, %v2663
      %v2665 = vpop.f32.mrb[0].mxu0
      %v2666 = vadd.f32 %v2593, %v2665
      %2667 = vmatprep.mubr.bf16.mxu0 %v1771
      %2668 = vmatmul.mubr.bf16.gmra.mrb[0].mxu0 %v1770
      %v2669 = vpop.f32.mrb[0].mxu0
      %v2670 = vadd.f32 %v2597, %v2669
      %v2671 = vpop.f32.mrb[0].mxu0
      %v2672 = vadd.f32 %v2599, %v2671
      %v2673 = vpop.f32.mrb[0].mxu0
      %v2674 = vadd.f32 %v2601, %v2673
      %v2675 = vpop.f32.mrb[0].mxu0
      %v2676 = vadd.f32 %v2603, %v2675
      %2677 = vmatprep.mubr.bf16.mxu0 %v1779
      %2678 = vmatmul.mubr.bf16.gmra.mrb[0].mxu0 %v1778
      %v2679 = vpop.f32.mrb[0].mxu0
      %v2680 = vadd.f32 %v2607, %v2679
      %v2681 = vpop.f32.mrb[0].mxu0
      %v2682 = vadd.f32 %v2609, %v2681
      %v2683 = vpop.f32.mrb[0].mxu0
      %v2684 = vadd.f32 %v2611, %v2683
      %v2685 = vpop.f32.mrb[0].mxu0
      %v2686 = vadd.f32 %v2613, %v2685
      %2687 = vdwg.mxu0
      %v2688 = vpack.c.bf16 %v2070, %v2066
      %v2689 = vpack.c.bf16 %v2072, %v2068
      %v2690 = vpack.c.bf16 %v2362, %v2358
      %v2691 = vpack.c.bf16 %v2364, %v2360
      %v2692 = vpack.c.bf16 %v2654, %v2650
      %v2693 = vpack.c.bf16 %v2656, %v2652
      %v2694 = vpack.c.bf16 %v2080, %v2076
      %v2695 = vpack.c.bf16 %v2082, %v2078
      %v2696 = vpack.c.bf16 %v2372, %v2368
      %v2697 = vpack.c.bf16 %v2374, %v2370
      %v2698 = vpack.c.bf16 %v2664, %v2660
      %v2699 = vpack.c.bf16 %v2666, %v2662
      %v2700 = vpack.c.bf16 %v2090, %v2086
      %v2701 = vpack.c.bf16 %v2092, %v2088
      %v2702 = vpack.c.bf16 %v2382, %v2378
      %v2703 = vpack.c.bf16 %v2384, %v2380
      %v2704 = vpack.c.bf16 %v2674, %v2670
      %v2705 = vpack.c.bf16 %v2676, %v2672
      %v2706 = vpack.c.bf16 %v2100, %v2096
      %v2707 = vpack.c.bf16 %v2102, %v2098
      %v2708 = vpack.c.bf16 %v2392, %v2388
      %v2709 = vpack.c.bf16 %v2394, %v2390
      %v2710 = vpack.c.bf16 %v2684, %v2680
      %v2711 = vpack.c.bf16 %v2686, %v2682
      %2712 = vst [vmem:[#allocation2] sm:$0xff] %v2688
      %2713 = vst [vmem:[#allocation2 + $0x8] sm:$0xff] %v2689
      %2714 = vst [vmem:[#allocation2 + $0x10] sm:$0xff] %v2690
      %2715 = vst [vmem:[#allocation2 + $0x18] sm:$0xff] %v2691
      %2716 = vst [vmem:[#allocation2 + $0x20] sm:$0xff] %v2692
      %vm2717 = vcmask 293888
      %2718 = vst.msk [vmem:[#allocation2 + $0x28] sm:$0xff] %vm2717, %v2693
      %2719 = vst [vmem:[#allocation2 + $0x38] sm:$0xff] %v2694
      %2720 = vst [vmem:[#allocation2 + $0x40] sm:$0xff] %v2695
      %2721 = vst [vmem:[#allocation2 + $0x48] sm:$0xff] %v2696
      %2722 = vst [vmem:[#allocation2 + $0x50] sm:$0xff] %v2697
      %2723 = vst [vmem:[#allocation2 + $0x58] sm:$0xff] %v2698
      %2724 = vst.msk [vmem:[#allocation2 + $0x60] sm:$0xff] %vm2717, %v2699
      %2725 = vst [vmem:[#allocation2 + $0x70] sm:$0xff] %v2700
      %2726 = vst [vmem:[#allocation2 + $0x78] sm:$0xff] %v2701
      %2727 = vst [vmem:[#allocation2 + $0x80] sm:$0xff] %v2702
      %2728 = vst [vmem:[#allocation2 + $0x88] sm:$0xff] %v2703
      %2729 = vst [vmem:[#allocation2 + $0x90] sm:$0xff] %v2704
      %2730 = vst.msk [vmem:[#allocation2 + $0x98] sm:$0xff] %vm2717, %v2705
      %2731 = vst [vmem:[#allocation2 + $0xa8] sm:$0xff] %v2706
      %2732 = vst [vmem:[#allocation2 + $0xb0] sm:$0xff] %v2707
      %2733 = vst [vmem:[#allocation2 + $0xb8] sm:$0xff] %v2708
      %2734 = vst [vmem:[#allocation2 + $0xc0] sm:$0xff] %v2709
      %2735 = vst [vmem:[#allocation2 + $0xc8] sm:$0xff] %v2710
      %2736 = vst.msk [vmem:[#allocation2 + $0xd0] sm:$0xff] %vm2717, %v2711
      %v2737 = vld [vmem:[%s3] sm:$0xf]
      %v2738 = vld [vmem:[%s3 + $0x4] sm:$0xf]
      %v2739 = vld [vmem:[%s3 + $0x8] sm:$0xf]
      %v2740 = vld [vmem:[%s3 + $0xc] sm:$0xf]
      %v2741 = vld [vmem:[%s3 + $0x10] sm:$0xf]
      %v2742 = vld [vmem:[%s3 + $0x14] sm:$0xf]
      %v2743 = vld [vmem:[%s3 + $0x18] sm:$0xf]
      %v2744 = vld [vmem:[%s3 + $0x1c] sm:$0xf]
      %v2745 = vld [vmem:[%s3 + $0x20] sm:$0xf]
      %v2746 = vld [vmem:[%s3 + $0x24] sm:$0xf]
      %v2747 = vld [vmem:[%s3 + $0x28] sm:$0xf]
      %v2748 = vld [vmem:[%s3 + $0x2c] sm:$0xf]
      %v2749 = vld [vmem:[%s3 + $0x30] sm:$0xf]
      %v2750 = vld [vmem:[%s3 + $0x34] sm:$0xf]
      %v2751 = vld [vmem:[%s3 + $0x38] sm:$0xf]
      %v2752 = vld [vmem:[%s3 + $0x3c] sm:$0xf]
      %v2753 = vld [vmem:[%s3 + $0x40] sm:$0xf]
      %v2754 = vld [vmem:[%s3 + $0x44] sm:$0xf]
      %v2755 = vld [vmem:[%s3 + $0x48] sm:$0xf]
      %v2756 = vld [vmem:[%s3 + $0x4c] sm:$0xf]
      %v2757 = vld [vmem:[%s3 + $0x50] sm:$0xf]
      %v2758 = vld [vmem:[%s3 + $0x54] sm:$0xf]
      %v2759 = vld [vmem:[%s3 + $0x58] sm:$0xf]
      %v2760 = vld [vmem:[%s3 + $0x5c] sm:$0xf]
      %v2761 = vld [vmem:[%s3 + $0x60] sm:$0xf]
      %v2762 = vld [vmem:[%s3 + $0x64] sm:$0xf]
      %v2763 = vld [vmem:[%s3 + $0x68] sm:$0xf]
      %v2764 = vld [vmem:[%s3 + $0x6c] sm:$0xf]
      %v2765 = vld [vmem:[%s3 + $0x70] sm:$0xf]
      %v2766 = vld [vmem:[%s3 + $0x74] sm:$0xf]
      %v2767 = vld [vmem:[%s3 + $0x78] sm:$0xf]
      %v2768 = vld [vmem:[%s3 + $0x7c] sm:$0xf]
      %v2769 = vld [vmem:[%s3 + $0x80] sm:$0xf]
      %v2770 = vld [vmem:[%s3 + $0x84] sm:$0xf]
      %v2771 = vld [vmem:[%s3 + $0x88] sm:$0xf]
      %v2772 = vld [vmem:[%s3 + $0x8c] sm:$0xf]
      %v2773 = vld [vmem:[%s3 + $0x90] sm:$0xf]
      %v2774 = vld [vmem:[%s3 + $0x94] sm:$0xf]
      %v2775 = vld [vmem:[%s3 + $0x98] sm:$0xf]
      %v2776 = vld [vmem:[%s3 + $0x9c] sm:$0xf]
      %v2777 = vld [vmem:[%s3 + $0xa0] sm:$0xf]
      %v2778 = vld [vmem:[%s3 + $0xa4] sm:$0xf]
      %v2779 = vld [vmem:[%s3 + $0xa8] sm:$0xf]
      %v2780 = vld [vmem:[%s3 + $0xac] sm:$0xf]
      %v2781 = vld [vmem:[%s3 + $0xb0] sm:$0xf]
      %v2782 = vld [vmem:[%s3 + $0xb4] sm:$0xf]
      %v2783 = vld [vmem:[%s3 + $0xb8] sm:$0xf]
      %v2784 = vld [vmem:[%s3 + $0xbc] sm:$0xf]
      %v2785 = vld [vmem:[%s3 + $0xc0] sm:$0xf]
      %v2786 = vld [vmem:[#allocation2] sm:$0xff]
      %v2787 = vld [vmem:[#allocation2 + $0x8] sm:$0xff]
      %v2788 = vld [vmem:[#allocation2 + $0x10] sm:$0xff]
      %v2789 = vld [vmem:[#allocation2 + $0x18] sm:$0xff]
      %v2790 = vld [vmem:[#allocation2 + $0x20] sm:$0xff]
      %v2791 = vld [vmem:[#allocation2 + $0x28] sm:$0xff]
      %v2792 = vld [vmem:[#allocation2 + $0x30] sm:$0xff]
      %v2793 = vld [vmem:[#allocation2 + $0x38] sm:$0xff]
      %v2794 = vld [vmem:[#allocation2 + $0x40] sm:$0xff]
      %v2795 = vld [vmem:[#allocation2 + $0x48] sm:$0xff]
      %v2796 = vld [vmem:[#allocation2 + $0x50] sm:$0xff]
      %v2797 = vld [vmem:[#allocation2 + $0x58] sm:$0xff]
      %v2798 = vld [vmem:[#allocation2 + $0x60] sm:$0xff]
      %v2799 = vld [vmem:[#allocation2 + $0x68] sm:$0xff]
      %v2800 = vld [vmem:[#allocation2 + $0x70] sm:$0xff]
      %v2801 = vld [vmem:[#allocation2 + $0x78] sm:$0xff]
      %v2802 = vld [vmem:[#allocation2 + $0x80] sm:$0xff]
      %v2803 = vld [vmem:[#allocation2 + $0x88] sm:$0xff]
      %v2804 = vld [vmem:[#allocation2 + $0x90] sm:$0xff]
      %v2805 = vld [vmem:[#allocation2 + $0x98] sm:$0xff]
      %v2806 = vld [vmem:[#allocation2 + $0xa0] sm:$0xff]
      %v2807 = vld [vmem:[#allocation2 + $0xa8] sm:$0xff]
      %v2808 = vld [vmem:[#allocation2 + $0xb0] sm:$0xff]
      %v2809 = vld [vmem:[#allocation2 + $0xb8] sm:$0xff]
      %v2810 = vld [vmem:[#allocation2 + $0xc0] sm:$0xff]
      %v2811 = vld [vmem:[#allocation2 + $0xc8] sm:$0xff]
      %v2812 = vld [vmem:[#allocation2 + $0xd0] sm:$0xff]
      %v2813 = vld [vmem:[#allocation2 + $0xd8] sm:$0xff]
      %v2863 = vunpack.c.l.b16 %v2737
      %v2864 = vunpack.c.l.b16 %v2738
      %v2865 = vunpack.c.l.b16 %v2739
      %v2866 = vunpack.c.l.b16 %v2740
      %v2867 = vunpack.c.l.b16 %v2741
      %v2868 = vunpack.c.l.b16 %v2742
      %v2869 = vunpack.c.l.b16 %v2743
      %v2870 = vunpack.c.l.b16 %v2744
      %v2871 = vunpack.c.l.b16 %v2745
      %v2872 = vunpack.c.l.b16 %v2746
      %v2873 = vunpack.c.l.b16 %v2747
      %v2874 = vunpack.c.l.b16 %v2748
      %v2875 = vunpack.c.l.b16 %v2749
      %v2876 = vunpack.c.l.b16 %v2750
      %v2877 = vunpack.c.l.b16 %v2751
      %v2878 = vunpack.c.l.b16 %v2752
      %v2879 = vunpack.c.l.b16 %v2753
      %v2880 = vunpack.c.l.b16 %v2754
      %v2881 = vunpack.c.l.b16 %v2755
      %v2882 = vunpack.c.l.b16 %v2756
      %v2883 = vunpack.c.l.b16 %v2757
      %v2884 = vunpack.c.l.b16 %v2758
      %v2885 = vunpack.c.l.b16 %v2759
      %v2886 = vunpack.c.l.b16 %v2760
      %v2887 = vunpack.c.l.b16 %v2761
      %v2888 = vunpack.c.l.b16 %v2762
      %v2889 = vunpack.c.l.b16 %v2763
      %v2890 = vunpack.c.l.b16 %v2764
      %v2891 = vunpack.c.l.b16 %v2765
      %v2892 = vunpack.c.l.b16 %v2766
      %v2893 = vunpack.c.l.b16 %v2767
      %v2894 = vunpack.c.l.b16 %v2768
      %v2895 = vunpack.c.l.b16 %v2769
      %v2896 = vunpack.c.l.b16 %v2770
      %v2897 = vunpack.c.l.b16 %v2771
      %v2898 = vunpack.c.l.b16 %v2772
      %v2899 = vunpack.c.l.b16 %v2773
      %v2900 = vunpack.c.l.b16 %v2774
      %v2901 = vunpack.c.l.b16 %v2775
      %v2902 = vunpack.c.l.b16 %v2776
      %v2903 = vunpack.c.l.b16 %v2777
      %v2904 = vunpack.c.l.b16 %v2778
      %v2905 = vunpack.c.l.b16 %v2779
      %v2906 = vunpack.c.l.b16 %v2780
      %v2907 = vunpack.c.l.b16 %v2781
      %v2908 = vunpack.c.l.b16 %v2782
      %v2909 = vunpack.c.l.b16 %v2783
      %v2910 = vunpack.c.l.b16 %v2784
      %v2911 = vunpack.c.l.b16 %v2785
      %v2912 = vpack.c.b16 %v2864, %v2863
      %v2913 = vpack.c.b16 %v2866, %v2865
      %v2914 = vpack.c.b16 %v2868, %v2867
      %v2915 = vpack.c.b16 %v2870, %v2869
      %v2916 = vpack.c.b16 %v2872, %v2871
      %v2917 = vpack.c.b16 %v2874, %v2873
      %v2918 = vpack.c.b16 %v2876, %v2875
      %v2919 = vpack.c.b16 %v2878, %v2877
      %v2920 = vpack.c.b16 %v2880, %v2879
      %v2921 = vpack.c.b16 %v2882, %v2881
      %v2922 = vpack.c.b16 %v2884, %v2883
      %v2923 = vpack.c.b16 %v2886, %v2885
      %v2924 = vpack.c.b16 %v2888, %v2887
      %v2925 = vpack.c.b16 %v2890, %v2889
      %v2926 = vpack.c.b16 %v2892, %v2891
      %v2927 = vpack.c.b16 %v2894, %v2893
      %v2928 = vpack.c.b16 %v2896, %v2895
      %v2929 = vpack.c.b16 %v2898, %v2897
      %v2930 = vpack.c.b16 %v2900, %v2899
      %v2931 = vpack.c.b16 %v2902, %v2901
      %v2932 = vpack.c.b16 %v2904, %v2903
      %v2933 = vpack.c.b16 %v2906, %v2905
      %v2934 = vpack.c.b16 %v2908, %v2907
      %v2935 = vpack.c.b16 %v2910, %v2909
      %v2936 = vpack.c.b16 %v2911, %v2911
      %vm2937 = vcmask 523264
      %v2939 = vsel %vm2937, %v2912, 0
      %v2942 = vsel %vm2937, %v2913, 0
      %v2945 = vsel %vm2937, %v2914, 0
      %v2948 = vsel %vm2937, %v2915, 0
      %v2951 = vsel %vm2937, %v2916, 0
      %v2954 = vsel %vm2937, %v2917, 0
      %v2957 = vsel %vm2937, %v2918, 0
      %v2960 = vsel %vm2937, %v2919, 0
      %v2963 = vsel %vm2937, %v2920, 0
      %v2966 = vsel %vm2937, %v2921, 0
      %v2969 = vsel %vm2937, %v2922, 0
      %v2972 = vsel %vm2937, %v2923, 0
      %v2975 = vsel %vm2937, %v2924, 0
      %v2978 = vsel %vm2937, %v2925, 0
      %v2981 = vsel %vm2937, %v2926, 0
      %v2984 = vsel %vm2937, %v2927, 0
      %v2987 = vsel %vm2937, %v2928, 0
      %v2990 = vsel %vm2937, %v2929, 0
      %v2993 = vsel %vm2937, %v2930, 0
      %v2996 = vsel %vm2937, %v2931, 0
      %v2999 = vsel %vm2937, %v2932, 0
      %v3002 = vsel %vm2937, %v2933, 0
      %v3005 = vsel %vm2937, %v2934, 0
      %v3008 = vsel %vm2937, %v2935, 0
      %v3011 = vsel %vm2937, %v2936, 0
      %3013 = vmatprep.subr.bf16.mxu0 %v2787
      %3014 = vmatpush1.bf16.msra.mxu0 %v2786
      %3015 = vmatprep.subr.bf16.mxu0 %v2794
      %3016 = vmatpush1.bf16.msra.mxu0 %v2793
      %3017 = vmatprep.subr.bf16.mxu0 %v2801
      %3018 = vmatpush1.bf16.msra.mxu0 %v2800
      %3019 = vmatprep.subr.bf16.mxu0 %v2808
      %3020 = vmatpush1.bf16.msra.mxu0 %v2807
      %3021 = vmatprep.subr.bf16.mxu0 0
      %3022 = vmatpush1.bf16.msra.mxu0 0
      %3023 = vmatprep.subr.bf16.mxu0 0
      %3024 = vmatpush1.bf16.msra.mxu0 0
      %3025 = vmatprep.subr.bf16.mxu0 0
      %3026 = vmatpush1.bf16.msra.mxu0 0
      %3027 = vmatprep.subr.bf16.mxu0 0
      %3028 = vmatpush1.bf16.msra.mxu0 0
      %3029 = vmatprep.subr.bf16.mxu0 0
      %3030 = vmatpush1.bf16.msra.mxu0 0
      %3031 = vmatprep.subr.bf16.mxu0 0
      %3032 = vmatpush1.bf16.msra.mxu0 0
      %3033 = vmatprep.subr.bf16.mxu0 0
      %3034 = vmatpush1.bf16.msra.mxu0 0
      %3035 = vmatprep.subr.bf16.mxu0 0
      %3036 = vmatpush1.bf16.msra.mxu0 0
      %3037 = vmatprep.subr.bf16.mxu0 0
      %3038 = vmatpush1.bf16.msra.mxu0 0
      %3039 = vmatprep.subr.bf16.mxu0 0
      %3040 = vmatpush1.bf16.msra.mxu0 0
      %3041 = vmatprep.subr.bf16.mxu0 0
      %3042 = vmatpush1.bf16.msra.mxu0 0
      %3043 = vmatprep.subr.bf16.mxu0 0
      %3044 = vmatpush1.bf16.msra.mxu0 0
      %3045 = vmatprep.mubr.bf16.mxu0 0
      %3046 = vmatmul.mubr.bf16.gmra.mrb[0].mxu0 %v2939
      %v3047 = vpop.f32.mrb[0].mxu0
      %v3048 = vadd.f32 0.0, %v3047
      %v3049 = vpop.f32.mrb[0].mxu0
      %v3050 = vadd.f32 0.0, %v3049
      %v3051 = vpop.f32.mrb[0].mxu0
      %v3052 = vadd.f32 0.0, %v3051
      %v3053 = vpop.f32.mrb[0].mxu0
      %v3054 = vadd.f32 0.0, %v3053
      %3055 = vmatprep.mubr.bf16.mxu0 0
      %3056 = vmatmul.mubr.bf16.gmra.mrb[0].mxu0 %v2942
      %v3057 = vpop.f32.mrb[0].mxu0
      %v3058 = vadd.f32 0.0, %v3057
      %v3059 = vpop.f32.mrb[0].mxu0
      %v3060 = vadd.f32 0.0, %v3059
      %v3061 = vpop.f32.mrb[0].mxu0
      %v3062 = vadd.f32 0.0, %v3061
      %v3063 = vpop.f32.mrb[0].mxu0
      %v3064 = vadd.f32 0.0, %v3063
      %3065 = vmatprep.mubr.bf16.mxu0 0
      %3066 = vmatmul.mubr.bf16.gmra.mrb[0].mxu0 %v2945
      %v3067 = vpop.f32.mrb[0].mxu0
      %v3068 = vadd.f32 0.0, %v3067
      %v3069 = vpop.f32.mrb[0].mxu0
      %v3070 = vadd.f32 0.0, %v3069
      %v3071 = vpop.f32.mrb[0].mxu0
      %v3072 = vadd.f32 0.0, %v3071
      %v3073 = vpop.f32.mrb[0].mxu0
      %v3074 = vadd.f32 0.0, %v3073
      %3075 = vmatprep.mubr.bf16.mxu0 0
      %3076 = vmatmul.mubr.bf16.gmra.mrb[0].mxu0 %v2948
      %v3077 = vpop.f32.mrb[0].mxu0
      %v3078 = vadd.f32 0.0, %v3077
      %v3079 = vpop.f32.mrb[0].mxu0
      %v3080 = vadd.f32 0.0, %v3079
      %v3081 = vpop.f32.mrb[0].mxu0
      %v3082 = vadd.f32 0.0, %v3081
      %v3083 = vpop.f32.mrb[0].mxu0
      %v3084 = vadd.f32 0.0, %v3083
      %3085 = vmatprep.mubr.bf16.mxu0 0
      %3086 = vmatmul.mubr.bf16.gmra.mrb[0].mxu0 %v2951
      %v3087 = vpop.f32.mrb[0].mxu0
      %v3088 = vadd.f32 0.0, %v3087
      %v3089 = vpop.f32.mrb[0].mxu0
      %v3090 = vadd.f32 0.0, %v3089
      %v3091 = vpop.f32.mrb[0].mxu0
      %v3092 = vadd.f32 0.0, %v3091
      %v3093 = vpop.f32.mrb[0].mxu0
      %v3094 = vadd.f32 0.0, %v3093
      %3095 = vmatprep.mubr.bf16.mxu0 0
      %3096 = vmatmul.mubr.bf16.gmra.mrb[0].mxu0 %v2954
      %v3097 = vpop.f32.mrb[0].mxu0
      %v3098 = vadd.f32 0.0, %v3097
      %v3099 = vpop.f32.mrb[0].mxu0
      %v3100 = vadd.f32 0.0, %v3099
      %v3101 = vpop.f32.mrb[0].mxu0
      %v3102 = vadd.f32 0.0, %v3101
      %v3103 = vpop.f32.mrb[0].mxu0
      %v3104 = vadd.f32 0.0, %v3103
      %3105 = vmatprep.mubr.bf16.mxu0 0
      %3106 = vmatmul.mubr.bf16.gmra.mrb[0].mxu0 %v2957
      %v3107 = vpop.f32.mrb[0].mxu0
      %v3108 = vadd.f32 0.0, %v3107
      %v3109 = vpop.f32.mrb[0].mxu0
      %v3110 = vadd.f32 0.0, %v3109
      %v3111 = vpop.f32.mrb[0].mxu0
      %v3112 = vadd.f32 0.0, %v3111
      %v3113 = vpop.f32.mrb[0].mxu0
      %v3114 = vadd.f32 0.0, %v3113
      %3115 = vmatprep.mubr.bf16.mxu0 0
      %3116 = vmatmul.mubr.bf16.gmra.mrb[0].mxu0 %v2960
      %v3117 = vpop.f32.mrb[0].mxu0
      %v3118 = vadd.f32 0.0, %v3117
      %v3119 = vpop.f32.mrb[0].mxu0
      %v3120 = vadd.f32 0.0, %v3119
      %v3121 = vpop.f32.mrb[0].mxu0
      %v3122 = vadd.f32 0.0, %v3121
      %v3123 = vpop.f32.mrb[0].mxu0
      %v3124 = vadd.f32 0.0, %v3123
      %3125 = vmatprep.mubr.bf16.mxu0 0
      %3126 = vmatmul.mubr.bf16.gmra.mrb[0].mxu0 %v2963
      %v3127 = vpop.f32.mrb[0].mxu0
      %v3128 = vadd.f32 0.0, %v3127
      %v3129 = vpop.f32.mrb[0].mxu0
      %v3130 = vadd.f32 0.0, %v3129
      %v3131 = vpop.f32.mrb[0].mxu0
      %v3132 = vadd.f32 0.0, %v3131
      %v3133 = vpop.f32.mrb[0].mxu0
      %v3134 = vadd.f32 0.0, %v3133
      %3135 = vmatprep.mubr.bf16.mxu0 0
      %3136 = vmatmul.mubr.bf16.gmra.mrb[0].mxu0 %v2966
      %v3137 = vpop.f32.mrb[0].mxu0
      %v3138 = vadd.f32 0.0, %v3137
      %v3139 = vpop.f32.mrb[0].mxu0
      %v3140 = vadd.f32 0.0, %v3139
      %v3141 = vpop.f32.mrb[0].mxu0
      %v3142 = vadd.f32 0.0, %v3141
      %v3143 = vpop.f32.mrb[0].mxu0
      %v3144 = vadd.f32 0.0, %v3143
      %3145 = vmatprep.mubr.bf16.mxu0 0
      %3146 = vmatmul.mubr.bf16.gmra.mrb[0].mxu0 %v2969
      %v3147 = vpop.f32.mrb[0].mxu0
      %v3148 = vadd.f32 0.0, %v3147
      %v3149 = vpop.f32.mrb[0].mxu0
      %v3150 = vadd.f32 0.0, %v3149
      %v3151 = vpop.f32.mrb[0].mxu0
      %v3152 = vadd.f32 0.0, %v3151
      %v3153 = vpop.f32.mrb[0].mxu0
      %v3154 = vadd.f32 0.0, %v3153
      %3155 = vmatprep.mubr.bf16.mxu0 0
      %3156 = vmatmul.mubr.bf16.gmra.mrb[0].mxu0 %v2972
      %v3157 = vpop.f32.mrb[0].mxu0
      %v3158 = vadd.f32 0.0, %v3157
      %v3159 = vpop.f32.mrb[0].mxu0
      %v3160 = vadd.f32 0.0, %v3159
      %v3161 = vpop.f32.mrb[0].mxu0
      %v3162 = vadd.f32 0.0, %v3161
      %v3163 = vpop.f32.mrb[0].mxu0
      %v3164 = vadd.f32 0.0, %v3163
      %3165 = vmatprep.mubr.bf16.mxu0 0
      %3166 = vmatmul.mubr.bf16.gmra.mrb[0].mxu0 %v2975
      %v3167 = vpop.f32.mrb[0].mxu0
      %v3168 = vadd.f32 0.0, %v3167
      %v3169 = vpop.f32.mrb[0].mxu0
      %v3170 = vadd.f32 0.0, %v3169
      %v3171 = vpop.f32.mrb[0].mxu0
      %v3172 = vadd.f32 0.0, %v3171
      %v3173 = vpop.f32.mrb[0].mxu0
      %v3174 = vadd.f32 0.0, %v3173
      %3175 = vmatprep.mubr.bf16.mxu0 0
      %3176 = vmatmul.mubr.bf16.gmra.mrb[0].mxu0 %v2978
      %v3177 = vpop.f32.mrb[0].mxu0
      %v3178 = vadd.f32 0.0, %v3177
      %v3179 = vpop.f32.mrb[0].mxu0
      %v3180 = vadd.f32 0.0, %v3179
      %v3181 = vpop.f32.mrb[0].mxu0
      %v3182 = vadd.f32 0.0, %v3181
      %v3183 = vpop.f32.mrb[0].mxu0
      %v3184 = vadd.f32 0.0, %v3183
      %3185 = vmatprep.mubr.bf16.mxu0 0
      %3186 = vmatmul.mubr.bf16.gmra.mrb[0].mxu0 %v2981
      %v3187 = vpop.f32.mrb[0].mxu0
      %v3188 = vadd.f32 0.0, %v3187
      %v3189 = vpop.f32.mrb[0].mxu0
      %v3190 = vadd.f32 0.0, %v3189
      %v3191 = vpop.f32.mrb[0].mxu0
      %v3192 = vadd.f32 0.0, %v3191
      %v3193 = vpop.f32.mrb[0].mxu0
      %v3194 = vadd.f32 0.0, %v3193
      %3195 = vmatprep.mubr.bf16.mxu0 0
      %3196 = vmatmul.mubr.bf16.gmra.mrb[0].mxu0 %v2984
      %v3197 = vpop.f32.mrb[0].mxu0
      %v3198 = vadd.f32 0.0, %v3197
      %v3199 = vpop.f32.mrb[0].mxu0
      %v3200 = vadd.f32 0.0, %v3199
      %v3201 = vpop.f32.mrb[0].mxu0
      %v3202 = vadd.f32 0.0, %v3201
      %v3203 = vpop.f32.mrb[0].mxu0
      %v3204 = vadd.f32 0.0, %v3203
      %3205 = vmatprep.mubr.bf16.mxu0 0
      %3206 = vmatmul.mubr.bf16.gmra.mrb[0].mxu0 %v2987
      %v3207 = vpop.f32.mrb[0].mxu0
      %v3208 = vadd.f32 0.0, %v3207
      %v3209 = vpop.f32.mrb[0].mxu0
      %v3210 = vadd.f32 0.0, %v3209
      %v3211 = vpop.f32.mrb[0].mxu0
      %v3212 = vadd.f32 0.0, %v3211
      %v3213 = vpop.f32.mrb[0].mxu0
      %v3214 = vadd.f32 0.0, %v3213
      %3215 = vmatprep.mubr.bf16.mxu0 0
      %3216 = vmatmul.mubr.bf16.gmra.mrb[0].mxu0 %v2990
      %v3217 = vpop.f32.mrb[0].mxu0
      %v3218 = vadd.f32 0.0, %v3217
      %v3219 = vpop.f32.mrb[0].mxu0
      %v3220 = vadd.f32 0.0, %v3219
      %v3221 = vpop.f32.mrb[0].mxu0
      %v3222 = vadd.f32 0.0, %v3221
      %v3223 = vpop.f32.mrb[0].mxu0
      %v3224 = vadd.f32 0.0, %v3223
      %3225 = vmatprep.mubr.bf16.mxu0 0
      %3226 = vmatmul.mubr.bf16.gmra.mrb[0].mxu0 %v2993
      %v3227 = vpop.f32.mrb[0].mxu0
      %v3228 = vadd.f32 0.0, %v3227
      %v3229 = vpop.f32.mrb[0].mxu0
      %v3230 = vadd.f32 0.0, %v3229
      %v3231 = vpop.f32.mrb[0].mxu0
      %v3232 = vadd.f32 0.0, %v3231
      %v3233 = vpop.f32.mrb[0].mxu0
      %v3234 = vadd.f32 0.0, %v3233
      %3235 = vmatprep.mubr.bf16.mxu0 0
      %3236 = vmatmul.mubr.bf16.gmra.mrb[0].mxu0 %v2996
      %v3237 = vpop.f32.mrb[0].mxu0
      %v3238 = vadd.f32 0.0, %v3237
      %v3239 = vpop.f32.mrb[0].mxu0
      %v3240 = vadd.f32 0.0, %v3239
      %v3241 = vpop.f32.mrb[0].mxu0
      %v3242 = vadd.f32 0.0, %v3241
      %v3243 = vpop.f32.mrb[0].mxu0
      %v3244 = vadd.f32 0.0, %v3243
      %3245 = vmatprep.mubr.bf16.mxu0 0
      %3246 = vmatmul.mubr.bf16.gmra.mrb[0].mxu0 %v2999
      %v3247 = vpop.f32.mrb[0].mxu0
      %v3248 = vadd.f32 0.0, %v3247
      %v3249 = vpop.f32.mrb[0].mxu0
      %v3250 = vadd.f32 0.0, %v3249
      %v3251 = vpop.f32.mrb[0].mxu0
      %v3252 = vadd.f32 0.0, %v3251
      %v3253 = vpop.f32.mrb[0].mxu0
      %v3254 = vadd.f32 0.0, %v3253
      %3255 = vmatprep.mubr.bf16.mxu0 0
      %3256 = vmatmul.mubr.bf16.gmra.mrb[0].mxu0 %v3002
      %v3257 = vpop.f32.mrb[0].mxu0
      %v3258 = vadd.f32 0.0, %v3257
      %v3259 = vpop.f32.mrb[0].mxu0
      %v3260 = vadd.f32 0.0, %v3259
      %v3261 = vpop.f32.mrb[0].mxu0
      %v3262 = vadd.f32 0.0, %v3261
      %v3263 = vpop.f32.mrb[0].mxu0
      %v3264 = vadd.f32 0.0, %v3263
      %3265 = vmatprep.mubr.bf16.mxu0 0
      %3266 = vmatmul.mubr.bf16.gmra.mrb[0].mxu0 %v3005
      %v3267 = vpop.f32.mrb[0].mxu0
      %v3268 = vadd.f32 0.0, %v3267
      %v3269 = vpop.f32.mrb[0].mxu0
      %v3270 = vadd.f32 0.0, %v3269
      %v3271 = vpop.f32.mrb[0].mxu0
      %v3272 = vadd.f32 0.0, %v3271
      %v3273 = vpop.f32.mrb[0].mxu0
      %v3274 = vadd.f32 0.0, %v3273
      %3275 = vmatprep.mubr.bf16.mxu0 0
      %3276 = vmatmul.mubr.bf16.gmra.mrb[0].mxu0 %v3008
      %v3277 = vpop.f32.mrb[0].mxu0
      %v3278 = vadd.f32 0.0, %v3277
      %v3279 = vpop.f32.mrb[0].mxu0
      %v3280 = vadd.f32 0.0, %v3279
      %v3281 = vpop.f32.mrb[0].mxu0
      %v3282 = vadd.f32 0.0, %v3281
      %v3283 = vpop.f32.mrb[0].mxu0
      %v3284 = vadd.f32 0.0, %v3283
      %3285 = vmatprep.mubr.bf16.mxu0 0
      %3286 = vmatmul.mubr.bf16.gmra.mrb[0].mxu0 %v3011
      %v3287 = vpop.f32.mrb[0].mxu0
      %v3288 = vadd.f32 0.0, %v3287
      %v3289 = vpop.f32.mrb[0].mxu0
      %v3290 = vadd.f32 0.0, %v3289
      %v3291 = vpop.f32.mrb[0].mxu0
      %v3292 = vpop.f32.mrb[0].mxu0
      %3293 = vdwg.mxu0
      %3294 = vmatprep.subr.bf16.mxu0 %v2789
      %3295 = vmatpush1.bf16.msra.mxu0 %v2788
      %3296 = vmatprep.subr.bf16.mxu0 %v2796
      %3297 = vmatpush1.bf16.msra.mxu0 %v2795
      %3298 = vmatprep.subr.bf16.mxu0 %v2803
      %3299 = vmatpush1.bf16.msra.mxu0 %v2802
      %3300 = vmatprep.subr.bf16.mxu0 %v2810
      %3301 = vmatpush1.bf16.msra.mxu0 %v2809
      %3302 = vmatprep.subr.bf16.mxu0 0
      %3303 = vmatpush1.bf16.msra.mxu0 0
      %3304 = vmatprep.subr.bf16.mxu0 0
      %3305 = vmatpush1.bf16.msra.mxu0 0
      %3306 = vmatprep.subr.bf16.mxu0 0
      %3307 = vmatpush1.bf16.msra.mxu0 0
      %3308 = vmatprep.subr.bf16.mxu0 0
      %3309 = vmatpush1.bf16.msra.mxu0 0
      %3310 = vmatprep.subr.bf16.mxu0 0
      %3311 = vmatpush1.bf16.msra.mxu0 0
      %3312 = vmatprep.subr.bf16.mxu0 0
      %3313 = vmatpush1.bf16.msra.mxu0 0
      %3314 = vmatprep.subr.bf16.mxu0 0
      %3315 = vmatpush1.bf16.msra.mxu0 0
      %3316 = vmatprep.subr.bf16.mxu0 0
      %3317 = vmatpush1.bf16.msra.mxu0 0
      %3318 = vmatprep.subr.bf16.mxu0 0
      %3319 = vmatpush1.bf16.msra.mxu0 0
      %3320 = vmatprep.subr.bf16.mxu0 0
      %3321 = vmatpush1.bf16.msra.mxu0 0
      %3322 = vmatprep.subr.bf16.mxu0 0
      %3323 = vmatpush1.bf16.msra.mxu0 0
      %3324 = vmatprep.subr.bf16.mxu0 0
      %3325 = vmatpush1.bf16.msra.mxu0 0
      %3326 = vmatprep.mubr.bf16.mxu0 0
      %3327 = vmatmul.mubr.bf16.gmra.mrb[0].mxu0 %v2939
      %v3328 = vpop.f32.mrb[0].mxu0
      %v3329 = vadd.f32 0.0, %v3328
      %v3330 = vpop.f32.mrb[0].mxu0
      %v3331 = vadd.f32 0.0, %v3330
      %v3332 = vpop.f32.mrb[0].mxu0
      %v3333 = vadd.f32 0.0, %v3332
      %v3334 = vpop.f32.mrb[0].mxu0
      %v3335 = vadd.f32 0.0, %v3334
      %3336 = vmatprep.mubr.bf16.mxu0 0
      %3337 = vmatmul.mubr.bf16.gmra.mrb[0].mxu0 %v2942
      %v3338 = vpop.f32.mrb[0].mxu0
      %v3339 = vadd.f32 0.0, %v3338
      %v3340 = vpop.f32.mrb[0].mxu0
      %v3341 = vadd.f32 0.0, %v3340
      %v3342 = vpop.f32.mrb[0].mxu0
      %v3343 = vadd.f32 0.0, %v3342
      %v3344 = vpop.f32.mrb[0].mxu0
      %v3345 = vadd.f32 0.0, %v3344
      %3346 = vmatprep.mubr.bf16.mxu0 0
      %3347 = vmatmul.mubr.bf16.gmra.mrb[0].mxu0 %v2945
      %v3348 = vpop.f32.mrb[0].mxu0
      %v3349 = vadd.f32 0.0, %v3348
      %v3350 = vpop.f32.mrb[0].mxu0
      %v3351 = vadd.f32 0.0, %v3350
      %v3352 = vpop.f32.mrb[0].mxu0
      %v3353 = vadd.f32 0.0, %v3352
      %v3354 = vpop.f32.mrb[0].mxu0
      %v3355 = vadd.f32 0.0, %v3354
      %3356 = vmatprep.mubr.bf16.mxu0 0
      %3357 = vmatmul.mubr.bf16.gmra.mrb[0].mxu0 %v2948
      %v3358 = vpop.f32.mrb[0].mxu0
      %v3359 = vadd.f32 0.0, %v3358
      %v3360 = vpop.f32.mrb[0].mxu0
      %v3361 = vadd.f32 0.0, %v3360
      %v3362 = vpop.f32.mrb[0].mxu0
      %v3363 = vadd.f32 0.0, %v3362
      %v3364 = vpop.f32.mrb[0].mxu0
      %v3365 = vadd.f32 0.0, %v3364
      %3366 = vmatprep.mubr.bf16.mxu0 0
      %3367 = vmatmul.mubr.bf16.gmra.mrb[0].mxu0 %v2951
      %v3368 = vpop.f32.mrb[0].mxu0
      %v3369 = vadd.f32 0.0, %v3368
      %v3370 = vpop.f32.mrb[0].mxu0
      %v3371 = vadd.f32 0.0, %v3370
      %v3372 = vpop.f32.mrb[0].mxu0
      %v3373 = vadd.f32 0.0, %v3372
      %v3374 = vpop.f32.mrb[0].mxu0
      %v3375 = vadd.f32 0.0, %v3374
      %3376 = vmatprep.mubr.bf16.mxu0 0
      %3377 = vmatmul.mubr.bf16.gmra.mrb[0].mxu0 %v2954
      %v3378 = vpop.f32.mrb[0].mxu0
      %v3379 = vadd.f32 0.0, %v3378
      %v3380 = vpop.f32.mrb[0].mxu0
      %v3381 = vadd.f32 0.0, %v3380
      %v3382 = vpop.f32.mrb[0].mxu0
      %v3383 = vadd.f32 0.0, %v3382
      %v3384 = vpop.f32.mrb[0].mxu0
      %v3385 = vadd.f32 0.0, %v3384
      %3386 = vmatprep.mubr.bf16.mxu0 0
      %3387 = vmatmul.mubr.bf16.gmra.mrb[0].mxu0 %v2957
      %v3388 = vpop.f32.mrb[0].mxu0
      %v3389 = vadd.f32 0.0, %v3388
      %v3390 = vpop.f32.mrb[0].mxu0
      %v3391 = vadd.f32 0.0, %v3390
      %v3392 = vpop.f32.mrb[0].mxu0
      %v3393 = vadd.f32 0.0, %v3392
      %v3394 = vpop.f32.mrb[0].mxu0
      %v3395 = vadd.f32 0.0, %v3394
      %3396 = vmatprep.mubr.bf16.mxu0 0
      %3397 = vmatmul.mubr.bf16.gmra.mrb[0].mxu0 %v2960
      %v3398 = vpop.f32.mrb[0].mxu0
      %v3399 = vadd.f32 0.0, %v3398
      %v3400 = vpop.f32.mrb[0].mxu0
      %v3401 = vadd.f32 0.0, %v3400
      %v3402 = vpop.f32.mrb[0].mxu0
      %v3403 = vadd.f32 0.0, %v3402
      %v3404 = vpop.f32.mrb[0].mxu0
      %v3405 = vadd.f32 0.0, %v3404
      %3406 = vmatprep.mubr.bf16.mxu0 0
      %3407 = vmatmul.mubr.bf16.gmra.mrb[0].mxu0 %v2963
      %v3408 = vpop.f32.mrb[0].mxu0
      %v3409 = vadd.f32 0.0, %v3408
      %v3410 = vpop.f32.mrb[0].mxu0
      %v3411 = vadd.f32 0.0, %v3410
      %v3412 = vpop.f32.mrb[0].mxu0
      %v3413 = vadd.f32 0.0, %v3412
      %v3414 = vpop.f32.mrb[0].mxu0
      %v3415 = vadd.f32 0.0, %v3414
      %3416 = vmatprep.mubr.bf16.mxu0 0
      %3417 = vmatmul.mubr.bf16.gmra.mrb[0].mxu0 %v2966
      %v3418 = vpop.f32.mrb[0].mxu0
      %v3419 = vadd.f32 0.0, %v3418
      %v3420 = vpop.f32.mrb[0].mxu0
      %v3421 = vadd.f32 0.0, %v3420
      %v3422 = vpop.f32.mrb[0].mxu0
      %v3423 = vadd.f32 0.0, %v3422
      %v3424 = vpop.f32.mrb[0].mxu0
      %v3425 = vadd.f32 0.0, %v3424
      %3426 = vmatprep.mubr.bf16.mxu0 0
      %3427 = vmatmul.mubr.bf16.gmra.mrb[0].mxu0 %v2969
      %v3428 = vpop.f32.mrb[0].mxu0
      %v3429 = vadd.f32 0.0, %v3428
      %v3430 = vpop.f32.mrb[0].mxu0
      %v3431 = vadd.f32 0.0, %v3430
      %v3432 = vpop.f32.mrb[0].mxu0
      %v3433 = vadd.f32 0.0, %v3432
      %v3434 = vpop.f32.mrb[0].mxu0
      %v3435 = vadd.f32 0.0, %v3434
      %3436 = vmatprep.mubr.bf16.mxu0 0
      %3437 = vmatmul.mubr.bf16.gmra.mrb[0].mxu0 %v2972
      %v3438 = vpop.f32.mrb[0].mxu0
      %v3439 = vadd.f32 0.0, %v3438
      %v3440 = vpop.f32.mrb[0].mxu0
      %v3441 = vadd.f32 0.0, %v3440
      %v3442 = vpop.f32.mrb[0].mxu0
      %v3443 = vadd.f32 0.0, %v3442
      %v3444 = vpop.f32.mrb[0].mxu0
      %v3445 = vadd.f32 0.0, %v3444
      %3446 = vmatprep.mubr.bf16.mxu0 0
      %3447 = vmatmul.mubr.bf16.gmra.mrb[0].mxu0 %v2975
      %v3448 = vpop.f32.mrb[0].mxu0
      %v3449 = vadd.f32 0.0, %v3448
      %v3450 = vpop.f32.mrb[0].mxu0
      %v3451 = vadd.f32 0.0, %v3450
      %v3452 = vpop.f32.mrb[0].mxu0
      %v3453 = vadd.f32 0.0, %v3452
      %v3454 = vpop.f32.mrb[0].mxu0
      %v3455 = vadd.f32 0.0, %v3454
      %3456 = vmatprep.mubr.bf16.mxu0 0
      %3457 = vmatmul.mubr.bf16.gmra.mrb[0].mxu0 %v2978
      %v3458 = vpop.f32.mrb[0].mxu0
      %v3459 = vadd.f32 0.0, %v3458
      %v3460 = vpop.f32.mrb[0].mxu0
      %v3461 = vadd.f32 0.0, %v3460
      %v3462 = vpop.f32.mrb[0].mxu0
      %v3463 = vadd.f32 0.0, %v3462
      %v3464 = vpop.f32.mrb[0].mxu0
      %v3465 = vadd.f32 0.0, %v3464
      %3466 = vmatprep.mubr.bf16.mxu0 0
      %3467 = vmatmul.mubr.bf16.gmra.mrb[0].mxu0 %v2981
      %v3468 = vpop.f32.mrb[0].mxu0
      %v3469 = vadd.f32 0.0, %v3468
      %v3470 = vpop.f32.mrb[0].mxu0
      %v3471 = vadd.f32 0.0, %v3470
      %v3472 = vpop.f32.mrb[0].mxu0
      %v3473 = vadd.f32 0.0, %v3472
      %v3474 = vpop.f32.mrb[0].mxu0
      %v3475 = vadd.f32 0.0, %v3474
      %3476 = vmatprep.mubr.bf16.mxu0 0
      %3477 = vmatmul.mubr.bf16.gmra.mrb[0].mxu0 %v2984
      %v3478 = vpop.f32.mrb[0].mxu0
      %v3479 = vadd.f32 0.0, %v3478
      %v3480 = vpop.f32.mrb[0].mxu0
      %v3481 = vadd.f32 0.0, %v3480
      %v3482 = vpop.f32.mrb[0].mxu0
      %v3483 = vadd.f32 0.0, %v3482
      %v3484 = vpop.f32.mrb[0].mxu0
      %v3485 = vadd.f32 0.0, %v3484
      %3486 = vmatprep.mubr.bf16.mxu0 0
      %3487 = vmatmul.mubr.bf16.gmra.mrb[0].mxu0 %v2987
      %v3488 = vpop.f32.mrb[0].mxu0
      %v3489 = vadd.f32 0.0, %v3488
      %v3490 = vpop.f32.mrb[0].mxu0
      %v3491 = vadd.f32 0.0, %v3490
      %v3492 = vpop.f32.mrb[0].mxu0
      %v3493 = vadd.f32 0.0, %v3492
      %v3494 = vpop.f32.mrb[0].mxu0
      %v3495 = vadd.f32 0.0, %v3494
      %3496 = vmatprep.mubr.bf16.mxu0 0
      %3497 = vmatmul.mubr.bf16.gmra.mrb[0].mxu0 %v2990
      %v3498 = vpop.f32.mrb[0].mxu0
      %v3499 = vadd.f32 0.0, %v3498
      %v3500 = vpop.f32.mrb[0].mxu0
      %v3501 = vadd.f32 0.0, %v3500
      %v3502 = vpop.f32.mrb[0].mxu0
      %v3503 = vadd.f32 0.0, %v3502
      %v3504 = vpop.f32.mrb[0].mxu0
      %v3505 = vadd.f32 0.0, %v3504
      %3506 = vmatprep.mubr.bf16.mxu0 0
      %3507 = vmatmul.mubr.bf16.gmra.mrb[0].mxu0 %v2993
      %v3508 = vpop.f32.mrb[0].mxu0
      %v3509 = vadd.f32 0.0, %v3508
      %v3510 = vpop.f32.mrb[0].mxu0
      %v3511 = vadd.f32 0.0, %v3510
      %v3512 = vpop.f32.mrb[0].mxu0
      %v3513 = vadd.f32 0.0, %v3512
      %v3514 = vpop.f32.mrb[0].mxu0
      %v3515 = vadd.f32 0.0, %v3514
      %3516 = vmatprep.mubr.bf16.mxu0 0
      %3517 = vmatmul.mubr.bf16.gmra.mrb[0].mxu0 %v2996
      %v3518 = vpop.f32.mrb[0].mxu0
      %v3519 = vadd.f32 0.0, %v3518
      %v3520 = vpop.f32.mrb[0].mxu0
      %v3521 = vadd.f32 0.0, %v3520
      %v3522 = vpop.f32.mrb[0].mxu0
      %v3523 = vadd.f32 0.0, %v3522
      %v3524 = vpop.f32.mrb[0].mxu0
      %v3525 = vadd.f32 0.0, %v3524
      %3526 = vmatprep.mubr.bf16.mxu0 0
      %3527 = vmatmul.mubr.bf16.gmra.mrb[0].mxu0 %v2999
      %v3528 = vpop.f32.mrb[0].mxu0
      %v3529 = vadd.f32 0.0, %v3528
      %v3530 = vpop.f32.mrb[0].mxu0
      %v3531 = vadd.f32 0.0, %v3530
      %v3532 = vpop.f32.mrb[0].mxu0
      %v3533 = vadd.f32 0.0, %v3532
      %v3534 = vpop.f32.mrb[0].mxu0
      %v3535 = vadd.f32 0.0, %v3534
      %3536 = vmatprep.mubr.bf16.mxu0 0
      %3537 = vmatmul.mubr.bf16.gmra.mrb[0].mxu0 %v3002
      %v3538 = vpop.f32.mrb[0].mxu0
      %v3539 = vadd.f32 0.0, %v3538
      %v3540 = vpop.f32.mrb[0].mxu0
      %v3541 = vadd.f32 0.0, %v3540
      %v3542 = vpop.f32.mrb[0].mxu0
      %v3543 = vadd.f32 0.0, %v3542
      %v3544 = vpop.f32.mrb[0].mxu0
      %v3545 = vadd.f32 0.0, %v3544
      %3546 = vmatprep.mubr.bf16.mxu0 0
      %3547 = vmatmul.mubr.bf16.gmra.mrb[0].mxu0 %v3005
      %v3548 = vpop.f32.mrb[0].mxu0
      %v3549 = vadd.f32 0.0, %v3548
      %v3550 = vpop.f32.mrb[0].mxu0
      %v3551 = vadd.f32 0.0, %v3550
      %v3552 = vpop.f32.mrb[0].mxu0
      %v3553 = vadd.f32 0.0, %v3552
      %v3554 = vpop.f32.mrb[0].mxu0
      %v3555 = vadd.f32 0.0, %v3554
      %3556 = vmatprep.mubr.bf16.mxu0 0
      %3557 = vmatmul.mubr.bf16.gmra.mrb[0].mxu0 %v3008
      %v3558 = vpop.f32.mrb[0].mxu0
      %v3559 = vadd.f32 0.0, %v3558
      %v3560 = vpop.f32.mrb[0].mxu0
      %v3561 = vadd.f32 0.0, %v3560
      %v3562 = vpop.f32.mrb[0].mxu0
      %v3563 = vadd.f32 0.0, %v3562
      %v3564 = vpop.f32.mrb[0].mxu0
      %v3565 = vadd.f32 0.0, %v3564
      %3566 = vmatprep.mubr.bf16.mxu0 0
      %3567 = vmatmul.mubr.bf16.gmra.mrb[0].mxu0 %v3011
      %v3568 = vpop.f32.mrb[0].mxu0
      %v3569 = vadd.f32 0.0, %v3568
      %v3570 = vpop.f32.mrb[0].mxu0
      %v3571 = vadd.f32 0.0, %v3570
      %v3572 = vpop.f32.mrb[0].mxu0
      %v3573 = vpop.f32.mrb[0].mxu0
      %3574 = vdwg.mxu0
      %3575 = vmatprep.subr.bf16.mxu0 %v2791
      %3576 = vmatpush1.bf16.msra.mxu0 %v2790
      %3577 = vmatprep.subr.bf16.mxu0 %v2798
      %3578 = vmatpush1.bf16.msra.mxu0 %v2797
      %3579 = vmatprep.subr.bf16.mxu0 %v2805
      %3580 = vmatpush1.bf16.msra.mxu0 %v2804
      %3581 = vmatprep.subr.bf16.mxu0 %v2812
      %3582 = vmatpush1.bf16.msra.mxu0 %v2811
      %3583 = vmatprep.subr.bf16.mxu0 0
      %3584 = vmatpush1.bf16.msra.mxu0 0
      %3585 = vmatprep.subr.bf16.mxu0 0
      %3586 = vmatpush1.bf16.msra.mxu0 0
      %3587 = vmatprep.subr.bf16.mxu0 0
      %3588 = vmatpush1.bf16.msra.mxu0 0
      %3589 = vmatprep.subr.bf16.mxu0 0
      %3590 = vmatpush1.bf16.msra.mxu0 0
      %3591 = vmatprep.subr.bf16.mxu0 0
      %3592 = vmatpush1.bf16.msra.mxu0 0
      %3593 = vmatprep.subr.bf16.mxu0 0
      %3594 = vmatpush1.bf16.msra.mxu0 0
      %3595 = vmatprep.subr.bf16.mxu0 0
      %3596 = vmatpush1.bf16.msra.mxu0 0
      %3597 = vmatprep.subr.bf16.mxu0 0
      %3598 = vmatpush1.bf16.msra.mxu0 0
      %3599 = vmatprep.subr.bf16.mxu0 0
      %3600 = vmatpush1.bf16.msra.mxu0 0
      %3601 = vmatprep.subr.bf16.mxu0 0
      %3602 = vmatpush1.bf16.msra.mxu0 0
      %3603 = vmatprep.subr.bf16.mxu0 0
      %3604 = vmatpush1.bf16.msra.mxu0 0
      %3605 = vmatprep.subr.bf16.mxu0 0
      %3606 = vmatpush1.bf16.msra.mxu0 0
      %3607 = vmatprep.mubr.bf16.mxu0 0
      %3608 = vmatmul.mubr.bf16.gmra.mrb[0].mxu0 %v2939
      %v3609 = vpop.f32.mrb[0].mxu0
      %v3610 = vadd.f32 0.0, %v3609
      %v3611 = vpop.f32.mrb[0].mxu0
      %v3612 = vadd.f32 0.0, %v3611
      %v3613 = vpop.f32.mrb[0].mxu0
      %v3614 = vadd.f32 0.0, %v3613
      %v3615 = vpop.f32.mrb[0].mxu0
      %v3616 = vadd.f32 0.0, %v3615
      %3617 = vmatprep.mubr.bf16.mxu0 0
      %3618 = vmatmul.mubr.bf16.gmra.mrb[0].mxu0 %v2942
      %v3619 = vpop.f32.mrb[0].mxu0
      %v3620 = vadd.f32 0.0, %v3619
      %v3621 = vpop.f32.mrb[0].mxu0
      %v3622 = vadd.f32 0.0, %v3621
      %v3623 = vpop.f32.mrb[0].mxu0
      %v3624 = vadd.f32 0.0, %v3623
      %v3625 = vpop.f32.mrb[0].mxu0
      %v3626 = vadd.f32 0.0, %v3625
      %3627 = vmatprep.mubr.bf16.mxu0 0
      %3628 = vmatmul.mubr.bf16.gmra.mrb[0].mxu0 %v2945
      %v3629 = vpop.f32.mrb[0].mxu0
      %v3630 = vadd.f32 0.0, %v3629
      %v3631 = vpop.f32.mrb[0].mxu0
      %v3632 = vadd.f32 0.0, %v3631
      %v3633 = vpop.f32.mrb[0].mxu0
      %v3634 = vadd.f32 0.0, %v3633
      %v3635 = vpop.f32.mrb[0].mxu0
      %v3636 = vadd.f32 0.0, %v3635
      %3637 = vmatprep.mubr.bf16.mxu0 0
      %3638 = vmatmul.mubr.bf16.gmra.mrb[0].mxu0 %v2948
      %v3639 = vpop.f32.mrb[0].mxu0
      %v3640 = vadd.f32 0.0, %v3639
      %v3641 = vpop.f32.mrb[0].mxu0
      %v3642 = vadd.f32 0.0, %v3641
      %v3643 = vpop.f32.mrb[0].mxu0
      %v3644 = vadd.f32 0.0, %v3643
      %v3645 = vpop.f32.mrb[0].mxu0
      %v3646 = vadd.f32 0.0, %v3645
      %3647 = vmatprep.mubr.bf16.mxu0 0
      %3648 = vmatmul.mubr.bf16.gmra.mrb[0].mxu0 %v2951
      %v3649 = vpop.f32.mrb[0].mxu0
      %v3650 = vadd.f32 0.0, %v3649
      %v3651 = vpop.f32.mrb[0].mxu0
      %v3652 = vadd.f32 0.0, %v3651
      %v3653 = vpop.f32.mrb[0].mxu0
      %v3654 = vadd.f32 0.0, %v3653
      %v3655 = vpop.f32.mrb[0].mxu0
      %v3656 = vadd.f32 0.0, %v3655
      %3657 = vmatprep.mubr.bf16.mxu0 0
      %3658 = vmatmul.mubr.bf16.gmra.mrb[0].mxu0 %v2954
      %v3659 = vpop.f32.mrb[0].mxu0
      %v3660 = vadd.f32 0.0, %v3659
      %v3661 = vpop.f32.mrb[0].mxu0
      %v3662 = vadd.f32 0.0, %v3661
      %v3663 = vpop.f32.mrb[0].mxu0
      %v3664 = vadd.f32 0.0, %v3663
      %v3665 = vpop.f32.mrb[0].mxu0
      %v3666 = vadd.f32 0.0, %v3665
      %3667 = vmatprep.mubr.bf16.mxu0 0
      %3668 = vmatmul.mubr.bf16.gmra.mrb[0].mxu0 %v2957
      %v3669 = vpop.f32.mrb[0].mxu0
      %v3670 = vadd.f32 0.0, %v3669
      %v3671 = vpop.f32.mrb[0].mxu0
      %v3672 = vadd.f32 0.0, %v3671
      %v3673 = vpop.f32.mrb[0].mxu0
      %v3674 = vadd.f32 0.0, %v3673
      %v3675 = vpop.f32.mrb[0].mxu0
      %v3676 = vadd.f32 0.0, %v3675
      %3677 = vmatprep.mubr.bf16.mxu0 0
      %3678 = vmatmul.mubr.bf16.gmra.mrb[0].mxu0 %v2960
      %v3679 = vpop.f32.mrb[0].mxu0
      %v3680 = vadd.f32 0.0, %v3679
      %v3681 = vpop.f32.mrb[0].mxu0
      %v3682 = vadd.f32 0.0, %v3681
      %v3683 = vpop.f32.mrb[0].mxu0
      %v3684 = vadd.f32 0.0, %v3683
      %v3685 = vpop.f32.mrb[0].mxu0
      %v3686 = vadd.f32 0.0, %v3685
      %3687 = vmatprep.mubr.bf16.mxu0 0
      %3688 = vmatmul.mubr.bf16.gmra.mrb[0].mxu0 %v2963
      %v3689 = vpop.f32.mrb[0].mxu0
      %v3690 = vadd.f32 0.0, %v3689
      %v3691 = vpop.f32.mrb[0].mxu0
      %v3692 = vadd.f32 0.0, %v3691
      %v3693 = vpop.f32.mrb[0].mxu0
      %v3694 = vadd.f32 0.0, %v3693
      %v3695 = vpop.f32.mrb[0].mxu0
      %v3696 = vadd.f32 0.0, %v3695
      %3697 = vmatprep.mubr.bf16.mxu0 0
      %3698 = vmatmul.mubr.bf16.gmra.mrb[0].mxu0 %v2966
      %v3699 = vpop.f32.mrb[0].mxu0
      %v3700 = vadd.f32 0.0, %v3699
      %v3701 = vpop.f32.mrb[0].mxu0
      %v3702 = vadd.f32 0.0, %v3701
      %v3703 = vpop.f32.mrb[0].mxu0
      %v3704 = vadd.f32 0.0, %v3703
      %v3705 = vpop.f32.mrb[0].mxu0
      %v3706 = vadd.f32 0.0, %v3705
      %3707 = vmatprep.mubr.bf16.mxu0 0
      %3708 = vmatmul.mubr.bf16.gmra.mrb[0].mxu0 %v2969
      %v3709 = vpop.f32.mrb[0].mxu0
      %v3710 = vadd.f32 0.0, %v3709
      %v3711 = vpop.f32.mrb[0].mxu0
      %v3712 = vadd.f32 0.0, %v3711
      %v3713 = vpop.f32.mrb[0].mxu0
      %v3714 = vadd.f32 0.0, %v3713
      %v3715 = vpop.f32.mrb[0].mxu0
      %v3716 = vadd.f32 0.0, %v3715
      %3717 = vmatprep.mubr.bf16.mxu0 0
      %3718 = vmatmul.mubr.bf16.gmra.mrb[0].mxu0 %v2972
      %v3719 = vpop.f32.mrb[0].mxu0
      %v3720 = vadd.f32 0.0, %v3719
      %v3721 = vpop.f32.mrb[0].mxu0
      %v3722 = vadd.f32 0.0, %v3721
      %v3723 = vpop.f32.mrb[0].mxu0
      %v3724 = vadd.f32 0.0, %v3723
      %v3725 = vpop.f32.mrb[0].mxu0
      %v3726 = vadd.f32 0.0, %v3725
      %3727 = vmatprep.mubr.bf16.mxu0 0
      %3728 = vmatmul.mubr.bf16.gmra.mrb[0].mxu0 %v2975
      %v3729 = vpop.f32.mrb[0].mxu0
      %v3730 = vadd.f32 0.0, %v3729
      %v3731 = vpop.f32.mrb[0].mxu0
      %v3732 = vadd.f32 0.0, %v3731
      %v3733 = vpop.f32.mrb[0].mxu0
      %v3734 = vadd.f32 0.0, %v3733
      %v3735 = vpop.f32.mrb[0].mxu0
      %v3736 = vadd.f32 0.0, %v3735
      %3737 = vmatprep.mubr.bf16.mxu0 0
      %3738 = vmatmul.mubr.bf16.gmra.mrb[0].mxu0 %v2978
      %v3739 = vpop.f32.mrb[0].mxu0
      %v3740 = vadd.f32 0.0, %v3739
      %v3741 = vpop.f32.mrb[0].mxu0
      %v3742 = vadd.f32 0.0, %v3741
      %v3743 = vpop.f32.mrb[0].mxu0
      %v3744 = vadd.f32 0.0, %v3743
      %v3745 = vpop.f32.mrb[0].mxu0
      %v3746 = vadd.f32 0.0, %v3745
      %3747 = vmatprep.mubr.bf16.mxu0 0
      %3748 = vmatmul.mubr.bf16.gmra.mrb[0].mxu0 %v2981
      %v3749 = vpop.f32.mrb[0].mxu0
      %v3750 = vadd.f32 0.0, %v3749
      %v3751 = vpop.f32.mrb[0].mxu0
      %v3752 = vadd.f32 0.0, %v3751
      %v3753 = vpop.f32.mrb[0].mxu0
      %v3754 = vadd.f32 0.0, %v3753
      %v3755 = vpop.f32.mrb[0].mxu0
      %v3756 = vadd.f32 0.0, %v3755
      %3757 = vmatprep.mubr.bf16.mxu0 0
      %3758 = vmatmul.mubr.bf16.gmra.mrb[0].mxu0 %v2984
      %v3759 = vpop.f32.mrb[0].mxu0
      %v3760 = vadd.f32 0.0, %v3759
      %v3761 = vpop.f32.mrb[0].mxu0
      %v3762 = vadd.f32 0.0, %v3761
      %v3763 = vpop.f32.mrb[0].mxu0
      %v3764 = vadd.f32 0.0, %v3763
      %v3765 = vpop.f32.mrb[0].mxu0
      %v3766 = vadd.f32 0.0, %v3765
      %3767 = vmatprep.mubr.bf16.mxu0 0
      %3768 = vmatmul.mubr.bf16.gmra.mrb[0].mxu0 %v2987
      %v3769 = vpop.f32.mrb[0].mxu0
      %v3770 = vadd.f32 0.0, %v3769
      %v3771 = vpop.f32.mrb[0].mxu0
      %v3772 = vadd.f32 0.0, %v3771
      %v3773 = vpop.f32.mrb[0].mxu0
      %v3774 = vadd.f32 0.0, %v3773
      %v3775 = vpop.f32.mrb[0].mxu0
      %v3776 = vadd.f32 0.0, %v3775
      %3777 = vmatprep.mubr.bf16.mxu0 0
      %3778 = vmatmul.mubr.bf16.gmra.mrb[0].mxu0 %v2990
      %v3779 = vpop.f32.mrb[0].mxu0
      %v3780 = vadd.f32 0.0, %v3779
      %v3781 = vpop.f32.mrb[0].mxu0
      %v3782 = vadd.f32 0.0, %v3781
      %v3783 = vpop.f32.mrb[0].mxu0
      %v3784 = vadd.f32 0.0, %v3783
      %v3785 = vpop.f32.mrb[0].mxu0
      %v3786 = vadd.f32 0.0, %v3785
      %3787 = vmatprep.mubr.bf16.mxu0 0
      %3788 = vmatmul.mubr.bf16.gmra.mrb[0].mxu0 %v2993
      %v3789 = vpop.f32.mrb[0].mxu0
      %v3790 = vadd.f32 0.0, %v3789
      %v3791 = vpop.f32.mrb[0].mxu0
      %v3792 = vadd.f32 0.0, %v3791
      %v3793 = vpop.f32.mrb[0].mxu0
      %v3794 = vadd.f32 0.0, %v3793
      %v3795 = vpop.f32.mrb[0].mxu0
      %v3796 = vadd.f32 0.0, %v3795
      %3797 = vmatprep.mubr.bf16.mxu0 0
      %3798 = vmatmul.mubr.bf16.gmra.mrb[0].mxu0 %v2996
      %v3799 = vpop.f32.mrb[0].mxu0
      %v3800 = vadd.f32 0.0, %v3799
      %v3801 = vpop.f32.mrb[0].mxu0
      %v3802 = vadd.f32 0.0, %v3801
      %v3803 = vpop.f32.mrb[0].mxu0
      %v3804 = vadd.f32 0.0, %v3803
      %v3805 = vpop.f32.mrb[0].mxu0
      %v3806 = vadd.f32 0.0, %v3805
      %3807 = vmatprep.mubr.bf16.mxu0 0
      %3808 = vmatmul.mubr.bf16.gmra.mrb[0].mxu0 %v2999
      %v3809 = vpop.f32.mrb[0].mxu0
      %v3810 = vadd.f32 0.0, %v3809
      %v3811 = vpop.f32.mrb[0].mxu0
      %v3812 = vadd.f32 0.0, %v3811
      %v3813 = vpop.f32.mrb[0].mxu0
      %v3814 = vadd.f32 0.0, %v3813
      %v3815 = vpop.f32.mrb[0].mxu0
      %v3816 = vadd.f32 0.0, %v3815
      %3817 = vmatprep.mubr.bf16.mxu0 0
      %3818 = vmatmul.mubr.bf16.gmra.mrb[0].mxu0 %v3002
      %v3819 = vpop.f32.mrb[0].mxu0
      %v3820 = vadd.f32 0.0, %v3819
      %v3821 = vpop.f32.mrb[0].mxu0
      %v3822 = vadd.f32 0.0, %v3821
      %v3823 = vpop.f32.mrb[0].mxu0
      %v3824 = vadd.f32 0.0, %v3823
      %v3825 = vpop.f32.mrb[0].mxu0
      %v3826 = vadd.f32 0.0, %v3825
      %3827 = vmatprep.mubr.bf16.mxu0 0
      %3828 = vmatmul.mubr.bf16.gmra.mrb[0].mxu0 %v3005
      %v3829 = vpop.f32.mrb[0].mxu0
      %v3830 = vadd.f32 0.0, %v3829
      %v3831 = vpop.f32.mrb[0].mxu0
      %v3832 = vadd.f32 0.0, %v3831
      %v3833 = vpop.f32.mrb[0].mxu0
      %v3834 = vadd.f32 0.0, %v3833
      %v3835 = vpop.f32.mrb[0].mxu0
      %v3836 = vadd.f32 0.0, %v3835
      %3837 = vmatprep.mubr.bf16.mxu0 0
      %3838 = vmatmul.mubr.bf16.gmra.mrb[0].mxu0 %v3008
      %v3839 = vpop.f32.mrb[0].mxu0
      %v3840 = vadd.f32 0.0, %v3839
      %v3841 = vpop.f32.mrb[0].mxu0
      %v3842 = vadd.f32 0.0, %v3841
      %v3843 = vpop.f32.mrb[0].mxu0
      %v3844 = vadd.f32 0.0, %v3843
      %v3845 = vpop.f32.mrb[0].mxu0
      %v3846 = vadd.f32 0.0, %v3845
      %3847 = vmatprep.mubr.bf16.mxu0 0
      %3848 = vmatmul.mubr.bf16.gmra.mrb[0].mxu0 %v3011
      %v3849 = vpop.f32.mrb[0].mxu0
      %v3850 = vadd.f32 0.0, %v3849
      %v3851 = vpop.f32.mrb[0].mxu0
      %v3852 = vadd.f32 0.0, %v3851
      %v3853 = vpop.f32.mrb[0].mxu0
      %v3854 = vpop.f32.mrb[0].mxu0
      %3855 = vdwg.mxu0
      %3856 = vmatprep.subr.bf16.mxu0 0
      %3857 = vmatpush1.bf16.msra.mxu0 %v2792
      %3858 = vmatprep.subr.bf16.mxu0 0
      %3859 = vmatpush1.bf16.msra.mxu0 %v2799
      %3860 = vmatprep.subr.bf16.mxu0 0
      %3861 = vmatpush1.bf16.msra.mxu0 %v2806
      %3862 = vmatprep.subr.bf16.mxu0 0
      %3863 = vmatpush1.bf16.msra.mxu0 %v2813
      %3864 = vmatprep.subr.bf16.mxu0 0
      %3865 = vmatpush1.bf16.msra.mxu0 0
      %3866 = vmatprep.subr.bf16.mxu0 0
      %3867 = vmatpush1.bf16.msra.mxu0 0
      %3868 = vmatprep.subr.bf16.mxu0 0
      %3869 = vmatpush1.bf16.msra.mxu0 0
      %3870 = vmatprep.subr.bf16.mxu0 0
      %3871 = vmatpush1.bf16.msra.mxu0 0
      %3872 = vmatprep.subr.bf16.mxu0 0
      %3873 = vmatpush1.bf16.msra.mxu0 0
      %3874 = vmatprep.subr.bf16.mxu0 0
      %3875 = vmatpush1.bf16.msra.mxu0 0
      %3876 = vmatprep.subr.bf16.mxu0 0
      %3877 = vmatpush1.bf16.msra.mxu0 0
      %3878 = vmatprep.subr.bf16.mxu0 0
      %3879 = vmatpush1.bf16.msra.mxu0 0
      %3880 = vmatprep.subr.bf16.mxu0 0
      %3881 = vmatpush1.bf16.msra.mxu0 0
      %3882 = vmatprep.subr.bf16.mxu0 0
      %3883 = vmatpush1.bf16.msra.mxu0 0
      %3884 = vmatprep.subr.bf16.mxu0 0
      %3885 = vmatpush1.bf16.msra.mxu0 0
      %3886 = vmatprep.subr.bf16.mxu0 0
      %3887 = vmatpush1.bf16.msra.mxu0 0
      %3888 = vmatprep.mubr.bf16.mxu0 0
      %3889 = vmatmul.mubr.bf16.gmra.mrb[0].mxu0 %v2939
      %v3890 = vpop.f32.mrb[0].mxu0
      %v3891 = vadd.f32 0.0, %v3890
      %v3892 = vpop.f32.mrb[0].mxu0
      %v3893 = vpop.f32.mrb[0].mxu0
      %v3894 = vadd.f32 0.0, %v3893
      %v3895 = vpop.f32.mrb[0].mxu0
      %3896 = vmatprep.mubr.bf16.mxu0 0
      %3897 = vmatmul.mubr.bf16.gmra.mrb[0].mxu0 %v2942
      %v3898 = vpop.f32.mrb[0].mxu0
      %v3899 = vadd.f32 0.0, %v3898
      %v3900 = vpop.f32.mrb[0].mxu0
      %v3901 = vpop.f32.mrb[0].mxu0
      %v3902 = vadd.f32 0.0, %v3901
      %v3903 = vpop.f32.mrb[0].mxu0
      %3904 = vmatprep.mubr.bf16.mxu0 0
      %3905 = vmatmul.mubr.bf16.gmra.mrb[0].mxu0 %v2945
      %v3906 = vpop.f32.mrb[0].mxu0
      %v3907 = vadd.f32 0.0, %v3906
      %v3908 = vpop.f32.mrb[0].mxu0
      %v3909 = vpop.f32.mrb[0].mxu0
      %v3910 = vadd.f32 0.0, %v3909
      %v3911 = vpop.f32.mrb[0].mxu0
      %3912 = vmatprep.mubr.bf16.mxu0 0
      %3913 = vmatmul.mubr.bf16.gmra.mrb[0].mxu0 %v2948
      %v3914 = vpop.f32.mrb[0].mxu0
      %v3915 = vadd.f32 0.0, %v3914
      %v3916 = vpop.f32.mrb[0].mxu0
      %v3917 = vpop.f32.mrb[0].mxu0
      %v3918 = vadd.f32 0.0, %v3917
      %v3919 = vpop.f32.mrb[0].mxu0
      %3920 = vmatprep.mubr.bf16.mxu0 0
      %3921 = vmatmul.mubr.bf16.gmra.mrb[0].mxu0 %v2951
      %v3922 = vpop.f32.mrb[0].mxu0
      %v3923 = vadd.f32 0.0, %v3922
      %v3924 = vpop.f32.mrb[0].mxu0
      %v3925 = vpop.f32.mrb[0].mxu0
      %v3926 = vadd.f32 0.0, %v3925
      %v3927 = vpop.f32.mrb[0].mxu0
      %3928 = vmatprep.mubr.bf16.mxu0 0
      %3929 = vmatmul.mubr.bf16.gmra.mrb[0].mxu0 %v2954
      %v3930 = vpop.f32.mrb[0].mxu0
      %v3931 = vadd.f32 0.0, %v3930
      %v3932 = vpop.f32.mrb[0].mxu0
      %v3933 = vpop.f32.mrb[0].mxu0
      %v3934 = vadd.f32 0.0, %v3933
      %v3935 = vpop.f32.mrb[0].mxu0
      %3936 = vmatprep.mubr.bf16.mxu0 0
      %3937 = vmatmul.mubr.bf16.gmra.mrb[0].mxu0 %v2957
      %v3938 = vpop.f32.mrb[0].mxu0
      %v3939 = vadd.f32 0.0, %v3938
      %v3940 = vpop.f32.mrb[0].mxu0
      %v3941 = vpop.f32.mrb[0].mxu0
      %v3942 = vadd.f32 0.0, %v3941
      %v3943 = vpop.f32.mrb[0].mxu0
      %3944 = vmatprep.mubr.bf16.mxu0 0
      %3945 = vmatmul.mubr.bf16.gmra.mrb[0].mxu0 %v2960
      %v3946 = vpop.f32.mrb[0].mxu0
      %v3947 = vadd.f32 0.0, %v3946
      %v3948 = vpop.f32.mrb[0].mxu0
      %v3949 = vpop.f32.mrb[0].mxu0
      %v3950 = vadd.f32 0.0, %v3949
      %v3951 = vpop.f32.mrb[0].mxu0
      %3952 = vmatprep.mubr.bf16.mxu0 0
      %3953 = vmatmul.mubr.bf16.gmra.mrb[0].mxu0 %v2963
      %v3954 = vpop.f32.mrb[0].mxu0
      %v3955 = vadd.f32 0.0, %v3954
      %v3956 = vpop.f32.mrb[0].mxu0
      %v3957 = vpop.f32.mrb[0].mxu0
      %v3958 = vadd.f32 0.0, %v3957
      %v3959 = vpop.f32.mrb[0].mxu0
      %3960 = vmatprep.mubr.bf16.mxu0 0
      %3961 = vmatmul.mubr.bf16.gmra.mrb[0].mxu0 %v2966
      %v3962 = vpop.f32.mrb[0].mxu0
      %v3963 = vadd.f32 0.0, %v3962
      %v3964 = vpop.f32.mrb[0].mxu0
      %v3965 = vpop.f32.mrb[0].mxu0
      %v3966 = vadd.f32 0.0, %v3965
      %v3967 = vpop.f32.mrb[0].mxu0
      %3968 = vmatprep.mubr.bf16.mxu0 0
      %3969 = vmatmul.mubr.bf16.gmra.mrb[0].mxu0 %v2969
      %v3970 = vpop.f32.mrb[0].mxu0
      %v3971 = vadd.f32 0.0, %v3970
      %v3972 = vpop.f32.mrb[0].mxu0
      %v3973 = vpop.f32.mrb[0].mxu0
      %v3974 = vadd.f32 0.0, %v3973
      %v3975 = vpop.f32.mrb[0].mxu0
      %3976 = vmatprep.mubr.bf16.mxu0 0
      %3977 = vmatmul.mubr.bf16.gmra.mrb[0].mxu0 %v2972
      %v3978 = vpop.f32.mrb[0].mxu0
      %v3979 = vadd.f32 0.0, %v3978
      %v3980 = vpop.f32.mrb[0].mxu0
      %v3981 = vpop.f32.mrb[0].mxu0
      %v3982 = vadd.f32 0.0, %v3981
      %v3983 = vpop.f32.mrb[0].mxu0
      %3984 = vmatprep.mubr.bf16.mxu0 0
      %3985 = vmatmul.mubr.bf16.gmra.mrb[0].mxu0 %v2975
      %v3986 = vpop.f32.mrb[0].mxu0
      %v3987 = vadd.f32 0.0, %v3986
      %v3988 = vpop.f32.mrb[0].mxu0
      %v3989 = vpop.f32.mrb[0].mxu0
      %v3990 = vadd.f32 0.0, %v3989
      %v3991 = vpop.f32.mrb[0].mxu0
      %3992 = vmatprep.mubr.bf16.mxu0 0
      %3993 = vmatmul.mubr.bf16.gmra.mrb[0].mxu0 %v2978
      %v3994 = vpop.f32.mrb[0].mxu0
      %v3995 = vadd.f32 0.0, %v3994
      %v3996 = vpop.f32.mrb[0].mxu0
      %v3997 = vpop.f32.mrb[0].mxu0
      %v3998 = vadd.f32 0.0, %v3997
      %v3999 = vpop.f32.mrb[0].mxu0
      %4000 = vmatprep.mubr.bf16.mxu0 0
      %4001 = vmatmul.mubr.bf16.gmra.mrb[0].mxu0 %v2981
      %v4002 = vpop.f32.mrb[0].mxu0
      %v4003 = vadd.f32 0.0, %v4002
      %v4004 = vpop.f32.mrb[0].mxu0
      %v4005 = vpop.f32.mrb[0].mxu0
      %v4006 = vadd.f32 0.0, %v4005
      %v4007 = vpop.f32.mrb[0].mxu0
      %4008 = vmatprep.mubr.bf16.mxu0 0
      %4009 = vmatmul.mubr.bf16.gmra.mrb[0].mxu0 %v2984
      %v4010 = vpop.f32.mrb[0].mxu0
      %v4011 = vadd.f32 0.0, %v4010
      %v4012 = vpop.f32.mrb[0].mxu0
      %v4013 = vpop.f32.mrb[0].mxu0
      %v4014 = vadd.f32 0.0, %v4013
      %v4015 = vpop.f32.mrb[0].mxu0
      %4016 = vmatprep.mubr.bf16.mxu0 0
      %4017 = vmatmul.mubr.bf16.gmra.mrb[0].mxu0 %v2987
      %v4018 = vpop.f32.mrb[0].mxu0
      %v4019 = vadd.f32 0.0, %v4018
      %v4020 = vpop.f32.mrb[0].mxu0
      %v4021 = vpop.f32.mrb[0].mxu0
      %v4022 = vadd.f32 0.0, %v4021
      %v4023 = vpop.f32.mrb[0].mxu0
      %4024 = vmatprep.mubr.bf16.mxu0 0
      %4025 = vmatmul.mubr.bf16.gmra.mrb[0].mxu0 %v2990
      %v4026 = vpop.f32.mrb[0].mxu0
      %v4027 = vadd.f32 0.0, %v4026
      %v4028 = vpop.f32.mrb[0].mxu0
      %v4029 = vpop.f32.mrb[0].mxu0
      %v4030 = vadd.f32 0.0, %v4029
      %v4031 = vpop.f32.mrb[0].mxu0
      %4032 = vmatprep.mubr.bf16.mxu0 0
      %4033 = vmatmul.mubr.bf16.gmra.mrb[0].mxu0 %v2993
      %v4034 = vpop.f32.mrb[0].mxu0
      %v4035 = vadd.f32 0.0, %v4034
      %v4036 = vpop.f32.mrb[0].mxu0
      %v4037 = vpop.f32.mrb[0].mxu0
      %v4038 = vadd.f32 0.0, %v4037
      %v4039 = vpop.f32.mrb[0].mxu0
      %4040 = vmatprep.mubr.bf16.mxu0 0
      %4041 = vmatmul.mubr.bf16.gmra.mrb[0].mxu0 %v2996
      %v4042 = vpop.f32.mrb[0].mxu0
      %v4043 = vadd.f32 0.0, %v4042
      %v4044 = vpop.f32.mrb[0].mxu0
      %v4045 = vpop.f32.mrb[0].mxu0
      %v4046 = vadd.f32 0.0, %v4045
      %v4047 = vpop.f32.mrb[0].mxu0
      %4048 = vmatprep.mubr.bf16.mxu0 0
      %4049 = vmatmul.mubr.bf16.gmra.mrb[0].mxu0 %v2999
      %v4050 = vpop.f32.mrb[0].mxu0
      %v4051 = vadd.f32 0.0, %v4050
      %v4052 = vpop.f32.mrb[0].mxu0
      %v4053 = vpop.f32.mrb[0].mxu0
      %v4054 = vadd.f32 0.0, %v4053
      %v4055 = vpop.f32.mrb[0].mxu0
      %4056 = vmatprep.mubr.bf16.mxu0 0
      %4057 = vmatmul.mubr.bf16.gmra.mrb[0].mxu0 %v3002
      %v4058 = vpop.f32.mrb[0].mxu0
      %v4059 = vadd.f32 0.0, %v4058
      %v4060 = vpop.f32.mrb[0].mxu0
      %v4061 = vpop.f32.mrb[0].mxu0
      %v4062 = vadd.f32 0.0, %v4061
      %v4063 = vpop.f32.mrb[0].mxu0
      %4064 = vmatprep.mubr.bf16.mxu0 0
      %4065 = vmatmul.mubr.bf16.gmra.mrb[0].mxu0 %v3005
      %v4066 = vpop.f32.mrb[0].mxu0
      %v4067 = vadd.f32 0.0, %v4066
      %v4068 = vpop.f32.mrb[0].mxu0
      %v4069 = vpop.f32.mrb[0].mxu0
      %v4070 = vadd.f32 0.0, %v4069
      %v4071 = vpop.f32.mrb[0].mxu0
      %4072 = vmatprep.mubr.bf16.mxu0 0
      %4073 = vmatmul.mubr.bf16.gmra.mrb[0].mxu0 %v3008
      %v4074 = vpop.f32.mrb[0].mxu0
      %v4075 = vadd.f32 0.0, %v4074
      %v4076 = vpop.f32.mrb[0].mxu0
      %v4077 = vpop.f32.mrb[0].mxu0
      %v4078 = vadd.f32 0.0, %v4077
      %v4079 = vpop.f32.mrb[0].mxu0
      %4080 = vmatprep.mubr.bf16.mxu0 0
      %4081 = vmatmul.mubr.bf16.gmra.mrb[0].mxu0 %v3011
      %v4082 = vpop.f32.mrb[0].mxu0
      %v4083 = vadd.f32 0.0, %v4082
      %v4084 = vpop.f32.mrb[0].mxu0
      %v4085 = vpop.f32.mrb[0].mxu0
      %v4086 = vpop.f32.mrb[0].mxu0
      %4087 = vdwg.mxu0
      %4088 = vst [vmem:[#allocation3] sm:$0xff] %v3048
      %4089 = vst [vmem:[#allocation3 + $0x8] sm:$0xff] %v3050
      %4090 = vst [vmem:[#allocation3 + $0x10] sm:$0xff] %v3329
      %4091 = vst [vmem:[#allocation3 + $0x18] sm:$0xff] %v3331
      %4092 = vst [vmem:[#allocation3 + $0x20] sm:$0xff] %v3610
      %4093 = vst [vmem:[#allocation3 + $0x28] sm:$0xff] %v3612
      %4094 = vst [vmem:[#allocation3 + $0x30] sm:$0xff] %v3891
      %4095 = vst [vmem:[#allocation3 + $0x38] sm:$0xff] %v3052
      %4096 = vst [vmem:[#allocation3 + $0x40] sm:$0xff] %v3054
      %4097 = vst [vmem:[#allocation3 + $0x48] sm:$0xff] %v3333
      %4098 = vst [vmem:[#allocation3 + $0x50] sm:$0xff] %v3335
      %4099 = vst [vmem:[#allocation3 + $0x58] sm:$0xff] %v3614
      %4100 = vst [vmem:[#allocation3 + $0x60] sm:$0xff] %v3616
      %4101 = vst [vmem:[#allocation3 + $0x68] sm:$0xff] %v3894
      %4102 = vst [vmem:[#allocation3 + $0x70] sm:$0xff] %v3058
      %4103 = vst [vmem:[#allocation3 + $0x78] sm:$0xff] %v3060
      %4104 = vst [vmem:[#allocation3 + $0x80] sm:$0xff] %v3339
      %4105 = vst [vmem:[#allocation3 + $0x88] sm:$0xff] %v3341
      %4106 = vst [vmem:[#allocation3 + $0x90] sm:$0xff] %v3620
      %4107 = vst [vmem:[#allocation3 + $0x98] sm:$0xff] %v3622
      %4108 = vst [vmem:[#allocation3 + $0xa0] sm:$0xff] %v3899
      %4109 = vst [vmem:[#allocation3 + $0xa8] sm:$0xff] %v3062
      %4110 = vst [vmem:[#allocation3 + $0xb0] sm:$0xff] %v3064
      %4111 = vst [vmem:[#allocation3 + $0xb8] sm:$0xff] %v3343
      %4112 = vst [vmem:[#allocation3 + $0xc0] sm:$0xff] %v3345
      %4113 = vst [vmem:[#allocation3 + $0xc8] sm:$0xff] %v3624
      %4114 = vst [vmem:[#allocation3 + $0xd0] sm:$0xff] %v3626
      %4115 = vst [vmem:[#allocation3 + $0xd8] sm:$0xff] %v3902
      %4116 = vst [vmem:[#allocation3 + $0xe0] sm:$0xff] %v3068
      %4117 = vst [vmem:[#allocation3 + $0xe8] sm:$0xff] %v3070
      %4118 = vst [vmem:[#allocation3 + $0xf0] sm:$0xff] %v3349
      %4119 = vst [vmem:[#allocation3 + $0xf8] sm:$0xff] %v3351
      %4120 = vst [vmem:[#allocation3 + $0x100] sm:$0xff] %v3630
      %4121 = vst [vmem:[#allocation3 + $0x108] sm:$0xff] %v3632
      %4122 = vst [vmem:[#allocation3 + $0x110] sm:$0xff] %v3907
      %4123 = vst [vmem:[#allocation3 + $0x118] sm:$0xff] %v3072
      %4124 = vst [vmem:[#allocation3 + $0x120] sm:$0xff] %v3074
      %4125 = vst [vmem:[#allocation3 + $0x128] sm:$0xff] %v3353
      %4126 = vst [vmem:[#allocation3 + $0x130] sm:$0xff] %v3355
      %4127 = vst [vmem:[#allocation3 + $0x138] sm:$0xff] %v3634
      %4128 = vst [vmem:[#allocation3 + $0x140] sm:$0xff] %v3636
      %4129 = vst [vmem:[#allocation3 + $0x148] sm:$0xff] %v3910
      %4130 = vst [vmem:[#allocation3 + $0x150] sm:$0xff] %v3078
      %4131 = vst [vmem:[#allocation3 + $0x158] sm:$0xff] %v3080
      %4132 = vst [vmem:[#allocation3 + $0x160] sm:$0xff] %v3359
      %4133 = vst [vmem:[#allocation3 + $0x168] sm:$0xff] %v3361
      %4134 = vst [vmem:[#allocation3 + $0x170] sm:$0xff] %v3640
      %4135 = vst [vmem:[#allocation3 + $0x178] sm:$0xff] %v3642
      %4136 = vst [vmem:[#allocation3 + $0x180] sm:$0xff] %v3915
      %4137 = vst [vmem:[#allocation3 + $0x188] sm:$0xff] %v3082
      %4138 = vst [vmem:[#allocation3 + $0x190] sm:$0xff] %v3084
      %4139 = vst [vmem:[#allocation3 + $0x198] sm:$0xff] %v3363
      %4140 = vst [vmem:[#allocation3 + $0x1a0] sm:$0xff] %v3365
      %4141 = vst [vmem:[#allocation3 + $0x1a8] sm:$0xff] %v3644
      %4142 = vst [vmem:[#allocation3 + $0x1b0] sm:$0xff] %v3646
      %4143 = vst [vmem:[#allocation3 + $0x1b8] sm:$0xff] %v3918
      %4144 = vst [vmem:[#allocation3 + $0x1c0] sm:$0xff] %v3088
      %4145 = vst [vmem:[#allocation3 + $0x1c8] sm:$0xff] %v3090
      %4146 = vst [vmem:[#allocation3 + $0x1d0] sm:$0xff] %v3369
      %4147 = vst [vmem:[#allocation3 + $0x1d8] sm:$0xff] %v3371
      %4148 = vst [vmem:[#allocation3 + $0x1e0] sm:$0xff] %v3650
      %4149 = vst [vmem:[#allocation3 + $0x1e8] sm:$0xff] %v3652
      %4150 = vst [vmem:[#allocation3 + $0x1f0] sm:$0xff] %v3923
      %4151 = vst [vmem:[#allocation3 + $0x1f8] sm:$0xff] %v3092
      %4152 = vst [vmem:[#allocation3 + $0x200] sm:$0xff] %v3094
      %4153 = vst [vmem:[#allocation3 + $0x208] sm:$0xff] %v3373
      %4154 = vst [vmem:[#allocation3 + $0x210] sm:$0xff] %v3375
      %4155 = vst [vmem:[#allocation3 + $0x218] sm:$0xff] %v3654
      %4156 = vst [vmem:[#allocation3 + $0x220] sm:$0xff] %v3656
      %4157 = vst [vmem:[#allocation3 + $0x228] sm:$0xff] %v3926
      %4158 = vst [vmem:[#allocation3 + $0x230] sm:$0xff] %v3098
      %4159 = vst [vmem:[#allocation3 + $0x238] sm:$0xff] %v3100
      %4160 = vst [vmem:[#allocation3 + $0x240] sm:$0xff] %v3379
      %4161 = vst [vmem:[#allocation3 + $0x248] sm:$0xff] %v3381
      %4162 = vst [vmem:[#allocation3 + $0x250] sm:$0xff] %v3660
      %4163 = vst [vmem:[#allocation3 + $0x258] sm:$0xff] %v3662
      %4164 = vst [vmem:[#allocation3 + $0x260] sm:$0xff] %v3931
      %4165 = vst [vmem:[#allocation3 + $0x268] sm:$0xff] %v3102
      %4166 = vst [vmem:[#allocation3 + $0x270] sm:$0xff] %v3104
      %4167 = vst [vmem:[#allocation3 + $0x278] sm:$0xff] %v3383
      %4168 = vst [vmem:[#allocation3 + $0x280] sm:$0xff] %v3385
      %4169 = vst [vmem:[#allocation3 + $0x288] sm:$0xff] %v3664
      %4170 = vst [vmem:[#allocation3 + $0x290] sm:$0xff] %v3666
      %4171 = vst [vmem:[#allocation3 + $0x298] sm:$0xff] %v3934
      %4172 = vst [vmem:[#allocation3 + $0x2a0] sm:$0xff] %v3108
      %4173 = vst [vmem:[#allocation3 + $0x2a8] sm:$0xff] %v3110
      %4174 = vst [vmem:[#allocation3 + $0x2b0] sm:$0xff] %v3389
      %4175 = vst [vmem:[#allocation3 + $0x2b8] sm:$0xff] %v3391
      %4176 = vst [vmem:[#allocation3 + $0x2c0] sm:$0xff] %v3670
      %4177 = vst [vmem:[#allocation3 + $0x2c8] sm:$0xff] %v3672
      %4178 = vst [vmem:[#allocation3 + $0x2d0] sm:$0xff] %v3939
      %4179 = vst [vmem:[#allocation3 + $0x2d8] sm:$0xff] %v3112
      %4180 = vst [vmem:[#allocation3 + $0x2e0] sm:$0xff] %v3114
      %4181 = vst [vmem:[#allocation3 + $0x2e8] sm:$0xff] %v3393
      %4182 = vst [vmem:[#allocation3 + $0x2f0] sm:$0xff] %v3395
      %4183 = vst [vmem:[#allocation3 + $0x2f8] sm:$0xff] %v3674
      %4184 = vst [vmem:[#allocation3 + $0x300] sm:$0xff] %v3676
      %4185 = vst [vmem:[#allocation3 + $0x308] sm:$0xff] %v3942
      %4186 = vst [vmem:[#allocation3 + $0x310] sm:$0xff] %v3118
      %4187 = vst [vmem:[#allocation3 + $0x318] sm:$0xff] %v3120
      %4188 = vst [vmem:[#allocation3 + $0x320] sm:$0xff] %v3399
      %4189 = vst [vmem:[#allocation3 + $0x328] sm:$0xff] %v3401
      %4190 = vst [vmem:[#allocation3 + $0x330] sm:$0xff] %v3680
      %4191 = vst [vmem:[#allocation3 + $0x338] sm:$0xff] %v3682
      %4192 = vst [vmem:[#allocation3 + $0x340] sm:$0xff] %v3947
      %4193 = vst [vmem:[#allocation3 + $0x348] sm:$0xff] %v3122
      %4194 = vst [vmem:[#allocation3 + $0x350] sm:$0xff] %v3124
      %4195 = vst [vmem:[#allocation3 + $0x358] sm:$0xff] %v3403
      %4196 = vst [vmem:[#allocation3 + $0x360] sm:$0xff] %v3405
      %4197 = vst [vmem:[#allocation3 + $0x368] sm:$0xff] %v3684
      %4198 = vst [vmem:[#allocation3 + $0x370] sm:$0xff] %v3686
      %4199 = vst [vmem:[#allocation3 + $0x378] sm:$0xff] %v3950
      %4200 = vst [vmem:[#allocation3 + $0x380] sm:$0xff] %v3128
      %4201 = vst [vmem:[#allocation3 + $0x388] sm:$0xff] %v3130
      %4202 = vst [vmem:[#allocation3 + $0x390] sm:$0xff] %v3409
      %4203 = vst [vmem:[#allocation3 + $0x398] sm:$0xff] %v3411
      %4204 = vst [vmem:[#allocation3 + $0x3a0] sm:$0xff] %v3690
      %4205 = vst [vmem:[#allocation3 + $0x3a8] sm:$0xff] %v3692
      %4206 = vst [vmem:[#allocation3 + $0x3b0] sm:$0xff] %v3955
      %4207 = vst [vmem:[#allocation3 + $0x3b8] sm:$0xff] %v3132
      %4208 = vst [vmem:[#allocation3 + $0x3c0] sm:$0xff] %v3134
      %4209 = vst [vmem:[#allocation3 + $0x3c8] sm:$0xff] %v3413
      %4210 = vst [vmem:[#allocation3 + $0x3d0] sm:$0xff] %v3415
      %4211 = vst [vmem:[#allocation3 + $0x3d8] sm:$0xff] %v3694
      %4212 = vst [vmem:[#allocation3 + $0x3e0] sm:$0xff] %v3696
      %4213 = vst [vmem:[#allocation3 + $0x3e8] sm:$0xff] %v3958
      %4214 = vst [vmem:[#allocation3 + $0x3f0] sm:$0xff] %v3138
      %4215 = vst [vmem:[#allocation3 + $0x3f8] sm:$0xff] %v3140
      %4216 = vst [vmem:[#allocation3 + $0x400] sm:$0xff] %v3419
      %4217 = vst [vmem:[#allocation3 + $0x408] sm:$0xff] %v3421
      %4218 = vst [vmem:[#allocation3 + $0x410] sm:$0xff] %v3700
      %4219 = vst [vmem:[#allocation3 + $0x418] sm:$0xff] %v3702
      %4220 = vst [vmem:[#allocation3 + $0x420] sm:$0xff] %v3963
      %4221 = vst [vmem:[#allocation3 + $0x428] sm:$0xff] %v3142
      %4222 = vst [vmem:[#allocation3 + $0x430] sm:$0xff] %v3144
      %4223 = vst [vmem:[#allocation3 + $0x438] sm:$0xff] %v3423
      %4224 = vst [vmem:[#allocation3 + $0x440] sm:$0xff] %v3425
      %4225 = vst [vmem:[#allocation3 + $0x448] sm:$0xff] %v3704
      %4226 = vst [vmem:[#allocation3 + $0x450] sm:$0xff] %v3706
      %4227 = vst [vmem:[#allocation3 + $0x458] sm:$0xff] %v3966
      %4228 = vst [vmem:[#allocation3 + $0x460] sm:$0xff] %v3148
      %4229 = vst [vmem:[#allocation3 + $0x468] sm:$0xff] %v3150
      %4230 = vst [vmem:[#allocation3 + $0x470] sm:$0xff] %v3429
      %4231 = vst [vmem:[#allocation3 + $0x478] sm:$0xff] %v3431
      %4232 = vst [vmem:[#allocation3 + $0x480] sm:$0xff] %v3710
      %4233 = vst [vmem:[#allocation3 + $0x488] sm:$0xff] %v3712
      %4234 = vst [vmem:[#allocation3 + $0x490] sm:$0xff] %v3971
      %4235 = vst [vmem:[#allocation3 + $0x498] sm:$0xff] %v3152
      %4236 = vst [vmem:[#allocation3 + $0x4a0] sm:$0xff] %v3154
      %4237 = vst [vmem:[#allocation3 + $0x4a8] sm:$0xff] %v3433
      %4238 = vst [vmem:[#allocation3 + $0x4b0] sm:$0xff] %v3435
      %4239 = vst [vmem:[#allocation3 + $0x4b8] sm:$0xff] %v3714
      %4240 = vst [vmem:[#allocation3 + $0x4c0] sm:$0xff] %v3716
      %4241 = vst [vmem:[#allocation3 + $0x4c8] sm:$0xff] %v3974
      %4242 = vst [vmem:[#allocation3 + $0x4d0] sm:$0xff] %v3158
      %4243 = vst [vmem:[#allocation3 + $0x4d8] sm:$0xff] %v3160
      %4244 = vst [vmem:[#allocation3 + $0x4e0] sm:$0xff] %v3439
      %4245 = vst [vmem:[#allocation3 + $0x4e8] sm:$0xff] %v3441
      %4246 = vst [vmem:[#allocation3 + $0x4f0] sm:$0xff] %v3720
      %4247 = vst [vmem:[#allocation3 + $0x4f8] sm:$0xff] %v3722
      %4248 = vst [vmem:[#allocation3 + $0x500] sm:$0xff] %v3979
      %4249 = vst [vmem:[#allocation3 + $0x508] sm:$0xff] %v3162
      %4250 = vst [vmem:[#allocation3 + $0x510] sm:$0xff] %v3164
      %4251 = vst [vmem:[#allocation3 + $0x518] sm:$0xff] %v3443
      %4252 = vst [vmem:[#allocation3 + $0x520] sm:$0xff] %v3445
      %4253 = vst [vmem:[#allocation3 + $0x528] sm:$0xff] %v3724
      %4254 = vst [vmem:[#allocation3 + $0x530] sm:$0xff] %v3726
      %4255 = vst [vmem:[#allocation3 + $0x538] sm:$0xff] %v3982
      %4256 = vst [vmem:[#allocation3 + $0x540] sm:$0xff] %v3168
      %4257 = vst [vmem:[#allocation3 + $0x548] sm:$0xff] %v3170
      %4258 = vst [vmem:[#allocation3 + $0x550] sm:$0xff] %v3449
      %4259 = vst [vmem:[#allocation3 + $0x558] sm:$0xff] %v3451
      %4260 = vst [vmem:[#allocation3 + $0x560] sm:$0xff] %v3730
      %4261 = vst [vmem:[#allocation3 + $0x568] sm:$0xff] %v3732
      %4262 = vst [vmem:[#allocation3 + $0x570] sm:$0xff] %v3987
      %4263 = vst [vmem:[#allocation3 + $0x578] sm:$0xff] %v3172
      %4264 = vst [vmem:[#allocation3 + $0x580] sm:$0xff] %v3174
      %4265 = vst [vmem:[#allocation3 + $0x588] sm:$0xff] %v3453
      %4266 = vst [vmem:[#allocation3 + $0x590] sm:$0xff] %v3455
      %4267 = vst [vmem:[#allocation3 + $0x598] sm:$0xff] %v3734
      %4268 = vst [vmem:[#allocation3 + $0x5a0] sm:$0xff] %v3736
      %4269 = vst [vmem:[#allocation3 + $0x5a8] sm:$0xff] %v3990
      %4270 = vst [vmem:[#allocation3 + $0x5b0] sm:$0xff] %v3178
      %4271 = vst [vmem:[#allocation3 + $0x5b8] sm:$0xff] %v3180
      %4272 = vst [vmem:[#allocation3 + $0x5c0] sm:$0xff] %v3459
      %4273 = vst [vmem:[#allocation3 + $0x5c8] sm:$0xff] %v3461
      %4274 = vst [vmem:[#allocation3 + $0x5d0] sm:$0xff] %v3740
      %4275 = vst [vmem:[#allocation3 + $0x5d8] sm:$0xff] %v3742
      %4276 = vst [vmem:[#allocation3 + $0x5e0] sm:$0xff] %v3995
      %4277 = vst [vmem:[#allocation3 + $0x5e8] sm:$0xff] %v3182
      %4278 = vst [vmem:[#allocation3 + $0x5f0] sm:$0xff] %v3184
      %4279 = vst [vmem:[#allocation3 + $0x5f8] sm:$0xff] %v3463
      %4280 = vst [vmem:[#allocation3 + $0x600] sm:$0xff] %v3465
      %4281 = vst [vmem:[#allocation3 + $0x608] sm:$0xff] %v3744
      %4282 = vst [vmem:[#allocation3 + $0x610] sm:$0xff] %v3746
      %4283 = vst [vmem:[#allocation3 + $0x618] sm:$0xff] %v3998
      %4284 = vst [vmem:[#allocation3 + $0x620] sm:$0xff] %v3188
      %4285 = vst [vmem:[#allocation3 + $0x628] sm:$0xff] %v3190
      %4286 = vst [vmem:[#allocation3 + $0x630] sm:$0xff] %v3469
      %4287 = vst [vmem:[#allocation3 + $0x638] sm:$0xff] %v3471
      %4288 = vst [vmem:[#allocation3 + $0x640] sm:$0xff] %v3750
      %4289 = vst [vmem:[#allocation3 + $0x648] sm:$0xff] %v3752
      %4290 = vst [vmem:[#allocation3 + $0x650] sm:$0xff] %v4003
      %4291 = vst [vmem:[#allocation3 + $0x658] sm:$0xff] %v3192
      %4292 = vst [vmem:[#allocation3 + $0x660] sm:$0xff] %v3194
      %4293 = vst [vmem:[#allocation3 + $0x668] sm:$0xff] %v3473
      %4294 = vst [vmem:[#allocation3 + $0x670] sm:$0xff] %v3475
      %4295 = vst [vmem:[#allocation3 + $0x678] sm:$0xff] %v3754
      %4296 = vst [vmem:[#allocation3 + $0x680] sm:$0xff] %v3756
      %4297 = vst [vmem:[#allocation3 + $0x688] sm:$0xff] %v4006
      %4298 = vst [vmem:[#allocation3 + $0x690] sm:$0xff] %v3198
      %4299 = vst [vmem:[#allocation3 + $0x698] sm:$0xff] %v3200
      %4300 = vst [vmem:[#allocation3 + $0x6a0] sm:$0xff] %v3479
      %4301 = vst [vmem:[#allocation3 + $0x6a8] sm:$0xff] %v3481
      %4302 = vst [vmem:[#allocation3 + $0x6b0] sm:$0xff] %v3760
      %4303 = vst [vmem:[#allocation3 + $0x6b8] sm:$0xff] %v3762
      %4304 = vst [vmem:[#allocation3 + $0x6c0] sm:$0xff] %v4011
      %4305 = vst [vmem:[#allocation3 + $0x6c8] sm:$0xff] %v3202
      %4306 = vst [vmem:[#allocation3 + $0x6d0] sm:$0xff] %v3204
      %4307 = vst [vmem:[#allocation3 + $0x6d8] sm:$0xff] %v3483
      %4308 = vst [vmem:[#allocation3 + $0x6e0] sm:$0xff] %v3485
      %4309 = vst [vmem:[#allocation3 + $0x6e8] sm:$0xff] %v3764
      %4310 = vst [vmem:[#allocation3 + $0x6f0] sm:$0xff] %v3766
      %4311 = vst [vmem:[#allocation3 + $0x6f8] sm:$0xff] %v4014
      %4312 = vst [vmem:[#allocation3 + $0x700] sm:$0xff] %v3208
      %4313 = vst [vmem:[#allocation3 + $0x708] sm:$0xff] %v3210
      %4314 = vst [vmem:[#allocation3 + $0x710] sm:$0xff] %v3489
      %4315 = vst [vmem:[#allocation3 + $0x718] sm:$0xff] %v3491
      %4316 = vst [vmem:[#allocation3 + $0x720] sm:$0xff] %v3770
      %4317 = vst [vmem:[#allocation3 + $0x728] sm:$0xff] %v3772
      %4318 = vst [vmem:[#allocation3 + $0x730] sm:$0xff] %v4019
      %4319 = vst [vmem:[#allocation3 + $0x738] sm:$0xff] %v3212
      %4320 = vst [vmem:[#allocation3 + $0x740] sm:$0xff] %v3214
      %4321 = vst [vmem:[#allocation3 + $0x748] sm:$0xff] %v3493
      %4322 = vst [vmem:[#allocation3 + $0x750] sm:$0xff] %v3495
      %4323 = vst [vmem:[#allocation3 + $0x758] sm:$0xff] %v3774
      %4324 = vst [vmem:[#allocation3 + $0x760] sm:$0xff] %v3776
      %4325 = vst [vmem:[#allocation3 + $0x768] sm:$0xff] %v4022
      %4326 = vst [vmem:[#allocation3 + $0x770] sm:$0xff] %v3218
      %4327 = vst [vmem:[#allocation3 + $0x778] sm:$0xff] %v3220
      %4328 = vst [vmem:[#allocation3 + $0x780] sm:$0xff] %v3499
      %4329 = vst [vmem:[#allocation3 + $0x788] sm:$0xff] %v3501
      %4330 = vst [vmem:[#allocation3 + $0x790] sm:$0xff] %v3780
      %4331 = vst [vmem:[#allocation3 + $0x798] sm:$0xff] %v3782
      %4332 = vst [vmem:[#allocation3 + $0x7a0] sm:$0xff] %v4027
      %4333 = vst [vmem:[#allocation3 + $0x7a8] sm:$0xff] %v3222
      %4334 = vst [vmem:[#allocation3 + $0x7b0] sm:$0xff] %v3224
      %4335 = vst [vmem:[#allocation3 + $0x7b8] sm:$0xff] %v3503
      %4336 = vst [vmem:[#allocation3 + $0x7c0] sm:$0xff] %v3505
      %4337 = vst [vmem:[#allocation3 + $0x7c8] sm:$0xff] %v3784
      %4338 = vst [vmem:[#allocation3 + $0x7d0] sm:$0xff] %v3786
      %4339 = vst [vmem:[#allocation3 + $0x7d8] sm:$0xff] %v4030
      %4340 = vst [vmem:[#allocation3 + $0x7e0] sm:$0xff] %v3228
      %4341 = vst [vmem:[#allocation3 + $0x7e8] sm:$0xff] %v3230
      %4342 = vst [vmem:[#allocation3 + $0x7f0] sm:$0xff] %v3509
      %4343 = vst [vmem:[#allocation3 + $0x7f8] sm:$0xff] %v3511
      %4344 = vst [vmem:[#allocation3 + $0x800] sm:$0xff] %v3790
      %4345 = vst [vmem:[#allocation3 + $0x808] sm:$0xff] %v3792
      %4346 = vst [vmem:[#allocation3 + $0x810] sm:$0xff] %v4035
      %4347 = vst [vmem:[#allocation3 + $0x818] sm:$0xff] %v3232
      %4348 = vst [vmem:[#allocation3 + $0x820] sm:$0xff] %v3234
      %4349 = vst [vmem:[#allocation3 + $0x828] sm:$0xff] %v3513
      %4350 = vst [vmem:[#allocation3 + $0x830] sm:$0xff] %v3515
      %4351 = vst [vmem:[#allocation3 + $0x838] sm:$0xff] %v3794
      %4352 = vst [vmem:[#allocation3 + $0x840] sm:$0xff] %v3796
      %4353 = vst [vmem:[#allocation3 + $0x848] sm:$0xff] %v4038
      %4354 = vst [vmem:[#allocation3 + $0x850] sm:$0xff] %v3238
      %4355 = vst [vmem:[#allocation3 + $0x858] sm:$0xff] %v3240
      %4356 = vst [vmem:[#allocation3 + $0x860] sm:$0xff] %v3519
      %4357 = vst [vmem:[#allocation3 + $0x868] sm:$0xff] %v3521
      %4358 = vst [vmem:[#allocation3 + $0x870] sm:$0xff] %v3800
      %4359 = vst [vmem:[#allocation3 + $0x878] sm:$0xff] %v3802
      %4360 = vst [vmem:[#allocation3 + $0x880] sm:$0xff] %v4043
      %4361 = vst [vmem:[#allocation3 + $0x888] sm:$0xff] %v3242
      %4362 = vst [vmem:[#allocation3 + $0x890] sm:$0xff] %v3244
      %4363 = vst [vmem:[#allocation3 + $0x898] sm:$0xff] %v3523
      %4364 = vst [vmem:[#allocation3 + $0x8a0] sm:$0xff] %v3525
      %4365 = vst [vmem:[#allocation3 + $0x8a8] sm:$0xff] %v3804
      %4366 = vst [vmem:[#allocation3 + $0x8b0] sm:$0xff] %v3806
      %4367 = vst [vmem:[#allocation3 + $0x8b8] sm:$0xff] %v4046
      %4368 = vst [vmem:[#allocation3 + $0x8c0] sm:$0xff] %v3248
      %4369 = vst [vmem:[#allocation3 + $0x8c8] sm:$0xff] %v3250
      %4370 = vst [vmem:[#allocation3 + $0x8d0] sm:$0xff] %v3529
      %4371 = vst [vmem:[#allocation3 + $0x8d8] sm:$0xff] %v3531
      %4372 = vst [vmem:[#allocation3 + $0x8e0] sm:$0xff] %v3810
      %4373 = vst [vmem:[#allocation3 + $0x8e8] sm:$0xff] %v3812
      %4374 = vst [vmem:[#allocation3 + $0x8f0] sm:$0xff] %v4051
      %4375 = vst [vmem:[#allocation3 + $0x8f8] sm:$0xff] %v3252
      %4376 = vst [vmem:[#allocation3 + $0x900] sm:$0xff] %v3254
      %4377 = vst [vmem:[#allocation3 + $0x908] sm:$0xff] %v3533
      %4378 = vst [vmem:[#allocation3 + $0x910] sm:$0xff] %v3535
      %4379 = vst [vmem:[#allocation3 + $0x918] sm:$0xff] %v3814
      %4380 = vst [vmem:[#allocation3 + $0x920] sm:$0xff] %v3816
      %4381 = vst [vmem:[#allocation3 + $0x928] sm:$0xff] %v4054
      %4382 = vst [vmem:[#allocation3 + $0x930] sm:$0xff] %v3258
      %4383 = vst [vmem:[#allocation3 + $0x938] sm:$0xff] %v3260
      %4384 = vst [vmem:[#allocation3 + $0x940] sm:$0xff] %v3539
      %4385 = vst [vmem:[#allocation3 + $0x948] sm:$0xff] %v3541
      %4386 = vst [vmem:[#allocation3 + $0x950] sm:$0xff] %v3820
      %4387 = vst [vmem:[#allocation3 + $0x958] sm:$0xff] %v3822
      %4388 = vst [vmem:[#allocation3 + $0x960] sm:$0xff] %v4059
      %4389 = vst [vmem:[#allocation3 + $0x968] sm:$0xff] %v3262
      %4390 = vst [vmem:[#allocation3 + $0x970] sm:$0xff] %v3264
      %4391 = vst [vmem:[#allocation3 + $0x978] sm:$0xff] %v3543
      %4392 = vst [vmem:[#allocation3 + $0x980] sm:$0xff] %v3545
      %4393 = vst [vmem:[#allocation3 + $0x988] sm:$0xff] %v3824
      %4394 = vst [vmem:[#allocation3 + $0x990] sm:$0xff] %v3826
      %4395 = vst [vmem:[#allocation3 + $0x998] sm:$0xff] %v4062
      %4396 = vst [vmem:[#allocation3 + $0x9a0] sm:$0xff] %v3268
      %4397 = vst [vmem:[#allocation3 + $0x9a8] sm:$0xff] %v3270
      %4398 = vst [vmem:[#allocation3 + $0x9b0] sm:$0xff] %v3549
      %4399 = vst [vmem:[#allocation3 + $0x9b8] sm:$0xff] %v3551
      %4400 = vst [vmem:[#allocation3 + $0x9c0] sm:$0xff] %v3830
      %4401 = vst [vmem:[#allocation3 + $0x9c8] sm:$0xff] %v3832
      %4402 = vst [vmem:[#allocation3 + $0x9d0] sm:$0xff] %v4067
      %4403 = vst [vmem:[#allocation3 + $0x9d8] sm:$0xff] %v3272
      %4404 = vst [vmem:[#allocation3 + $0x9e0] sm:$0xff] %v3274
      %4405 = vst [vmem:[#allocation3 + $0x9e8] sm:$0xff] %v3553
      %4406 = vst [vmem:[#allocation3 + $0x9f0] sm:$0xff] %v3555
      %4407 = vst [vmem:[#allocation3 + $0x9f8] sm:$0xff] %v3834
      %4408 = vst [vmem:[#allocation3 + $0xa00] sm:$0xff] %v3836
      %4409 = vst [vmem:[#allocation3 + $0xa08] sm:$0xff] %v4070
      %4410 = vst [vmem:[#allocation3 + $0xa10] sm:$0xff] %v3278
      %4411 = vst [vmem:[#allocation3 + $0xa18] sm:$0xff] %v3280
      %4412 = vst [vmem:[#allocation3 + $0xa20] sm:$0xff] %v3559
      %4413 = vst [vmem:[#allocation3 + $0xa28] sm:$0xff] %v3561
      %4414 = vst [vmem:[#allocation3 + $0xa30] sm:$0xff] %v3840
      %4415 = vst [vmem:[#allocation3 + $0xa38] sm:$0xff] %v3842
      %4416 = vst [vmem:[#allocation3 + $0xa40] sm:$0xff] %v4075
      %4417 = vst [vmem:[#allocation3 + $0xa48] sm:$0xff] %v3282
      %4418 = vst [vmem:[#allocation3 + $0xa50] sm:$0xff] %v3284
      %4419 = vst [vmem:[#allocation3 + $0xa58] sm:$0xff] %v3563
      %4420 = vst [vmem:[#allocation3 + $0xa60] sm:$0xff] %v3565
      %4421 = vst [vmem:[#allocation3 + $0xa68] sm:$0xff] %v3844
      %4422 = vst [vmem:[#allocation3 + $0xa70] sm:$0xff] %v3846
      %4423 = vst [vmem:[#allocation3 + $0xa78] sm:$0xff] %v4078
      %4424 = vst [vmem:[#allocation3 + $0xa80] sm:$0xff] %v3288
      %4425 = vst [vmem:[#allocation3 + $0xa88] sm:$0xff] %v3290
      %4426 = vst [vmem:[#allocation3 + $0xa90] sm:$0xff] %v3569
      %4427 = vst [vmem:[#allocation3 + $0xa98] sm:$0xff] %v3571
      %4428 = vst [vmem:[#allocation3 + $0xaa0] sm:$0xff] %v3850
      %4429 = vst [vmem:[#allocation3 + $0xaa8] sm:$0xff] %v3852
      %4430 = vst [vmem:[#allocation3 + $0xab0] sm:$0xff] %v4083
      %v4431 = vld [vmem:[#allocation3] sm:$0xff]
      %v4432 = vld [vmem:[#allocation3 + $0x8] sm:$0xff]
      %v4433 = vld [vmem:[#allocation3 + $0x10] sm:$0xff]
      %v4434 = vld [vmem:[#allocation3 + $0x18] sm:$0xff]
      %v4435 = vld [vmem:[#allocation3 + $0x20] sm:$0xff]
      %v4436 = vld [vmem:[#allocation3 + $0x28] sm:$0xff]
      %v4437 = vadd.f32 %v4431, 0.0
      %v4438 = vadd.f32 %v4432, 0.0
      %v4439 = vadd.f32 %v4433, 0.0
      %v4440 = vadd.f32 %v4434, 0.0
      %v4441 = vadd.f32 %v4435, 0.0
      %v4442 = vadd.f32 %v4436, 0.0
      %v4443 = vld [vmem:[#allocation3 + $0x38] sm:$0xff]
      %v4444 = vld [vmem:[#allocation3 + $0x40] sm:$0xff]
      %v4445 = vld [vmem:[#allocation3 + $0x48] sm:$0xff]
      %v4446 = vld [vmem:[#allocation3 + $0x50] sm:$0xff]
      %v4447 = vld [vmem:[#allocation3 + $0x58] sm:$0xff]
      %v4448 = vld [vmem:[#allocation3 + $0x60] sm:$0xff]
      %4455 = vrot.lane.b32.xlu0 %v4443, 127
      %v4456 = vpop.permute.xlu0 %4455
      %4457 = vrot.lane.b32.xlu0 %v4444, 127
      %v4458 = vpop.permute.xlu0 %4457
      %4459 = vrot.lane.b32.xlu0 %v4445, 127
      %v4460 = vpop.permute.xlu0 %4459
      %4461 = vrot.lane.b32.xlu0 %v4446, 127
      %v4462 = vpop.permute.xlu0 %4461
      %4463 = vrot.lane.b32.xlu0 %v4447, 127
      %v4464 = vpop.permute.xlu0 %4463
      %4465 = vrot.lane.b32.xlu0 %v4448, 127
      %v4466 = vpop.permute.xlu0 %4465
      %vm4467 = vcmask 1039360
      %v4468 = vsel %vm4467, %v4456, %v4458
      %v4469 = vsel %vm4467, %v4458, %v4460
      %v4470 = vsel %vm4467, %v4460, %v4462
      %v4471 = vsel %vm4467, %v4462, %v4464
      %v4472 = vsel %vm4467, %v4464, %v4466
      %v4479 = vadd.f32 %v4437, %v4468
      %v4480 = vadd.f32 %v4438, %v4469
      %v4481 = vadd.f32 %v4439, %v4470
      %v4482 = vadd.f32 %v4440, %v4471
      %v4483 = vadd.f32 %v4441, %v4472
      %v4484 = vadd.f32 %v4442, %v4466
      %v4485 = vld [vmem:[#allocation3 + $0x70] sm:$0xff]
      %v4486 = vld [vmem:[#allocation3 + $0x78] sm:$0xff]
      %v4487 = vld [vmem:[#allocation3 + $0x80] sm:$0xff]
      %v4488 = vld [vmem:[#allocation3 + $0x88] sm:$0xff]
      %v4489 = vld [vmem:[#allocation3 + $0x90] sm:$0xff]
      %v4490 = vld [vmem:[#allocation3 + $0x98] sm:$0xff]
      %4497 = vrot.lane.b32.xlu0 %v4485, 126
      %v4498 = vpop.permute.xlu0 %4497
      %4499 = vrot.lane.b32.xlu0 %v4486, 126
      %v4500 = vpop.permute.xlu0 %4499
      %4501 = vrot.lane.b32.xlu0 %v4487, 126
      %v4502 = vpop.permute.xlu0 %4501
      %4503 = vrot.lane.b32.xlu0 %v4488, 126
      %v4504 = vpop.permute.xlu0 %4503
      %4505 = vrot.lane.b32.xlu0 %v4489, 126
      %v4506 = vpop.permute.xlu0 %4505
      %4507 = vrot.lane.b32.xlu0 %v4490, 126
      %v4508 = vpop.permute.xlu0 %4507
      %vm4509 = vcmask 1031168
      %v4510 = vsel %vm4509, %v4498, %v4500
      %v4511 = vsel %vm4509, %v4500, %v4502
      %v4512 = vsel %vm4509, %v4502, %v4504
      %v4513 = vsel %vm4509, %v4504, %v4506
      %v4514 = vsel %vm4509, %v4506, %v4508
      %v4521 = vadd.f32 %v4479, %v4510
      %v4522 = vadd.f32 %v4480, %v4511
      %v4523 = vadd.f32 %v4481, %v4512
      %v4524 = vadd.f32 %v4482, %v4513
      %v4525 = vadd.f32 %v4483, %v4514
      %v4526 = vadd.f32 %v4484, %v4508
      %v4527 = vld [vmem:[#allocation3 + $0xa8] sm:$0xff]
      %v4528 = vld [vmem:[#allocation3 + $0xb0] sm:$0xff]
      %v4529 = vld [vmem:[#allocation3 + $0xb8] sm:$0xff]
      %v4530 = vld [vmem:[#allocation3 + $0xc0] sm:$0xff]
      %v4531 = vld [vmem:[#allocation3 + $0xc8] sm:$0xff]
      %v4532 = vld [vmem:[#allocation3 + $0xd0] sm:$0xff]
      %4539 = vrot.lane.b32.xlu0 %v4527, 125
      %v4540 = vpop.permute.xlu0 %4539
      %4541 = vrot.lane.b32.xlu0 %v4528, 125
      %v4542 = vpop.permute.xlu0 %4541
      %4543 = vrot.lane.b32.xlu0 %v4529, 125
      %v4544 = vpop.permute.xlu0 %4543
      %4545 = vrot.lane.b32.xlu0 %v4530, 125
      %v4546 = vpop.permute.xlu0 %4545
      %4547 = vrot.lane.b32.xlu0 %v4531, 125
      %v4548 = vpop.permute.xlu0 %4547
      %4549 = vrot.lane.b32.xlu0 %v4532, 125
      %v4550 = vpop.permute.xlu0 %4549
      %vm4551 = vcmask 1022976
      %v4552 = vsel %vm4551, %v4540, %v4542
      %v4553 = vsel %vm4551, %v4542, %v4544
      %v4554 = vsel %vm4551, %v4544, %v4546
      %v4555 = vsel %vm4551, %v4546, %v4548
      %v4556 = vsel %vm4551, %v4548, %v4550
      %v4563 = vadd.f32 %v4521, %v4552
      %v4564 = vadd.f32 %v4522, %v4553
      %v4565 = vadd.f32 %v4523, %v4554
      %v4566 = vadd.f32 %v4524, %v4555
      %v4567 = vadd.f32 %v4525, %v4556
      %v4568 = vadd.f32 %v4526, %v4550
      %v4569 = vld [vmem:[#allocation3 + $0xe0] sm:$0xff]
      %v4570 = vld [vmem:[#allocation3 + $0xe8] sm:$0xff]
      %v4571 = vld [vmem:[#allocation3 + $0xf0] sm:$0xff]
      %v4572 = vld [vmem:[#allocation3 + $0xf8] sm:$0xff]
      %v4573 = vld [vmem:[#allocation3 + $0x100] sm:$0xff]
      %v4574 = vld [vmem:[#allocation3 + $0x108] sm:$0xff]
      %4581 = vrot.lane.b32.xlu0 %v4569, 124
      %v4582 = vpop.permute.xlu0 %4581
      %4583 = vrot.lane.b32.xlu0 %v4570, 124
      %v4584 = vpop.permute.xlu0 %4583
      %4585 = vrot.lane.b32.xlu0 %v4571, 124
      %v4586 = vpop.permute.xlu0 %4585
      %4587 = vrot.lane.b32.xlu0 %v4572, 124
      %v4588 = vpop.permute.xlu0 %4587
      %4589 = vrot.lane.b32.xlu0 %v4573, 124
      %v4590 = vpop.permute.xlu0 %4589
      %4591 = vrot.lane.b32.xlu0 %v4574, 124
      %v4592 = vpop.permute.xlu0 %4591
      %vm4593 = vcmask 1014784
      %v4594 = vsel %vm4593, %v4582, %v4584
      %v4595 = vsel %vm4593, %v4584, %v4586
      %v4596 = vsel %vm4593, %v4586, %v4588
      %v4597 = vsel %vm4593, %v4588, %v4590
      %v4598 = vsel %vm4593, %v4590, %v4592
      %v4605 = vadd.f32 %v4563, %v4594
      %v4606 = vadd.f32 %v4564, %v4595
      %v4607 = vadd.f32 %v4565, %v4596
      %v4608 = vadd.f32 %v4566, %v4597
      %v4609 = vadd.f32 %v4567, %v4598
      %v4610 = vadd.f32 %v4568, %v4592
      %v4611 = vld [vmem:[#allocation3 + $0x118] sm:$0xff]
      %v4612 = vld [vmem:[#allocation3 + $0x120] sm:$0xff]
      %v4613 = vld [vmem:[#allocation3 + $0x128] sm:$0xff]
      %v4614 = vld [vmem:[#allocation3 + $0x130] sm:$0xff]
      %v4615 = vld [vmem:[#allocation3 + $0x138] sm:$0xff]
      %v4616 = vld [vmem:[#allocation3 + $0x140] sm:$0xff]
      %4623 = vrot.lane.b32.xlu0 %v4611, 123
      %v4624 = vpop.permute.xlu0 %4623
      %4625 = vrot.lane.b32.xlu0 %v4612, 123
      %v4626 = vpop.permute.xlu0 %4625
      %4627 = vrot.lane.b32.xlu0 %v4613, 123
      %v4628 = vpop.permute.xlu0 %4627
      %4629 = vrot.lane.b32.xlu0 %v4614, 123
      %v4630 = vpop.permute.xlu0 %4629
      %4631 = vrot.lane.b32.xlu0 %v4615, 123
      %v4632 = vpop.permute.xlu0 %4631
      %4633 = vrot.lane.b32.xlu0 %v4616, 123
      %v4634 = vpop.permute.xlu0 %4633
      %vm4635 = vcmask 1006592
      %v4636 = vsel %vm4635, %v4624, %v4626
      %v4637 = vsel %vm4635, %v4626, %v4628
      %v4638 = vsel %vm4635, %v4628, %v4630
      %v4639 = vsel %vm4635, %v4630, %v4632
      %v4640 = vsel %vm4635, %v4632, %v4634
      %v4647 = vadd.f32 %v4605, %v4636
      %v4648 = vadd.f32 %v4606, %v4637
      %v4649 = vadd.f32 %v4607, %v4638
      %v4650 = vadd.f32 %v4608, %v4639
      %v4651 = vadd.f32 %v4609, %v4640
      %v4652 = vadd.f32 %v4610, %v4634
      %v4653 = vld [vmem:[#allocation3 + $0x150] sm:$0xff]
      %v4654 = vld [vmem:[#allocation3 + $0x158] sm:$0xff]
      %v4655 = vld [vmem:[#allocation3 + $0x160] sm:$0xff]
      %v4656 = vld [vmem:[#allocation3 + $0x168] sm:$0xff]
      %v4657 = vld [vmem:[#allocation3 + $0x170] sm:$0xff]
      %v4658 = vld [vmem:[#allocation3 + $0x178] sm:$0xff]
      %4665 = vrot.lane.b32.xlu0 %v4653, 122
      %v4666 = vpop.permute.xlu0 %4665
      %4667 = vrot.lane.b32.xlu0 %v4654, 122
      %v4668 = vpop.permute.xlu0 %4667
      %4669 = vrot.lane.b32.xlu0 %v4655, 122
      %v4670 = vpop.permute.xlu0 %4669
      %4671 = vrot.lane.b32.xlu0 %v4656, 122
      %v4672 = vpop.permute.xlu0 %4671
      %4673 = vrot.lane.b32.xlu0 %v4657, 122
      %v4674 = vpop.permute.xlu0 %4673
      %4675 = vrot.lane.b32.xlu0 %v4658, 122
      %v4676 = vpop.permute.xlu0 %4675
      %vm4677 = vcmask 998400
      %v4678 = vsel %vm4677, %v4666, %v4668
      %v4679 = vsel %vm4677, %v4668, %v4670
      %v4680 = vsel %vm4677, %v4670, %v4672
      %v4681 = vsel %vm4677, %v4672, %v4674
      %v4682 = vsel %vm4677, %v4674, %v4676
      %v4689 = vadd.f32 %v4647, %v4678
      %v4690 = vadd.f32 %v4648, %v4679
      %v4691 = vadd.f32 %v4649, %v4680
      %v4692 = vadd.f32 %v4650, %v4681
      %v4693 = vadd.f32 %v4651, %v4682
      %v4694 = vadd.f32 %v4652, %v4676
      %v4695 = vld [vmem:[#allocation3 + $0x188] sm:$0xff]
      %v4696 = vld [vmem:[#allocation3 + $0x190] sm:$0xff]
      %v4697 = vld [vmem:[#allocation3 + $0x198] sm:$0xff]
      %v4698 = vld [vmem:[#allocation3 + $0x1a0] sm:$0xff]
      %v4699 = vld [vmem:[#allocation3 + $0x1a8] sm:$0xff]
      %v4700 = vld [vmem:[#allocation3 + $0x1b0] sm:$0xff]
      %4707 = vrot.lane.b32.xlu0 %v4695, 102
      %v4708 = vpop.permute.xlu0 %4707
      %4709 = vrot.lane.b32.xlu0 %v4696, 102
      %v4710 = vpop.permute.xlu0 %4709
      %4711 = vrot.lane.b32.xlu0 %v4697, 102
      %v4712 = vpop.permute.xlu0 %4711
      %4713 = vrot.lane.b32.xlu0 %v4698, 102
      %v4714 = vpop.permute.xlu0 %4713
      %4715 = vrot.lane.b32.xlu0 %v4699, 102
      %v4716 = vpop.permute.xlu0 %4715
      %4717 = vrot.lane.b32.xlu0 %v4700, 102
      %v4718 = vpop.permute.xlu0 %4717
      %vm4719 = vcmask 834560
      %v4720 = vsel %vm4719, %v4708, %v4710
      %v4721 = vsel %vm4719, %v4710, %v4712
      %v4722 = vsel %vm4719, %v4712, %v4714
      %v4723 = vsel %vm4719, %v4714, %v4716
      %v4724 = vsel %vm4719, %v4716, %v4718
      %v4731 = vadd.f32 %v4689, %v4720
      %v4732 = vadd.f32 %v4690, %v4721
      %v4733 = vadd.f32 %v4691, %v4722
      %v4734 = vadd.f32 %v4692, %v4723
      %v4735 = vadd.f32 %v4693, %v4724
      %v4736 = vadd.f32 %v4694, %v4718
      %v4737 = vld [vmem:[#allocation3 + $0x1c0] sm:$0xff]
      %v4738 = vld [vmem:[#allocation3 + $0x1c8] sm:$0xff]
      %v4739 = vld [vmem:[#allocation3 + $0x1d0] sm:$0xff]
      %v4740 = vld [vmem:[#allocation3 + $0x1d8] sm:$0xff]
      %v4741 = vld [vmem:[#allocation3 + $0x1e0] sm:$0xff]
      %v4742 = vld [vmem:[#allocation3 + $0x1e8] sm:$0xff]
      %4749 = vrot.lane.b32.xlu0 %v4737, 101
      %v4750 = vpop.permute.xlu0 %4749
      %4751 = vrot.lane.b32.xlu0 %v4738, 101
      %v4752 = vpop.permute.xlu0 %4751
      %4753 = vrot.lane.b32.xlu0 %v4739, 101
      %v4754 = vpop.permute.xlu0 %4753
      %4755 = vrot.lane.b32.xlu0 %v4740, 101
      %v4756 = vpop.permute.xlu0 %4755
      %4757 = vrot.lane.b32.xlu0 %v4741, 101
      %v4758 = vpop.permute.xlu0 %4757
      %4759 = vrot.lane.b32.xlu0 %v4742, 101
      %v4760 = vpop.permute.xlu0 %4759
      %vm4761 = vcmask 826368
      %v4762 = vsel %vm4761, %v4750, %v4752
      %v4763 = vsel %vm4761, %v4752, %v4754
      %v4764 = vsel %vm4761, %v4754, %v4756
      %v4765 = vsel %vm4761, %v4756, %v4758
      %v4766 = vsel %vm4761, %v4758, %v4760
      %v4773 = vadd.f32 %v4731, %v4762
      %v4774 = vadd.f32 %v4732, %v4763
      %v4775 = vadd.f32 %v4733, %v4764
      %v4776 = vadd.f32 %v4734, %v4765
      %v4777 = vadd.f32 %v4735, %v4766
      %v4778 = vadd.f32 %v4736, %v4760
      %v4779 = vld [vmem:[#allocation3 + $0x1f8] sm:$0xff]
      %v4780 = vld [vmem:[#allocation3 + $0x200] sm:$0xff]
      %v4781 = vld [vmem:[#allocation3 + $0x208] sm:$0xff]
      %v4782 = vld [vmem:[#allocation3 + $0x210] sm:$0xff]
      %v4783 = vld [vmem:[#allocation3 + $0x218] sm:$0xff]
      %v4784 = vld [vmem:[#allocation3 + $0x220] sm:$0xff]
      %4791 = vrot.lane.b32.xlu0 %v4779, 100
      %v4792 = vpop.permute.xlu0 %4791
      %4793 = vrot.lane.b32.xlu0 %v4780, 100
      %v4794 = vpop.permute.xlu0 %4793
      %4795 = vrot.lane.b32.xlu0 %v4781, 100
      %v4796 = vpop.permute.xlu0 %4795
      %4797 = vrot.lane.b32.xlu0 %v4782, 100
      %v4798 = vpop.permute.xlu0 %4797
      %4799 = vrot.lane.b32.xlu0 %v4783, 100
      %v4800 = vpop.permute.xlu0 %4799
      %4801 = vrot.lane.b32.xlu0 %v4784, 100
      %v4802 = vpop.permute.xlu0 %4801
      %vm4803 = vcmask 818176
      %v4804 = vsel %vm4803, %v4792, %v4794
      %v4805 = vsel %vm4803, %v4794, %v4796
      %v4806 = vsel %vm4803, %v4796, %v4798
      %v4807 = vsel %vm4803, %v4798, %v4800
      %v4808 = vsel %vm4803, %v4800, %v4802
      %v4815 = vadd.f32 %v4773, %v4804
      %v4816 = vadd.f32 %v4774, %v4805
      %v4817 = vadd.f32 %v4775, %v4806
      %v4818 = vadd.f32 %v4776, %v4807
      %v4819 = vadd.f32 %v4777, %v4808
      %v4820 = vadd.f32 %v4778, %v4802
      %v4821 = vld [vmem:[#allocation3 + $0x230] sm:$0xff]
      %v4822 = vld [vmem:[#allocation3 + $0x238] sm:$0xff]
      %v4823 = vld [vmem:[#allocation3 + $0x240] sm:$0xff]
      %v4824 = vld [vmem:[#allocation3 + $0x248] sm:$0xff]
      %v4825 = vld [vmem:[#allocation3 + $0x250] sm:$0xff]
      %v4826 = vld [vmem:[#allocation3 + $0x258] sm:$0xff]
      %4833 = vrot.lane.b32.xlu0 %v4821, 99
      %v4834 = vpop.permute.xlu0 %4833
      %4835 = vrot.lane.b32.xlu0 %v4822, 99
      %v4836 = vpop.permute.xlu0 %4835
      %4837 = vrot.lane.b32.xlu0 %v4823, 99
      %v4838 = vpop.permute.xlu0 %4837
      %4839 = vrot.lane.b32.xlu0 %v4824, 99
      %v4840 = vpop.permute.xlu0 %4839
      %4841 = vrot.lane.b32.xlu0 %v4825, 99
      %v4842 = vpop.permute.xlu0 %4841
      %4843 = vrot.lane.b32.xlu0 %v4826, 99
      %v4844 = vpop.permute.xlu0 %4843
      %vm4845 = vcmask 809984
      %v4846 = vsel %vm4845, %v4834, %v4836
      %v4847 = vsel %vm4845, %v4836, %v4838
      %v4848 = vsel %vm4845, %v4838, %v4840
      %v4849 = vsel %vm4845, %v4840, %v4842
      %v4850 = vsel %vm4845, %v4842, %v4844
      %v4857 = vadd.f32 %v4815, %v4846
      %v4858 = vadd.f32 %v4816, %v4847
      %v4859 = vadd.f32 %v4817, %v4848
      %v4860 = vadd.f32 %v4818, %v4849
      %v4861 = vadd.f32 %v4819, %v4850
      %v4862 = vadd.f32 %v4820, %v4844
      %v4863 = vld [vmem:[#allocation3 + $0x268] sm:$0xff]
      %v4864 = vld [vmem:[#allocation3 + $0x270] sm:$0xff]
      %v4865 = vld [vmem:[#allocation3 + $0x278] sm:$0xff]
      %v4866 = vld [vmem:[#allocation3 + $0x280] sm:$0xff]
      %v4867 = vld [vmem:[#allocation3 + $0x288] sm:$0xff]
      %v4868 = vld [vmem:[#allocation3 + $0x290] sm:$0xff]
      %4875 = vrot.lane.b32.xlu0 %v4863, 98
      %v4876 = vpop.permute.xlu0 %4875
      %4877 = vrot.lane.b32.xlu0 %v4864, 98
      %v4878 = vpop.permute.xlu0 %4877
      %4879 = vrot.lane.b32.xlu0 %v4865, 98
      %v4880 = vpop.permute.xlu0 %4879
      %4881 = vrot.lane.b32.xlu0 %v4866, 98
      %v4882 = vpop.permute.xlu0 %4881
      %4883 = vrot.lane.b32.xlu0 %v4867, 98
      %v4884 = vpop.permute.xlu0 %4883
      %4885 = vrot.lane.b32.xlu0 %v4868, 98
      %v4886 = vpop.permute.xlu0 %4885
      %vm4887 = vcmask 801792
      %v4888 = vsel %vm4887, %v4876, %v4878
      %v4889 = vsel %vm4887, %v4878, %v4880
      %v4890 = vsel %vm4887, %v4880, %v4882
      %v4891 = vsel %vm4887, %v4882, %v4884
      %v4892 = vsel %vm4887, %v4884, %v4886
      %v4899 = vadd.f32 %v4857, %v4888
      %v4900 = vadd.f32 %v4858, %v4889
      %v4901 = vadd.f32 %v4859, %v4890
      %v4902 = vadd.f32 %v4860, %v4891
      %v4903 = vadd.f32 %v4861, %v4892
      %v4904 = vadd.f32 %v4862, %v4886
      %v4905 = vld [vmem:[#allocation3 + $0x2a0] sm:$0xff]
      %v4906 = vld [vmem:[#allocation3 + $0x2a8] sm:$0xff]
      %v4907 = vld [vmem:[#allocation3 + $0x2b0] sm:$0xff]
      %v4908 = vld [vmem:[#allocation3 + $0x2b8] sm:$0xff]
      %v4909 = vld [vmem:[#allocation3 + $0x2c0] sm:$0xff]
      %v4910 = vld [vmem:[#allocation3 + $0x2c8] sm:$0xff]
      %4917 = vrot.lane.b32.xlu0 %v4905, 97
      %v4918 = vpop.permute.xlu0 %4917
      %4919 = vrot.lane.b32.xlu0 %v4906, 97
      %v4920 = vpop.permute.xlu0 %4919
      %4921 = vrot.lane.b32.xlu0 %v4907, 97
      %v4922 = vpop.permute.xlu0 %4921
      %4923 = vrot.lane.b32.xlu0 %v4908, 97
      %v4924 = vpop.permute.xlu0 %4923
      %4925 = vrot.lane.b32.xlu0 %v4909, 97
      %v4926 = vpop.permute.xlu0 %4925
      %4927 = vrot.lane.b32.xlu0 %v4910, 97
      %v4928 = vpop.permute.xlu0 %4927
      %vm4929 = vcmask 793600
      %v4930 = vsel %vm4929, %v4918, %v4920
      %v4931 = vsel %vm4929, %v4920, %v4922
      %v4932 = vsel %vm4929, %v4922, %v4924
      %v4933 = vsel %vm4929, %v4924, %v4926
      %v4934 = vsel %vm4929, %v4926, %v4928
      %v4941 = vadd.f32 %v4899, %v4930
      %v4942 = vadd.f32 %v4900, %v4931
      %v4943 = vadd.f32 %v4901, %v4932
      %v4944 = vadd.f32 %v4902, %v4933
      %v4945 = vadd.f32 %v4903, %v4934
      %v4946 = vadd.f32 %v4904, %v4928
      %v4947 = vld [vmem:[#allocation3 + $0x2d8] sm:$0xff]
      %v4948 = vld [vmem:[#allocation3 + $0x2e0] sm:$0xff]
      %v4949 = vld [vmem:[#allocation3 + $0x2e8] sm:$0xff]
      %v4950 = vld [vmem:[#allocation3 + $0x2f0] sm:$0xff]
      %v4951 = vld [vmem:[#allocation3 + $0x2f8] sm:$0xff]
      %v4952 = vld [vmem:[#allocation3 + $0x300] sm:$0xff]
      %4959 = vrot.lane.b32.xlu0 %v4947, 96
      %v4960 = vpop.permute.xlu0 %4959
      %4961 = vrot.lane.b32.xlu0 %v4948, 96
      %v4962 = vpop.permute.xlu0 %4961
      %4963 = vrot.lane.b32.xlu0 %v4949, 96
      %v4964 = vpop.permute.xlu0 %4963
      %4965 = vrot.lane.b32.xlu0 %v4950, 96
      %v4966 = vpop.permute.xlu0 %4965
      %4967 = vrot.lane.b32.xlu0 %v4951, 96
      %v4968 = vpop.permute.xlu0 %4967
      %4969 = vrot.lane.b32.xlu0 %v4952, 96
      %v4970 = vpop.permute.xlu0 %4969
      %vm4971 = vcmask 785408
      %v4972 = vsel %vm4971, %v4960, %v4962
      %v4973 = vsel %vm4971, %v4962, %v4964
      %v4974 = vsel %vm4971, %v4964, %v4966
      %v4975 = vsel %vm4971, %v4966, %v4968
      %v4976 = vsel %vm4971, %v4968, %v4970
      %v4983 = vadd.f32 %v4941, %v4972
      %v4984 = vadd.f32 %v4942, %v4973
      %v4985 = vadd.f32 %v4943, %v4974
      %v4986 = vadd.f32 %v4944, %v4975
      %v4987 = vadd.f32 %v4945, %v4976
      %v4988 = vadd.f32 %v4946, %v4970
      %v4989 = vld [vmem:[#allocation3 + $0x310] sm:$0xff]
      %v4990 = vld [vmem:[#allocation3 + $0x318] sm:$0xff]
      %v4991 = vld [vmem:[#allocation3 + $0x320] sm:$0xff]
      %v4992 = vld [vmem:[#allocation3 + $0x328] sm:$0xff]
      %v4993 = vld [vmem:[#allocation3 + $0x330] sm:$0xff]
      %v4994 = vld [vmem:[#allocation3 + $0x338] sm:$0xff]
      %5001 = vrot.lane.b32.xlu0 %v4989, 76
      %v5002 = vpop.permute.xlu0 %5001
      %5003 = vrot.lane.b32.xlu0 %v4990, 76
      %v5004 = vpop.permute.xlu0 %5003
      %5005 = vrot.lane.b32.xlu0 %v4991, 76
      %v5006 = vpop.permute.xlu0 %5005
      %5007 = vrot.lane.b32.xlu0 %v4992, 76
      %v5008 = vpop.permute.xlu0 %5007
      %5009 = vrot.lane.b32.xlu0 %v4993, 76
      %v5010 = vpop.permute.xlu0 %5009
      %5011 = vrot.lane.b32.xlu0 %v4994, 76
      %v5012 = vpop.permute.xlu0 %5011
      %vm5013 = vcmask 621568
      %v5014 = vsel %vm5013, %v5002, %v5004
      %v5015 = vsel %vm5013, %v5004, %v5006
      %v5016 = vsel %vm5013, %v5006, %v5008
      %v5017 = vsel %vm5013, %v5008, %v5010
      %v5018 = vsel %vm5013, %v5010, %v5012
      %v5025 = vadd.f32 %v4983, %v5014
      %v5026 = vadd.f32 %v4984, %v5015
      %v5027 = vadd.f32 %v4985, %v5016
      %v5028 = vadd.f32 %v4986, %v5017
      %v5029 = vadd.f32 %v4987, %v5018
      %v5030 = vadd.f32 %v4988, %v5012
      %v5031 = vld [vmem:[#allocation3 + $0x348] sm:$0xff]
      %v5032 = vld [vmem:[#allocation3 + $0x350] sm:$0xff]
      %v5033 = vld [vmem:[#allocation3 + $0x358] sm:$0xff]
      %v5034 = vld [vmem:[#allocation3 + $0x360] sm:$0xff]
      %v5035 = vld [vmem:[#allocation3 + $0x368] sm:$0xff]
      %v5036 = vld [vmem:[#allocation3 + $0x370] sm:$0xff]
      %5043 = vrot.lane.b32.xlu0 %v5031, 75
      %v5044 = vpop.permute.xlu0 %5043
      %5045 = vrot.lane.b32.xlu0 %v5032, 75
      %v5046 = vpop.permute.xlu0 %5045
      %5047 = vrot.lane.b32.xlu0 %v5033, 75
      %v5048 = vpop.permute.xlu0 %5047
      %5049 = vrot.lane.b32.xlu0 %v5034, 75
      %v5050 = vpop.permute.xlu0 %5049
      %5051 = vrot.lane.b32.xlu0 %v5035, 75
      %v5052 = vpop.permute.xlu0 %5051
      %5053 = vrot.lane.b32.xlu0 %v5036, 75
      %v5054 = vpop.permute.xlu0 %5053
      %vm5055 = vcmask 613376
      %v5056 = vsel %vm5055, %v5044, %v5046
      %v5057 = vsel %vm5055, %v5046, %v5048
      %v5058 = vsel %vm5055, %v5048, %v5050
      %v5059 = vsel %vm5055, %v5050, %v5052
      %v5060 = vsel %vm5055, %v5052, %v5054
      %v5067 = vadd.f32 %v5025, %v5056
      %v5068 = vadd.f32 %v5026, %v5057
      %v5069 = vadd.f32 %v5027, %v5058
      %v5070 = vadd.f32 %v5028, %v5059
      %v5071 = vadd.f32 %v5029, %v5060
      %v5072 = vadd.f32 %v5030, %v5054
      %v5073 = vld [vmem:[#allocation3 + $0x380] sm:$0xff]
      %v5074 = vld [vmem:[#allocation3 + $0x388] sm:$0xff]
      %v5075 = vld [vmem:[#allocation3 + $0x390] sm:$0xff]
      %v5076 = vld [vmem:[#allocation3 + $0x398] sm:$0xff]
      %v5077 = vld [vmem:[#allocation3 + $0x3a0] sm:$0xff]
      %v5078 = vld [vmem:[#allocation3 + $0x3a8] sm:$0xff]
      %5085 = vrot.lane.b32.xlu0 %v5073, 74
      %v5086 = vpop.permute.xlu0 %5085
      %5087 = vrot.lane.b32.xlu0 %v5074, 74
      %v5088 = vpop.permute.xlu0 %5087
      %5089 = vrot.lane.b32.xlu0 %v5075, 74
      %v5090 = vpop.permute.xlu0 %5089
      %5091 = vrot.lane.b32.xlu0 %v5076, 74
      %v5092 = vpop.permute.xlu0 %5091
      %5093 = vrot.lane.b32.xlu0 %v5077, 74
      %v5094 = vpop.permute.xlu0 %5093
      %5095 = vrot.lane.b32.xlu0 %v5078, 74
      %v5096 = vpop.permute.xlu0 %5095
      %vm5097 = vcmask 605184
      %v5098 = vsel %vm5097, %v5086, %v5088
      %v5099 = vsel %vm5097, %v5088, %v5090
      %v5100 = vsel %vm5097, %v5090, %v5092
      %v5101 = vsel %vm5097, %v5092, %v5094
      %v5102 = vsel %vm5097, %v5094, %v5096
      %v5109 = vadd.f32 %v5067, %v5098
      %v5110 = vadd.f32 %v5068, %v5099
      %v5111 = vadd.f32 %v5069, %v5100
      %v5112 = vadd.f32 %v5070, %v5101
      %v5113 = vadd.f32 %v5071, %v5102
      %v5114 = vadd.f32 %v5072, %v5096
      %v5115 = vld [vmem:[#allocation3 + $0x3b8] sm:$0xff]
      %v5116 = vld [vmem:[#allocation3 + $0x3c0] sm:$0xff]
      %v5117 = vld [vmem:[#allocation3 + $0x3c8] sm:$0xff]
      %v5118 = vld [vmem:[#allocation3 + $0x3d0] sm:$0xff]
      %v5119 = vld [vmem:[#allocation3 + $0x3d8] sm:$0xff]
      %v5120 = vld [vmem:[#allocation3 + $0x3e0] sm:$0xff]
      %5127 = vrot.lane.b32.xlu0 %v5115, 73
      %v5128 = vpop.permute.xlu0 %5127
      %5129 = vrot.lane.b32.xlu0 %v5116, 73
      %v5130 = vpop.permute.xlu0 %5129
      %5131 = vrot.lane.b32.xlu0 %v5117, 73
      %v5132 = vpop.permute.xlu0 %5131
      %5133 = vrot.lane.b32.xlu0 %v5118, 73
      %v5134 = vpop.permute.xlu0 %5133
      %5135 = vrot.lane.b32.xlu0 %v5119, 73
      %v5136 = vpop.permute.xlu0 %5135
      %5137 = vrot.lane.b32.xlu0 %v5120, 73
      %v5138 = vpop.permute.xlu0 %5137
      %vm5139 = vcmask 596992
      %v5140 = vsel %vm5139, %v5128, %v5130
      %v5141 = vsel %vm5139, %v5130, %v5132
      %v5142 = vsel %vm5139, %v5132, %v5134
      %v5143 = vsel %vm5139, %v5134, %v5136
      %v5144 = vsel %vm5139, %v5136, %v5138
      %v5151 = vadd.f32 %v5109, %v5140
      %v5152 = vadd.f32 %v5110, %v5141
      %v5153 = vadd.f32 %v5111, %v5142
      %v5154 = vadd.f32 %v5112, %v5143
      %v5155 = vadd.f32 %v5113, %v5144
      %v5156 = vadd.f32 %v5114, %v5138
      %v5157 = vld [vmem:[#allocation3 + $0x3f0] sm:$0xff]
      %v5158 = vld [vmem:[#allocation3 + $0x3f8] sm:$0xff]
      %v5159 = vld [vmem:[#allocation3 + $0x400] sm:$0xff]
      %v5160 = vld [vmem:[#allocation3 + $0x408] sm:$0xff]
      %v5161 = vld [vmem:[#allocation3 + $0x410] sm:$0xff]
      %v5162 = vld [vmem:[#allocation3 + $0x418] sm:$0xff]
      %5169 = vrot.lane.b32.xlu0 %v5157, 72
      %v5170 = vpop.permute.xlu0 %5169
      %5171 = vrot.lane.b32.xlu0 %v5158, 72
      %v5172 = vpop.permute.xlu0 %5171
      %5173 = vrot.lane.b32.xlu0 %v5159, 72
      %v5174 = vpop.permute.xlu0 %5173
      %5175 = vrot.lane.b32.xlu0 %v5160, 72
      %v5176 = vpop.permute.xlu0 %5175
      %5177 = vrot.lane.b32.xlu0 %v5161, 72
      %v5178 = vpop.permute.xlu0 %5177
      %5179 = vrot.lane.b32.xlu0 %v5162, 72
      %v5180 = vpop.permute.xlu0 %5179
      %vm5181 = vcmask 588800
      %v5182 = vsel %vm5181, %v5170, %v5172
      %v5183 = vsel %vm5181, %v5172, %v5174
      %v5184 = vsel %vm5181, %v5174, %v5176
      %v5185 = vsel %vm5181, %v5176, %v5178
      %v5186 = vsel %vm5181, %v5178, %v5180
      %v5193 = vadd.f32 %v5151, %v5182
      %v5194 = vadd.f32 %v5152, %v5183
      %v5195 = vadd.f32 %v5153, %v5184
      %v5196 = vadd.f32 %v5154, %v5185
      %v5197 = vadd.f32 %v5155, %v5186
      %v5198 = vadd.f32 %v5156, %v5180
      %v5199 = vld [vmem:[#allocation3 + $0x428] sm:$0xff]
      %v5200 = vld [vmem:[#allocation3 + $0x430] sm:$0xff]
      %v5201 = vld [vmem:[#allocation3 + $0x438] sm:$0xff]
      %v5202 = vld [vmem:[#allocation3 + $0x440] sm:$0xff]
      %v5203 = vld [vmem:[#allocation3 + $0x448] sm:$0xff]
      %v5204 = vld [vmem:[#allocation3 + $0x450] sm:$0xff]
      %5211 = vrot.lane.b32.xlu0 %v5199, 71
      %v5212 = vpop.permute.xlu0 %5211
      %5213 = vrot.lane.b32.xlu0 %v5200, 71
      %v5214 = vpop.permute.xlu0 %5213
      %5215 = vrot.lane.b32.xlu0 %v5201, 71
      %v5216 = vpop.permute.xlu0 %5215
      %5217 = vrot.lane.b32.xlu0 %v5202, 71
      %v5218 = vpop.permute.xlu0 %5217
      %5219 = vrot.lane.b32.xlu0 %v5203, 71
      %v5220 = vpop.permute.xlu0 %5219
      %5221 = vrot.lane.b32.xlu0 %v5204, 71
      %v5222 = vpop.permute.xlu0 %5221
      %vm5223 = vcmask 580608
      %v5224 = vsel %vm5223, %v5212, %v5214
      %v5225 = vsel %vm5223, %v5214, %v5216
      %v5226 = vsel %vm5223, %v5216, %v5218
      %v5227 = vsel %vm5223, %v5218, %v5220
      %v5228 = vsel %vm5223, %v5220, %v5222
      %v5235 = vadd.f32 %v5193, %v5224
      %v5236 = vadd.f32 %v5194, %v5225
      %v5237 = vadd.f32 %v5195, %v5226
      %v5238 = vadd.f32 %v5196, %v5227
      %v5239 = vadd.f32 %v5197, %v5228
      %v5240 = vadd.f32 %v5198, %v5222
      %v5241 = vld [vmem:[#allocation3 + $0x460] sm:$0xff]
      %v5242 = vld [vmem:[#allocation3 + $0x468] sm:$0xff]
      %v5243 = vld [vmem:[#allocation3 + $0x470] sm:$0xff]
      %v5244 = vld [vmem:[#allocation3 + $0x478] sm:$0xff]
      %v5245 = vld [vmem:[#allocation3 + $0x480] sm:$0xff]
      %v5246 = vld [vmem:[#allocation3 + $0x488] sm:$0xff]
      %5253 = vrot.lane.b32.xlu0 %v5241, 70
      %v5254 = vpop.permute.xlu0 %5253
      %5255 = vrot.lane.b32.xlu0 %v5242, 70
      %v5256 = vpop.permute.xlu0 %5255
      %5257 = vrot.lane.b32.xlu0 %v5243, 70
      %v5258 = vpop.permute.xlu0 %5257
      %5259 = vrot.lane.b32.xlu0 %v5244, 70
      %v5260 = vpop.permute.xlu0 %5259
      %5261 = vrot.lane.b32.xlu0 %v5245, 70
      %v5262 = vpop.permute.xlu0 %5261
      %5263 = vrot.lane.b32.xlu0 %v5246, 70
      %v5264 = vpop.permute.xlu0 %5263
      %vm5265 = vcmask 572416
      %v5266 = vsel %vm5265, %v5254, %v5256
      %v5267 = vsel %vm5265, %v5256, %v5258
      %v5268 = vsel %vm5265, %v5258, %v5260
      %v5269 = vsel %vm5265, %v5260, %v5262
      %v5270 = vsel %vm5265, %v5262, %v5264
      %v5277 = vadd.f32 %v5235, %v5266
      %v5278 = vadd.f32 %v5236, %v5267
      %v5279 = vadd.f32 %v5237, %v5268
      %v5280 = vadd.f32 %v5238, %v5269
      %v5281 = vadd.f32 %v5239, %v5270
      %v5282 = vadd.f32 %v5240, %v5264
      %v5283 = vld [vmem:[#allocation3 + $0x498] sm:$0xff]
      %v5284 = vld [vmem:[#allocation3 + $0x4a0] sm:$0xff]
      %v5285 = vld [vmem:[#allocation3 + $0x4a8] sm:$0xff]
      %v5286 = vld [vmem:[#allocation3 + $0x4b0] sm:$0xff]
      %v5287 = vld [vmem:[#allocation3 + $0x4b8] sm:$0xff]
      %v5288 = vld [vmem:[#allocation3 + $0x4c0] sm:$0xff]
      %5295 = vrot.lane.b32.xlu0 %v5283, 50
      %v5296 = vpop.permute.xlu0 %5295
      %5297 = vrot.lane.b32.xlu0 %v5284, 50
      %v5298 = vpop.permute.xlu0 %5297
      %5299 = vrot.lane.b32.xlu0 %v5285, 50
      %v5300 = vpop.permute.xlu0 %5299
      %5301 = vrot.lane.b32.xlu0 %v5286, 50
      %v5302 = vpop.permute.xlu0 %5301
      %5303 = vrot.lane.b32.xlu0 %v5287, 50
      %v5304 = vpop.permute.xlu0 %5303
      %5305 = vrot.lane.b32.xlu0 %v5288, 50
      %v5306 = vpop.permute.xlu0 %5305
      %vm5307 = vcmask 408576
      %v5308 = vsel %vm5307, %v5296, %v5298
      %v5309 = vsel %vm5307, %v5298, %v5300
      %v5310 = vsel %vm5307, %v5300, %v5302
      %v5311 = vsel %vm5307, %v5302, %v5304
      %v5312 = vsel %vm5307, %v5304, %v5306
      %v5319 = vadd.f32 %v5277, %v5308
      %v5320 = vadd.f32 %v5278, %v5309
      %v5321 = vadd.f32 %v5279, %v5310
      %v5322 = vadd.f32 %v5280, %v5311
      %v5323 = vadd.f32 %v5281, %v5312
      %v5324 = vadd.f32 %v5282, %v5306
      %v5325 = vld [vmem:[#allocation3 + $0x4d0] sm:$0xff]
      %v5326 = vld [vmem:[#allocation3 + $0x4d8] sm:$0xff]
      %v5327 = vld [vmem:[#allocation3 + $0x4e0] sm:$0xff]
      %v5328 = vld [vmem:[#allocation3 + $0x4e8] sm:$0xff]
      %v5329 = vld [vmem:[#allocation3 + $0x4f0] sm:$0xff]
      %v5330 = vld [vmem:[#allocation3 + $0x4f8] sm:$0xff]
      %5337 = vrot.lane.b32.xlu0 %v5325, 49
      %v5338 = vpop.permute.xlu0 %5337
      %5339 = vrot.lane.b32.xlu0 %v5326, 49
      %v5340 = vpop.permute.xlu0 %5339
      %5341 = vrot.lane.b32.xlu0 %v5327, 49
      %v5342 = vpop.permute.xlu0 %5341
      %5343 = vrot.lane.b32.xlu0 %v5328, 49
      %v5344 = vpop.permute.xlu0 %5343
      %5345 = vrot.lane.b32.xlu0 %v5329, 49
      %v5346 = vpop.permute.xlu0 %5345
      %5347 = vrot.lane.b32.xlu0 %v5330, 49
      %v5348 = vpop.permute.xlu0 %5347
      %vm5349 = vcmask 400384
      %v5350 = vsel %vm5349, %v5338, %v5340
      %v5351 = vsel %vm5349, %v5340, %v5342
      %v5352 = vsel %vm5349, %v5342, %v5344
      %v5353 = vsel %vm5349, %v5344, %v5346
      %v5354 = vsel %vm5349, %v5346, %v5348
      %v5361 = vadd.f32 %v5319, %v5350
      %v5362 = vadd.f32 %v5320, %v5351
      %v5363 = vadd.f32 %v5321, %v5352
      %v5364 = vadd.f32 %v5322, %v5353
      %v5365 = vadd.f32 %v5323, %v5354
      %v5366 = vadd.f32 %v5324, %v5348
      %v5367 = vld [vmem:[#allocation3 + $0x508] sm:$0xff]
      %v5368 = vld [vmem:[#allocation3 + $0x510] sm:$0xff]
      %v5369 = vld [vmem:[#allocation3 + $0x518] sm:$0xff]
      %v5370 = vld [vmem:[#allocation3 + $0x520] sm:$0xff]
      %v5371 = vld [vmem:[#allocation3 + $0x528] sm:$0xff]
      %v5372 = vld [vmem:[#allocation3 + $0x530] sm:$0xff]
      %5379 = vrot.lane.b32.xlu0 %v5367, 48
      %v5380 = vpop.permute.xlu0 %5379
      %5381 = vrot.lane.b32.xlu0 %v5368, 48
      %v5382 = vpop.permute.xlu0 %5381
      %5383 = vrot.lane.b32.xlu0 %v5369, 48
      %v5384 = vpop.permute.xlu0 %5383
      %5385 = vrot.lane.b32.xlu0 %v5370, 48
      %v5386 = vpop.permute.xlu0 %5385
      %5387 = vrot.lane.b32.xlu0 %v5371, 48
      %v5388 = vpop.permute.xlu0 %5387
      %5389 = vrot.lane.b32.xlu0 %v5372, 48
      %v5390 = vpop.permute.xlu0 %5389
      %vm5391 = vcmask 392192
      %v5392 = vsel %vm5391, %v5380, %v5382
      %v5393 = vsel %vm5391, %v5382, %v5384
      %v5394 = vsel %vm5391, %v5384, %v5386
      %v5395 = vsel %vm5391, %v5386, %v5388
      %v5396 = vsel %vm5391, %v5388, %v5390
      %v5403 = vadd.f32 %v5361, %v5392
      %v5404 = vadd.f32 %v5362, %v5393
      %v5405 = vadd.f32 %v5363, %v5394
      %v5406 = vadd.f32 %v5364, %v5395
      %v5407 = vadd.f32 %v5365, %v5396
      %v5408 = vadd.f32 %v5366, %v5390
      %v5409 = vld [vmem:[#allocation3 + $0x540] sm:$0xff]
      %v5410 = vld [vmem:[#allocation3 + $0x548] sm:$0xff]
      %v5411 = vld [vmem:[#allocation3 + $0x550] sm:$0xff]
      %v5412 = vld [vmem:[#allocation3 + $0x558] sm:$0xff]
      %v5413 = vld [vmem:[#allocation3 + $0x560] sm:$0xff]
      %v5414 = vld [vmem:[#allocation3 + $0x568] sm:$0xff]
      %5421 = vrot.lane.b32.xlu0 %v5409, 47
      %v5422 = vpop.permute.xlu0 %5421
      %5423 = vrot.lane.b32.xlu0 %v5410, 47
      %v5424 = vpop.permute.xlu0 %5423
      %5425 = vrot.lane.b32.xlu0 %v5411, 47
      %v5426 = vpop.permute.xlu0 %5425
      %5427 = vrot.lane.b32.xlu0 %v5412, 47
      %v5428 = vpop.permute.xlu0 %5427
      %5429 = vrot.lane.b32.xlu0 %v5413, 47
      %v5430 = vpop.permute.xlu0 %5429
      %5431 = vrot.lane.b32.xlu0 %v5414, 47
      %v5432 = vpop.permute.xlu0 %5431
      %vm5433 = vcmask 384000
      %v5434 = vsel %vm5433, %v5422, %v5424
      %v5435 = vsel %vm5433, %v5424, %v5426
      %v5436 = vsel %vm5433, %v5426, %v5428
      %v5437 = vsel %vm5433, %v5428, %v5430
      %v5438 = vsel %vm5433, %v5430, %v5432
      %v5445 = vadd.f32 %v5403, %v5434
      %v5446 = vadd.f32 %v5404, %v5435
      %v5447 = vadd.f32 %v5405, %v5436
      %v5448 = vadd.f32 %v5406, %v5437
      %v5449 = vadd.f32 %v5407, %v5438
      %v5450 = vadd.f32 %v5408, %v5432
      %v5451 = vld [vmem:[#allocation3 + $0x578] sm:$0xff]
      %v5452 = vld [vmem:[#allocation3 + $0x580] sm:$0xff]
      %v5453 = vld [vmem:[#allocation3 + $0x588] sm:$0xff]
      %v5454 = vld [vmem:[#allocation3 + $0x590] sm:$0xff]
      %v5455 = vld [vmem:[#allocation3 + $0x598] sm:$0xff]
      %v5456 = vld [vmem:[#allocation3 + $0x5a0] sm:$0xff]
      %5463 = vrot.lane.b32.xlu0 %v5451, 46
      %v5464 = vpop.permute.xlu0 %5463
      %5465 = vrot.lane.b32.xlu0 %v5452, 46
      %v5466 = vpop.permute.xlu0 %5465
      %5467 = vrot.lane.b32.xlu0 %v5453, 46
      %v5468 = vpop.permute.xlu0 %5467
      %5469 = vrot.lane.b32.xlu0 %v5454, 46
      %v5470 = vpop.permute.xlu0 %5469
      %5471 = vrot.lane.b32.xlu0 %v5455, 46
      %v5472 = vpop.permute.xlu0 %5471
      %5473 = vrot.lane.b32.xlu0 %v5456, 46
      %v5474 = vpop.permute.xlu0 %5473
      %vm5475 = vcmask 375808
      %v5476 = vsel %vm5475, %v5464, %v5466
      %v5477 = vsel %vm5475, %v5466, %v5468
      %v5478 = vsel %vm5475, %v5468, %v5470
      %v5479 = vsel %vm5475, %v5470, %v5472
      %v5480 = vsel %vm5475, %v5472, %v5474
      %v5487 = vadd.f32 %v5445, %v5476
      %v5488 = vadd.f32 %v5446, %v5477
      %v5489 = vadd.f32 %v5447, %v5478
      %v5490 = vadd.f32 %v5448, %v5479
      %v5491 = vadd.f32 %v5449, %v5480
      %v5492 = vadd.f32 %v5450, %v5474
      %v5493 = vld [vmem:[#allocation3 + $0x5b0] sm:$0xff]
      %v5494 = vld [vmem:[#allocation3 + $0x5b8] sm:$0xff]
      %v5495 = vld [vmem:[#allocation3 + $0x5c0] sm:$0xff]
      %v5496 = vld [vmem:[#allocation3 + $0x5c8] sm:$0xff]
      %v5497 = vld [vmem:[#allocation3 + $0x5d0] sm:$0xff]
      %v5498 = vld [vmem:[#allocation3 + $0x5d8] sm:$0xff]
      %5505 = vrot.lane.b32.xlu0 %v5493, 45
      %v5506 = vpop.permute.xlu0 %5505
      %5507 = vrot.lane.b32.xlu0 %v5494, 45
      %v5508 = vpop.permute.xlu0 %5507
      %5509 = vrot.lane.b32.xlu0 %v5495, 45
      %v5510 = vpop.permute.xlu0 %5509
      %5511 = vrot.lane.b32.xlu0 %v5496, 45
      %v5512 = vpop.permute.xlu0 %5511
      %5513 = vrot.lane.b32.xlu0 %v5497, 45
      %v5514 = vpop.permute.xlu0 %5513
      %5515 = vrot.lane.b32.xlu0 %v5498, 45
      %v5516 = vpop.permute.xlu0 %5515
      %vm5517 = vcmask 367616
      %v5518 = vsel %vm5517, %v5506, %v5508
      %v5519 = vsel %vm5517, %v5508, %v5510
      %v5520 = vsel %vm5517, %v5510, %v5512
      %v5521 = vsel %vm5517, %v5512, %v5514
      %v5522 = vsel %vm5517, %v5514, %v5516
      %v5529 = vadd.f32 %v5487, %v5518
      %v5530 = vadd.f32 %v5488, %v5519
      %v5531 = vadd.f32 %v5489, %v5520
      %v5532 = vadd.f32 %v5490, %v5521
      %v5533 = vadd.f32 %v5491, %v5522
      %v5534 = vadd.f32 %v5492, %v5516
      %v5535 = vld [vmem:[#allocation3 + $0x5e8] sm:$0xff]
      %v5536 = vld [vmem:[#allocation3 + $0x5f0] sm:$0xff]
      %v5537 = vld [vmem:[#allocation3 + $0x5f8] sm:$0xff]
      %v5538 = vld [vmem:[#allocation3 + $0x600] sm:$0xff]
      %v5539 = vld [vmem:[#allocation3 + $0x608] sm:$0xff]
      %v5540 = vld [vmem:[#allocation3 + $0x610] sm:$0xff]
      %5547 = vrot.lane.b32.xlu0 %v5535, 44
      %v5548 = vpop.permute.xlu0 %5547
      %5549 = vrot.lane.b32.xlu0 %v5536, 44
      %v5550 = vpop.permute.xlu0 %5549
      %5551 = vrot.lane.b32.xlu0 %v5537, 44
      %v5552 = vpop.permute.xlu0 %5551
      %5553 = vrot.lane.b32.xlu0 %v5538, 44
      %v5554 = vpop.permute.xlu0 %5553
      %5555 = vrot.lane.b32.xlu0 %v5539, 44
      %v5556 = vpop.permute.xlu0 %5555
      %5557 = vrot.lane.b32.xlu0 %v5540, 44
      %v5558 = vpop.permute.xlu0 %5557
      %vm5559 = vcmask 359424
      %v5560 = vsel %vm5559, %v5548, %v5550
      %v5561 = vsel %vm5559, %v5550, %v5552
      %v5562 = vsel %vm5559, %v5552, %v5554
      %v5563 = vsel %vm5559, %v5554, %v5556
      %v5564 = vsel %vm5559, %v5556, %v5558
      %v5571 = vadd.f32 %v5529, %v5560
      %v5572 = vadd.f32 %v5530, %v5561
      %v5573 = vadd.f32 %v5531, %v5562
      %v5574 = vadd.f32 %v5532, %v5563
      %v5575 = vadd.f32 %v5533, %v5564
      %v5576 = vadd.f32 %v5534, %v5558
      %v5577 = vld [vmem:[#allocation3 + $0x620] sm:$0xff]
      %v5578 = vld [vmem:[#allocation3 + $0x628] sm:$0xff]
      %v5579 = vld [vmem:[#allocation3 + $0x630] sm:$0xff]
      %v5580 = vld [vmem:[#allocation3 + $0x638] sm:$0xff]
      %v5581 = vld [vmem:[#allocation3 + $0x640] sm:$0xff]
      %v5582 = vld [vmem:[#allocation3 + $0x648] sm:$0xff]
      %v5583 = vld [vmem:[#allocation3 + $0x650] sm:$0xff]
      %5591 = vrot.lane.b32.xlu0 %v5577, 24
      %v5592 = vpop.permute.xlu0 %5591
      %5593 = vrot.lane.b32.xlu0 %v5578, 24
      %v5594 = vpop.permute.xlu0 %5593
      %5595 = vrot.lane.b32.xlu0 %v5579, 24
      %v5596 = vpop.permute.xlu0 %5595
      %5597 = vrot.lane.b32.xlu0 %v5580, 24
      %v5598 = vpop.permute.xlu0 %5597
      %5599 = vrot.lane.b32.xlu0 %v5581, 24
      %v5600 = vpop.permute.xlu0 %5599
      %5601 = vrot.lane.b32.xlu0 %v5582, 24
      %v5602 = vpop.permute.xlu0 %5601
      %5603 = vrot.lane.b32.xlu0 %v5583, 24
      %v5604 = vpop.permute.xlu0 %5603
      %vm5605 = vcmask 195584
      %v5606 = vsel %vm5605, %v5592, %v5594
      %v5607 = vsel %vm5605, %v5594, %v5596
      %v5608 = vsel %vm5605, %v5596, %v5598
      %v5609 = vsel %vm5605, %v5598, %v5600
      %v5610 = vsel %vm5605, %v5600, %v5602
      %v5611 = vsel %vm5605, %v5602, %v5604
      %v5618 = vadd.f32 %v5571, %v5606
      %v5619 = vadd.f32 %v5572, %v5607
      %v5620 = vadd.f32 %v5573, %v5608
      %v5621 = vadd.f32 %v5574, %v5609
      %v5622 = vadd.f32 %v5575, %v5610
      %v5623 = vadd.f32 %v5576, %v5611
      %v5624 = vld [vmem:[#allocation3 + $0x658] sm:$0xff]
      %v5625 = vld [vmem:[#allocation3 + $0x660] sm:$0xff]
      %v5626 = vld [vmem:[#allocation3 + $0x668] sm:$0xff]
      %v5627 = vld [vmem:[#allocation3 + $0x670] sm:$0xff]
      %v5628 = vld [vmem:[#allocation3 + $0x678] sm:$0xff]
      %v5629 = vld [vmem:[#allocation3 + $0x680] sm:$0xff]
      %v5630 = vld [vmem:[#allocation3 + $0x688] sm:$0xff]
      %5638 = vrot.lane.b32.xlu0 %v5624, 23
      %v5639 = vpop.permute.xlu0 %5638
      %5640 = vrot.lane.b32.xlu0 %v5625, 23
      %v5641 = vpop.permute.xlu0 %5640
      %5642 = vrot.lane.b32.xlu0 %v5626, 23
      %v5643 = vpop.permute.xlu0 %5642
      %5644 = vrot.lane.b32.xlu0 %v5627, 23
      %v5645 = vpop.permute.xlu0 %5644
      %5646 = vrot.lane.b32.xlu0 %v5628, 23
      %v5647 = vpop.permute.xlu0 %5646
      %5648 = vrot.lane.b32.xlu0 %v5629, 23
      %v5649 = vpop.permute.xlu0 %5648
      %5650 = vrot.lane.b32.xlu0 %v5630, 23
      %v5651 = vpop.permute.xlu0 %5650
      %vm5652 = vcmask 187392
      %v5653 = vsel %vm5652, %v5639, %v5641
      %v5654 = vsel %vm5652, %v5641, %v5643
      %v5655 = vsel %vm5652, %v5643, %v5645
      %v5656 = vsel %vm5652, %v5645, %v5647
      %v5657 = vsel %vm5652, %v5647, %v5649
      %v5658 = vsel %vm5652, %v5649, %v5651
      %v5665 = vadd.f32 %v5618, %v5653
      %v5666 = vadd.f32 %v5619, %v5654
      %v5667 = vadd.f32 %v5620, %v5655
      %v5668 = vadd.f32 %v5621, %v5656
      %v5669 = vadd.f32 %v5622, %v5657
      %v5670 = vadd.f32 %v5623, %v5658
      %v5671 = vld [vmem:[#allocation3 + $0x690] sm:$0xff]
      %v5672 = vld [vmem:[#allocation3 + $0x698] sm:$0xff]
      %v5673 = vld [vmem:[#allocation3 + $0x6a0] sm:$0xff]
      %v5674 = vld [vmem:[#allocation3 + $0x6a8] sm:$0xff]
      %v5675 = vld [vmem:[#allocation3 + $0x6b0] sm:$0xff]
      %v5676 = vld [vmem:[#allocation3 + $0x6b8] sm:$0xff]
      %v5677 = vld [vmem:[#allocation3 + $0x6c0] sm:$0xff]
      %5685 = vrot.lane.b32.xlu0 %v5671, 22
      %v5686 = vpop.permute.xlu0 %5685
      %5687 = vrot.lane.b32.xlu0 %v5672, 22
      %v5688 = vpop.permute.xlu0 %5687
      %5689 = vrot.lane.b32.xlu0 %v5673, 22
      %v5690 = vpop.permute.xlu0 %5689
      %5691 = vrot.lane.b32.xlu0 %v5674, 22
      %v5692 = vpop.permute.xlu0 %5691
      %5693 = vrot.lane.b32.xlu0 %v5675, 22
      %v5694 = vpop.permute.xlu0 %5693
      %5695 = vrot.lane.b32.xlu0 %v5676, 22
      %v5696 = vpop.permute.xlu0 %5695
      %5697 = vrot.lane.b32.xlu0 %v5677, 22
      %v5698 = vpop.permute.xlu0 %5697
      %vm5699 = vcmask 179200
      %v5700 = vsel %vm5699, %v5686, %v5688
      %v5701 = vsel %vm5699, %v5688, %v5690
      %v5702 = vsel %vm5699, %v5690, %v5692
      %v5703 = vsel %vm5699, %v5692, %v5694
      %v5704 = vsel %vm5699, %v5694, %v5696
      %v5705 = vsel %vm5699, %v5696, %v5698
      %v5712 = vadd.f32 %v5665, %v5700
      %v5713 = vadd.f32 %v5666, %v5701
      %v5714 = vadd.f32 %v5667, %v5702
      %v5715 = vadd.f32 %v5668, %v5703
      %v5716 = vadd.f32 %v5669, %v5704
      %v5717 = vadd.f32 %v5670, %v5705
      %v5718 = vld [vmem:[#allocation3 + $0x6c8] sm:$0xff]
      %v5719 = vld [vmem:[#allocation3 + $0x6d0] sm:$0xff]
      %v5720 = vld [vmem:[#allocation3 + $0x6d8] sm:$0xff]
      %v5721 = vld [vmem:[#allocation3 + $0x6e0] sm:$0xff]
      %v5722 = vld [vmem:[#allocation3 + $0x6e8] sm:$0xff]
      %v5723 = vld [vmem:[#allocation3 + $0x6f0] sm:$0xff]
      %v5724 = vld [vmem:[#allocation3 + $0x6f8] sm:$0xff]
      %5732 = vrot.lane.b32.xlu0 %v5718, 21
      %v5733 = vpop.permute.xlu0 %5732
      %5734 = vrot.lane.b32.xlu0 %v5719, 21
      %v5735 = vpop.permute.xlu0 %5734
      %5736 = vrot.lane.b32.xlu0 %v5720, 21
      %v5737 = vpop.permute.xlu0 %5736
      %5738 = vrot.lane.b32.xlu0 %v5721, 21
      %v5739 = vpop.permute.xlu0 %5738
      %5740 = vrot.lane.b32.xlu0 %v5722, 21
      %v5741 = vpop.permute.xlu0 %5740
      %5742 = vrot.lane.b32.xlu0 %v5723, 21
      %v5743 = vpop.permute.xlu0 %5742
      %5744 = vrot.lane.b32.xlu0 %v5724, 21
      %v5745 = vpop.permute.xlu0 %5744
      %vm5746 = vcmask 171008
      %v5747 = vsel %vm5746, %v5733, %v5735
      %v5748 = vsel %vm5746, %v5735, %v5737
      %v5749 = vsel %vm5746, %v5737, %v5739
      %v5750 = vsel %vm5746, %v5739, %v5741
      %v5751 = vsel %vm5746, %v5741, %v5743
      %v5752 = vsel %vm5746, %v5743, %v5745
      %v5759 = vadd.f32 %v5712, %v5747
      %v5760 = vadd.f32 %v5713, %v5748
      %v5761 = vadd.f32 %v5714, %v5749
      %v5762 = vadd.f32 %v5715, %v5750
      %v5763 = vadd.f32 %v5716, %v5751
      %v5764 = vadd.f32 %v5717, %v5752
      %v5765 = vld [vmem:[#allocation3 + $0x700] sm:$0xff]
      %v5766 = vld [vmem:[#allocation3 + $0x708] sm:$0xff]
      %v5767 = vld [vmem:[#allocation3 + $0x710] sm:$0xff]
      %v5768 = vld [vmem:[#allocation3 + $0x718] sm:$0xff]
      %v5769 = vld [vmem:[#allocation3 + $0x720] sm:$0xff]
      %v5770 = vld [vmem:[#allocation3 + $0x728] sm:$0xff]
      %v5771 = vld [vmem:[#allocation3 + $0x730] sm:$0xff]
      %5779 = vrot.lane.b32.xlu0 %v5765, 20
      %v5780 = vpop.permute.xlu0 %5779
      %5781 = vrot.lane.b32.xlu0 %v5766, 20
      %v5782 = vpop.permute.xlu0 %5781
      %5783 = vrot.lane.b32.xlu0 %v5767, 20
      %v5784 = vpop.permute.xlu0 %5783
      %5785 = vrot.lane.b32.xlu0 %v5768, 20
      %v5786 = vpop.permute.xlu0 %5785
      %5787 = vrot.lane.b32.xlu0 %v5769, 20
      %v5788 = vpop.permute.xlu0 %5787
      %5789 = vrot.lane.b32.xlu0 %v5770, 20
      %v5790 = vpop.permute.xlu0 %5789
      %5791 = vrot.lane.b32.xlu0 %v5771, 20
      %v5792 = vpop.permute.xlu0 %5791
      %vm5793 = vcmask 162816
      %v5794 = vsel %vm5793, %v5780, %v5782
      %v5795 = vsel %vm5793, %v5782, %v5784
      %v5796 = vsel %vm5793, %v5784, %v5786
      %v5797 = vsel %vm5793, %v5786, %v5788
      %v5798 = vsel %vm5793, %v5788, %v5790
      %v5799 = vsel %vm5793, %v5790, %v5792
      %v5806 = vadd.f32 %v5759, %v5794
      %v5807 = vadd.f32 %v5760, %v5795
      %v5808 = vadd.f32 %v5761, %v5796
      %v5809 = vadd.f32 %v5762, %v5797
      %v5810 = vadd.f32 %v5763, %v5798
      %v5811 = vadd.f32 %v5764, %v5799
      %v5812 = vld [vmem:[#allocation3 + $0x738] sm:$0xff]
      %v5813 = vld [vmem:[#allocation3 + $0x740] sm:$0xff]
      %v5814 = vld [vmem:[#allocation3 + $0x748] sm:$0xff]
      %v5815 = vld [vmem:[#allocation3 + $0x750] sm:$0xff]
      %v5816 = vld [vmem:[#allocation3 + $0x758] sm:$0xff]
      %v5817 = vld [vmem:[#allocation3 + $0x760] sm:$0xff]
      %v5818 = vld [vmem:[#allocation3 + $0x768] sm:$0xff]
      %5826 = vrot.lane.b32.xlu0 %v5812, 19
      %v5827 = vpop.permute.xlu0 %5826
      %5828 = vrot.lane.b32.xlu0 %v5813, 19
      %v5829 = vpop.permute.xlu0 %5828
      %5830 = vrot.lane.b32.xlu0 %v5814, 19
      %v5831 = vpop.permute.xlu0 %5830
      %5832 = vrot.lane.b32.xlu0 %v5815, 19
      %v5833 = vpop.permute.xlu0 %5832
      %5834 = vrot.lane.b32.xlu0 %v5816, 19
      %v5835 = vpop.permute.xlu0 %5834
      %5836 = vrot.lane.b32.xlu0 %v5817, 19
      %v5837 = vpop.permute.xlu0 %5836
      %5838 = vrot.lane.b32.xlu0 %v5818, 19
      %v5839 = vpop.permute.xlu0 %5838
      %vm5840 = vcmask 154624
      %v5841 = vsel %vm5840, %v5827, %v5829
      %v5842 = vsel %vm5840, %v5829, %v5831
      %v5843 = vsel %vm5840, %v5831, %v5833
      %v5844 = vsel %vm5840, %v5833, %v5835
      %v5845 = vsel %vm5840, %v5835, %v5837
      %v5846 = vsel %vm5840, %v5837, %v5839
      %v5853 = vadd.f32 %v5806, %v5841
      %v5854 = vadd.f32 %v5807, %v5842
      %v5855 = vadd.f32 %v5808, %v5843
      %v5856 = vadd.f32 %v5809, %v5844
      %v5857 = vadd.f32 %v5810, %v5845
      %v5858 = vadd.f32 %v5811, %v5846
      %v5859 = vld [vmem:[#allocation3 + $0x770] sm:$0xff]
      %v5860 = vld [vmem:[#allocation3 + $0x778] sm:$0xff]
      %v5861 = vld [vmem:[#allocation3 + $0x780] sm:$0xff]
      %v5862 = vld [vmem:[#allocation3 + $0x788] sm:$0xff]
      %v5863 = vld [vmem:[#allocation3 + $0x790] sm:$0xff]
      %v5864 = vld [vmem:[#allocation3 + $0x798] sm:$0xff]
      %v5865 = vld [vmem:[#allocation3 + $0x7a0] sm:$0xff]
      %5873 = vrot.lane.b32.xlu0 %v5859, 18
      %v5874 = vpop.permute.xlu0 %5873
      %5875 = vrot.lane.b32.xlu0 %v5860, 18
      %v5876 = vpop.permute.xlu0 %5875
      %5877 = vrot.lane.b32.xlu0 %v5861, 18
      %v5878 = vpop.permute.xlu0 %5877
      %5879 = vrot.lane.b32.xlu0 %v5862, 18
      %v5880 = vpop.permute.xlu0 %5879
      %5881 = vrot.lane.b32.xlu0 %v5863, 18
      %v5882 = vpop.permute.xlu0 %5881
      %5883 = vrot.lane.b32.xlu0 %v5864, 18
      %v5884 = vpop.permute.xlu0 %5883
      %5885 = vrot.lane.b32.xlu0 %v5865, 18
      %v5886 = vpop.permute.xlu0 %5885
      %vm5887 = vcmask 146432
      %v5888 = vsel %vm5887, %v5874, %v5876
      %v5889 = vsel %vm5887, %v5876, %v5878
      %v5890 = vsel %vm5887, %v5878, %v5880
      %v5891 = vsel %vm5887, %v5880, %v5882
      %v5892 = vsel %vm5887, %v5882, %v5884
      %v5893 = vsel %vm5887, %v5884, %v5886
      %v5900 = vadd.f32 %v5853, %v5888
      %v5901 = vadd.f32 %v5854, %v5889
      %v5902 = vadd.f32 %v5855, %v5890
      %v5903 = vadd.f32 %v5856, %v5891
      %v5904 = vadd.f32 %v5857, %v5892
      %v5905 = vadd.f32 %v5858, %v5893
      %v5906 = vld [vmem:[#allocation3 + $0x7b0] sm:$0xff]
      %v5907 = vld [vmem:[#allocation3 + $0x7b8] sm:$0xff]
      %v5908 = vld [vmem:[#allocation3 + $0x7c0] sm:$0xff]
      %v5909 = vld [vmem:[#allocation3 + $0x7c8] sm:$0xff]
      %v5910 = vld [vmem:[#allocation3 + $0x7d0] sm:$0xff]
      %v5911 = vld [vmem:[#allocation3 + $0x7d8] sm:$0xff]
      %5918 = vrot.lane.b32.xlu0 %v5906, 126
      %v5919 = vpop.permute.xlu0 %5918
      %5920 = vrot.lane.b32.xlu0 %v5907, 126
      %v5921 = vpop.permute.xlu0 %5920
      %5922 = vrot.lane.b32.xlu0 %v5908, 126
      %v5923 = vpop.permute.xlu0 %5922
      %5924 = vrot.lane.b32.xlu0 %v5909, 126
      %v5925 = vpop.permute.xlu0 %5924
      %5926 = vrot.lane.b32.xlu0 %v5910, 126
      %v5927 = vpop.permute.xlu0 %5926
      %5928 = vrot.lane.b32.xlu0 %v5911, 126
      %v5929 = vpop.permute.xlu0 %5928
      %v5930 = vsel %vm4509, %v5919, %v5921
      %v5931 = vsel %vm4509, %v5921, %v5923
      %v5932 = vsel %vm4509, %v5923, %v5925
      %v5933 = vsel %vm4509, %v5925, %v5927
      %v5934 = vsel %vm4509, %v5927, %v5929
      %v5941 = vadd.f32 %v5900, %v5930
      %v5942 = vadd.f32 %v5901, %v5931
      %v5943 = vadd.f32 %v5902, %v5932
      %v5944 = vadd.f32 %v5903, %v5933
      %v5945 = vadd.f32 %v5904, %v5934
      %v5946 = vadd.f32 %v5905, %v5929
      %v5947 = vld [vmem:[#allocation3 + $0x7e8] sm:$0xff]
      %v5948 = vld [vmem:[#allocation3 + $0x7f0] sm:$0xff]
      %v5949 = vld [vmem:[#allocation3 + $0x7f8] sm:$0xff]
      %v5950 = vld [vmem:[#allocation3 + $0x800] sm:$0xff]
      %v5951 = vld [vmem:[#allocation3 + $0x808] sm:$0xff]
      %v5952 = vld [vmem:[#allocation3 + $0x810] sm:$0xff]
      %5959 = vrot.lane.b32.xlu0 %v5947, 125
      %v5960 = vpop.permute.xlu0 %5959
      %5961 = vrot.lane.b32.xlu0 %v5948, 125
      %v5962 = vpop.permute.xlu0 %5961
      %5963 = vrot.lane.b32.xlu0 %v5949, 125
      %v5964 = vpop.permute.xlu0 %5963
      %5965 = vrot.lane.b32.xlu0 %v5950, 125
      %v5966 = vpop.permute.xlu0 %5965
      %5967 = vrot.lane.b32.xlu0 %v5951, 125
      %v5968 = vpop.permute.xlu0 %5967
      %5969 = vrot.lane.b32.xlu0 %v5952, 125
      %v5970 = vpop.permute.xlu0 %5969
      %v5971 = vsel %vm4551, %v5960, %v5962
      %v5972 = vsel %vm4551, %v5962, %v5964
      %v5973 = vsel %vm4551, %v5964, %v5966
      %v5974 = vsel %vm4551, %v5966, %v5968
      %v5975 = vsel %vm4551, %v5968, %v5970
      %v5982 = vadd.f32 %v5941, %v5971
      %v5983 = vadd.f32 %v5942, %v5972
      %v5984 = vadd.f32 %v5943, %v5973
      %v5985 = vadd.f32 %v5944, %v5974
      %v5986 = vadd.f32 %v5945, %v5975
      %v5987 = vadd.f32 %v5946, %v5970
      %v5988 = vld [vmem:[#allocation3 + $0x820] sm:$0xff]
      %v5989 = vld [vmem:[#allocation3 + $0x828] sm:$0xff]
      %v5990 = vld [vmem:[#allocation3 + $0x830] sm:$0xff]
      %v5991 = vld [vmem:[#allocation3 + $0x838] sm:$0xff]
      %v5992 = vld [vmem:[#allocation3 + $0x840] sm:$0xff]
      %v5993 = vld [vmem:[#allocation3 + $0x848] sm:$0xff]
      %6000 = vrot.lane.b32.xlu0 %v5988, 124
      %v6001 = vpop.permute.xlu0 %6000
      %6002 = vrot.lane.b32.xlu0 %v5989, 124
      %v6003 = vpop.permute.xlu0 %6002
      %6004 = vrot.lane.b32.xlu0 %v5990, 124
      %v6005 = vpop.permute.xlu0 %6004
      %6006 = vrot.lane.b32.xlu0 %v5991, 124
      %v6007 = vpop.permute.xlu0 %6006
      %6008 = vrot.lane.b32.xlu0 %v5992, 124
      %v6009 = vpop.permute.xlu0 %6008
      %6010 = vrot.lane.b32.xlu0 %v5993, 124
      %v6011 = vpop.permute.xlu0 %6010
      %v6012 = vsel %vm4593, %v6001, %v6003
      %v6013 = vsel %vm4593, %v6003, %v6005
      %v6014 = vsel %vm4593, %v6005, %v6007
      %v6015 = vsel %vm4593, %v6007, %v6009
      %v6016 = vsel %vm4593, %v6009, %v6011
      %v6023 = vadd.f32 %v5982, %v6012
      %v6024 = vadd.f32 %v5983, %v6013
      %v6025 = vadd.f32 %v5984, %v6014
      %v6026 = vadd.f32 %v5985, %v6015
      %v6027 = vadd.f32 %v5986, %v6016
      %v6028 = vadd.f32 %v5987, %v6011
      %v6029 = vld [vmem:[#allocation3 + $0x858] sm:$0xff]
      %v6030 = vld [vmem:[#allocation3 + $0x860] sm:$0xff]
      %v6031 = vld [vmem:[#allocation3 + $0x868] sm:$0xff]
      %v6032 = vld [vmem:[#allocation3 + $0x870] sm:$0xff]
      %v6033 = vld [vmem:[#allocation3 + $0x878] sm:$0xff]
      %v6034 = vld [vmem:[#allocation3 + $0x880] sm:$0xff]
      %6041 = vrot.lane.b32.xlu0 %v6029, 123
      %v6042 = vpop.permute.xlu0 %6041
      %6043 = vrot.lane.b32.xlu0 %v6030, 123
      %v6044 = vpop.permute.xlu0 %6043
      %6045 = vrot.lane.b32.xlu0 %v6031, 123
      %v6046 = vpop.permute.xlu0 %6045
      %6047 = vrot.lane.b32.xlu0 %v6032, 123
      %v6048 = vpop.permute.xlu0 %6047
      %6049 = vrot.lane.b32.xlu0 %v6033, 123
      %v6050 = vpop.permute.xlu0 %6049
      %6051 = vrot.lane.b32.xlu0 %v6034, 123
      %v6052 = vpop.permute.xlu0 %6051
      %v6053 = vsel %vm4635, %v6042, %v6044
      %v6054 = vsel %vm4635, %v6044, %v6046
      %v6055 = vsel %vm4635, %v6046, %v6048
      %v6056 = vsel %vm4635, %v6048, %v6050
      %v6057 = vsel %vm4635, %v6050, %v6052
      %v6064 = vadd.f32 %v6023, %v6053
      %v6065 = vadd.f32 %v6024, %v6054
      %v6066 = vadd.f32 %v6025, %v6055
      %v6067 = vadd.f32 %v6026, %v6056
      %v6068 = vadd.f32 %v6027, %v6057
      %v6069 = vadd.f32 %v6028, %v6052
      %v6070 = vld [vmem:[#allocation3 + $0x890] sm:$0xff]
      %v6071 = vld [vmem:[#allocation3 + $0x898] sm:$0xff]
      %v6072 = vld [vmem:[#allocation3 + $0x8a0] sm:$0xff]
      %v6073 = vld [vmem:[#allocation3 + $0x8a8] sm:$0xff]
      %v6074 = vld [vmem:[#allocation3 + $0x8b0] sm:$0xff]
      %v6075 = vld [vmem:[#allocation3 + $0x8b8] sm:$0xff]
      %6082 = vrot.lane.b32.xlu0 %v6070, 122
      %v6083 = vpop.permute.xlu0 %6082
      %6084 = vrot.lane.b32.xlu0 %v6071, 122
      %v6085 = vpop.permute.xlu0 %6084
      %6086 = vrot.lane.b32.xlu0 %v6072, 122
      %v6087 = vpop.permute.xlu0 %6086
      %6088 = vrot.lane.b32.xlu0 %v6073, 122
      %v6089 = vpop.permute.xlu0 %6088
      %6090 = vrot.lane.b32.xlu0 %v6074, 122
      %v6091 = vpop.permute.xlu0 %6090
      %6092 = vrot.lane.b32.xlu0 %v6075, 122
      %v6093 = vpop.permute.xlu0 %6092
      %v6094 = vsel %vm4677, %v6083, %v6085
      %v6095 = vsel %vm4677, %v6085, %v6087
      %v6096 = vsel %vm4677, %v6087, %v6089
      %v6097 = vsel %vm4677, %v6089, %v6091
      %v6098 = vsel %vm4677, %v6091, %v6093
      %v6105 = vadd.f32 %v6064, %v6094
      %v6106 = vadd.f32 %v6065, %v6095
      %v6107 = vadd.f32 %v6066, %v6096
      %v6108 = vadd.f32 %v6067, %v6097
      %v6109 = vadd.f32 %v6068, %v6098
      %v6110 = vadd.f32 %v6069, %v6093
      %v6111 = vld [vmem:[#allocation3 + $0x8c8] sm:$0xff]
      %v6112 = vld [vmem:[#allocation3 + $0x8d0] sm:$0xff]
      %v6113 = vld [vmem:[#allocation3 + $0x8d8] sm:$0xff]
      %v6114 = vld [vmem:[#allocation3 + $0x8e0] sm:$0xff]
      %v6115 = vld [vmem:[#allocation3 + $0x8e8] sm:$0xff]
      %v6116 = vld [vmem:[#allocation3 + $0x8f0] sm:$0xff]
      %6123 = vrot.lane.b32.xlu0 %v6111, 121
      %v6124 = vpop.permute.xlu0 %6123
      %6125 = vrot.lane.b32.xlu0 %v6112, 121
      %v6126 = vpop.permute.xlu0 %6125
      %6127 = vrot.lane.b32.xlu0 %v6113, 121
      %v6128 = vpop.permute.xlu0 %6127
      %6129 = vrot.lane.b32.xlu0 %v6114, 121
      %v6130 = vpop.permute.xlu0 %6129
      %6131 = vrot.lane.b32.xlu0 %v6115, 121
      %v6132 = vpop.permute.xlu0 %6131
      %6133 = vrot.lane.b32.xlu0 %v6116, 121
      %v6134 = vpop.permute.xlu0 %6133
      %vm6135 = vcmask 990208
      %v6136 = vsel %vm6135, %v6124, %v6126
      %v6137 = vsel %vm6135, %v6126, %v6128
      %v6138 = vsel %vm6135, %v6128, %v6130
      %v6139 = vsel %vm6135, %v6130, %v6132
      %v6140 = vsel %vm6135, %v6132, %v6134
      %v6147 = vadd.f32 %v6105, %v6136
      %v6148 = vadd.f32 %v6106, %v6137
      %v6149 = vadd.f32 %v6107, %v6138
      %v6150 = vadd.f32 %v6108, %v6139
      %v6151 = vadd.f32 %v6109, %v6140
      %v6152 = vadd.f32 %v6110, %v6134
      %v6153 = vld [vmem:[#allocation3 + $0x900] sm:$0xff]
      %v6154 = vld [vmem:[#allocation3 + $0x908] sm:$0xff]
      %v6155 = vld [vmem:[#allocation3 + $0x910] sm:$0xff]
      %v6156 = vld [vmem:[#allocation3 + $0x918] sm:$0xff]
      %v6157 = vld [vmem:[#allocation3 + $0x920] sm:$0xff]
      %v6158 = vld [vmem:[#allocation3 + $0x928] sm:$0xff]
      %6165 = vrot.lane.b32.xlu0 %v6153, 120
      %v6166 = vpop.permute.xlu0 %6165
      %6167 = vrot.lane.b32.xlu0 %v6154, 120
      %v6168 = vpop.permute.xlu0 %6167
      %6169 = vrot.lane.b32.xlu0 %v6155, 120
      %v6170 = vpop.permute.xlu0 %6169
      %6171 = vrot.lane.b32.xlu0 %v6156, 120
      %v6172 = vpop.permute.xlu0 %6171
      %6173 = vrot.lane.b32.xlu0 %v6157, 120
      %v6174 = vpop.permute.xlu0 %6173
      %6175 = vrot.lane.b32.xlu0 %v6158, 120
      %v6176 = vpop.permute.xlu0 %6175
      %vm6177 = vcmask 982016
      %v6178 = vsel %vm6177, %v6166, %v6168
      %v6179 = vsel %vm6177, %v6168, %v6170
      %v6180 = vsel %vm6177, %v6170, %v6172
      %v6181 = vsel %vm6177, %v6172, %v6174
      %v6182 = vsel %vm6177, %v6174, %v6176
      %v6189 = vadd.f32 %v6147, %v6178
      %v6190 = vadd.f32 %v6148, %v6179
      %v6191 = vadd.f32 %v6149, %v6180
      %v6192 = vadd.f32 %v6150, %v6181
      %v6193 = vadd.f32 %v6151, %v6182
      %v6194 = vadd.f32 %v6152, %v6176
      %v6195 = vld [vmem:[#allocation3 + $0x938] sm:$0xff]
      %v6196 = vld [vmem:[#allocation3 + $0x940] sm:$0xff]
      %v6197 = vld [vmem:[#allocation3 + $0x948] sm:$0xff]
      %v6198 = vld [vmem:[#allocation3 + $0x950] sm:$0xff]
      %v6199 = vld [vmem:[#allocation3 + $0x958] sm:$0xff]
      %v6200 = vld [vmem:[#allocation3 + $0x960] sm:$0xff]
      %6207 = vrot.lane.b32.xlu0 %v6195, 100
      %v6208 = vpop.permute.xlu0 %6207
      %6209 = vrot.lane.b32.xlu0 %v6196, 100
      %v6210 = vpop.permute.xlu0 %6209
      %6211 = vrot.lane.b32.xlu0 %v6197, 100
      %v6212 = vpop.permute.xlu0 %6211
      %6213 = vrot.lane.b32.xlu0 %v6198, 100
      %v6214 = vpop.permute.xlu0 %6213
      %6215 = vrot.lane.b32.xlu0 %v6199, 100
      %v6216 = vpop.permute.xlu0 %6215
      %6217 = vrot.lane.b32.xlu0 %v6200, 100
      %v6218 = vpop.permute.xlu0 %6217
      %v6219 = vsel %vm4803, %v6208, %v6210
      %v6220 = vsel %vm4803, %v6210, %v6212
      %v6221 = vsel %vm4803, %v6212, %v6214
      %v6222 = vsel %vm4803, %v6214, %v6216
      %v6223 = vsel %vm4803, %v6216, %v6218
      %v6230 = vadd.f32 %v6189, %v6219
      %v6231 = vadd.f32 %v6190, %v6220
      %v6232 = vadd.f32 %v6191, %v6221
      %v6233 = vadd.f32 %v6192, %v6222
      %v6234 = vadd.f32 %v6193, %v6223
      %v6235 = vadd.f32 %v6194, %v6218
      %v6236 = vld [vmem:[#allocation3 + $0x970] sm:$0xff]
      %v6237 = vld [vmem:[#allocation3 + $0x978] sm:$0xff]
      %v6238 = vld [vmem:[#allocation3 + $0x980] sm:$0xff]
      %v6239 = vld [vmem:[#allocation3 + $0x988] sm:$0xff]
      %v6240 = vld [vmem:[#allocation3 + $0x990] sm:$0xff]
      %v6241 = vld [vmem:[#allocation3 + $0x998] sm:$0xff]
      %6248 = vrot.lane.b32.xlu0 %v6236, 99
      %v6249 = vpop.permute.xlu0 %6248
      %6250 = vrot.lane.b32.xlu0 %v6237, 99
      %v6251 = vpop.permute.xlu0 %6250
      %6252 = vrot.lane.b32.xlu0 %v6238, 99
      %v6253 = vpop.permute.xlu0 %6252
      %6254 = vrot.lane.b32.xlu0 %v6239, 99
      %v6255 = vpop.permute.xlu0 %6254
      %6256 = vrot.lane.b32.xlu0 %v6240, 99
      %v6257 = vpop.permute.xlu0 %6256
      %6258 = vrot.lane.b32.xlu0 %v6241, 99
      %v6259 = vpop.permute.xlu0 %6258
      %v6260 = vsel %vm4845, %v6249, %v6251
      %v6261 = vsel %vm4845, %v6251, %v6253
      %v6262 = vsel %vm4845, %v6253, %v6255
      %v6263 = vsel %vm4845, %v6255, %v6257
      %v6264 = vsel %vm4845, %v6257, %v6259
      %v6271 = vadd.f32 %v6230, %v6260
      %v6272 = vadd.f32 %v6231, %v6261
      %v6273 = vadd.f32 %v6232, %v6262
      %v6274 = vadd.f32 %v6233, %v6263
      %v6275 = vadd.f32 %v6234, %v6264
      %v6276 = vadd.f32 %v6235, %v6259
      %v6277 = vld [vmem:[#allocation3 + $0x9a8] sm:$0xff]
      %v6278 = vld [vmem:[#allocation3 + $0x9b0] sm:$0xff]
      %v6279 = vld [vmem:[#allocation3 + $0x9b8] sm:$0xff]
      %v6280 = vld [vmem:[#allocation3 + $0x9c0] sm:$0xff]
      %v6281 = vld [vmem:[#allocation3 + $0x9c8] sm:$0xff]
      %v6282 = vld [vmem:[#allocation3 + $0x9d0] sm:$0xff]
      %6289 = vrot.lane.b32.xlu0 %v6277, 98
      %v6290 = vpop.permute.xlu0 %6289
      %6291 = vrot.lane.b32.xlu0 %v6278, 98
      %v6292 = vpop.permute.xlu0 %6291
      %6293 = vrot.lane.b32.xlu0 %v6279, 98
      %v6294 = vpop.permute.xlu0 %6293
      %6295 = vrot.lane.b32.xlu0 %v6280, 98
      %v6296 = vpop.permute.xlu0 %6295
      %6297 = vrot.lane.b32.xlu0 %v6281, 98
      %v6298 = vpop.permute.xlu0 %6297
      %6299 = vrot.lane.b32.xlu0 %v6282, 98
      %v6300 = vpop.permute.xlu0 %6299
      %v6301 = vsel %vm4887, %v6290, %v6292
      %v6302 = vsel %vm4887, %v6292, %v6294
      %v6303 = vsel %vm4887, %v6294, %v6296
      %v6304 = vsel %vm4887, %v6296, %v6298
      %v6305 = vsel %vm4887, %v6298, %v6300
      %v6312 = vadd.f32 %v6271, %v6301
      %v6313 = vadd.f32 %v6272, %v6302
      %v6314 = vadd.f32 %v6273, %v6303
      %v6315 = vadd.f32 %v6274, %v6304
      %v6316 = vadd.f32 %v6275, %v6305
      %v6317 = vadd.f32 %v6276, %v6300
      %v6318 = vld [vmem:[#allocation3 + $0x9e0] sm:$0xff]
      %v6319 = vld [vmem:[#allocation3 + $0x9e8] sm:$0xff]
      %v6320 = vld [vmem:[#allocation3 + $0x9f0] sm:$0xff]
      %v6321 = vld [vmem:[#allocation3 + $0x9f8] sm:$0xff]
      %v6322 = vld [vmem:[#allocation3 + $0xa00] sm:$0xff]
      %v6323 = vld [vmem:[#allocation3 + $0xa08] sm:$0xff]
      %6330 = vrot.lane.b32.xlu0 %v6318, 97
      %v6331 = vpop.permute.xlu0 %6330
      %6332 = vrot.lane.b32.xlu0 %v6319, 97
      %v6333 = vpop.permute.xlu0 %6332
      %6334 = vrot.lane.b32.xlu0 %v6320, 97
      %v6335 = vpop.permute.xlu0 %6334
      %6336 = vrot.lane.b32.xlu0 %v6321, 97
      %v6337 = vpop.permute.xlu0 %6336
      %6338 = vrot.lane.b32.xlu0 %v6322, 97
      %v6339 = vpop.permute.xlu0 %6338
      %6340 = vrot.lane.b32.xlu0 %v6323, 97
      %v6341 = vpop.permute.xlu0 %6340
      %v6342 = vsel %vm4929, %v6331, %v6333
      %v6343 = vsel %vm4929, %v6333, %v6335
      %v6344 = vsel %vm4929, %v6335, %v6337
      %v6345 = vsel %vm4929, %v6337, %v6339
      %v6346 = vsel %vm4929, %v6339, %v6341
      %v6353 = vadd.f32 %v6312, %v6342
      %v6354 = vadd.f32 %v6313, %v6343
      %v6355 = vadd.f32 %v6314, %v6344
      %v6356 = vadd.f32 %v6315, %v6345
      %v6357 = vadd.f32 %v6316, %v6346
      %v6358 = vadd.f32 %v6317, %v6341
      %v6359 = vld [vmem:[#allocation3 + $0xa18] sm:$0xff]
      %v6360 = vld [vmem:[#allocation3 + $0xa20] sm:$0xff]
      %v6361 = vld [vmem:[#allocation3 + $0xa28] sm:$0xff]
      %v6362 = vld [vmem:[#allocation3 + $0xa30] sm:$0xff]
      %v6363 = vld [vmem:[#allocation3 + $0xa38] sm:$0xff]
      %v6364 = vld [vmem:[#allocation3 + $0xa40] sm:$0xff]
      %6371 = vrot.lane.b32.xlu0 %v6359, 96
      %v6372 = vpop.permute.xlu0 %6371
      %6373 = vrot.lane.b32.xlu0 %v6360, 96
      %v6374 = vpop.permute.xlu0 %6373
      %6375 = vrot.lane.b32.xlu0 %v6361, 96
      %v6376 = vpop.permute.xlu0 %6375
      %6377 = vrot.lane.b32.xlu0 %v6362, 96
      %v6378 = vpop.permute.xlu0 %6377
      %6379 = vrot.lane.b32.xlu0 %v6363, 96
      %v6380 = vpop.permute.xlu0 %6379
      %6381 = vrot.lane.b32.xlu0 %v6364, 96
      %v6382 = vpop.permute.xlu0 %6381
      %v6383 = vsel %vm4971, %v6372, %v6374
      %v6384 = vsel %vm4971, %v6374, %v6376
      %v6385 = vsel %vm4971, %v6376, %v6378
      %v6386 = vsel %vm4971, %v6378, %v6380
      %v6387 = vsel %vm4971, %v6380, %v6382
      %v6394 = vadd.f32 %v6353, %v6383
      %v6395 = vadd.f32 %v6354, %v6384
      %v6396 = vadd.f32 %v6355, %v6385
      %v6397 = vadd.f32 %v6356, %v6386
      %v6398 = vadd.f32 %v6357, %v6387
      %v6399 = vadd.f32 %v6358, %v6382
      %v6400 = vld [vmem:[#allocation3 + $0xa50] sm:$0xff]
      %v6401 = vld [vmem:[#allocation3 + $0xa58] sm:$0xff]
      %v6402 = vld [vmem:[#allocation3 + $0xa60] sm:$0xff]
      %v6403 = vld [vmem:[#allocation3 + $0xa68] sm:$0xff]
      %v6404 = vld [vmem:[#allocation3 + $0xa70] sm:$0xff]
      %v6405 = vld [vmem:[#allocation3 + $0xa78] sm:$0xff]
      %6412 = vrot.lane.b32.xlu0 %v6400, 95
      %v6413 = vpop.permute.xlu0 %6412
      %6414 = vrot.lane.b32.xlu0 %v6401, 95
      %v6415 = vpop.permute.xlu0 %6414
      %6416 = vrot.lane.b32.xlu0 %v6402, 95
      %v6417 = vpop.permute.xlu0 %6416
      %6418 = vrot.lane.b32.xlu0 %v6403, 95
      %v6419 = vpop.permute.xlu0 %6418
      %6420 = vrot.lane.b32.xlu0 %v6404, 95
      %v6421 = vpop.permute.xlu0 %6420
      %6422 = vrot.lane.b32.xlu0 %v6405, 95
      %v6423 = vpop.permute.xlu0 %6422
      %vm6424 = vcmask 777216
      %v6425 = vsel %vm6424, %v6413, %v6415
      %v6426 = vsel %vm6424, %v6415, %v6417
      %v6427 = vsel %vm6424, %v6417, %v6419
      %v6428 = vsel %vm6424, %v6419, %v6421
      %v6429 = vsel %vm6424, %v6421, %v6423
      %v6436 = vadd.f32 %v6394, %v6425
      %v6437 = vadd.f32 %v6395, %v6426
      %v6438 = vadd.f32 %v6396, %v6427
      %v6439 = vadd.f32 %v6397, %v6428
      %v6440 = vadd.f32 %v6398, %v6429
      %v6441 = vadd.f32 %v6399, %v6423
      %v6442 = vld [vmem:[#allocation3 + $0xa88] sm:$0xff]
      %v6443 = vld [vmem:[#allocation3 + $0xa90] sm:$0xff]
      %v6444 = vld [vmem:[#allocation3 + $0xa98] sm:$0xff]
      %v6445 = vld [vmem:[#allocation3 + $0xaa0] sm:$0xff]
      %v6446 = vld [vmem:[#allocation3 + $0xaa8] sm:$0xff]
      %v6447 = vld [vmem:[#allocation3 + $0xab0] sm:$0xff]
      %6454 = vrot.lane.b32.xlu0 %v6442, 94
      %v6455 = vpop.permute.xlu0 %6454
      %6456 = vrot.lane.b32.xlu0 %v6443, 94
      %v6457 = vpop.permute.xlu0 %6456
      %6458 = vrot.lane.b32.xlu0 %v6444, 94
      %v6459 = vpop.permute.xlu0 %6458
      %6460 = vrot.lane.b32.xlu0 %v6445, 94
      %v6461 = vpop.permute.xlu0 %6460
      %6462 = vrot.lane.b32.xlu0 %v6446, 94
      %v6463 = vpop.permute.xlu0 %6462
      %6464 = vrot.lane.b32.xlu0 %v6447, 94
      %v6465 = vpop.permute.xlu0 %6464
      %vm6466 = vcmask 769024
      %v6467 = vsel %vm6466, %v6455, %v6457
      %v6468 = vsel %vm6466, %v6457, %v6459
      %v6469 = vsel %vm6466, %v6459, %v6461
      %v6470 = vsel %vm6466, %v6461, %v6463
      %v6471 = vsel %vm6466, %v6463, %v6465
      %v6478 = vadd.f32 %v6436, %v6467
      %v6479 = vadd.f32 %v6437, %v6468
      %v6480 = vadd.f32 %v6438, %v6469
      %v6481 = vadd.f32 %v6439, %v6470
      %v6482 = vadd.f32 %v6440, %v6471
      %v6483 = vadd.f32 %v6441, %v6465
      %v6484 = vld [vmem:[%s4] sm:$0xff]
      %6486 = vset.pattern.permute.xlu0 0
      %6487 = vperm.xlu0 %6486, %v6484
      %v6488 = vpop.permute.xlu0 %6487
      %v6490 = vadd.f32 %v6478, %v6488
      %v6491 = vadd.f32 %v6479, %v6488
      %v6492 = vadd.f32 %v6480, %v6488
      %v6493 = vadd.f32 %v6481, %v6488
      %v6494 = vadd.f32 %v6482, %v6488
      %v6495 = vadd.f32 %v6483, %v6488
      %6496 = vst [vmem:[#allocation4] sm:$0xff] %v6490
      %6497 = vst [vmem:[#allocation4 + $0x8] sm:$0xff] %v6491
      %6498 = vst [vmem:[#allocation4 + $0x10] sm:$0xff] %v6492
      %6499 = vst [vmem:[#allocation4 + $0x18] sm:$0xff] %v6493
      %6500 = vst [vmem:[#allocation4 + $0x20] sm:$0xff] %v6494
      %6501 = vst.msk [vmem:[#allocation4 + $0x28] sm:$0xff] %vm2717, %v6495
      %v6502 = vld [vmem:[#allocation4] sm:$0xff]
      %v6503 = vld [vmem:[#allocation4 + $0x8] sm:$0xff]
      %v6504 = vld [vmem:[#allocation4 + $0x10] sm:$0xff]
      %v6505 = vld [vmem:[#allocation4 + $0x18] sm:$0xff]
      %v6506 = vld [vmem:[#allocation4 + $0x20] sm:$0xff]
      %v6507 = vld [vmem:[#allocation4 + $0x28] sm:$0xff]
      %6514 = vrot.lane.b32.xlu0 %v6502, 127
      %v6515 = vpop.permute.xlu0 %6514
      %6516 = vrot.lane.b32.xlu0 %v6503, 127
      %v6517 = vpop.permute.xlu0 %6516
      %6518 = vrot.lane.b32.xlu0 %v6504, 127
      %v6519 = vpop.permute.xlu0 %6518
      %6520 = vrot.lane.b32.xlu0 %v6505, 127
      %v6521 = vpop.permute.xlu0 %6520
      %6522 = vrot.lane.b32.xlu0 %v6506, 127
      %v6523 = vpop.permute.xlu0 %6522
      %6524 = vrot.lane.b32.xlu0 %v6507, 127
      %v6525 = vpop.permute.xlu0 %6524
      %v6526 = vsel %vm4467, %v6515, %v6517
      %v6527 = vsel %vm4467, %v6517, %v6519
      %v6528 = vsel %vm4467, %v6519, %v6521
      %v6529 = vsel %vm4467, %v6521, %v6523
      %v6530 = vsel %vm4467, %v6523, %v6525
      %v6537 = vmax.f32 %v6502, %v6526
      %v6538 = vmax.f32 %v6503, %v6527
      %v6539 = vmax.f32 %v6504, %v6528
      %v6540 = vmax.f32 %v6505, %v6529
      %v6541 = vmax.f32 %v6506, %v6530
      %v6542 = vmax.f32 %v6507, %v6525
      %6549 = vrot.lane.b32.xlu0 %v6537, 102
      %v6550 = vpop.permute.xlu0 %6549
      %6551 = vrot.lane.b32.xlu0 %v6538, 102
      %v6552 = vpop.permute.xlu0 %6551
      %6553 = vrot.lane.b32.xlu0 %v6539, 102
      %v6554 = vpop.permute.xlu0 %6553
      %6555 = vrot.lane.b32.xlu0 %v6540, 102
      %v6556 = vpop.permute.xlu0 %6555
      %6557 = vrot.lane.b32.xlu0 %v6541, 102
      %v6558 = vpop.permute.xlu0 %6557
      %6559 = vrot.lane.b32.xlu0 %v6542, 102
      %v6560 = vpop.permute.xlu0 %6559
      %v6561 = vsel %vm4719, %v6550, %v6552
      %v6562 = vsel %vm4719, %v6552, %v6554
      %v6563 = vsel %vm4719, %v6554, %v6556
      %v6564 = vsel %vm4719, %v6556, %v6558
      %v6565 = vsel %vm4719, %v6558, %v6560
      %v6572 = vmax.f32 %v6537, %v6561
      %v6573 = vmax.f32 %v6538, %v6562
      %v6574 = vmax.f32 %v6539, %v6563
      %v6575 = vmax.f32 %v6540, %v6564
      %v6576 = vmax.f32 %v6541, %v6565
      %v6577 = vmax.f32 %v6542, %v6560
      %v6578 = vmax.f32 %v6572, 0.0
      %v6579 = vmax.f32 %v6573, 0.0
      %v6580 = vmax.f32 %v6574, 0.0
      %v6581 = vmax.f32 %v6575, 0.0
      %v6582 = vmax.f32 %v6576, 0.0
      %v6583 = vmax.f32 %v6577, 0.0
      %v6584 = vpack.c.bf16 %v6578, %v6578
      %v6585 = vpack.c.bf16 %v6579, %v6579
      %v6586 = vpack.c.bf16 %v6580, %v6580
      %v6587 = vpack.c.bf16 %v6581, %v6581
      %v6588 = vpack.c.bf16 %v6582, %v6582
      %v6589 = vpack.c.bf16 %v6583, %v6583
      %v6596 = vunpack.c.l.b16 %v6584
      %v6597 = vunpack.c.l.b16 %v6585
      %v6598 = vunpack.c.l.b16 %v6586
      %v6599 = vunpack.c.l.b16 %v6587
      %v6600 = vunpack.c.l.b16 %v6588
      %v6601 = vunpack.c.l.b16 %v6589
      %v6602 = vpack.c.b16 %v6597, %v6596
      %v6603 = vpack.c.b16 %v6599, %v6598
      %v6604 = vpack.c.b16 %v6601, %v6600
      %6608 = vst [vmem:[#allocation5] sm:$0xff] %v6602
      %6609 = vst [vmem:[#allocation5 + $0x8] sm:$0xff] %v6603
      %vm6610 = vcmask 1043456
      %vm6611 = vcmask 293892
      %vm6612 = vmor %vm6611, %vm6610
      %6613 = vst.msk [vmem:[#allocation5 + $0x10] sm:$0xff] %vm6612, %v6604
      %v6614 = vld [vmem:[#allocation5] sm:$0xff]
      %v6615 = vld [vmem:[#allocation5 + $0x8] sm:$0xff]
      %v6616 = vld [vmem:[#allocation5 + $0x10] sm:$0xff]
      %6617 = vst [vmem:[#allocation6] sm:$0xff] %v6614
      %6618 = vst [vmem:[#allocation6 + $0x8] sm:$0xff] %v6615
      %6619 = vst.msk [vmem:[#allocation6 + $0x10] sm:$0xff] %vm6612, %v6616
      %v6620 = vld [vmem:[#allocation5] sm:$0xff]
      %v6621 = vld [vmem:[#allocation5 + $0x8] sm:$0xff]
      %v6622 = vld [vmem:[#allocation5 + $0x10] sm:$0xff]
      %6626 = vrot.lane.b32.xlu0 %v6620, 126
      %v6627 = vpop.permute.xlu0 %6626
      %6628 = vrot.lane.b32.xlu0 %v6621, 126
      %v6629 = vpop.permute.xlu0 %6628
      %6630 = vrot.lane.b32.xlu0 %v6622, 126
      %v6631 = vpop.permute.xlu0 %6630
      %v6632 = vrot.slane %v6627, 4
      %v6633 = vrot.slane %v6629, 4
      %v6634 = vrot.slane %v6631, 4
      %vm6635 = vcmask 1043456
      %v6636 = vsel %vm6635, %v6632, %v6633
      %vm6637 = vcmask 1031168
      %v6638 = vsel %vm6637, %v6627, %v6636
      %v6639 = vsel %vm6635, %v6633, %v6634
      %v6640 = vsel %vm6637, %v6629, %v6639
      %v6641 = vsel %vm6637, %v6631, %v6634
      %6645 = vst [vmem:[#allocation6 + $0x1c] sm:$0xff] %v6638
      %6646 = vst [vmem:[#allocation6 + $0x24] sm:$0xff] %v6640
      %6647 = vst.msk [vmem:[#allocation6 + $0x2c] sm:$0xff] %vm6612, %v6641
      %v6648 = vld [vmem:[#allocation5] sm:$0xff]
      %v6649 = vld [vmem:[#allocation5 + $0x8] sm:$0xff]
      %v6650 = vld [vmem:[#allocation5 + $0x10] sm:$0xff]
      %6654 = vrot.lane.b32.xlu0 %v6648, 124
      %v6655 = vpop.permute.xlu0 %6654
      %6656 = vrot.lane.b32.xlu0 %v6649, 124
      %v6657 = vpop.permute.xlu0 %6656
      %6658 = vrot.lane.b32.xlu0 %v6650, 124
      %v6659 = vpop.permute.xlu0 %6658
      %v6660 = vrot.slane %v6655, 4
      %v6661 = vrot.slane %v6657, 4
      %v6662 = vrot.slane %v6659, 4
      %v6663 = vsel %vm6635, %v6660, %v6661
      %vm6664 = vcmask 1014784
      %v6665 = vsel %vm6664, %v6655, %v6663
      %v6666 = vsel %vm6635, %v6661, %v6662
      %v6667 = vsel %vm6664, %v6657, %v6666
      %v6668 = vsel %vm6664, %v6659, %v6662
      %6672 = vst [vmem:[#allocation6 + $0x38] sm:$0xff] %v6665
      %6673 = vst [vmem:[#allocation6 + $0x40] sm:$0xff] %v6667
      %6674 = vst.msk [vmem:[#allocation6 + $0x48] sm:$0xff] %vm6612, %v6668
      %v6675 = vld [vmem:[#allocation5] sm:$0xff]
      %v6676 = vld [vmem:[#allocation5 + $0x8] sm:$0xff]
      %v6677 = vld [vmem:[#allocation5 + $0x10] sm:$0xff]
      %6681 = vrot.lane.b32.xlu0 %v6675, 122
      %v6682 = vpop.permute.xlu0 %6681
      %6683 = vrot.lane.b32.xlu0 %v6676, 122
      %v6684 = vpop.permute.xlu0 %6683
      %6685 = vrot.lane.b32.xlu0 %v6677, 122
      %v6686 = vpop.permute.xlu0 %6685
      %v6687 = vrot.slane %v6682, 4
      %v6688 = vrot.slane %v6684, 4
      %v6689 = vrot.slane %v6686, 4
      %v6690 = vsel %vm6635, %v6687, %v6688
      %vm6691 = vcmask 998400
      %v6692 = vsel %vm6691, %v6682, %v6690
      %v6693 = vsel %vm6635, %v6688, %v6689
      %v6694 = vsel %vm6691, %v6684, %v6693
      %v6695 = vsel %vm6691, %v6686, %v6689
      %6699 = vst [vmem:[#allocation6 + $0x54] sm:$0xff] %v6692
      %6700 = vst [vmem:[#allocation6 + $0x5c] sm:$0xff] %v6694
      %6701 = vst.msk [vmem:[#allocation6 + $0x64] sm:$0xff] %vm6612, %v6695
      %v6702 = vld [vmem:[#allocation5] sm:$0xff]
      %v6703 = vld [vmem:[#allocation5 + $0x8] sm:$0xff]
      %v6704 = vld [vmem:[#allocation5 + $0x10] sm:$0xff]
      %6708 = vrot.lane.b32.xlu0 %v6702, 120
      %v6709 = vpop.permute.xlu0 %6708
      %6710 = vrot.lane.b32.xlu0 %v6703, 120
      %v6711 = vpop.permute.xlu0 %6710
      %6712 = vrot.lane.b32.xlu0 %v6704, 120
      %v6713 = vpop.permute.xlu0 %6712
      %v6714 = vrot.slane %v6709, 4
      %v6715 = vrot.slane %v6711, 4
      %v6716 = vrot.slane %v6713, 4
      %v6717 = vsel %vm6635, %v6714, %v6715
      %vm6718 = vcmask 982016
      %v6719 = vsel %vm6718, %v6709, %v6717
      %v6720 = vsel %vm6635, %v6715, %v6716
      %v6721 = vsel %vm6718, %v6711, %v6720
      %v6722 = vsel %vm6718, %v6713, %v6716
      %6726 = vst [vmem:[#allocation6 + $0x70] sm:$0xff] %v6719
      %6727 = vst [vmem:[#allocation6 + $0x78] sm:$0xff] %v6721
      %6728 = vst.msk [vmem:[#allocation6 + $0x80] sm:$0xff] %vm6612, %v6722
      %v6729 = vld [vmem:[#allocation5] sm:$0xff]
      %v6730 = vld [vmem:[#allocation5 + $0x8] sm:$0xff]
      %v6731 = vld [vmem:[#allocation5 + $0x10] sm:$0xff]
      %6735 = vrot.lane.b32.xlu0 %v6729, 76
      %v6736 = vpop.permute.xlu0 %6735
      %6737 = vrot.lane.b32.xlu0 %v6730, 76
      %v6738 = vpop.permute.xlu0 %6737
      %6739 = vrot.lane.b32.xlu0 %v6731, 76
      %v6740 = vpop.permute.xlu0 %6739
      %v6741 = vrot.slane %v6736, 4
      %v6742 = vrot.slane %v6738, 4
      %v6743 = vrot.slane %v6740, 4
      %v6744 = vsel %vm6635, %v6741, %v6742
      %vm6745 = vcmask 621568
      %v6746 = vsel %vm6745, %v6736, %v6744
      %v6747 = vsel %vm6635, %v6742, %v6743
      %v6748 = vsel %vm6745, %v6738, %v6747
      %v6749 = vsel %vm6745, %v6740, %v6743
      %6753 = vst [vmem:[#allocation6 + $0x8c] sm:$0xff] %v6746
      %6754 = vst [vmem:[#allocation6 + $0x94] sm:$0xff] %v6748
      %6755 = vst.msk [vmem:[#allocation6 + $0x9c] sm:$0xff] %vm6612, %v6749
      %v6756 = vld [vmem:[#allocation5] sm:$0xff]
      %v6757 = vld [vmem:[#allocation5 + $0x8] sm:$0xff]
      %v6758 = vld [vmem:[#allocation5 + $0x10] sm:$0xff]
      %6762 = vrot.lane.b32.xlu0 %v6756, 74
      %v6763 = vpop.permute.xlu0 %6762
      %6764 = vrot.lane.b32.xlu0 %v6757, 74
      %v6765 = vpop.permute.xlu0 %6764
      %6766 = vrot.lane.b32.xlu0 %v6758, 74
      %v6767 = vpop.permute.xlu0 %6766
      %v6768 = vrot.slane %v6763, 4
      %v6769 = vrot.slane %v6765, 4
      %v6770 = vrot.slane %v6767, 4
      %v6771 = vsel %vm6635, %v6768, %v6769
      %vm6772 = vcmask 605184
      %v6773 = vsel %vm6772, %v6763, %v6771
      %v6774 = vsel %vm6635, %v6769, %v6770
      %v6775 = vsel %vm6772, %v6765, %v6774
      %v6776 = vsel %vm6772, %v6767, %v6770
      %6780 = vst [vmem:[#allocation6 + $0xa8] sm:$0xff] %v6773
      %6781 = vst [vmem:[#allocation6 + $0xb0] sm:$0xff] %v6775
      %6782 = vst.msk [vmem:[#allocation6 + $0xb8] sm:$0xff] %vm6612, %v6776
      %v6783 = vld [vmem:[#allocation5] sm:$0xff]
      %v6784 = vld [vmem:[#allocation5 + $0x8] sm:$0xff]
      %v6785 = vld [vmem:[#allocation5 + $0x10] sm:$0xff]
      %6789 = vrot.lane.b32.xlu0 %v6783, 72
      %v6790 = vpop.permute.xlu0 %6789
      %6791 = vrot.lane.b32.xlu0 %v6784, 72
      %v6792 = vpop.permute.xlu0 %6791
      %6793 = vrot.lane.b32.xlu0 %v6785, 72
      %v6794 = vpop.permute.xlu0 %6793
      %v6795 = vrot.slane %v6790, 4
      %v6796 = vrot.slane %v6792, 4
      %v6797 = vrot.slane %v6794, 4
      %v6798 = vsel %vm6635, %v6795, %v6796
      %vm6799 = vcmask 588800
      %v6800 = vsel %vm6799, %v6790, %v6798
      %v6801 = vsel %vm6635, %v6796, %v6797
      %v6802 = vsel %vm6799, %v6792, %v6801
      %v6803 = vsel %vm6799, %v6794, %v6797
      %6807 = vst [vmem:[#allocation6 + $0xc4] sm:$0xff] %v6800
      %6808 = vst [vmem:[#allocation6 + $0xcc] sm:$0xff] %v6802
      %6809 = vst.msk [vmem:[#allocation6 + $0xd4] sm:$0xff] %vm6612, %v6803
      %v6810 = vld [vmem:[#allocation5] sm:$0xff]
      %v6811 = vld [vmem:[#allocation5 + $0x8] sm:$0xff]
      %v6812 = vld [vmem:[#allocation5 + $0x10] sm:$0xff]
      %6816 = vrot.lane.b32.xlu0 %v6810, 70
      %v6817 = vpop.permute.xlu0 %6816
      %6818 = vrot.lane.b32.xlu0 %v6811, 70
      %v6819 = vpop.permute.xlu0 %6818
      %6820 = vrot.lane.b32.xlu0 %v6812, 70
      %v6821 = vpop.permute.xlu0 %6820
      %v6822 = vrot.slane %v6817, 4
      %v6823 = vrot.slane %v6819, 4
      %v6824 = vrot.slane %v6821, 4
      %v6825 = vsel %vm6635, %v6822, %v6823
      %vm6826 = vcmask 572416
      %v6827 = vsel %vm6826, %v6817, %v6825
      %v6828 = vsel %vm6635, %v6823, %v6824
      %v6829 = vsel %vm6826, %v6819, %v6828
      %v6830 = vsel %vm6826, %v6821, %v6824
      %6834 = vst [vmem:[#allocation6 + $0xe0] sm:$0xff] %v6827
      %6835 = vst [vmem:[#allocation6 + $0xe8] sm:$0xff] %v6829
      %6836 = vst.msk [vmem:[#allocation6 + $0xf0] sm:$0xff] %vm6612, %v6830
      %v6837 = vld [vmem:[#allocation5] sm:$0xff]
      %v6838 = vld [vmem:[#allocation5 + $0x8] sm:$0xff]
      %v6839 = vld [vmem:[#allocation5 + $0x10] sm:$0xff]
      %6843 = vrot.lane.b32.xlu0 %v6837, 68
      %v6844 = vpop.permute.xlu0 %6843
      %6845 = vrot.lane.b32.xlu0 %v6838, 68
      %v6846 = vpop.permute.xlu0 %6845
      %6847 = vrot.lane.b32.xlu0 %v6839, 68
      %v6848 = vpop.permute.xlu0 %6847
      %v6849 = vrot.slane %v6844, 4
      %v6850 = vrot.slane %v6846, 4
      %v6851 = vrot.slane %v6848, 4
      %v6852 = vsel %vm6635, %v6849, %v6850
      %vm6853 = vcmask 556032
      %v6854 = vsel %vm6853, %v6844, %v6852
      %v6855 = vsel %vm6635, %v6850, %v6851
      %v6856 = vsel %vm6853, %v6846, %v6855
      %v6857 = vsel %vm6853, %v6848, %v6851
      %6861 = vst [vmem:[#allocation6 + $0xfc] sm:$0xff] %v6854
      %6862 = vst [vmem:[#allocation6 + $0x104] sm:$0xff] %v6856
      %6863 = vst.msk [vmem:[#allocation6 + $0x10c] sm:$0xff] %vm6612, %v6857
      %v6864 = vld [vmem:[#allocation5] sm:$0xff]
      %v6865 = vld [vmem:[#allocation5 + $0x8] sm:$0xff]
      %v6866 = vld [vmem:[#allocation5 + $0x10] sm:$0xff]
      %v6867 = vld [vmem:[#allocation5 + $0x18] sm:$0xf]
      %6872 = vrot.lane.b32.xlu0 %v6864, 24
      %v6873 = vpop.permute.xlu0 %6872
      %6874 = vrot.lane.b32.xlu0 %v6865, 24
      %v6875 = vpop.permute.xlu0 %6874
      %6876 = vrot.lane.b32.xlu0 %v6866, 24
      %v6877 = vpop.permute.xlu0 %6876
      %6878 = vrot.lane.b32.xlu0 %v6867, 24
      %v6879 = vpop.permute.xlu0 %6878
      %v6880 = vrot.slane %v6873, 4
      %v6881 = vrot.slane %v6875, 4
      %v6882 = vrot.slane %v6877, 4
      %v6883 = vrot.slane %v6879, 4
      %v6884 = vsel %vm6635, %v6880, %v6881
      %vm6885 = vcmask 195584
      %v6886 = vsel %vm6885, %v6873, %v6884
      %v6887 = vsel %vm6635, %v6881, %v6882
      %v6888 = vsel %vm6885, %v6875, %v6887
      %v6889 = vsel %vm6635, %v6882, %v6883
      %v6890 = vsel %vm6885, %v6877, %v6889
      %6894 = vst [vmem:[#allocation6 + $0x118] sm:$0xff] %v6886
      %6895 = vst [vmem:[#allocation6 + $0x120] sm:$0xff] %v6888
      %6896 = vst.msk [vmem:[#allocation6 + $0x128] sm:$0xff] %vm6612, %v6890
      %v6897 = vld [vmem:[#allocation5] sm:$0xff]
      %v6898 = vld [vmem:[#allocation5 + $0x8] sm:$0xff]
      %v6899 = vld [vmem:[#allocation5 + $0x10] sm:$0xff]
      %v6900 = vld [vmem:[#allocation5 + $0x18] sm:$0xf]
      %6905 = vrot.lane.b32.xlu0 %v6897, 22
      %v6906 = vpop.permute.xlu0 %6905
      %6907 = vrot.lane.b32.xlu0 %v6898, 22
      %v6908 = vpop.permute.xlu0 %6907
      %6909 = vrot.lane.b32.xlu0 %v6899, 22
      %v6910 = vpop.permute.xlu0 %6909
      %6911 = vrot.lane.b32.xlu0 %v6900, 22
      %v6912 = vpop.permute.xlu0 %6911
      %v6913 = vrot.slane %v6906, 4
      %v6914 = vrot.slane %v6908, 4
      %v6915 = vrot.slane %v6910, 4
      %v6916 = vrot.slane %v6912, 4
      %v6917 = vsel %vm6635, %v6913, %v6914
      %vm6918 = vcmask 179200
      %v6919 = vsel %vm6918, %v6906, %v6917
      %v6920 = vsel %vm6635, %v6914, %v6915
      %v6921 = vsel %vm6918, %v6908, %v6920
      %v6922 = vsel %vm6635, %v6915, %v6916
      %v6923 = vsel %vm6918, %v6910, %v6922
      %6927 = vst [vmem:[#allocation6 + $0x134] sm:$0xff] %v6919
      %6928 = vst [vmem:[#allocation6 + $0x13c] sm:$0xff] %v6921
      %6929 = vst.msk [vmem:[#allocation6 + $0x144] sm:$0xff] %vm6612, %v6923
      %v6930 = vld [vmem:[#allocation5] sm:$0xff]
      %v6931 = vld [vmem:[#allocation5 + $0x8] sm:$0xff]
      %v6932 = vld [vmem:[#allocation5 + $0x10] sm:$0xff]
      %v6933 = vld [vmem:[#allocation5 + $0x18] sm:$0xf]
      %6938 = vrot.lane.b32.xlu0 %v6930, 20
      %v6939 = vpop.permute.xlu0 %6938
      %6940 = vrot.lane.b32.xlu0 %v6931, 20
      %v6941 = vpop.permute.xlu0 %6940
      %6942 = vrot.lane.b32.xlu0 %v6932, 20
      %v6943 = vpop.permute.xlu0 %6942
      %6944 = vrot.lane.b32.xlu0 %v6933, 20
      %v6945 = vpop.permute.xlu0 %6944
      %v6946 = vrot.slane %v6939, 4
      %v6947 = vrot.slane %v6941, 4
      %v6948 = vrot.slane %v6943, 4
      %v6949 = vrot.slane %v6945, 4
      %v6950 = vsel %vm6635, %v6946, %v6947
      %vm6951 = vcmask 162816
      %v6952 = vsel %vm6951, %v6939, %v6950
      %v6953 = vsel %vm6635, %v6947, %v6948
      %v6954 = vsel %vm6951, %v6941, %v6953
      %v6955 = vsel %vm6635, %v6948, %v6949
      %v6956 = vsel %vm6951, %v6943, %v6955
      %6960 = vst [vmem:[#allocation6 + $0x150] sm:$0xff] %v6952
      %6961 = vst [vmem:[#allocation6 + $0x158] sm:$0xff] %v6954
      %6962 = vst.msk [vmem:[#allocation6 + $0x160] sm:$0xff] %vm6612, %v6956
      %v6963 = vld [vmem:[#allocation5] sm:$0xff]
      %v6964 = vld [vmem:[#allocation5 + $0x8] sm:$0xff]
      %v6965 = vld [vmem:[#allocation5 + $0x10] sm:$0xff]
      %v6966 = vld [vmem:[#allocation5 + $0x18] sm:$0xf]
      %6971 = vrot.lane.b32.xlu0 %v6963, 18
      %v6972 = vpop.permute.xlu0 %6971
      %6973 = vrot.lane.b32.xlu0 %v6964, 18
      %v6974 = vpop.permute.xlu0 %6973
      %6975 = vrot.lane.b32.xlu0 %v6965, 18
      %v6976 = vpop.permute.xlu0 %6975
      %6977 = vrot.lane.b32.xlu0 %v6966, 18
      %v6978 = vpop.permute.xlu0 %6977
      %v6979 = vrot.slane %v6972, 4
      %v6980 = vrot.slane %v6974, 4
      %v6981 = vrot.slane %v6976, 4
      %v6982 = vrot.slane %v6978, 4
      %v6983 = vsel %vm6635, %v6979, %v6980
      %vm6984 = vcmask 146432
      %v6985 = vsel %vm6984, %v6972, %v6983
      %v6986 = vsel %vm6635, %v6980, %v6981
      %v6987 = vsel %vm6984, %v6974, %v6986
      %v6988 = vsel %vm6635, %v6981, %v6982
      %v6989 = vsel %vm6984, %v6976, %v6988
      %6993 = vst [vmem:[#allocation6 + $0x16c] sm:$0xff] %v6985
      %6994 = vst [vmem:[#allocation6 + $0x174] sm:$0xff] %v6987
      %6995 = vst.msk [vmem:[#allocation6 + $0x17c] sm:$0xff] %vm6612, %v6989
      %v6996 = vld [vmem:[#allocation5] sm:$0xff]
      %v6997 = vld [vmem:[#allocation5 + $0x8] sm:$0xff]
      %v6998 = vld [vmem:[#allocation5 + $0x10] sm:$0xff]
      %v6999 = vld [vmem:[#allocation5 + $0x18] sm:$0xf]
      %7004 = vrot.lane.b32.xlu0 %v6996, 16
      %v7005 = vpop.permute.xlu0 %7004
      %7006 = vrot.lane.b32.xlu0 %v6997, 16
      %v7007 = vpop.permute.xlu0 %7006
      %7008 = vrot.lane.b32.xlu0 %v6998, 16
      %v7009 = vpop.permute.xlu0 %7008
      %7010 = vrot.lane.b32.xlu0 %v6999, 16
      %v7011 = vpop.permute.xlu0 %7010
      %v7012 = vrot.slane %v7005, 4
      %v7013 = vrot.slane %v7007, 4
      %v7014 = vrot.slane %v7009, 4
      %v7015 = vrot.slane %v7011, 4
      %v7016 = vsel %vm6635, %v7012, %v7013
      %vm7017 = vcmask 130048
      %v7018 = vsel %vm7017, %v7005, %v7016
      %v7019 = vsel %vm6635, %v7013, %v7014
      %v7020 = vsel %vm7017, %v7007, %v7019
      %v7021 = vsel %vm6635, %v7014, %v7015
      %v7022 = vsel %vm7017, %v7009, %v7021
      %7026 = vst [vmem:[#allocation6 + $0x188] sm:$0xff] %v7018
      %7027 = vst [vmem:[#allocation6 + $0x190] sm:$0xff] %v7020
      %7028 = vst.msk [vmem:[#allocation6 + $0x198] sm:$0xff] %vm6612, %v7022
      %v7029 = vld [vmem:[#allocation5 + $0x4] sm:$0xff]
      %v7030 = vld [vmem:[#allocation5 + $0xc] sm:$0xff]
      %v7031 = vld [vmem:[#allocation5 + $0x14] sm:$0xff]
      %7035 = vrot.lane.b32.xlu0 %v7029, 100
      %v7036 = vpop.permute.xlu0 %7035
      %7037 = vrot.lane.b32.xlu0 %v7030, 100
      %v7038 = vpop.permute.xlu0 %7037
      %7039 = vrot.lane.b32.xlu0 %v7031, 100
      %v7040 = vpop.permute.xlu0 %7039
      %v7041 = vrot.slane %v7036, 4
      %v7042 = vrot.slane %v7038, 4
      %v7043 = vrot.slane %v7040, 4
      %v7044 = vsel %vm6635, %v7041, %v7042
      %vm7045 = vcmask 818176
      %v7046 = vsel %vm7045, %v7036, %v7044
      %v7047 = vsel %vm6635, %v7042, %v7043
      %v7048 = vsel %vm7045, %v7038, %v7047
      %v7049 = vsel %vm7045, %v7040, %v7043
      %7053 = vst [vmem:[#allocation6 + $0x1a4] sm:$0xff] %v7046
      %7054 = vst [vmem:[#allocation6 + $0x1ac] sm:$0xff] %v7048
      %7055 = vst.msk [vmem:[#allocation6 + $0x1b4] sm:$0xff] %vm6612, %v7049
      %v7056 = vld [vmem:[#allocation5 + $0x4] sm:$0xff]
      %v7057 = vld [vmem:[#allocation5 + $0xc] sm:$0xff]
      %v7058 = vld [vmem:[#allocation5 + $0x14] sm:$0xff]
      %7062 = vrot.lane.b32.xlu0 %v7056, 98
      %v7063 = vpop.permute.xlu0 %7062
      %7064 = vrot.lane.b32.xlu0 %v7057, 98
      %v7065 = vpop.permute.xlu0 %7064
      %7066 = vrot.lane.b32.xlu0 %v7058, 98
      %v7067 = vpop.permute.xlu0 %7066
      %v7068 = vrot.slane %v7063, 4
      %v7069 = vrot.slane %v7065, 4
      %v7070 = vrot.slane %v7067, 4
      %v7071 = vsel %vm6635, %v7068, %v7069
      %vm7072 = vcmask 801792
      %v7073 = vsel %vm7072, %v7063, %v7071
      %v7074 = vsel %vm6635, %v7069, %v7070
      %v7075 = vsel %vm7072, %v7065, %v7074
      %v7076 = vsel %vm7072, %v7067, %v7070
      %7080 = vst [vmem:[#allocation6 + $0x1c0] sm:$0xff] %v7073
      %7081 = vst [vmem:[#allocation6 + $0x1c8] sm:$0xff] %v7075
      %7082 = vst.msk [vmem:[#allocation6 + $0x1d0] sm:$0xff] %vm6612, %v7076
      %v7083 = vld [vmem:[#allocation5 + $0x4] sm:$0xff]
      %v7084 = vld [vmem:[#allocation5 + $0xc] sm:$0xff]
      %v7085 = vld [vmem:[#allocation5 + $0x14] sm:$0xff]
      %7089 = vrot.lane.b32.xlu0 %v7083, 96
      %v7090 = vpop.permute.xlu0 %7089
      %7091 = vrot.lane.b32.xlu0 %v7084, 96
      %v7092 = vpop.permute.xlu0 %7091
      %7093 = vrot.lane.b32.xlu0 %v7085, 96
      %v7094 = vpop.permute.xlu0 %7093
      %v7095 = vrot.slane %v7090, 4
      %v7096 = vrot.slane %v7092, 4
      %v7097 = vrot.slane %v7094, 4
      %v7098 = vsel %vm6635, %v7095, %v7096
      %vm7099 = vcmask 785408
      %v7100 = vsel %vm7099, %v7090, %v7098
      %v7101 = vsel %vm6635, %v7096, %v7097
      %v7102 = vsel %vm7099, %v7092, %v7101
      %v7103 = vsel %vm7099, %v7094, %v7097
      %7107 = vst [vmem:[#allocation6 + $0x1dc] sm:$0xff] %v7100
      %7108 = vst [vmem:[#allocation6 + $0x1e4] sm:$0xff] %v7102
      %7109 = vst.msk [vmem:[#allocation6 + $0x1ec] sm:$0xff] %vm6612, %v7103
      %v7110 = vld [vmem:[#allocation5 + $0x4] sm:$0xff]
      %v7111 = vld [vmem:[#allocation5 + $0xc] sm:$0xff]
      %v7112 = vld [vmem:[#allocation5 + $0x14] sm:$0xff]
      %7116 = vrot.lane.b32.xlu0 %v7110, 94
      %v7117 = vpop.permute.xlu0 %7116
      %7118 = vrot.lane.b32.xlu0 %v7111, 94
      %v7119 = vpop.permute.xlu0 %7118
      %7120 = vrot.lane.b32.xlu0 %v7112, 94
      %v7121 = vpop.permute.xlu0 %7120
      %v7122 = vrot.slane %v7117, 4
      %v7123 = vrot.slane %v7119, 4
      %v7124 = vrot.slane %v7121, 4
      %v7125 = vsel %vm6635, %v7122, %v7123
      %vm7126 = vcmask 769024
      %v7127 = vsel %vm7126, %v7117, %v7125
      %v7128 = vsel %vm6635, %v7123, %v7124
      %v7129 = vsel %vm7126, %v7119, %v7128
      %v7130 = vsel %vm7126, %v7121, %v7124
      %7134 = vst [vmem:[#allocation6 + $0x1f8] sm:$0xff] %v7127
      %7135 = vst [vmem:[#allocation6 + $0x200] sm:$0xff] %v7129
      %7136 = vst.msk [vmem:[#allocation6 + $0x208] sm:$0xff] %vm6612, %v7130
      %v7137 = vld [vmem:[#allocation5 + $0x4] sm:$0xff]
      %v7138 = vld [vmem:[#allocation5 + $0xc] sm:$0xff]
      %v7139 = vld [vmem:[#allocation5 + $0x14] sm:$0xff]
      %7143 = vrot.lane.b32.xlu0 %v7137, 92
      %v7144 = vpop.permute.xlu0 %7143
      %7145 = vrot.lane.b32.xlu0 %v7138, 92
      %v7146 = vpop.permute.xlu0 %7145
      %7147 = vrot.lane.b32.xlu0 %v7139, 92
      %v7148 = vpop.permute.xlu0 %7147
      %v7149 = vrot.slane %v7144, 4
      %v7150 = vrot.slane %v7146, 4
      %v7151 = vrot.slane %v7148, 4
      %v7152 = vsel %vm6635, %v7149, %v7150
      %vm7153 = vcmask 752640
      %v7154 = vsel %vm7153, %v7144, %v7152
      %v7155 = vsel %vm6635, %v7150, %v7151
      %v7156 = vsel %vm7153, %v7146, %v7155
      %v7157 = vsel %vm7153, %v7148, %v7151
      %7161 = vst [vmem:[#allocation6 + $0x214] sm:$0xff] %v7154
      %7162 = vst [vmem:[#allocation6 + $0x21c] sm:$0xff] %v7156
      %7163 = vst.msk [vmem:[#allocation6 + $0x224] sm:$0xff] %vm6612, %v7157
      %v7164 = vld [vmem:[#allocation5 + $0x4] sm:$0xff]
      %v7165 = vld [vmem:[#allocation5 + $0xc] sm:$0xff]
      %v7166 = vld [vmem:[#allocation5 + $0x14] sm:$0xff]
      %7170 = vrot.lane.b32.xlu0 %v7164, 48
      %v7171 = vpop.permute.xlu0 %7170
      %7172 = vrot.lane.b32.xlu0 %v7165, 48
      %v7173 = vpop.permute.xlu0 %7172
      %7174 = vrot.lane.b32.xlu0 %v7166, 48
      %v7175 = vpop.permute.xlu0 %7174
      %v7176 = vrot.slane %v7171, 4
      %v7177 = vrot.slane %v7173, 4
      %v7178 = vrot.slane %v7175, 4
      %v7179 = vsel %vm6635, %v7176, %v7177
      %vm7180 = vcmask 392192
      %v7181 = vsel %vm7180, %v7171, %v7179
      %v7182 = vsel %vm6635, %v7177, %v7178
      %v7183 = vsel %vm7180, %v7173, %v7182
      %v7184 = vsel %vm7180, %v7175, %v7178
      %7188 = vst [vmem:[#allocation6 + $0x230] sm:$0xff] %v7181
      %7189 = vst [vmem:[#allocation6 + $0x238] sm:$0xff] %v7183
      %7190 = vst.msk [vmem:[#allocation6 + $0x240] sm:$0xff] %vm6612, %v7184
      %v7191 = vld [vmem:[#allocation5 + $0x4] sm:$0xff]
      %v7192 = vld [vmem:[#allocation5 + $0xc] sm:$0xff]
      %v7193 = vld [vmem:[#allocation5 + $0x14] sm:$0xff]
      %7197 = vrot.lane.b32.xlu0 %v7191, 46
      %v7198 = vpop.permute.xlu0 %7197
      %7199 = vrot.lane.b32.xlu0 %v7192, 46
      %v7200 = vpop.permute.xlu0 %7199
      %7201 = vrot.lane.b32.xlu0 %v7193, 46
      %v7202 = vpop.permute.xlu0 %7201
      %v7203 = vrot.slane %v7198, 4
      %v7204 = vrot.slane %v7200, 4
      %v7205 = vrot.slane %v7202, 4
      %v7206 = vsel %vm6635, %v7203, %v7204
      %vm7207 = vcmask 375808
      %v7208 = vsel %vm7207, %v7198, %v7206
      %v7209 = vsel %vm6635, %v7204, %v7205
      %v7210 = vsel %vm7207, %v7200, %v7209
      %v7211 = vsel %vm7207, %v7202, %v7205
      %7215 = vst [vmem:[#allocation6 + $0x24c] sm:$0xff] %v7208
      %7216 = vst [vmem:[#allocation6 + $0x254] sm:$0xff] %v7210
      %7217 = vst.msk [vmem:[#allocation6 + $0x25c] sm:$0xff] %vm6612, %v7211
      %v7218 = vld [vmem:[#allocation5 + $0x4] sm:$0xff]
      %v7219 = vld [vmem:[#allocation5 + $0xc] sm:$0xff]
      %v7220 = vld [vmem:[#allocation5 + $0x14] sm:$0xff]
      %7224 = vrot.lane.b32.xlu0 %v7218, 44
      %v7225 = vpop.permute.xlu0 %7224
      %7226 = vrot.lane.b32.xlu0 %v7219, 44
      %v7227 = vpop.permute.xlu0 %7226
      %7228 = vrot.lane.b32.xlu0 %v7220, 44
      %v7229 = vpop.permute.xlu0 %7228
      %v7230 = vrot.slane %v7225, 4
      %v7231 = vrot.slane %v7227, 4
      %v7232 = vrot.slane %v7229, 4
      %v7233 = vsel %vm6635, %v7230, %v7231
      %vm7234 = vcmask 359424
      %v7235 = vsel %vm7234, %v7225, %v7233
      %v7236 = vsel %vm6635, %v7231, %v7232
      %v7237 = vsel %vm7234, %v7227, %v7236
      %v7238 = vsel %vm7234, %v7229, %v7232
      %7242 = vst [vmem:[#allocation6 + $0x268] sm:$0xff] %v7235
      %7243 = vst [vmem:[#allocation6 + $0x270] sm:$0xff] %v7237
      %7244 = vst.msk [vmem:[#allocation6 + $0x278] sm:$0xff] %vm6612, %v7238
      %v7245 = vld [vmem:[#allocation5 + $0x4] sm:$0xff]
      %v7246 = vld [vmem:[#allocation5 + $0xc] sm:$0xff]
      %v7247 = vld [vmem:[#allocation5 + $0x14] sm:$0xff]
      %7251 = vrot.lane.b32.xlu0 %v7245, 42
      %v7252 = vpop.permute.xlu0 %7251
      %7253 = vrot.lane.b32.xlu0 %v7246, 42
      %v7254 = vpop.permute.xlu0 %7253
      %7255 = vrot.lane.b32.xlu0 %v7247, 42
      %v7256 = vpop.permute.xlu0 %7255
      %v7257 = vrot.slane %v7252, 4
      %v7258 = vrot.slane %v7254, 4
      %v7259 = vrot.slane %v7256, 4
      %v7260 = vsel %vm6635, %v7257, %v7258
      %vm7261 = vcmask 343040
      %v7262 = vsel %vm7261, %v7252, %v7260
      %v7263 = vsel %vm6635, %v7258, %v7259
      %v7264 = vsel %vm7261, %v7254, %v7263
      %v7265 = vsel %vm7261, %v7256, %v7259
      %7269 = vst [vmem:[#allocation6 + $0x284] sm:$0xff] %v7262
      %7270 = vst [vmem:[#allocation6 + $0x28c] sm:$0xff] %v7264
      %7271 = vst.msk [vmem:[#allocation6 + $0x294] sm:$0xff] %vm6612, %v7265
      %v7272 = vld [vmem:[#allocation5 + $0x4] sm:$0xff]
      %v7273 = vld [vmem:[#allocation5 + $0xc] sm:$0xff]
      %v7274 = vld [vmem:[#allocation5 + $0x14] sm:$0xff]
      %7278 = vrot.lane.b32.xlu0 %v7272, 40
      %v7279 = vpop.permute.xlu0 %7278
      %7280 = vrot.lane.b32.xlu0 %v7273, 40
      %v7281 = vpop.permute.xlu0 %7280
      %7282 = vrot.lane.b32.xlu0 %v7274, 40
      %v7283 = vpop.permute.xlu0 %7282
      %v7284 = vrot.slane %v7279, 4
      %v7285 = vrot.slane %v7281, 4
      %v7286 = vrot.slane %v7283, 4
      %v7287 = vsel %vm6635, %v7284, %v7285
      %vm7288 = vcmask 326656
      %v7289 = vsel %vm7288, %v7279, %v7287
      %v7290 = vsel %vm6635, %v7285, %v7286
      %v7291 = vsel %vm7288, %v7281, %v7290
      %v7292 = vsel %vm7288, %v7283, %v7286
      %7296 = vst [vmem:[#allocation6 + $0x2a0] sm:$0xff] %v7289
      %7297 = vst [vmem:[#allocation6 + $0x2a8] sm:$0xff] %v7291
      %7298 = vst.msk [vmem:[#allocation6 + $0x2b0] sm:$0xff] %vm6612, %v7292
      %v7299 = vld [vmem:[%s5] sm:$0xff]
      %v7300 = vld [vmem:[%s5 + $0x8] sm:$0x11]
      %v7301 = vld [vmem:[#allocation6] sm:$0xff]
      %v7302 = vld [vmem:[#allocation6 + $0x8] sm:$0xff]
      %v7303 = vld [vmem:[#allocation6 + $0x10] sm:$0xff]
      %v7304 = vld [vmem:[#allocation6 + $0x1c] sm:$0xff]
      %v7305 = vld [vmem:[#allocation6 + $0x24] sm:$0xff]
      %v7306 = vld [vmem:[#allocation6 + $0x2c] sm:$0xff]
      %v7307 = vld [vmem:[#allocation6 + $0x38] sm:$0xff]
      %v7308 = vld [vmem:[#allocation6 + $0x40] sm:$0xff]
      %v7309 = vld [vmem:[#allocation6 + $0x48] sm:$0xff]
      %v7310 = vld [vmem:[#allocation6 + $0x54] sm:$0xff]
      %v7311 = vld [vmem:[#allocation6 + $0x5c] sm:$0xff]
      %v7312 = vld [vmem:[#allocation6 + $0x64] sm:$0xff]
      %v7313 = vld [vmem:[#allocation6 + $0x70] sm:$0xff]
      %v7314 = vld [vmem:[#allocation6 + $0x78] sm:$0xff]
      %v7315 = vld [vmem:[#allocation6 + $0x80] sm:$0xff]
      %v7316 = vld [vmem:[#allocation6 + $0x8c] sm:$0xff]
      %v7317 = vld [vmem:[#allocation6 + $0x94] sm:$0xff]
      %v7318 = vld [vmem:[#allocation6 + $0x9c] sm:$0xff]
      %v7319 = vld [vmem:[#allocation6 + $0xa8] sm:$0xff]
      %v7320 = vld [vmem:[#allocation6 + $0xb0] sm:$0xff]
      %v7321 = vld [vmem:[#allocation6 + $0xb8] sm:$0xff]
      %v7322 = vld [vmem:[#allocation6 + $0xc4] sm:$0xff]
      %v7323 = vld [vmem:[#allocation6 + $0xcc] sm:$0xff]
      %v7324 = vld [vmem:[#allocation6 + $0xd4] sm:$0xff]
      %v7325 = vld [vmem:[#allocation6 + $0xe0] sm:$0xff]
      %v7326 = vld [vmem:[#allocation6 + $0xe8] sm:$0xff]
      %v7327 = vld [vmem:[#allocation6 + $0xf0] sm:$0xff]
      %v7328 = vld [vmem:[#allocation6 + $0xfc] sm:$0xff]
      %v7329 = vld [vmem:[#allocation6 + $0x104] sm:$0xff]
      %v7330 = vld [vmem:[#allocation6 + $0x10c] sm:$0xff]
      %v7331 = vld [vmem:[#allocation6 + $0x118] sm:$0xff]
      %v7332 = vld [vmem:[#allocation6 + $0x120] sm:$0xff]
      %v7333 = vld [vmem:[#allocation6 + $0x128] sm:$0xff]
      %v7334 = vld [vmem:[#allocation6 + $0x134] sm:$0xff]
      %v7335 = vld [vmem:[#allocation6 + $0x13c] sm:$0xff]
      %v7336 = vld [vmem:[#allocation6 + $0x144] sm:$0xff]
      %v7337 = vld [vmem:[#allocation6 + $0x150] sm:$0xff]
      %v7338 = vld [vmem:[#allocation6 + $0x158] sm:$0xff]
      %v7339 = vld [vmem:[#allocation6 + $0x160] sm:$0xff]
      %v7340 = vld [vmem:[#allocation6 + $0x16c] sm:$0xff]
      %v7341 = vld [vmem:[#allocation6 + $0x174] sm:$0xff]
      %v7342 = vld [vmem:[#allocation6 + $0x17c] sm:$0xff]
      %v7343 = vld [vmem:[#allocation6 + $0x188] sm:$0xff]
      %v7344 = vld [vmem:[#allocation6 + $0x190] sm:$0xff]
      %v7345 = vld [vmem:[#allocation6 + $0x198] sm:$0xff]
      %v7346 = vld [vmem:[#allocation6 + $0x1a4] sm:$0xff]
      %v7347 = vld [vmem:[#allocation6 + $0x1ac] sm:$0xff]
      %v7348 = vld [vmem:[#allocation6 + $0x1b4] sm:$0xff]
      %v7349 = vld [vmem:[#allocation6 + $0x1c0] sm:$0xff]
      %v7350 = vld [vmem:[#allocation6 + $0x1c8] sm:$0xff]
      %v7351 = vld [vmem:[#allocation6 + $0x1d0] sm:$0xff]
      %v7352 = vld [vmem:[#allocation6 + $0x1dc] sm:$0xff]
      %v7353 = vld [vmem:[#allocation6 + $0x1e4] sm:$0xff]
      %v7354 = vld [vmem:[#allocation6 + $0x1ec] sm:$0xff]
      %v7355 = vld [vmem:[#allocation6 + $0x1f8] sm:$0xff]
      %v7356 = vld [vmem:[#allocation6 + $0x200] sm:$0xff]
      %v7357 = vld [vmem:[#allocation6 + $0x208] sm:$0xff]
      %v7358 = vld [vmem:[#allocation6 + $0x214] sm:$0xff]
      %v7359 = vld [vmem:[#allocation6 + $0x21c] sm:$0xff]
      %v7360 = vld [vmem:[#allocation6 + $0x224] sm:$0xff]
      %v7361 = vld [vmem:[#allocation6 + $0x230] sm:$0xff]
      %v7362 = vld [vmem:[#allocation6 + $0x238] sm:$0xff]
      %v7363 = vld [vmem:[#allocation6 + $0x240] sm:$0xff]
      %v7364 = vld [vmem:[#allocation6 + $0x24c] sm:$0xff]
      %v7365 = vld [vmem:[#allocation6 + $0x254] sm:$0xff]
      %v7366 = vld [vmem:[#allocation6 + $0x25c] sm:$0xff]
      %v7367 = vld [vmem:[#allocation6 + $0x268] sm:$0xff]
      %v7368 = vld [vmem:[#allocation6 + $0x270] sm:$0xff]
      %v7369 = vld [vmem:[#allocation6 + $0x278] sm:$0xff]
      %v7370 = vld [vmem:[#allocation6 + $0x284] sm:$0xff]
      %v7371 = vld [vmem:[#allocation6 + $0x28c] sm:$0xff]
      %v7372 = vld [vmem:[#allocation6 + $0x294] sm:$0xff]
      %v7373 = vld [vmem:[#allocation6 + $0x2a0] sm:$0xff]
      %v7374 = vld [vmem:[#allocation6 + $0x2a8] sm:$0xff]
      %v7375 = vld [vmem:[#allocation6 + $0x2b0] sm:$0xff]
      %v7376 = vld [vmem:[%s6] sm:$0xff]
      %v7377 = vld [vmem:[%s6 + $0x8] sm:$0x3]
      %7379 = vset.pattern.permute.xlu0 0
      %7380 = vperm.xlu0 %7379, %v7376
      %v7381 = vpop.permute.xlu0 %7380
      %7384 = vset.pattern.permute.xlu0 0
      %7385 = vperm.xlu0 %7384, %v7377
      %v7386 = vpop.permute.xlu0 %7385
      %v7390 = vunpack.c.l.b16 %v7299
      %v7391 = vunpack.c.h.b16 %v7299
      %v7392 = vunpack.c.l.b16 %v7300
      %v7393 = vunpack.c.h.b16 %v7300
      %v7394 = vpack.c.b16 %v7392, %v7390
      %v7395 = vpack.c.b16 %v7393, %v7391
      %v7472 = vunpack.c.l.b16 %v7301
      %v7473 = vunpack.c.h.b16 %v7301
      %v7474 = vunpack.c.l.b16 %v7302
      %v7475 = vunpack.c.h.b16 %v7302
      %v7476 = vunpack.c.l.b16 %v7303
      %v7477 = vunpack.c.h.b16 %v7303
      %v7478 = vunpack.c.l.b16 %v7304
      %v7479 = vunpack.c.h.b16 %v7304
      %v7480 = vunpack.c.l.b16 %v7305
      %v7481 = vunpack.c.h.b16 %v7305
      %v7482 = vunpack.c.l.b16 %v7306
      %v7483 = vunpack.c.h.b16 %v7306
      %v7484 = vunpack.c.l.b16 %v7307
      %v7485 = vunpack.c.h.b16 %v7307
      %v7486 = vunpack.c.l.b16 %v7308
      %v7487 = vunpack.c.h.b16 %v7308
      %v7488 = vunpack.c.l.b16 %v7309
      %v7489 = vunpack.c.h.b16 %v7309
      %v7490 = vunpack.c.l.b16 %v7310
      %v7491 = vunpack.c.h.b16 %v7310
      %v7492 = vunpack.c.l.b16 %v7311
      %v7493 = vunpack.c.h.b16 %v7311
      %v7494 = vunpack.c.l.b16 %v7312
      %v7495 = vunpack.c.h.b16 %v7312
      %v7496 = vunpack.c.l.b16 %v7313
      %v7497 = vunpack.c.h.b16 %v7313
      %v7498 = vunpack.c.l.b16 %v7314
      %v7499 = vunpack.c.h.b16 %v7314
      %v7500 = vunpack.c.l.b16 %v7315
      %v7501 = vunpack.c.h.b16 %v7315
      %v7502 = vunpack.c.l.b16 %v7316
      %v7503 = vunpack.c.h.b16 %v7316
      %v7504 = vunpack.c.l.b16 %v7317
      %v7505 = vunpack.c.h.b16 %v7317
      %v7506 = vunpack.c.l.b16 %v7318
      %v7507 = vunpack.c.h.b16 %v7318
      %v7508 = vunpack.c.l.b16 %v7319
      %v7509 = vunpack.c.h.b16 %v7319
      %v7510 = vunpack.c.l.b16 %v7320
      %v7511 = vunpack.c.h.b16 %v7320
      %v7512 = vunpack.c.l.b16 %v7321
      %v7513 = vunpack.c.h.b16 %v7321
      %v7514 = vunpack.c.l.b16 %v7322
      %v7515 = vunpack.c.h.b16 %v7322
      %v7516 = vunpack.c.l.b16 %v7323
      %v7517 = vunpack.c.h.b16 %v7323
      %v7518 = vunpack.c.l.b16 %v7324
      %v7519 = vunpack.c.h.b16 %v7324
      %v7520 = vunpack.c.l.b16 %v7325
      %v7521 = vunpack.c.h.b16 %v7325
      %v7522 = vunpack.c.l.b16 %v7326
      %v7523 = vunpack.c.h.b16 %v7326
      %v7524 = vunpack.c.l.b16 %v7327
      %v7525 = vunpack.c.h.b16 %v7327
      %v7526 = vunpack.c.l.b16 %v7328
      %v7527 = vunpack.c.h.b16 %v7328
      %v7528 = vunpack.c.l.b16 %v7329
      %v7529 = vunpack.c.h.b16 %v7329
      %v7530 = vunpack.c.l.b16 %v7330
      %v7531 = vunpack.c.h.b16 %v7330
      %v7532 = vunpack.c.l.b16 %v7331
      %v7533 = vunpack.c.h.b16 %v7331
      %v7534 = vunpack.c.l.b16 %v7332
      %v7535 = vunpack.c.h.b16 %v7332
      %v7536 = vunpack.c.l.b16 %v7333
      %v7537 = vunpack.c.h.b16 %v7333
      %v7538 = vunpack.c.l.b16 %v7334
      %v7539 = vunpack.c.h.b16 %v7334
      %v7540 = vunpack.c.l.b16 %v7335
      %v7541 = vunpack.c.h.b16 %v7335
      %v7542 = vunpack.c.l.b16 %v7336
      %v7543 = vunpack.c.h.b16 %v7336
      %v7544 = vunpack.c.l.b16 %v7337
      %v7545 = vunpack.c.h.b16 %v7337
      %v7546 = vunpack.c.l.b16 %v7338
      %v7547 = vunpack.c.h.b16 %v7338
      %v7548 = vunpack.c.l.b16 %v7339
      %v7549 = vunpack.c.h.b16 %v7339
      %v7550 = vunpack.c.l.b16 %v7340
      %v7551 = vunpack.c.h.b16 %v7340
      %v7552 = vunpack.c.l.b16 %v7341
      %v7553 = vunpack.c.h.b16 %v7341
      %v7554 = vunpack.c.l.b16 %v7342
      %v7555 = vunpack.c.h.b16 %v7342
      %v7556 = vunpack.c.l.b16 %v7343
      %v7557 = vunpack.c.h.b16 %v7343
      %v7558 = vunpack.c.l.b16 %v7344
      %v7559 = vunpack.c.h.b16 %v7344
      %v7560 = vunpack.c.l.b16 %v7345
      %v7561 = vunpack.c.h.b16 %v7345
      %v7562 = vunpack.c.l.b16 %v7346
      %v7563 = vunpack.c.h.b16 %v7346
      %v7564 = vunpack.c.l.b16 %v7347
      %v7565 = vunpack.c.h.b16 %v7347
      %v7566 = vunpack.c.l.b16 %v7348
      %v7567 = vunpack.c.h.b16 %v7348
      %v7568 = vunpack.c.l.b16 %v7349
      %v7569 = vunpack.c.h.b16 %v7349
      %v7570 = vunpack.c.l.b16 %v7350
      %v7571 = vunpack.c.h.b16 %v7350
      %v7572 = vunpack.c.l.b16 %v7351
      %v7573 = vunpack.c.h.b16 %v7351
      %v7574 = vunpack.c.l.b16 %v7352
      %v7575 = vunpack.c.h.b16 %v7352
      %v7576 = vunpack.c.l.b16 %v7353
      %v7577 = vunpack.c.h.b16 %v7353
      %v7578 = vunpack.c.l.b16 %v7354
      %v7579 = vunpack.c.h.b16 %v7354
      %v7580 = vunpack.c.l.b16 %v7355
      %v7581 = vunpack.c.h.b16 %v7355
      %v7582 = vunpack.c.l.b16 %v7356
      %v7583 = vunpack.c.h.b16 %v7356
      %v7584 = vunpack.c.l.b16 %v7357
      %v7585 = vunpack.c.h.b16 %v7357
      %v7586 = vunpack.c.l.b16 %v7358
      %v7587 = vunpack.c.h.b16 %v7358
      %v7588 = vunpack.c.l.b16 %v7359
      %v7589 = vunpack.c.h.b16 %v7359
      %v7590 = vunpack.c.l.b16 %v7360
      %v7591 = vunpack.c.h.b16 %v7360
      %v7592 = vunpack.c.l.b16 %v7361
      %v7593 = vunpack.c.h.b16 %v7361
      %v7594 = vunpack.c.l.b16 %v7362
      %v7595 = vunpack.c.h.b16 %v7362
      %v7596 = vunpack.c.l.b16 %v7363
      %v7597 = vunpack.c.h.b16 %v7363
      %v7598 = vunpack.c.l.b16 %v7364
      %v7599 = vunpack.c.h.b16 %v7364
      %v7600 = vunpack.c.l.b16 %v7365
      %v7601 = vunpack.c.h.b16 %v7365
      %v7602 = vunpack.c.l.b16 %v7366
      %v7603 = vunpack.c.h.b16 %v7366
      %v7604 = vunpack.c.l.b16 %v7367
      %v7605 = vunpack.c.h.b16 %v7367
      %v7606 = vunpack.c.l.b16 %v7368
      %v7607 = vunpack.c.h.b16 %v7368
      %v7608 = vunpack.c.l.b16 %v7369
      %v7609 = vunpack.c.h.b16 %v7369
      %v7610 = vunpack.c.l.b16 %v7370
      %v7611 = vunpack.c.h.b16 %v7370
      %v7612 = vunpack.c.l.b16 %v7371
      %v7613 = vunpack.c.h.b16 %v7371
      %v7614 = vunpack.c.l.b16 %v7372
      %v7615 = vunpack.c.h.b16 %v7372
      %v7616 = vunpack.c.l.b16 %v7373
      %v7617 = vunpack.c.h.b16 %v7373
      %v7618 = vunpack.c.l.b16 %v7374
      %v7619 = vunpack.c.h.b16 %v7374
      %v7620 = vunpack.c.l.b16 %v7375
      %v7621 = vunpack.c.h.b16 %v7375
      %v7622 = vpack.c.b16 %v7478, %v7472
      %v7623 = vpack.c.b16 %v7479, %v7473
      %v7624 = vpack.c.b16 %v7480, %v7474
      %v7625 = vpack.c.b16 %v7481, %v7475
      %v7626 = vpack.c.b16 %v7482, %v7476
      %v7627 = vpack.c.b16 %v7483, %v7477
      %v7628 = vpack.c.b16 %v7490, %v7484
      %v7629 = vpack.c.b16 %v7491, %v7485
      %v7630 = vpack.c.b16 %v7492, %v7486
      %v7631 = vpack.c.b16 %v7493, %v7487
      %v7632 = vpack.c.b16 %v7494, %v7488
      %v7633 = vpack.c.b16 %v7495, %v7489
      %v7634 = vpack.c.b16 %v7502, %v7496
      %v7635 = vpack.c.b16 %v7503, %v7497
      %v7636 = vpack.c.b16 %v7504, %v7498
      %v7637 = vpack.c.b16 %v7505, %v7499
      %v7638 = vpack.c.b16 %v7506, %v7500
      %v7639 = vpack.c.b16 %v7507, %v7501
      %v7640 = vpack.c.b16 %v7514, %v7508
      %v7641 = vpack.c.b16 %v7515, %v7509
      %v7642 = vpack.c.b16 %v7516, %v7510
      %v7643 = vpack.c.b16 %v7517, %v7511
      %v7644 = vpack.c.b16 %v7518, %v7512
      %v7645 = vpack.c.b16 %v7519, %v7513
      %v7646 = vpack.c.b16 %v7526, %v7520
      %v7647 = vpack.c.b16 %v7527, %v7521
      %v7648 = vpack.c.b16 %v7528, %v7522
      %v7649 = vpack.c.b16 %v7529, %v7523
      %v7650 = vpack.c.b16 %v7530, %v7524
      %v7651 = vpack.c.b16 %v7531, %v7525
      %v7652 = vpack.c.b16 %v7538, %v7532
      %v7653 = vpack.c.b16 %v7539, %v7533
      %v7654 = vpack.c.b16 %v7540, %v7534
      %v7655 = vpack.c.b16 %v7541, %v7535
      %v7656 = vpack.c.b16 %v7542, %v7536
      %v7657 = vpack.c.b16 %v7543, %v7537
      %v7658 = vpack.c.b16 %v7550, %v7544
      %v7659 = vpack.c.b16 %v7551, %v7545
      %v7660 = vpack.c.b16 %v7552, %v7546
      %v7661 = vpack.c.b16 %v7553, %v7547
      %v7662 = vpack.c.b16 %v7554, %v7548
      %v7663 = vpack.c.b16 %v7555, %v7549
      %v7664 = vpack.c.b16 %v7562, %v7556
      %v7665 = vpack.c.b16 %v7563, %v7557
      %v7666 = vpack.c.b16 %v7564, %v7558
      %v7667 = vpack.c.b16 %v7565, %v7559
      %v7668 = vpack.c.b16 %v7566, %v7560
      %v7669 = vpack.c.b16 %v7567, %v7561
      %v7670 = vpack.c.b16 %v7574, %v7568
      %v7671 = vpack.c.b16 %v7575, %v7569
      %v7672 = vpack.c.b16 %v7576, %v7570
      %v7673 = vpack.c.b16 %v7577, %v7571
      %v7674 = vpack.c.b16 %v7578, %v7572
      %v7675 = vpack.c.b16 %v7579, %v7573
      %v7676 = vpack.c.b16 %v7586, %v7580
      %v7677 = vpack.c.b16 %v7587, %v7581
      %v7678 = vpack.c.b16 %v7588, %v7582
      %v7679 = vpack.c.b16 %v7589, %v7583
      %v7680 = vpack.c.b16 %v7590, %v7584
      %v7681 = vpack.c.b16 %v7591, %v7585
      %v7682 = vpack.c.b16 %v7598, %v7592
      %v7683 = vpack.c.b16 %v7599, %v7593
      %v7684 = vpack.c.b16 %v7600, %v7594
      %v7685 = vpack.c.b16 %v7601, %v7595
      %v7686 = vpack.c.b16 %v7602, %v7596
      %v7687 = vpack.c.b16 %v7603, %v7597
      %v7688 = vpack.c.b16 %v7610, %v7604
      %v7689 = vpack.c.b16 %v7611, %v7605
      %v7690 = vpack.c.b16 %v7612, %v7606
      %v7691 = vpack.c.b16 %v7613, %v7607
      %v7692 = vpack.c.b16 %v7614, %v7608
      %v7693 = vpack.c.b16 %v7615, %v7609
      %v7694 = vpack.c.b16 %v7616, %v7616
      %v7695 = vpack.c.b16 %v7617, %v7617
      %v7696 = vpack.c.b16 %v7618, %v7618
      %v7697 = vpack.c.b16 %v7619, %v7619
      %v7698 = vpack.c.b16 %v7620, %v7620
      %v7699 = vpack.c.b16 %v7621, %v7621
      %v7773 = vsel %vm5181, %v7395, 0
      %v7776 = vsel %vm6610, %v7694, 0
      %v7779 = vsel %vm6610, %v7695, 0
      %v7782 = vsel %vm6610, %v7696, 0
      %v7785 = vsel %vm6610, %v7697, 0
      %v7788 = vsel %vm6610, %v7698, 0
      %v7791 = vsel %vm6610, %v7699, 0
      %7793 = vmatprep.subr.bf16.mxu0 %v7623
      %7794 = vmatpush1.bf16.msra.mxu0 %v7622
      %7795 = vmatprep.subr.bf16.mxu0 %v7629
      %7796 = vmatpush1.bf16.msra.mxu0 %v7628
      %7797 = vmatprep.subr.bf16.mxu0 %v7635
      %7798 = vmatpush1.bf16.msra.mxu0 %v7634
      %7799 = vmatprep.subr.bf16.mxu0 %v7641
      %7800 = vmatpush1.bf16.msra.mxu0 %v7640
      %7801 = vmatprep.subr.bf16.mxu0 %v7647
      %7802 = vmatpush1.bf16.msra.mxu0 %v7646
      %7803 = vmatprep.subr.bf16.mxu0 %v7653
      %7804 = vmatpush1.bf16.msra.mxu0 %v7652
      %7805 = vmatprep.subr.bf16.mxu0 %v7659
      %7806 = vmatpush1.bf16.msra.mxu0 %v7658
      %7807 = vmatprep.subr.bf16.mxu0 %v7665
      %7808 = vmatpush1.bf16.msra.mxu0 %v7664
      %7809 = vmatprep.subr.bf16.mxu0 %v7671
      %7810 = vmatpush1.bf16.msra.mxu0 %v7670
      %7811 = vmatprep.subr.bf16.mxu0 %v7677
      %7812 = vmatpush1.bf16.msra.mxu0 %v7676
      %7813 = vmatprep.subr.bf16.mxu0 %v7683
      %7814 = vmatpush1.bf16.msra.mxu0 %v7682
      %7815 = vmatprep.subr.bf16.mxu0 %v7689
      %7816 = vmatpush1.bf16.msra.mxu0 %v7688
      %7817 = vmatprep.subr.bf16.mxu0 %v7779
      %7818 = vmatpush1.bf16.msra.mxu0 %v7776
      %7819 = vmatprep.subr.bf16.mxu0 0
      %7820 = vmatpush1.bf16.msra.mxu0 0
      %7821 = vmatprep.subr.bf16.mxu0 0
      %7822 = vmatpush1.bf16.msra.mxu0 0
      %7823 = vmatprep.subr.bf16.mxu0 0
      %7824 = vmatpush1.bf16.msra.mxu0 0
      %7825 = vmatprep.mubr.bf16.mxu0 %v7773
      %7826 = vmatmul.mubr.bf16.gmra.mrb[0].mxu0 %v7394
      %v7827 = vpop.f32.mrb[0].mxu0
      %v7828 = vadd.f32 %v7381, %v7827
      %v7829 = vpop.f32.mrb[0].mxu0
      %v7830 = vadd.f32 %v7381, %v7829
      %v7831 = vpop.f32.mrb[0].mxu0
      %v7832 = vadd.f32 %v7386, %v7831
      %v7833 = vpop.f32.mrb[0].mxu0
      %v7834 = vadd.f32 %v7386, %v7833
      %7835 = vdwg.mxu0
      %7836 = vmatprep.subr.bf16.mxu0 %v7625
      %7837 = vmatpush1.bf16.msra.mxu0 %v7624
      %7838 = vmatprep.subr.bf16.mxu0 %v7631
      %7839 = vmatpush1.bf16.msra.mxu0 %v7630
      %7840 = vmatprep.subr.bf16.mxu0 %v7637
      %7841 = vmatpush1.bf16.msra.mxu0 %v7636
      %7842 = vmatprep.subr.bf16.mxu0 %v7643
      %7843 = vmatpush1.bf16.msra.mxu0 %v7642
      %7844 = vmatprep.subr.bf16.mxu0 %v7649
      %7845 = vmatpush1.bf16.msra.mxu0 %v7648
      %7846 = vmatprep.subr.bf16.mxu0 %v7655
      %7847 = vmatpush1.bf16.msra.mxu0 %v7654
      %7848 = vmatprep.subr.bf16.mxu0 %v7661
      %7849 = vmatpush1.bf16.msra.mxu0 %v7660
      %7850 = vmatprep.subr.bf16.mxu0 %v7667
      %7851 = vmatpush1.bf16.msra.mxu0 %v7666
      %7852 = vmatprep.subr.bf16.mxu0 %v7673
      %7853 = vmatpush1.bf16.msra.mxu0 %v7672
      %7854 = vmatprep.subr.bf16.mxu0 %v7679
      %7855 = vmatpush1.bf16.msra.mxu0 %v7678
      %7856 = vmatprep.subr.bf16.mxu0 %v7685
      %7857 = vmatpush1.bf16.msra.mxu0 %v7684
      %7858 = vmatprep.subr.bf16.mxu0 %v7691
      %7859 = vmatpush1.bf16.msra.mxu0 %v7690
      %7860 = vmatprep.subr.bf16.mxu0 %v7785
      %7861 = vmatpush1.bf16.msra.mxu0 %v7782
      %7862 = vmatprep.subr.bf16.mxu0 0
      %7863 = vmatpush1.bf16.msra.mxu0 0
      %7864 = vmatprep.subr.bf16.mxu0 0
      %7865 = vmatpush1.bf16.msra.mxu0 0
      %7866 = vmatprep.subr.bf16.mxu0 0
      %7867 = vmatpush1.bf16.msra.mxu0 0
      %7868 = vmatprep.mubr.bf16.mxu0 %v7773
      %7869 = vmatmul.mubr.bf16.gmra.mrb[0].mxu0 %v7394
      %v7870 = vpop.f32.mrb[0].mxu0
      %v7871 = vadd.f32 %v7381, %v7870
      %v7872 = vpop.f32.mrb[0].mxu0
      %v7873 = vadd.f32 %v7381, %v7872
      %v7874 = vpop.f32.mrb[0].mxu0
      %v7875 = vadd.f32 %v7386, %v7874
      %v7876 = vpop.f32.mrb[0].mxu0
      %v7877 = vadd.f32 %v7386, %v7876
      %7878 = vdwg.mxu0
      %7879 = vmatprep.subr.bf16.mxu0 %v7627
      %7880 = vmatpush1.bf16.msra.mxu0 %v7626
      %7881 = vmatprep.subr.bf16.mxu0 %v7633
      %7882 = vmatpush1.bf16.msra.mxu0 %v7632
      %7883 = vmatprep.subr.bf16.mxu0 %v7639
      %7884 = vmatpush1.bf16.msra.mxu0 %v7638
      %7885 = vmatprep.subr.bf16.mxu0 %v7645
      %7886 = vmatpush1.bf16.msra.mxu0 %v7644
      %7887 = vmatprep.subr.bf16.mxu0 %v7651
      %7888 = vmatpush1.bf16.msra.mxu0 %v7650
      %7889 = vmatprep.subr.bf16.mxu0 %v7657
      %7890 = vmatpush1.bf16.msra.mxu0 %v7656
      %7891 = vmatprep.subr.bf16.mxu0 %v7663
      %7892 = vmatpush1.bf16.msra.mxu0 %v7662
      %7893 = vmatprep.subr.bf16.mxu0 %v7669
      %7894 = vmatpush1.bf16.msra.mxu0 %v7668
      %7895 = vmatprep.subr.bf16.mxu0 %v7675
      %7896 = vmatpush1.bf16.msra.mxu0 %v7674
      %7897 = vmatprep.subr.bf16.mxu0 %v7681
      %7898 = vmatpush1.bf16.msra.mxu0 %v7680
      %7899 = vmatprep.subr.bf16.mxu0 %v7687
      %7900 = vmatpush1.bf16.msra.mxu0 %v7686
      %7901 = vmatprep.subr.bf16.mxu0 %v7693
      %7902 = vmatpush1.bf16.msra.mxu0 %v7692
      %7903 = vmatprep.subr.bf16.mxu0 %v7791
      %7904 = vmatpush1.bf16.msra.mxu0 %v7788
      %7905 = vmatprep.subr.bf16.mxu0 0
      %7906 = vmatpush1.bf16.msra.mxu0 0
      %7907 = vmatprep.subr.bf16.mxu0 0
      %7908 = vmatpush1.bf16.msra.mxu0 0
      %7909 = vmatprep.subr.bf16.mxu0 0
      %7910 = vmatpush1.bf16.msra.mxu0 0
      %7911 = vmatprep.mubr.bf16.mxu0 %v7773
      %7912 = vmatmul.mubr.bf16.gmra.mrb[0].mxu0 %v7394
      %v7913 = vpop.f32.mrb[0].mxu0
      %v7914 = vadd.f32 %v7381, %v7913
      %v7915 = vpop.f32.mrb[0].mxu0
      %v7916 = vadd.f32 %v7381, %v7915
      %v7917 = vpop.f32.mrb[0].mxu0
      %v7918 = vadd.f32 %v7386, %v7917
      %v7919 = vpop.f32.mrb[0].mxu0
      %v7920 = vadd.f32 %v7386, %v7919
      %7921 = vdwg.mxu0
      %7934 = vrot.lane.b32.xlu0 %v7828, 126
      %v7935 = vpop.permute.xlu0 %7934
      %7936 = vrot.lane.b32.xlu0 %v7830, 126
      %v7937 = vpop.permute.xlu0 %7936
      %7938 = vrot.lane.b32.xlu0 %v7871, 126
      %v7939 = vpop.permute.xlu0 %7938
      %7940 = vrot.lane.b32.xlu0 %v7873, 126
      %v7941 = vpop.permute.xlu0 %7940
      %7942 = vrot.lane.b32.xlu0 %v7914, 126
      %v7943 = vpop.permute.xlu0 %7942
      %7944 = vrot.lane.b32.xlu0 %v7916, 126
      %v7945 = vpop.permute.xlu0 %7944
      %7946 = vrot.lane.b32.xlu0 %v7832, 126
      %v7947 = vpop.permute.xlu0 %7946
      %7948 = vrot.lane.b32.xlu0 %v7834, 126
      %v7949 = vpop.permute.xlu0 %7948
      %7950 = vrot.lane.b32.xlu0 %v7875, 126
      %v7951 = vpop.permute.xlu0 %7950
      %7952 = vrot.lane.b32.xlu0 %v7877, 126
      %v7953 = vpop.permute.xlu0 %7952
      %7954 = vrot.lane.b32.xlu0 %v7918, 126
      %v7955 = vpop.permute.xlu0 %7954
      %7956 = vrot.lane.b32.xlu0 %v7920, 126
      %v7957 = vpop.permute.xlu0 %7956
      %v7958 = vsel %vm4509, %v7935, %v7937
      %v7959 = vsel %vm4509, %v7937, %v7939
      %v7960 = vsel %vm4509, %v7939, %v7941
      %v7961 = vsel %vm4509, %v7941, %v7943
      %v7962 = vsel %vm4509, %v7943, %v7945
      %v7963 = vsel %vm4509, %v7947, %v7949
      %v7964 = vsel %vm4509, %v7949, %v7951
      %v7965 = vsel %vm4509, %v7951, %v7953
      %v7966 = vsel %vm4509, %v7953, %v7955
      %v7967 = vsel %vm4509, %v7955, %v7957
      %v7980 = vmax.f32 %v7828, %v7958
      %v7981 = vmax.f32 %v7830, %v7959
      %v7982 = vmax.f32 %v7871, %v7960
      %v7983 = vmax.f32 %v7873, %v7961
      %v7984 = vmax.f32 %v7914, %v7962
      %v7985 = vmax.f32 %v7916, %v7945
      %v7986 = vmax.f32 %v7832, %v7963
      %v7987 = vmax.f32 %v7834, %v7964
      %v7988 = vmax.f32 %v7875, %v7965
      %v7989 = vmax.f32 %v7877, %v7966
      %v7990 = vmax.f32 %v7918, %v7967
      %v7991 = vmax.f32 %v7920, %v7957
      %8004 = vrot.lane.b32.xlu0 %v7980, 76
      %v8005 = vpop.permute.xlu0 %8004
      %8006 = vrot.lane.b32.xlu0 %v7981, 76
      %v8007 = vpop.permute.xlu0 %8006
      %8008 = vrot.lane.b32.xlu0 %v7982, 76
      %v8009 = vpop.permute.xlu0 %8008
      %8010 = vrot.lane.b32.xlu0 %v7983, 76
      %v8011 = vpop.permute.xlu0 %8010
      %8012 = vrot.lane.b32.xlu0 %v7984, 76
      %v8013 = vpop.permute.xlu0 %8012
      %8014 = vrot.lane.b32.xlu0 %v7985, 76
      %v8015 = vpop.permute.xlu0 %8014
      %8016 = vrot.lane.b32.xlu0 %v7986, 76
      %v8017 = vpop.permute.xlu0 %8016
      %8018 = vrot.lane.b32.xlu0 %v7987, 76
      %v8019 = vpop.permute.xlu0 %8018
      %8020 = vrot.lane.b32.xlu0 %v7988, 76
      %v8021 = vpop.permute.xlu0 %8020
      %8022 = vrot.lane.b32.xlu0 %v7989, 76
      %v8023 = vpop.permute.xlu0 %8022
      %8024 = vrot.lane.b32.xlu0 %v7990, 76
      %v8025 = vpop.permute.xlu0 %8024
      %8026 = vrot.lane.b32.xlu0 %v7991, 76
      %v8027 = vpop.permute.xlu0 %8026
      %v8028 = vsel %vm5013, %v8005, %v8007
      %v8029 = vsel %vm5013, %v8007, %v8009
      %v8030 = vsel %vm5013, %v8009, %v8011
      %v8031 = vsel %vm5013, %v8011, %v8013
      %v8032 = vsel %vm5013, %v8013, %v8015
      %v8033 = vsel %vm5013, %v8017, %v8019
      %v8034 = vsel %vm5013, %v8019, %v8021
      %v8035 = vsel %vm5013, %v8021, %v8023
      %v8036 = vsel %vm5013, %v8023, %v8025
      %v8037 = vsel %vm5013, %v8025, %v8027
      %v8050 = vmax.f32 %v7980, %v8028
      %v8051 = vmax.f32 %v7981, %v8029
      %v8052 = vmax.f32 %v7982, %v8030
      %v8053 = vmax.f32 %v7983, %v8031
      %v8054 = vmax.f32 %v7984, %v8032
      %v8055 = vmax.f32 %v7985, %v8015
      %v8056 = vmax.f32 %v7986, %v8033
      %v8057 = vmax.f32 %v7987, %v8034
      %v8058 = vmax.f32 %v7988, %v8035
      %v8059 = vmax.f32 %v7989, %v8036
      %v8060 = vmax.f32 %v7990, %v8037
      %v8061 = vmax.f32 %v7991, %v8027
      %v8062 = vmax.f32 %v8050, 0.0
      %v8063 = vmax.f32 %v8051, 0.0
      %v8064 = vmax.f32 %v8052, 0.0
      %v8065 = vmax.f32 %v8053, 0.0
      %v8066 = vmax.f32 %v8054, 0.0
      %v8067 = vmax.f32 %v8055, 0.0
      %v8068 = vmax.f32 %v8056, 0.0
      %v8069 = vmax.f32 %v8057, 0.0
      %v8070 = vmax.f32 %v8058, 0.0
      %v8071 = vmax.f32 %v8059, 0.0
      %v8072 = vmax.f32 %v8060, 0.0
      %v8073 = vmax.f32 %v8061, 0.0
      %v8074 = vpack.c.bf16 %v8068, %v8062
      %v8075 = vpack.c.bf16 %v8069, %v8063
      %v8076 = vpack.c.bf16 %v8070, %v8064
      %v8077 = vpack.c.bf16 %v8071, %v8065
      %v8078 = vpack.c.bf16 %v8072, %v8066
      %v8079 = vpack.c.bf16 %v8073, %v8067
      %v8080 = vld [vmem:[%s7] sm:$0xff]
      %v8081 = vld [vmem:[%s7 + $0x8] sm:$0xff]
      %v8082 = vld [vmem:[%s7 + $0x10] sm:$0xff]
      %v8083 = vld [vmem:[%s7 + $0x18] sm:$0xff]
      %v8084 = vld [vmem:[%s7 + $0x20] sm:$0xff]
      %v8085 = vld [vmem:[%s7 + $0x28] sm:$0xff]
      %v8086 = vld [vmem:[%s7 + $0x30] sm:$0xff]
      %v8087 = vld [vmem:[%s7 + $0x38] sm:$0xff]
      %v8088 = vld [vmem:[%s7 + $0x40] sm:$0xff]
      %v8089 = vld [vmem:[%s7 + $0x48] sm:$0xff]
      %v8090 = vld [vmem:[%s7 + $0x50] sm:$0xff]
      %v8091 = vld [vmem:[%s7 + $0x58] sm:$0xff]
      %v8092 = vld [vmem:[%s7 + $0x60] sm:$0xff]
      %v8093 = vld [vmem:[%s7 + $0x68] sm:$0xff]
      %v8094 = vld [vmem:[%s7 + $0x70] sm:$0xff]
      %v8095 = vld [vmem:[%s7 + $0x78] sm:$0xff]
      %v8096 = vld [vmem:[%s7 + $0x80] sm:$0xff]
      %v8097 = vld [vmem:[%s7 + $0x88] sm:$0xff]
      %v8098 = vld [vmem:[%s7 + $0x90] sm:$0xff]
      %v8099 = vld [vmem:[%s7 + $0x98] sm:$0xff]
      %v8100 = vld [vmem:[%s7 + $0xa0] sm:$0xff]
      %v8101 = vld [vmem:[%s7 + $0xa8] sm:$0xff]
      %v8102 = vld [vmem:[%s7 + $0xb0] sm:$0xff]
      %v8103 = vld [vmem:[%s7 + $0xb8] sm:$0xff]
      %v8104 = vld [vmem:[%s7 + $0xc0] sm:$0xff]
      %v8105 = vld [vmem:[%s7 + $0xc8] sm:$0xff]
      %v8106 = vld [vmem:[%s7 + $0xd0] sm:$0xff]
      %v8107 = vld [vmem:[%s7 + $0xd8] sm:$0xff]
      %v8108 = vld [vmem:[%s7 + $0xe0] sm:$0xff]
      %v8109 = vld [vmem:[%s7 + $0xe8] sm:$0xff]
      %v8110 = vld [vmem:[%s7 + $0xf0] sm:$0xff]
      %v8111 = vld [vmem:[%s7 + $0xf8] sm:$0xff]
      %v8112 = vld [vmem:[%s7 + $0x100] sm:$0xff]
      %v8113 = vld [vmem:[%s7 + $0x108] sm:$0xff]
      %v8114 = vld [vmem:[%s7 + $0x110] sm:$0xff]
      %v8115 = vld [vmem:[%s7 + $0x118] sm:$0xff]
      %v8116 = vld [vmem:[%s7 + $0x120] sm:$0xff]
      %v8117 = vld [vmem:[%s7 + $0x128] sm:$0xff]
      %v8118 = vld [vmem:[%s7 + $0x130] sm:$0xff]
      %v8119 = vld [vmem:[%s7 + $0x138] sm:$0xff]
      %v8120 = vld [vmem:[%s7 + $0x140] sm:$0xff]
      %v8121 = vld [vmem:[%s7 + $0x148] sm:$0xff]
      %v8122 = vld [vmem:[%s7 + $0x150] sm:$0xff]
      %v8123 = vld [vmem:[%s7 + $0x158] sm:$0xff]
      %v8124 = vld [vmem:[%s7 + $0x160] sm:$0xff]
      %v8125 = vld [vmem:[%s7 + $0x168] sm:$0xff]
      %v8126 = vld [vmem:[%s7 + $0x170] sm:$0xff]
      %v8127 = vld [vmem:[%s7 + $0x178] sm:$0xff]
      %v8128 = vld [vmem:[%s7 + $0x180] sm:$0xff]
      %v8129 = vld [vmem:[%s7 + $0x188] sm:$0xff]
      %v8130 = vld [vmem:[%s7 + $0x190] sm:$0xff]
      %v8131 = vld [vmem:[%s7 + $0x198] sm:$0xff]
      %v8132 = vld [vmem:[%s7 + $0x1a0] sm:$0xff]
      %v8133 = vld [vmem:[%s7 + $0x1a8] sm:$0xff]
      %v8134 = vld [vmem:[%s7 + $0x1b0] sm:$0xff]
      %v8135 = vld [vmem:[%s7 + $0x1b8] sm:$0xff]
      %v8136 = vld [vmem:[%s7 + $0x1c0] sm:$0xff]
      %v8137 = vld [vmem:[%s7 + $0x1c8] sm:$0xff]
      %v8138 = vld [vmem:[%s7 + $0x1d0] sm:$0xff]
      %v8139 = vld [vmem:[%s7 + $0x1d8] sm:$0xff]
      %v8140 = vld [vmem:[%s7 + $0x1e0] sm:$0xff]
      %v8141 = vld [vmem:[%s7 + $0x1e8] sm:$0xff]
      %v8142 = vld [vmem:[%s7 + $0x1f0] sm:$0xff]
      %v8143 = vld [vmem:[%s7 + $0x1f8] sm:$0xff]
      %v8144 = vld [vmem:[%s7 + $0x200] sm:$0xff]
      %v8145 = vld [vmem:[%s7 + $0x208] sm:$0xff]
      %v8146 = vld [vmem:[%s7 + $0x210] sm:$0xff]
      %v8147 = vld [vmem:[%s7 + $0x218] sm:$0xff]
      %v8148 = vld [vmem:[%s7 + $0x220] sm:$0xff]
      %v8149 = vld [vmem:[%s7 + $0x228] sm:$0xff]
      %v8150 = vld [vmem:[%s7 + $0x230] sm:$0xff]
      %v8151 = vld [vmem:[%s7 + $0x238] sm:$0xff]
      %v8152 = vld [vmem:[%s7 + $0x240] sm:$0xff]
      %v8153 = vld [vmem:[%s7 + $0x248] sm:$0xff]
      %v8154 = vld [vmem:[%s7 + $0x250] sm:$0xff]
      %v8155 = vld [vmem:[%s7 + $0x258] sm:$0xff]
      %v8156 = vld [vmem:[%s7 + $0x260] sm:$0xff]
      %v8157 = vld [vmem:[%s7 + $0x268] sm:$0xff]
      %v8158 = vld [vmem:[%s7 + $0x270] sm:$0xff]
      %v8159 = vld [vmem:[%s7 + $0x278] sm:$0xff]
      %v8160 = vld [vmem:[%s7 + $0x280] sm:$0xff]
      %v8161 = vld [vmem:[%s7 + $0x288] sm:$0xff]
      %v8162 = vld [vmem:[%s7 + $0x290] sm:$0xff]
      %v8163 = vld [vmem:[%s7 + $0x298] sm:$0xff]
      %v8164 = vld [vmem:[%s7 + $0x2a0] sm:$0xff]
      %v8165 = vld [vmem:[%s7 + $0x2a8] sm:$0xff]
      %v8166 = vld [vmem:[%s7 + $0x2b0] sm:$0xff]
      %v8167 = vld [vmem:[%s7 + $0x2b8] sm:$0xff]
      %v8168 = vld [vmem:[%s7 + $0x2c0] sm:$0xff]
      %v8169 = vld [vmem:[%s7 + $0x2c8] sm:$0xff]
      %v8170 = vld [vmem:[%s7 + $0x2d0] sm:$0xff]
      %v8171 = vld [vmem:[%s7 + $0x2d8] sm:$0xff]
      %v8172 = vld [vmem:[%s7 + $0x2e0] sm:$0xff]
      %v8173 = vld [vmem:[%s7 + $0x2e8] sm:$0xff]
      %v8174 = vld [vmem:[%s7 + $0x2f0] sm:$0xff]
      %v8175 = vld [vmem:[%s7 + $0x2f8] sm:$0xff]
      %v8176 = vld [vmem:[%s7 + $0x300] sm:$0xff]
      %v8177 = vld [vmem:[%s7 + $0x308] sm:$0xff]
      %v8178 = vld [vmem:[%s7 + $0x310] sm:$0xff]
      %v8179 = vld [vmem:[%s7 + $0x318] sm:$0xff]
      %v8180 = vld [vmem:[%s7 + $0x320] sm:$0xff]
      %v8181 = vld [vmem:[%s7 + $0x328] sm:$0xff]
      %v8182 = vld [vmem:[%s7 + $0x330] sm:$0xff]
      %v8183 = vld [vmem:[%s7 + $0x338] sm:$0xff]
      %v8184 = vld [vmem:[%s7 + $0x340] sm:$0xff]
      %v8185 = vld [vmem:[%s7 + $0x348] sm:$0xff]
      %v8186 = vld [vmem:[%s7 + $0x350] sm:$0xff]
      %v8187 = vld [vmem:[%s7 + $0x358] sm:$0xff]
      %v8188 = vld [vmem:[%s7 + $0x360] sm:$0xff]
      %v8189 = vld [vmem:[%s7 + $0x368] sm:$0xff]
      %v8190 = vld [vmem:[%s7 + $0x370] sm:$0xff]
      %v8191 = vld [vmem:[%s7 + $0x378] sm:$0xff]
      %v8192 = vld [vmem:[%s7 + $0x380] sm:$0xff]
      %v8193 = vld [vmem:[%s7 + $0x388] sm:$0xff]
      %v8194 = vld [vmem:[%s7 + $0x390] sm:$0xff]
      %v8195 = vld [vmem:[%s7 + $0x398] sm:$0xff]
      %v8196 = vld [vmem:[%s7 + $0x3a0] sm:$0xff]
      %v8197 = vld [vmem:[%s7 + $0x3a8] sm:$0xff]
      %v8198 = vld [vmem:[%s7 + $0x3b0] sm:$0xff]
      %v8199 = vld [vmem:[%s7 + $0x3b8] sm:$0xff]
      %v8200 = vld [vmem:[%s7 + $0x3c0] sm:$0xff]
      %v8201 = vld [vmem:[%s7 + $0x3c8] sm:$0xff]
      %v8202 = vld [vmem:[%s7 + $0x3d0] sm:$0xff]
      %v8203 = vld [vmem:[%s7 + $0x3d8] sm:$0xff]
      %v8204 = vld [vmem:[%s7 + $0x3e0] sm:$0xff]
      %v8205 = vld [vmem:[%s7 + $0x3e8] sm:$0xff]
      %v8206 = vld [vmem:[%s7 + $0x3f0] sm:$0xff]
      %v8207 = vld [vmem:[%s7 + $0x3f8] sm:$0xff]
      %v8208 = vld [vmem:[%s7 + $0x400] sm:$0xff]
      %v8209 = vld [vmem:[%s7 + $0x408] sm:$0xff]
      %v8210 = vld [vmem:[%s7 + $0x410] sm:$0xff]
      %v8211 = vld [vmem:[%s7 + $0x418] sm:$0xff]
      %v8212 = vld [vmem:[%s7 + $0x420] sm:$0xff]
      %v8213 = vld [vmem:[%s7 + $0x428] sm:$0xff]
      %v8214 = vld [vmem:[%s7 + $0x430] sm:$0xff]
      %v8215 = vld [vmem:[%s7 + $0x438] sm:$0xff]
      %v8216 = vld [vmem:[%s7 + $0x440] sm:$0xff]
      %v8217 = vld [vmem:[%s7 + $0x448] sm:$0xff]
      %v8218 = vld [vmem:[%s7 + $0x450] sm:$0xff]
      %v8219 = vld [vmem:[%s7 + $0x458] sm:$0xff]
      %v8220 = vld [vmem:[%s7 + $0x460] sm:$0xff]
      %v8221 = vld [vmem:[%s7 + $0x468] sm:$0xff]
      %v8222 = vld [vmem:[%s7 + $0x470] sm:$0xff]
      %v8223 = vld [vmem:[%s7 + $0x478] sm:$0xff]
      %v8224 = vld [vmem:[%s7 + $0x480] sm:$0xff]
      %v8225 = vld [vmem:[%s7 + $0x488] sm:$0xff]
      %v8226 = vld [vmem:[%s7 + $0x490] sm:$0xff]
      %v8227 = vld [vmem:[%s7 + $0x498] sm:$0xff]
      %v8228 = vld [vmem:[%s7 + $0x4a0] sm:$0xff]
      %v8229 = vld [vmem:[%s7 + $0x4a8] sm:$0xff]
      %v8230 = vld [vmem:[%s7 + $0x4b0] sm:$0xff]
      %v8231 = vld [vmem:[%s7 + $0x4b8] sm:$0xff]
      %v8232 = vld [vmem:[%s7 + $0x4c0] sm:$0xff]
      %v8233 = vld [vmem:[%s7 + $0x4c8] sm:$0xff]
      %v8234 = vld [vmem:[%s7 + $0x4d0] sm:$0xff]
      %v8235 = vld [vmem:[%s7 + $0x4d8] sm:$0xff]
      %v8236 = vld [vmem:[%s7 + $0x4e0] sm:$0xff]
      %v8237 = vld [vmem:[%s7 + $0x4e8] sm:$0xff]
      %v8238 = vld [vmem:[%s7 + $0x4f0] sm:$0xff]
      %v8239 = vld [vmem:[%s7 + $0x4f8] sm:$0xff]
      %v8240 = vld [vmem:[%s7 + $0x500] sm:$0xff]
      %v8241 = vld [vmem:[%s7 + $0x508] sm:$0xff]
      %v8242 = vld [vmem:[%s7 + $0x510] sm:$0xff]
      %v8243 = vld [vmem:[%s7 + $0x518] sm:$0xff]
      %v8244 = vld [vmem:[%s7 + $0x520] sm:$0xff]
      %v8245 = vld [vmem:[%s7 + $0x528] sm:$0xff]
      %v8246 = vld [vmem:[%s7 + $0x530] sm:$0xff]
      %v8247 = vld [vmem:[%s7 + $0x538] sm:$0xff]
      %v8248 = vld [vmem:[%s7 + $0x540] sm:$0xff]
      %v8249 = vld [vmem:[%s7 + $0x548] sm:$0xff]
      %v8250 = vld [vmem:[%s7 + $0x550] sm:$0xff]
      %v8251 = vld [vmem:[%s7 + $0x558] sm:$0xff]
      %v8252 = vld [vmem:[%s7 + $0x560] sm:$0xff]
      %v8253 = vld [vmem:[%s7 + $0x568] sm:$0xff]
      %v8254 = vld [vmem:[%s7 + $0x570] sm:$0xff]
      %v8255 = vld [vmem:[%s7 + $0x578] sm:$0xff]
      %v8256 = vld [vmem:[%s7 + $0x580] sm:$0xff]
      %v8257 = vld [vmem:[%s7 + $0x588] sm:$0xff]
      %v8258 = vld [vmem:[%s7 + $0x590] sm:$0xff]
      %v8259 = vld [vmem:[%s7 + $0x598] sm:$0xff]
      %v8260 = vld [vmem:[%s7 + $0x5a0] sm:$0xff]
      %v8261 = vld [vmem:[%s7 + $0x5a8] sm:$0xff]
      %v8262 = vld [vmem:[%s7 + $0x5b0] sm:$0xff]
      %v8263 = vld [vmem:[%s7 + $0x5b8] sm:$0xff]
      %v8264 = vld [vmem:[%s7 + $0x5c0] sm:$0xff]
      %v8265 = vld [vmem:[%s7 + $0x5c8] sm:$0xff]
      %v8266 = vld [vmem:[%s7 + $0x5d0] sm:$0xff]
      %v8267 = vld [vmem:[%s7 + $0x5d8] sm:$0xff]
      %v8268 = vld [vmem:[%s7 + $0x5e0] sm:$0xff]
      %v8269 = vld [vmem:[%s7 + $0x5e8] sm:$0xff]
      %v8270 = vld [vmem:[%s7 + $0x5f0] sm:$0xff]
      %v8271 = vld [vmem:[%s7 + $0x5f8] sm:$0xff]
      %v8272 = vld [vmem:[%s7 + $0x600] sm:$0xff]
      %v8273 = vld [vmem:[%s7 + $0x608] sm:$0xff]
      %v8274 = vld [vmem:[%s7 + $0x610] sm:$0xff]
      %v8275 = vld [vmem:[%s7 + $0x618] sm:$0xff]
      %v8276 = vld [vmem:[%s7 + $0x620] sm:$0xff]
      %v8277 = vld [vmem:[%s7 + $0x628] sm:$0xff]
      %v8278 = vld [vmem:[%s7 + $0x630] sm:$0xff]
      %v8279 = vld [vmem:[%s7 + $0x638] sm:$0xff]
      %v8280 = vld [vmem:[%s7 + $0x640] sm:$0xff]
      %v8281 = vld [vmem:[%s7 + $0x648] sm:$0xff]
      %v8282 = vld [vmem:[%s7 + $0x650] sm:$0xff]
      %v8283 = vld [vmem:[%s7 + $0x658] sm:$0xff]
      %v8284 = vld [vmem:[%s7 + $0x660] sm:$0xff]
      %v8285 = vld [vmem:[%s7 + $0x668] sm:$0xff]
      %v8286 = vld [vmem:[%s7 + $0x670] sm:$0xff]
      %v8287 = vld [vmem:[%s7 + $0x678] sm:$0xff]
      %v8288 = vld [vmem:[%s7 + $0x680] sm:$0xff]
      %v8289 = vld [vmem:[%s7 + $0x688] sm:$0xff]
      %v8290 = vld [vmem:[%s7 + $0x690] sm:$0xff]
      %v8291 = vld [vmem:[%s7 + $0x698] sm:$0xff]
      %v8292 = vld [vmem:[%s7 + $0x6a0] sm:$0xff]
      %v8293 = vld [vmem:[%s7 + $0x6a8] sm:$0xff]
      %v8294 = vld [vmem:[%s7 + $0x6b0] sm:$0xff]
      %v8295 = vld [vmem:[%s7 + $0x6b8] sm:$0xff]
      %v8296 = vld [vmem:[%s7 + $0x6c0] sm:$0xff]
      %v8297 = vld [vmem:[%s7 + $0x6c8] sm:$0xff]
      %v8298 = vld [vmem:[%s7 + $0x6d0] sm:$0xff]
      %v8299 = vld [vmem:[%s7 + $0x6d8] sm:$0xff]
      %v8300 = vld [vmem:[%s7 + $0x6e0] sm:$0xff]
      %v8301 = vld [vmem:[%s7 + $0x6e8] sm:$0xff]
      %v8302 = vld [vmem:[%s7 + $0x6f0] sm:$0xff]
      %v8303 = vld [vmem:[%s7 + $0x6f8] sm:$0xff]
      %v8304 = vld [vmem:[%s7 + $0x700] sm:$0xff]
      %v8305 = vld [vmem:[%s7 + $0x708] sm:$0xff]
      %v8306 = vld [vmem:[%s7 + $0x710] sm:$0xff]
      %v8307 = vld [vmem:[%s7 + $0x718] sm:$0xff]
      %v8308 = vld [vmem:[%s7 + $0x720] sm:$0xff]
      %v8309 = vld [vmem:[%s7 + $0x728] sm:$0xff]
      %v8310 = vld [vmem:[%s7 + $0x730] sm:$0xff]
      %v8311 = vld [vmem:[%s7 + $0x738] sm:$0xff]
      %v8312 = vld [vmem:[%s7 + $0x740] sm:$0xff]
      %v8313 = vld [vmem:[%s7 + $0x748] sm:$0xff]
      %v8314 = vld [vmem:[%s7 + $0x750] sm:$0xff]
      %v8315 = vld [vmem:[%s7 + $0x758] sm:$0xff]
      %v8316 = vld [vmem:[%s7 + $0x760] sm:$0xff]
      %v8317 = vld [vmem:[%s7 + $0x768] sm:$0xff]
      %v8318 = vld [vmem:[%s7 + $0x770] sm:$0xff]
      %v8319 = vld [vmem:[%s7 + $0x778] sm:$0xff]
      %v8320 = vld [vmem:[%s7 + $0x780] sm:$0xff]
      %v8321 = vld [vmem:[%s7 + $0x788] sm:$0xff]
      %v8322 = vld [vmem:[%s7 + $0x790] sm:$0xff]
      %v8323 = vld [vmem:[%s7 + $0x798] sm:$0xff]
      %v8324 = vld [vmem:[%s7 + $0x7a0] sm:$0xff]
      %v8325 = vld [vmem:[%s7 + $0x7a8] sm:$0xff]
      %v8326 = vld [vmem:[%s7 + $0x7b0] sm:$0xff]
      %v8327 = vld [vmem:[%s7 + $0x7b8] sm:$0xff]
      %v8328 = vld [vmem:[%s7 + $0x7c0] sm:$0xff]
      %v8329 = vld [vmem:[%s7 + $0x7c8] sm:$0xff]
      %v8330 = vld [vmem:[%s7 + $0x7d0] sm:$0xff]
      %v8331 = vld [vmem:[%s7 + $0x7d8] sm:$0xff]
      %v8332 = vld [vmem:[%s7 + $0x7e0] sm:$0xff]
      %v8333 = vld [vmem:[%s7 + $0x7e8] sm:$0xff]
      %v8334 = vld [vmem:[%s7 + $0x7f0] sm:$0xff]
      %v8335 = vld [vmem:[%s7 + $0x7f8] sm:$0xff]
      %v8336 = vld [vmem:[%s7 + $0x800] sm:$0xff]
      %v8337 = vld [vmem:[%s7 + $0x808] sm:$0xff]
      %v8338 = vld [vmem:[%s7 + $0x810] sm:$0xff]
      %v8339 = vld [vmem:[%s7 + $0x818] sm:$0xff]
      %v8340 = vld [vmem:[%s7 + $0x820] sm:$0xff]
      %v8341 = vld [vmem:[%s7 + $0x828] sm:$0xff]
      %v8342 = vld [vmem:[%s7 + $0x830] sm:$0xff]
      %v8343 = vld [vmem:[%s7 + $0x838] sm:$0xff]
      %v8344 = vld [vmem:[%s7 + $0x840] sm:$0xff]
      %v8345 = vld [vmem:[%s7 + $0x848] sm:$0xff]
      %v8346 = vld [vmem:[%s7 + $0x850] sm:$0xff]
      %v8347 = vld [vmem:[%s7 + $0x858] sm:$0xff]
      %v8348 = vld [vmem:[%s7 + $0x860] sm:$0xff]
      %v8349 = vld [vmem:[%s7 + $0x868] sm:$0xff]
      %v8350 = vld [vmem:[%s7 + $0x870] sm:$0xff]
      %v8351 = vld [vmem:[%s7 + $0x878] sm:$0xff]
      %v8352 = vld [vmem:[%s7 + $0x880] sm:$0xff]
      %v8353 = vld [vmem:[%s7 + $0x888] sm:$0xff]
      %v8354 = vld [vmem:[%s7 + $0x890] sm:$0xff]
      %v8355 = vld [vmem:[%s7 + $0x898] sm:$0xff]
      %v8356 = vld [vmem:[%s7 + $0x8a0] sm:$0xff]
      %v8357 = vld [vmem:[%s7 + $0x8a8] sm:$0xff]
      %v8358 = vld [vmem:[%s7 + $0x8b0] sm:$0xff]
      %v8359 = vld [vmem:[%s7 + $0x8b8] sm:$0xff]
      %v8360 = vld [vmem:[%s7 + $0x8c0] sm:$0xff]
      %v8361 = vld [vmem:[%s7 + $0x8c8] sm:$0xff]
      %v8362 = vld [vmem:[%s7 + $0x8d0] sm:$0xff]
      %v8363 = vld [vmem:[%s7 + $0x8d8] sm:$0xff]
      %v8364 = vld [vmem:[%s7 + $0x8e0] sm:$0xff]
      %v8365 = vld [vmem:[%s7 + $0x8e8] sm:$0xff]
      %v8366 = vld [vmem:[%s7 + $0x8f0] sm:$0xff]
      %v8367 = vld [vmem:[%s7 + $0x8f8] sm:$0xff]
      %v8368 = vld [vmem:[%s7 + $0x900] sm:$0xff]
      %v8369 = vld [vmem:[%s7 + $0x908] sm:$0xff]
      %v8370 = vld [vmem:[%s7 + $0x910] sm:$0xff]
      %v8371 = vld [vmem:[%s7 + $0x918] sm:$0xff]
      %v8372 = vld [vmem:[%s7 + $0x920] sm:$0xff]
      %v8373 = vld [vmem:[%s7 + $0x928] sm:$0xff]
      %v8374 = vld [vmem:[%s7 + $0x930] sm:$0xff]
      %v8375 = vld [vmem:[%s7 + $0x938] sm:$0xff]
      %v8376 = vld [vmem:[%s7 + $0x940] sm:$0xff]
      %v8377 = vld [vmem:[%s7 + $0x948] sm:$0xff]
      %v8378 = vld [vmem:[%s7 + $0x950] sm:$0xff]
      %v8379 = vld [vmem:[%s7 + $0x958] sm:$0xff]
      %v8380 = vld [vmem:[%s7 + $0x960] sm:$0xff]
      %v8381 = vld [vmem:[%s7 + $0x968] sm:$0xff]
      %v8382 = vld [vmem:[%s7 + $0x970] sm:$0xff]
      %v8383 = vld [vmem:[%s7 + $0x978] sm:$0xff]
      %v8384 = vld [vmem:[%s7 + $0x980] sm:$0xff]
      %v8385 = vld [vmem:[%s7 + $0x988] sm:$0xff]
      %v8386 = vld [vmem:[%s7 + $0x990] sm:$0xff]
      %v8387 = vld [vmem:[%s7 + $0x998] sm:$0xff]
      %v8388 = vld [vmem:[%s7 + $0x9a0] sm:$0xff]
      %v8389 = vld [vmem:[%s7 + $0x9a8] sm:$0xff]
      %v8390 = vld [vmem:[%s7 + $0x9b0] sm:$0xff]
      %v8391 = vld [vmem:[%s7 + $0x9b8] sm:$0xff]
      %v8392 = vld [vmem:[%s7 + $0x9c0] sm:$0xff]
      %v8393 = vld [vmem:[%s7 + $0x9c8] sm:$0xff]
      %v8394 = vld [vmem:[%s7 + $0x9d0] sm:$0xff]
      %v8395 = vld [vmem:[%s7 + $0x9d8] sm:$0xff]
      %v8396 = vld [vmem:[%s7 + $0x9e0] sm:$0xff]
      %v8397 = vld [vmem:[%s7 + $0x9e8] sm:$0xff]
      %v8398 = vld [vmem:[%s7 + $0x9f0] sm:$0xff]
      %v8399 = vld [vmem:[%s7 + $0x9f8] sm:$0xff]
      %v8400 = vld [vmem:[%s7 + $0xa00] sm:$0xff]
      %v8401 = vld [vmem:[%s7 + $0xa08] sm:$0xff]
      %v8402 = vld [vmem:[%s7 + $0xa10] sm:$0xff]
      %v8403 = vld [vmem:[%s7 + $0xa18] sm:$0xff]
      %v8404 = vld [vmem:[%s7 + $0xa20] sm:$0xff]
      %v8405 = vld [vmem:[%s7 + $0xa28] sm:$0xff]
      %v8406 = vld [vmem:[%s7 + $0xa30] sm:$0xff]
      %v8407 = vld [vmem:[%s7 + $0xa38] sm:$0xff]
      %v8408 = vld [vmem:[%s7 + $0xa40] sm:$0xff]
      %v8409 = vld [vmem:[%s7 + $0xa48] sm:$0xff]
      %v8410 = vld [vmem:[%s7 + $0xa50] sm:$0xff]
      %v8411 = vld [vmem:[%s7 + $0xa58] sm:$0xff]
      %v8412 = vld [vmem:[%s7 + $0xa60] sm:$0xff]
      %v8413 = vld [vmem:[%s7 + $0xa68] sm:$0xff]
      %v8414 = vld [vmem:[%s7 + $0xa70] sm:$0xff]
      %v8415 = vld [vmem:[%s7 + $0xa78] sm:$0xff]
      %v8416 = vld [vmem:[%s7 + $0xa80] sm:$0xff]
      %v8417 = vld [vmem:[%s7 + $0xa88] sm:$0xff]
      %v8418 = vld [vmem:[%s7 + $0xa90] sm:$0xff]
      %v8419 = vld [vmem:[%s7 + $0xa98] sm:$0xff]
      %v8420 = vld [vmem:[%s7 + $0xaa0] sm:$0xff]
      %v8421 = vld [vmem:[%s7 + $0xaa8] sm:$0xff]
      %v8422 = vld [vmem:[%s7 + $0xab0] sm:$0xff]
      %v8423 = vld [vmem:[%s7 + $0xab8] sm:$0xff]
      %v8424 = vld [vmem:[%s7 + $0xac0] sm:$0xff]
      %v8425 = vld [vmem:[%s7 + $0xac8] sm:$0xff]
      %v8426 = vld [vmem:[%s7 + $0xad0] sm:$0xff]
      %v8427 = vld [vmem:[%s7 + $0xad8] sm:$0xff]
      %v8428 = vld [vmem:[%s7 + $0xae0] sm:$0xff]
      %v8429 = vld [vmem:[%s7 + $0xae8] sm:$0xff]
      %v8430 = vld [vmem:[%s7 + $0xaf0] sm:$0xff]
      %v8431 = vld [vmem:[%s7 + $0xaf8] sm:$0xff]
      %v8432 = vld [vmem:[%s7 + $0xb00] sm:$0xff]
      %v8433 = vld [vmem:[%s7 + $0xb08] sm:$0xff]
      %v8434 = vld [vmem:[%s7 + $0xb10] sm:$0xff]
      %v8435 = vld [vmem:[%s7 + $0xb18] sm:$0xff]
      %v8436 = vld [vmem:[%s7 + $0xb20] sm:$0xff]
      %v8437 = vld [vmem:[%s7 + $0xb28] sm:$0xff]
      %v8438 = vld [vmem:[%s7 + $0xb30] sm:$0xff]
      %v8439 = vld [vmem:[%s7 + $0xb38] sm:$0xff]
      %v8440 = vld [vmem:[%s7 + $0xb40] sm:$0xff]
      %v8441 = vld [vmem:[%s7 + $0xb48] sm:$0xff]
      %v8442 = vld [vmem:[%s7 + $0xb50] sm:$0xff]
      %v8443 = vld [vmem:[%s7 + $0xb58] sm:$0xff]
      %v8444 = vld [vmem:[%s7 + $0xb60] sm:$0xff]
      %v8445 = vld [vmem:[%s7 + $0xb68] sm:$0xff]
      %v8446 = vld [vmem:[%s7 + $0xb70] sm:$0xff]
      %v8447 = vld [vmem:[%s7 + $0xb78] sm:$0xff]
      %v8448 = vld [vmem:[%s7 + $0xb80] sm:$0xff]
      %v8449 = vld [vmem:[%s7 + $0xb88] sm:$0xff]
      %v8450 = vld [vmem:[%s7 + $0xb90] sm:$0xff]
      %v8451 = vld [vmem:[%s7 + $0xb98] sm:$0xff]
      %v8452 = vld [vmem:[%s7 + $0xba0] sm:$0xff]
      %v8453 = vld [vmem:[%s7 + $0xba8] sm:$0xff]
      %v8454 = vld [vmem:[%s7 + $0xbb0] sm:$0xff]
      %v8455 = vld [vmem:[%s7 + $0xbb8] sm:$0xff]
      %v8456 = vld [vmem:[%s7 + $0xbc0] sm:$0xff]
      %v8457 = vld [vmem:[%s7 + $0xbc8] sm:$0xff]
      %v8458 = vld [vmem:[%s7 + $0xbd0] sm:$0xff]
      %v8459 = vld [vmem:[%s7 + $0xbd8] sm:$0xff]
      %v8460 = vld [vmem:[%s7 + $0xbe0] sm:$0xff]
      %v8461 = vld [vmem:[%s7 + $0xbe8] sm:$0xff]
      %v8462 = vld [vmem:[%s7 + $0xbf0] sm:$0xff]
      %v8463 = vld [vmem:[%s7 + $0xbf8] sm:$0xff]
      %v8464 = vld [vmem:[%s7 + $0xc00] sm:$0xff]
      %v8465 = vld [vmem:[%s7 + $0xc08] sm:$0xff]
      %v8466 = vld [vmem:[%s7 + $0xc10] sm:$0xff]
      %v8467 = vld [vmem:[%s7 + $0xc18] sm:$0xff]
      %v8468 = vld [vmem:[%s7 + $0xc20] sm:$0xff]
      %v8469 = vld [vmem:[%s7 + $0xc28] sm:$0xff]
      %v8470 = vld [vmem:[%s7 + $0xc30] sm:$0xff]
      %v8471 = vld [vmem:[%s7 + $0xc38] sm:$0xff]
      %v8472 = vld [vmem:[%s7 + $0xc40] sm:$0xff]
      %v8473 = vld [vmem:[%s7 + $0xc48] sm:$0xff]
      %v8474 = vld [vmem:[%s7 + $0xc50] sm:$0xff]
      %v8475 = vld [vmem:[%s7 + $0xc58] sm:$0xff]
      %v8476 = vld [vmem:[%s7 + $0xc60] sm:$0xff]
      %v8477 = vld [vmem:[%s7 + $0xc68] sm:$0xff]
      %v8478 = vld [vmem:[%s7 + $0xc70] sm:$0xff]
      %v8479 = vld [vmem:[%s7 + $0xc78] sm:$0xff]
      %v8480 = vld [vmem:[%s7 + $0xc80] sm:$0xff]
      %v8481 = vld [vmem:[%s7 + $0xc88] sm:$0xff]
      %v8482 = vld [vmem:[%s7 + $0xc90] sm:$0xff]
      %v8483 = vld [vmem:[%s7 + $0xc98] sm:$0xff]
      %v8484 = vld [vmem:[%s7 + $0xca0] sm:$0xff]
      %v8485 = vld [vmem:[%s7 + $0xca8] sm:$0xff]
      %v8486 = vld [vmem:[%s7 + $0xcb0] sm:$0xff]
      %v8487 = vld [vmem:[%s7 + $0xcb8] sm:$0xff]
      %v8488 = vld [vmem:[%s7 + $0xcc0] sm:$0xff]
      %v8489 = vld [vmem:[%s7 + $0xcc8] sm:$0xff]
      %v8490 = vld [vmem:[%s7 + $0xcd0] sm:$0xff]
      %v8491 = vld [vmem:[%s7 + $0xcd8] sm:$0xff]
      %v8492 = vld [vmem:[%s7 + $0xce0] sm:$0xff]
      %v8493 = vld [vmem:[%s7 + $0xce8] sm:$0xff]
      %v8494 = vld [vmem:[%s7 + $0xcf0] sm:$0xff]
      %v8495 = vld [vmem:[%s7 + $0xcf8] sm:$0xff]
      %v8496 = vld [vmem:[%s7 + $0xd00] sm:$0xff]
      %v8497 = vld [vmem:[%s7 + $0xd08] sm:$0xff]
      %v8498 = vld [vmem:[%s7 + $0xd10] sm:$0xff]
      %v8499 = vld [vmem:[%s7 + $0xd18] sm:$0xff]
      %v8500 = vld [vmem:[%s7 + $0xd20] sm:$0x33]
      %v8501 = vld [vmem:[%s7 + $0xd28] sm:$0x33]
      %v8502 = vld [vmem:[%s7 + $0xd30] sm:$0x33]
      %v8503 = vld [vmem:[%s7 + $0xd38] sm:$0x33]
      %v8504 = vld [vmem:[%s7 + $0xd40] sm:$0x33]
      %v8930 = vunpack.c.l.b16 %v8080
      %v8931 = vunpack.c.h.b16 %v8080
      %v8932 = vunpack.c.l.b16 %v8081
      %v8933 = vunpack.c.h.b16 %v8081
      %v8934 = vunpack.c.l.b16 %v8082
      %v8935 = vunpack.c.h.b16 %v8082
      %v8936 = vunpack.c.l.b16 %v8083
      %v8937 = vunpack.c.h.b16 %v8083
      %v8938 = vunpack.c.l.b16 %v8084
      %v8939 = vunpack.c.h.b16 %v8084
      %v8940 = vunpack.c.l.b16 %v8085
      %v8941 = vunpack.c.h.b16 %v8085
      %v8942 = vunpack.c.l.b16 %v8086
      %v8943 = vunpack.c.h.b16 %v8086
      %v8944 = vunpack.c.l.b16 %v8087
      %v8945 = vunpack.c.h.b16 %v8087
      %v8946 = vunpack.c.l.b16 %v8088
      %v8947 = vunpack.c.h.b16 %v8088
      %v8948 = vunpack.c.l.b16 %v8089
      %v8949 = vunpack.c.h.b16 %v8089
      %v8950 = vunpack.c.l.b16 %v8090
      %v8951 = vunpack.c.h.b16 %v8090
      %v8952 = vunpack.c.l.b16 %v8091
      %v8953 = vunpack.c.h.b16 %v8091
      %v8954 = vunpack.c.l.b16 %v8092
      %v8955 = vunpack.c.h.b16 %v8092
      %v8956 = vunpack.c.l.b16 %v8093
      %v8957 = vunpack.c.h.b16 %v8093
      %v8958 = vunpack.c.l.b16 %v8094
      %v8959 = vunpack.c.h.b16 %v8094
      %v8960 = vunpack.c.l.b16 %v8095
      %v8961 = vunpack.c.h.b16 %v8095
      %v8962 = vunpack.c.l.b16 %v8096
      %v8963 = vunpack.c.h.b16 %v8096
      %v8964 = vunpack.c.l.b16 %v8097
      %v8965 = vunpack.c.h.b16 %v8097
      %v8966 = vunpack.c.l.b16 %v8098
      %v8967 = vunpack.c.h.b16 %v8098
      %v8968 = vunpack.c.l.b16 %v8099
      %v8969 = vunpack.c.h.b16 %v8099
      %v8970 = vunpack.c.l.b16 %v8100
      %v8971 = vunpack.c.h.b16 %v8100
      %v8972 = vunpack.c.l.b16 %v8101
      %v8973 = vunpack.c.h.b16 %v8101
      %v8974 = vunpack.c.l.b16 %v8102
      %v8975 = vunpack.c.h.b16 %v8102
      %v8976 = vunpack.c.l.b16 %v8103
      %v8977 = vunpack.c.h.b16 %v8103
      %v8978 = vunpack.c.l.b16 %v8104
      %v8979 = vunpack.c.h.b16 %v8104
      %v8980 = vunpack.c.l.b16 %v8105
      %v8981 = vunpack.c.h.b16 %v8105
      %v8982 = vunpack.c.l.b16 %v8106
      %v8983 = vunpack.c.h.b16 %v8106
      %v8984 = vunpack.c.l.b16 %v8107
      %v8985 = vunpack.c.h.b16 %v8107
      %v8986 = vunpack.c.l.b16 %v8108
      %v8987 = vunpack.c.h.b16 %v8108
      %v8988 = vunpack.c.l.b16 %v8109
      %v8989 = vunpack.c.h.b16 %v8109
      %v8990 = vunpack.c.l.b16 %v8110
      %v8991 = vunpack.c.h.b16 %v8110
      %v8992 = vunpack.c.l.b16 %v8111
      %v8993 = vunpack.c.h.b16 %v8111
      %v8994 = vunpack.c.l.b16 %v8112
      %v8995 = vunpack.c.h.b16 %v8112
      %v8996 = vunpack.c.l.b16 %v8113
      %v8997 = vunpack.c.h.b16 %v8113
      %v8998 = vunpack.c.l.b16 %v8114
      %v8999 = vunpack.c.h.b16 %v8114
      %v9000 = vunpack.c.l.b16 %v8115
      %v9001 = vunpack.c.h.b16 %v8115
      %v9002 = vunpack.c.l.b16 %v8116
      %v9003 = vunpack.c.h.b16 %v8116
      %v9004 = vunpack.c.l.b16 %v8117
      %v9005 = vunpack.c.h.b16 %v8117
      %v9006 = vunpack.c.l.b16 %v8118
      %v9007 = vunpack.c.h.b16 %v8118
      %v9008 = vunpack.c.l.b16 %v8119
      %v9009 = vunpack.c.h.b16 %v8119
      %v9010 = vunpack.c.l.b16 %v8120
      %v9011 = vunpack.c.h.b16 %v8120
      %v9012 = vunpack.c.l.b16 %v8121
      %v9013 = vunpack.c.h.b16 %v8121
      %v9014 = vunpack.c.l.b16 %v8122
      %v9015 = vunpack.c.h.b16 %v8122
      %v9016 = vunpack.c.l.b16 %v8123
      %v9017 = vunpack.c.h.b16 %v8123
      %v9018 = vunpack.c.l.b16 %v8124
      %v9019 = vunpack.c.h.b16 %v8124
      %v9020 = vunpack.c.l.b16 %v8125
      %v9021 = vunpack.c.h.b16 %v8125
      %v9022 = vunpack.c.l.b16 %v8126
      %v9023 = vunpack.c.h.b16 %v8126
      %v9024 = vunpack.c.l.b16 %v8127
      %v9025 = vunpack.c.h.b16 %v8127
      %v9026 = vunpack.c.l.b16 %v8128
      %v9027 = vunpack.c.h.b16 %v8128
      %v9028 = vunpack.c.l.b16 %v8129
      %v9029 = vunpack.c.h.b16 %v8129
      %v9030 = vunpack.c.l.b16 %v8130
      %v9031 = vunpack.c.h.b16 %v8130
      %v9032 = vunpack.c.l.b16 %v8131
      %v9033 = vunpack.c.h.b16 %v8131
      %v9034 = vunpack.c.l.b16 %v8132
      %v9035 = vunpack.c.h.b16 %v8132
      %v9036 = vunpack.c.l.b16 %v8133
      %v9037 = vunpack.c.h.b16 %v8133
      %v9038 = vunpack.c.l.b16 %v8134
      %v9039 = vunpack.c.h.b16 %v8134
      %v9040 = vunpack.c.l.b16 %v8135
      %v9041 = vunpack.c.h.b16 %v8135
      %v9042 = vunpack.c.l.b16 %v8136
      %v9043 = vunpack.c.h.b16 %v8136
      %v9044 = vunpack.c.l.b16 %v8137
      %v9045 = vunpack.c.h.b16 %v8137
      %v9046 = vunpack.c.l.b16 %v8138
      %v9047 = vunpack.c.h.b16 %v8138
      %v9048 = vunpack.c.l.b16 %v8139
      %v9049 = vunpack.c.h.b16 %v8139
      %v9050 = vunpack.c.l.b16 %v8140
      %v9051 = vunpack.c.h.b16 %v8140
      %v9052 = vunpack.c.l.b16 %v8141
      %v9053 = vunpack.c.h.b16 %v8141
      %v9054 = vunpack.c.l.b16 %v8142
      %v9055 = vunpack.c.h.b16 %v8142
      %v9056 = vunpack.c.l.b16 %v8143
      %v9057 = vunpack.c.h.b16 %v8143
      %v9058 = vunpack.c.l.b16 %v8144
      %v9059 = vunpack.c.h.b16 %v8144
      %v9060 = vunpack.c.l.b16 %v8145
      %v9061 = vunpack.c.h.b16 %v8145
      %v9062 = vunpack.c.l.b16 %v8146
      %v9063 = vunpack.c.h.b16 %v8146
      %v9064 = vunpack.c.l.b16 %v8147
      %v9065 = vunpack.c.h.b16 %v8147
      %v9066 = vunpack.c.l.b16 %v8148
      %v9067 = vunpack.c.h.b16 %v8148
      %v9068 = vunpack.c.l.b16 %v8149
      %v9069 = vunpack.c.h.b16 %v8149
      %v9070 = vunpack.c.l.b16 %v8150
      %v9071 = vunpack.c.h.b16 %v8150
      %v9072 = vunpack.c.l.b16 %v8151
      %v9073 = vunpack.c.h.b16 %v8151
      %v9074 = vunpack.c.l.b16 %v8152
      %v9075 = vunpack.c.h.b16 %v8152
      %v9076 = vunpack.c.l.b16 %v8153
      %v9077 = vunpack.c.h.b16 %v8153
      %v9078 = vunpack.c.l.b16 %v8154
      %v9079 = vunpack.c.h.b16 %v8154
      %v9080 = vunpack.c.l.b16 %v8155
      %v9081 = vunpack.c.h.b16 %v8155
      %v9082 = vunpack.c.l.b16 %v8156
      %v9083 = vunpack.c.h.b16 %v8156
      %v9084 = vunpack.c.l.b16 %v8157
      %v9085 = vunpack.c.h.b16 %v8157
      %v9086 = vunpack.c.l.b16 %v8158
      %v9087 = vunpack.c.h.b16 %v8158
      %v9088 = vunpack.c.l.b16 %v8159
      %v9089 = vunpack.c.h.b16 %v8159
      %v9090 = vunpack.c.l.b16 %v8160
      %v9091 = vunpack.c.h.b16 %v8160
      %v9092 = vunpack.c.l.b16 %v8161
      %v9093 = vunpack.c.h.b16 %v8161
      %v9094 = vunpack.c.l.b16 %v8162
      %v9095 = vunpack.c.h.b16 %v8162
      %v9096 = vunpack.c.l.b16 %v8163
      %v9097 = vunpack.c.h.b16 %v8163
      %v9098 = vunpack.c.l.b16 %v8164
      %v9099 = vunpack.c.h.b16 %v8164
      %v9100 = vunpack.c.l.b16 %v8165
      %v9101 = vunpack.c.h.b16 %v8165
      %v9102 = vunpack.c.l.b16 %v8166
      %v9103 = vunpack.c.h.b16 %v8166
      %v9104 = vunpack.c.l.b16 %v8167
      %v9105 = vunpack.c.h.b16 %v8167
      %v9106 = vunpack.c.l.b16 %v8168
      %v9107 = vunpack.c.h.b16 %v8168
      %v9108 = vunpack.c.l.b16 %v8169
      %v9109 = vunpack.c.h.b16 %v8169
      %v9110 = vunpack.c.l.b16 %v8170
      %v9111 = vunpack.c.h.b16 %v8170
      %v9112 = vunpack.c.l.b16 %v8171
      %v9113 = vunpack.c.h.b16 %v8171
      %v9114 = vunpack.c.l.b16 %v8172
      %v9115 = vunpack.c.h.b16 %v8172
      %v9116 = vunpack.c.l.b16 %v8173
      %v9117 = vunpack.c.h.b16 %v8173
      %v9118 = vunpack.c.l.b16 %v8174
      %v9119 = vunpack.c.h.b16 %v8174
      %v9120 = vunpack.c.l.b16 %v8175
      %v9121 = vunpack.c.h.b16 %v8175
      %v9122 = vunpack.c.l.b16 %v8176
      %v9123 = vunpack.c.h.b16 %v8176
      %v9124 = vunpack.c.l.b16 %v8177
      %v9125 = vunpack.c.h.b16 %v8177
      %v9126 = vunpack.c.l.b16 %v8178
      %v9127 = vunpack.c.h.b16 %v8178
      %v9128 = vunpack.c.l.b16 %v8179
      %v9129 = vunpack.c.h.b16 %v8179
      %v9130 = vunpack.c.l.b16 %v8180
      %v9131 = vunpack.c.h.b16 %v8180
      %v9132 = vunpack.c.l.b16 %v8181
      %v9133 = vunpack.c.h.b16 %v8181
      %v9134 = vunpack.c.l.b16 %v8182
      %v9135 = vunpack.c.h.b16 %v8182
      %v9136 = vunpack.c.l.b16 %v8183
      %v9137 = vunpack.c.h.b16 %v8183
      %v9138 = vunpack.c.l.b16 %v8184
      %v9139 = vunpack.c.h.b16 %v8184
      %v9140 = vunpack.c.l.b16 %v8185
      %v9141 = vunpack.c.h.b16 %v8185
      %v9142 = vunpack.c.l.b16 %v8186
      %v9143 = vunpack.c.h.b16 %v8186
      %v9144 = vunpack.c.l.b16 %v8187
      %v9145 = vunpack.c.h.b16 %v8187
      %v9146 = vunpack.c.l.b16 %v8188
      %v9147 = vunpack.c.h.b16 %v8188
      %v9148 = vunpack.c.l.b16 %v8189
      %v9149 = vunpack.c.h.b16 %v8189
      %v9150 = vunpack.c.l.b16 %v8190
      %v9151 = vunpack.c.h.b16 %v8190
      %v9152 = vunpack.c.l.b16 %v8191
      %v9153 = vunpack.c.h.b16 %v8191
      %v9154 = vunpack.c.l.b16 %v8192
      %v9155 = vunpack.c.h.b16 %v8192
      %v9156 = vunpack.c.l.b16 %v8193
      %v9157 = vunpack.c.h.b16 %v8193
      %v9158 = vunpack.c.l.b16 %v8194
      %v9159 = vunpack.c.h.b16 %v8194
      %v9160 = vunpack.c.l.b16 %v8195
      %v9161 = vunpack.c.h.b16 %v8195
      %v9162 = vunpack.c.l.b16 %v8196
      %v9163 = vunpack.c.h.b16 %v8196
      %v9164 = vunpack.c.l.b16 %v8197
      %v9165 = vunpack.c.h.b16 %v8197
      %v9166 = vunpack.c.l.b16 %v8198
      %v9167 = vunpack.c.h.b16 %v8198
      %v9168 = vunpack.c.l.b16 %v8199
      %v9169 = vunpack.c.h.b16 %v8199
      %v9170 = vunpack.c.l.b16 %v8200
      %v9171 = vunpack.c.h.b16 %v8200
      %v9172 = vunpack.c.l.b16 %v8201
      %v9173 = vunpack.c.h.b16 %v8201
      %v9174 = vunpack.c.l.b16 %v8202
      %v9175 = vunpack.c.h.b16 %v8202
      %v9176 = vunpack.c.l.b16 %v8203
      %v9177 = vunpack.c.h.b16 %v8203
      %v9178 = vunpack.c.l.b16 %v8204
      %v9179 = vunpack.c.h.b16 %v8204
      %v9180 = vunpack.c.l.b16 %v8205
      %v9181 = vunpack.c.h.b16 %v8205
      %v9182 = vunpack.c.l.b16 %v8206
      %v9183 = vunpack.c.h.b16 %v8206
      %v9184 = vunpack.c.l.b16 %v8207
      %v9185 = vunpack.c.h.b16 %v8207
      %v9186 = vunpack.c.l.b16 %v8208
      %v9187 = vunpack.c.h.b16 %v8208
      %v9188 = vunpack.c.l.b16 %v8209
      %v9189 = vunpack.c.h.b16 %v8209
      %v9190 = vunpack.c.l.b16 %v8210
      %v9191 = vunpack.c.h.b16 %v8210
      %v9192 = vunpack.c.l.b16 %v8211
      %v9193 = vunpack.c.h.b16 %v8211
      %v9194 = vunpack.c.l.b16 %v8212
      %v9195 = vunpack.c.h.b16 %v8212
      %v9196 = vunpack.c.l.b16 %v8213
      %v9197 = vunpack.c.h.b16 %v8213
      %v9198 = vunpack.c.l.b16 %v8214
      %v9199 = vunpack.c.h.b16 %v8214
      %v9200 = vunpack.c.l.b16 %v8215
      %v9201 = vunpack.c.h.b16 %v8215
      %v9202 = vunpack.c.l.b16 %v8216
      %v9203 = vunpack.c.h.b16 %v8216
      %v9204 = vunpack.c.l.b16 %v8217
      %v9205 = vunpack.c.h.b16 %v8217
      %v9206 = vunpack.c.l.b16 %v8218
      %v9207 = vunpack.c.h.b16 %v8218
      %v9208 = vunpack.c.l.b16 %v8219
      %v9209 = vunpack.c.h.b16 %v8219
      %v9210 = vunpack.c.l.b16 %v8220
      %v9211 = vunpack.c.h.b16 %v8220
      %v9212 = vunpack.c.l.b16 %v8221
      %v9213 = vunpack.c.h.b16 %v8221
      %v9214 = vunpack.c.l.b16 %v8222
      %v9215 = vunpack.c.h.b16 %v8222
      %v9216 = vunpack.c.l.b16 %v8223
      %v9217 = vunpack.c.h.b16 %v8223
      %v9218 = vunpack.c.l.b16 %v8224
      %v9219 = vunpack.c.h.b16 %v8224
      %v9220 = vunpack.c.l.b16 %v8225
      %v9221 = vunpack.c.h.b16 %v8225
      %v9222 = vunpack.c.l.b16 %v8226
      %v9223 = vunpack.c.h.b16 %v8226
      %v9224 = vunpack.c.l.b16 %v8227
      %v9225 = vunpack.c.h.b16 %v8227
      %v9226 = vunpack.c.l.b16 %v8228
      %v9227 = vunpack.c.h.b16 %v8228
      %v9228 = vunpack.c.l.b16 %v8229
      %v9229 = vunpack.c.h.b16 %v8229
      %v9230 = vunpack.c.l.b16 %v8230
      %v9231 = vunpack.c.h.b16 %v8230
      %v9232 = vunpack.c.l.b16 %v8231
      %v9233 = vunpack.c.h.b16 %v8231
      %v9234 = vunpack.c.l.b16 %v8232
      %v9235 = vunpack.c.h.b16 %v8232
      %v9236 = vunpack.c.l.b16 %v8233
      %v9237 = vunpack.c.h.b16 %v8233
      %v9238 = vunpack.c.l.b16 %v8234
      %v9239 = vunpack.c.h.b16 %v8234
      %v9240 = vunpack.c.l.b16 %v8235
      %v9241 = vunpack.c.h.b16 %v8235
      %v9242 = vunpack.c.l.b16 %v8236
      %v9243 = vunpack.c.h.b16 %v8236
      %v9244 = vunpack.c.l.b16 %v8237
      %v9245 = vunpack.c.h.b16 %v8237
      %v9246 = vunpack.c.l.b16 %v8238
      %v9247 = vunpack.c.h.b16 %v8238
      %v9248 = vunpack.c.l.b16 %v8239
      %v9249 = vunpack.c.h.b16 %v8239
      %v9250 = vunpack.c.l.b16 %v8240
      %v9251 = vunpack.c.h.b16 %v8240
      %v9252 = vunpack.c.l.b16 %v8241
      %v9253 = vunpack.c.h.b16 %v8241
      %v9254 = vunpack.c.l.b16 %v8242
      %v9255 = vunpack.c.h.b16 %v8242
      %v9256 = vunpack.c.l.b16 %v8243
      %v9257 = vunpack.c.h.b16 %v8243
      %v9258 = vunpack.c.l.b16 %v8244
      %v9259 = vunpack.c.h.b16 %v8244
      %v9260 = vunpack.c.l.b16 %v8245
      %v9261 = vunpack.c.h.b16 %v8245
      %v9262 = vunpack.c.l.b16 %v8246
      %v9263 = vunpack.c.h.b16 %v8246
      %v9264 = vunpack.c.l.b16 %v8247
      %v9265 = vunpack.c.h.b16 %v8247
      %v9266 = vunpack.c.l.b16 %v8248
      %v9267 = vunpack.c.h.b16 %v8248
      %v9268 = vunpack.c.l.b16 %v8249
      %v9269 = vunpack.c.h.b16 %v8249
      %v9270 = vunpack.c.l.b16 %v8250
      %v9271 = vunpack.c.h.b16 %v8250
      %v9272 = vunpack.c.l.b16 %v8251
      %v9273 = vunpack.c.h.b16 %v8251
      %v9274 = vunpack.c.l.b16 %v8252
      %v9275 = vunpack.c.h.b16 %v8252
      %v9276 = vunpack.c.l.b16 %v8253
      %v9277 = vunpack.c.h.b16 %v8253
      %v9278 = vunpack.c.l.b16 %v8254
      %v9279 = vunpack.c.h.b16 %v8254
      %v9280 = vunpack.c.l.b16 %v8255
      %v9281 = vunpack.c.h.b16 %v8255
      %v9282 = vunpack.c.l.b16 %v8256
      %v9283 = vunpack.c.h.b16 %v8256
      %v9284 = vunpack.c.l.b16 %v8257
      %v9285 = vunpack.c.h.b16 %v8257
      %v9286 = vunpack.c.l.b16 %v8258
      %v9287 = vunpack.c.h.b16 %v8258
      %v9288 = vunpack.c.l.b16 %v8259
      %v9289 = vunpack.c.h.b16 %v8259
      %v9290 = vunpack.c.l.b16 %v8260
      %v9291 = vunpack.c.h.b16 %v8260
      %v9292 = vunpack.c.l.b16 %v8261
      %v9293 = vunpack.c.h.b16 %v8261
      %v9294 = vunpack.c.l.b16 %v8262
      %v9295 = vunpack.c.h.b16 %v8262
      %v9296 = vunpack.c.l.b16 %v8263
      %v9297 = vunpack.c.h.b16 %v8263
      %v9298 = vunpack.c.l.b16 %v8264
      %v9299 = vunpack.c.h.b16 %v8264
      %v9300 = vunpack.c.l.b16 %v8265
      %v9301 = vunpack.c.h.b16 %v8265
      %v9302 = vunpack.c.l.b16 %v8266
      %v9303 = vunpack.c.h.b16 %v8266
      %v9304 = vunpack.c.l.b16 %v8267
      %v9305 = vunpack.c.h.b16 %v8267
      %v9306 = vunpack.c.l.b16 %v8268
      %v9307 = vunpack.c.h.b16 %v8268
      %v9308 = vunpack.c.l.b16 %v8269
      %v9309 = vunpack.c.h.b16 %v8269
      %v9310 = vunpack.c.l.b16 %v8270
      %v9311 = vunpack.c.h.b16 %v8270
      %v9312 = vunpack.c.l.b16 %v8271
      %v9313 = vunpack.c.h.b16 %v8271
      %v9314 = vunpack.c.l.b16 %v8272
      %v9315 = vunpack.c.h.b16 %v8272
      %v9316 = vunpack.c.l.b16 %v8273
      %v9317 = vunpack.c.h.b16 %v8273
      %v9318 = vunpack.c.l.b16 %v8274
      %v9319 = vunpack.c.h.b16 %v8274
      %v9320 = vunpack.c.l.b16 %v8275
      %v9321 = vunpack.c.h.b16 %v8275
      %v9322 = vunpack.c.l.b16 %v8276
      %v9323 = vunpack.c.h.b16 %v8276
      %v9324 = vunpack.c.l.b16 %v8277
      %v9325 = vunpack.c.h.b16 %v8277
      %v9326 = vunpack.c.l.b16 %v8278
      %v9327 = vunpack.c.h.b16 %v8278
      %v9328 = vunpack.c.l.b16 %v8279
      %v9329 = vunpack.c.h.b16 %v8279
      %v9330 = vunpack.c.l.b16 %v8280
      %v9331 = vunpack.c.h.b16 %v8280
      %v9332 = vunpack.c.l.b16 %v8281
      %v9333 = vunpack.c.h.b16 %v8281
      %v9334 = vunpack.c.l.b16 %v8282
      %v9335 = vunpack.c.h.b16 %v8282
      %v9336 = vunpack.c.l.b16 %v8283
      %v9337 = vunpack.c.h.b16 %v8283
      %v9338 = vunpack.c.l.b16 %v8284
      %v9339 = vunpack.c.h.b16 %v8284
      %v9340 = vunpack.c.l.b16 %v8285
      %v9341 = vunpack.c.h.b16 %v8285
      %v9342 = vunpack.c.l.b16 %v8286
      %v9343 = vunpack.c.h.b16 %v8286
      %v9344 = vunpack.c.l.b16 %v8287
      %v9345 = vunpack.c.h.b16 %v8287
      %v9346 = vunpack.c.l.b16 %v8288
      %v9347 = vunpack.c.h.b16 %v8288
      %v9348 = vunpack.c.l.b16 %v8289
      %v9349 = vunpack.c.h.b16 %v8289
      %v9350 = vunpack.c.l.b16 %v8290
      %v9351 = vunpack.c.h.b16 %v8290
      %v9352 = vunpack.c.l.b16 %v8291
      %v9353 = vunpack.c.h.b16 %v8291
      %v9354 = vunpack.c.l.b16 %v8292
      %v9355 = vunpack.c.h.b16 %v8292
      %v9356 = vunpack.c.l.b16 %v8293
      %v9357 = vunpack.c.h.b16 %v8293
      %v9358 = vunpack.c.l.b16 %v8294
      %v9359 = vunpack.c.h.b16 %v8294
      %v9360 = vunpack.c.l.b16 %v8295
      %v9361 = vunpack.c.h.b16 %v8295
      %v9362 = vunpack.c.l.b16 %v8296
      %v9363 = vunpack.c.h.b16 %v8296
      %v9364 = vunpack.c.l.b16 %v8297
      %v9365 = vunpack.c.h.b16 %v8297
      %v9366 = vunpack.c.l.b16 %v8298
      %v9367 = vunpack.c.h.b16 %v8298
      %v9368 = vunpack.c.l.b16 %v8299
      %v9369 = vunpack.c.h.b16 %v8299
      %v9370 = vunpack.c.l.b16 %v8300
      %v9371 = vunpack.c.h.b16 %v8300
      %v9372 = vunpack.c.l.b16 %v8301
      %v9373 = vunpack.c.h.b16 %v8301
      %v9374 = vunpack.c.l.b16 %v8302
      %v9375 = vunpack.c.h.b16 %v8302
      %v9376 = vunpack.c.l.b16 %v8303
      %v9377 = vunpack.c.h.b16 %v8303
      %v9378 = vunpack.c.l.b16 %v8304
      %v9379 = vunpack.c.h.b16 %v8304
      %v9380 = vunpack.c.l.b16 %v8305
      %v9381 = vunpack.c.h.b16 %v8305
      %v9382 = vunpack.c.l.b16 %v8306
      %v9383 = vunpack.c.h.b16 %v8306
      %v9384 = vunpack.c.l.b16 %v8307
      %v9385 = vunpack.c.h.b16 %v8307
      %v9386 = vunpack.c.l.b16 %v8308
      %v9387 = vunpack.c.h.b16 %v8308
      %v9388 = vunpack.c.l.b16 %v8309
      %v9389 = vunpack.c.h.b16 %v8309
      %v9390 = vunpack.c.l.b16 %v8310
      %v9391 = vunpack.c.h.b16 %v8310
      %v9392 = vunpack.c.l.b16 %v8311
      %v9393 = vunpack.c.h.b16 %v8311
      %v9394 = vunpack.c.l.b16 %v8312
      %v9395 = vunpack.c.h.b16 %v8312
      %v9396 = vunpack.c.l.b16 %v8313
      %v9397 = vunpack.c.h.b16 %v8313
      %v9398 = vunpack.c.l.b16 %v8314
      %v9399 = vunpack.c.h.b16 %v8314
      %v9400 = vunpack.c.l.b16 %v8315
      %v9401 = vunpack.c.h.b16 %v8315
      %v9402 = vunpack.c.l.b16 %v8316
      %v9403 = vunpack.c.h.b16 %v8316
      %v9404 = vunpack.c.l.b16 %v8317
      %v9405 = vunpack.c.h.b16 %v8317
      %v9406 = vunpack.c.l.b16 %v8318
      %v9407 = vunpack.c.h.b16 %v8318
      %v9408 = vunpack.c.l.b16 %v8319
      %v9409 = vunpack.c.h.b16 %v8319
      %v9410 = vunpack.c.l.b16 %v8320
      %v9411 = vunpack.c.h.b16 %v8320
      %v9412 = vunpack.c.l.b16 %v8321
      %v9413 = vunpack.c.h.b16 %v8321
      %v9414 = vunpack.c.l.b16 %v8322
      %v9415 = vunpack.c.h.b16 %v8322
      %v9416 = vunpack.c.l.b16 %v8323
      %v9417 = vunpack.c.h.b16 %v8323
      %v9418 = vunpack.c.l.b16 %v8324
      %v9419 = vunpack.c.h.b16 %v8324
      %v9420 = vunpack.c.l.b16 %v8325
      %v9421 = vunpack.c.h.b16 %v8325
      %v9422 = vunpack.c.l.b16 %v8326
      %v9423 = vunpack.c.h.b16 %v8326
      %v9424 = vunpack.c.l.b16 %v8327
      %v9425 = vunpack.c.h.b16 %v8327
      %v9426 = vunpack.c.l.b16 %v8328
      %v9427 = vunpack.c.h.b16 %v8328
      %v9428 = vunpack.c.l.b16 %v8329
      %v9429 = vunpack.c.h.b16 %v8329
      %v9430 = vunpack.c.l.b16 %v8330
      %v9431 = vunpack.c.h.b16 %v8330
      %v9432 = vunpack.c.l.b16 %v8331
      %v9433 = vunpack.c.h.b16 %v8331
      %v9434 = vunpack.c.l.b16 %v8332
      %v9435 = vunpack.c.h.b16 %v8332
      %v9436 = vunpack.c.l.b16 %v8333
      %v9437 = vunpack.c.h.b16 %v8333
      %v9438 = vunpack.c.l.b16 %v8334
      %v9439 = vunpack.c.h.b16 %v8334
      %v9440 = vunpack.c.l.b16 %v8335
      %v9441 = vunpack.c.h.b16 %v8335
      %v9442 = vunpack.c.l.b16 %v8336
      %v9443 = vunpack.c.h.b16 %v8336
      %v9444 = vunpack.c.l.b16 %v8337
      %v9445 = vunpack.c.h.b16 %v8337
      %v9446 = vunpack.c.l.b16 %v8338
      %v9447 = vunpack.c.h.b16 %v8338
      %v9448 = vunpack.c.l.b16 %v8339
      %v9449 = vunpack.c.h.b16 %v8339
      %v9450 = vunpack.c.l.b16 %v8340
      %v9451 = vunpack.c.h.b16 %v8340
      %v9452 = vunpack.c.l.b16 %v8341
      %v9453 = vunpack.c.h.b16 %v8341
      %v9454 = vunpack.c.l.b16 %v8342
      %v9455 = vunpack.c.h.b16 %v8342
      %v9456 = vunpack.c.l.b16 %v8343
      %v9457 = vunpack.c.h.b16 %v8343
      %v9458 = vunpack.c.l.b16 %v8344
      %v9459 = vunpack.c.h.b16 %v8344
      %v9460 = vunpack.c.l.b16 %v8345
      %v9461 = vunpack.c.h.b16 %v8345
      %v9462 = vunpack.c.l.b16 %v8346
      %v9463 = vunpack.c.h.b16 %v8346
      %v9464 = vunpack.c.l.b16 %v8347
      %v9465 = vunpack.c.h.b16 %v8347
      %v9466 = vunpack.c.l.b16 %v8348
      %v9467 = vunpack.c.h.b16 %v8348
      %v9468 = vunpack.c.l.b16 %v8349
      %v9469 = vunpack.c.h.b16 %v8349
      %v9470 = vunpack.c.l.b16 %v8350
      %v9471 = vunpack.c.h.b16 %v8350
      %v9472 = vunpack.c.l.b16 %v8351
      %v9473 = vunpack.c.h.b16 %v8351
      %v9474 = vunpack.c.l.b16 %v8352
      %v9475 = vunpack.c.h.b16 %v8352
      %v9476 = vunpack.c.l.b16 %v8353
      %v9477 = vunpack.c.h.b16 %v8353
      %v9478 = vunpack.c.l.b16 %v8354
      %v9479 = vunpack.c.h.b16 %v8354
      %v9480 = vunpack.c.l.b16 %v8355
      %v9481 = vunpack.c.h.b16 %v8355
      %v9482 = vunpack.c.l.b16 %v8356
      %v9483 = vunpack.c.h.b16 %v8356
      %v9484 = vunpack.c.l.b16 %v8357
      %v9485 = vunpack.c.h.b16 %v8357
      %v9486 = vunpack.c.l.b16 %v8358
      %v9487 = vunpack.c.h.b16 %v8358
      %v9488 = vunpack.c.l.b16 %v8359
      %v9489 = vunpack.c.h.b16 %v8359
      %v9490 = vunpack.c.l.b16 %v8360
      %v9491 = vunpack.c.h.b16 %v8360
      %v9492 = vunpack.c.l.b16 %v8361
      %v9493 = vunpack.c.h.b16 %v8361
      %v9494 = vunpack.c.l.b16 %v8362
      %v9495 = vunpack.c.h.b16 %v8362
      %v9496 = vunpack.c.l.b16 %v8363
      %v9497 = vunpack.c.h.b16 %v8363
      %v9498 = vunpack.c.l.b16 %v8364
      %v9499 = vunpack.c.h.b16 %v8364
      %v9500 = vunpack.c.l.b16 %v8365
      %v9501 = vunpack.c.h.b16 %v8365
      %v9502 = vunpack.c.l.b16 %v8366
      %v9503 = vunpack.c.h.b16 %v8366
      %v9504 = vunpack.c.l.b16 %v8367
      %v9505 = vunpack.c.h.b16 %v8367
      %v9506 = vunpack.c.l.b16 %v8368
      %v9507 = vunpack.c.h.b16 %v8368
      %v9508 = vunpack.c.l.b16 %v8369
      %v9509 = vunpack.c.h.b16 %v8369
      %v9510 = vunpack.c.l.b16 %v8370
      %v9511 = vunpack.c.h.b16 %v8370
      %v9512 = vunpack.c.l.b16 %v8371
      %v9513 = vunpack.c.h.b16 %v8371
      %v9514 = vunpack.c.l.b16 %v8372
      %v9515 = vunpack.c.h.b16 %v8372
      %v9516 = vunpack.c.l.b16 %v8373
      %v9517 = vunpack.c.h.b16 %v8373
      %v9518 = vunpack.c.l.b16 %v8374
      %v9519 = vunpack.c.h.b16 %v8374
      %v9520 = vunpack.c.l.b16 %v8375
      %v9521 = vunpack.c.h.b16 %v8375
      %v9522 = vunpack.c.l.b16 %v8376
      %v9523 = vunpack.c.h.b16 %v8376
      %v9524 = vunpack.c.l.b16 %v8377
      %v9525 = vunpack.c.h.b16 %v8377
      %v9526 = vunpack.c.l.b16 %v8378
      %v9527 = vunpack.c.h.b16 %v8378
      %v9528 = vunpack.c.l.b16 %v8379
      %v9529 = vunpack.c.h.b16 %v8379
      %v9530 = vunpack.c.l.b16 %v8380
      %v9531 = vunpack.c.h.b16 %v8380
      %v9532 = vunpack.c.l.b16 %v8381
      %v9533 = vunpack.c.h.b16 %v8381
      %v9534 = vunpack.c.l.b16 %v8382
      %v9535 = vunpack.c.h.b16 %v8382
      %v9536 = vunpack.c.l.b16 %v8383
      %v9537 = vunpack.c.h.b16 %v8383
      %v9538 = vunpack.c.l.b16 %v8384
      %v9539 = vunpack.c.h.b16 %v8384
      %v9540 = vunpack.c.l.b16 %v8385
      %v9541 = vunpack.c.h.b16 %v8385
      %v9542 = vunpack.c.l.b16 %v8386
      %v9543 = vunpack.c.h.b16 %v8386
      %v9544 = vunpack.c.l.b16 %v8387
      %v9545 = vunpack.c.h.b16 %v8387
      %v9546 = vunpack.c.l.b16 %v8388
      %v9547 = vunpack.c.h.b16 %v8388
      %v9548 = vunpack.c.l.b16 %v8389
      %v9549 = vunpack.c.h.b16 %v8389
      %v9550 = vunpack.c.l.b16 %v8390
      %v9551 = vunpack.c.h.b16 %v8390
      %v9552 = vunpack.c.l.b16 %v8391
      %v9553 = vunpack.c.h.b16 %v8391
      %v9554 = vunpack.c.l.b16 %v8392
      %v9555 = vunpack.c.h.b16 %v8392
      %v9556 = vunpack.c.l.b16 %v8393
      %v9557 = vunpack.c.h.b16 %v8393
      %v9558 = vunpack.c.l.b16 %v8394
      %v9559 = vunpack.c.h.b16 %v8394
      %v9560 = vunpack.c.l.b16 %v8395
      %v9561 = vunpack.c.h.b16 %v8395
      %v9562 = vunpack.c.l.b16 %v8396
      %v9563 = vunpack.c.h.b16 %v8396
      %v9564 = vunpack.c.l.b16 %v8397
      %v9565 = vunpack.c.h.b16 %v8397
      %v9566 = vunpack.c.l.b16 %v8398
      %v9567 = vunpack.c.h.b16 %v8398
      %v9568 = vunpack.c.l.b16 %v8399
      %v9569 = vunpack.c.h.b16 %v8399
      %v9570 = vunpack.c.l.b16 %v8400
      %v9571 = vunpack.c.h.b16 %v8400
      %v9572 = vunpack.c.l.b16 %v8401
      %v9573 = vunpack.c.h.b16 %v8401
      %v9574 = vunpack.c.l.b16 %v8402
      %v9575 = vunpack.c.h.b16 %v8402
      %v9576 = vunpack.c.l.b16 %v8403
      %v9577 = vunpack.c.h.b16 %v8403
      %v9578 = vunpack.c.l.b16 %v8404
      %v9579 = vunpack.c.h.b16 %v8404
      %v9580 = vunpack.c.l.b16 %v8405
      %v9581 = vunpack.c.h.b16 %v8405
      %v9582 = vunpack.c.l.b16 %v8406
      %v9583 = vunpack.c.h.b16 %v8406
      %v9584 = vunpack.c.l.b16 %v8407
      %v9585 = vunpack.c.h.b16 %v8407
      %v9586 = vunpack.c.l.b16 %v8408
      %v9587 = vunpack.c.h.b16 %v8408
      %v9588 = vunpack.c.l.b16 %v8409
      %v9589 = vunpack.c.h.b16 %v8409
      %v9590 = vunpack.c.l.b16 %v8410
      %v9591 = vunpack.c.h.b16 %v8410
      %v9592 = vunpack.c.l.b16 %v8411
      %v9593 = vunpack.c.h.b16 %v8411
      %v9594 = vunpack.c.l.b16 %v8412
      %v9595 = vunpack.c.h.b16 %v8412
      %v9596 = vunpack.c.l.b16 %v8413
      %v9597 = vunpack.c.h.b16 %v8413
      %v9598 = vunpack.c.l.b16 %v8414
      %v9599 = vunpack.c.h.b16 %v8414
      %v9600 = vunpack.c.l.b16 %v8415
      %v9601 = vunpack.c.h.b16 %v8415
      %v9602 = vunpack.c.l.b16 %v8416
      %v9603 = vunpack.c.h.b16 %v8416
      %v9604 = vunpack.c.l.b16 %v8417
      %v9605 = vunpack.c.h.b16 %v8417
      %v9606 = vunpack.c.l.b16 %v8418
      %v9607 = vunpack.c.h.b16 %v8418
      %v9608 = vunpack.c.l.b16 %v8419
      %v9609 = vunpack.c.h.b16 %v8419
      %v9610 = vunpack.c.l.b16 %v8420
      %v9611 = vunpack.c.h.b16 %v8420
      %v9612 = vunpack.c.l.b16 %v8421
      %v9613 = vunpack.c.h.b16 %v8421
      %v9614 = vunpack.c.l.b16 %v8422
      %v9615 = vunpack.c.h.b16 %v8422
      %v9616 = vunpack.c.l.b16 %v8423
      %v9617 = vunpack.c.h.b16 %v8423
      %v9618 = vunpack.c.l.b16 %v8424
      %v9619 = vunpack.c.h.b16 %v8424
      %v9620 = vunpack.c.l.b16 %v8425
      %v9621 = vunpack.c.h.b16 %v8425
      %v9622 = vunpack.c.l.b16 %v8426
      %v9623 = vunpack.c.h.b16 %v8426
      %v9624 = vunpack.c.l.b16 %v8427
      %v9625 = vunpack.c.h.b16 %v8427
      %v9626 = vunpack.c.l.b16 %v8428
      %v9627 = vunpack.c.h.b16 %v8428
      %v9628 = vunpack.c.l.b16 %v8429
      %v9629 = vunpack.c.h.b16 %v8429
      %v9630 = vunpack.c.l.b16 %v8430
      %v9631 = vunpack.c.h.b16 %v8430
      %v9632 = vunpack.c.l.b16 %v8431
      %v9633 = vunpack.c.h.b16 %v8431
      %v9634 = vunpack.c.l.b16 %v8432
      %v9635 = vunpack.c.h.b16 %v8432
      %v9636 = vunpack.c.l.b16 %v8433
      %v9637 = vunpack.c.h.b16 %v8433
      %v9638 = vunpack.c.l.b16 %v8434
      %v9639 = vunpack.c.h.b16 %v8434
      %v9640 = vunpack.c.l.b16 %v8435
      %v9641 = vunpack.c.h.b16 %v8435
      %v9642 = vunpack.c.l.b16 %v8436
      %v9643 = vunpack.c.h.b16 %v8436
      %v9644 = vunpack.c.l.b16 %v8437
      %v9645 = vunpack.c.h.b16 %v8437
      %v9646 = vunpack.c.l.b16 %v8438
      %v9647 = vunpack.c.h.b16 %v8438
      %v9648 = vunpack.c.l.b16 %v8439
      %v9649 = vunpack.c.h.b16 %v8439
      %v9650 = vunpack.c.l.b16 %v8440
      %v9651 = vunpack.c.h.b16 %v8440
      %v9652 = vunpack.c.l.b16 %v8441
      %v9653 = vunpack.c.h.b16 %v8441
      %v9654 = vunpack.c.l.b16 %v8442
      %v9655 = vunpack.c.h.b16 %v8442
      %v9656 = vunpack.c.l.b16 %v8443
      %v9657 = vunpack.c.h.b16 %v8443
      %v9658 = vunpack.c.l.b16 %v8444
      %v9659 = vunpack.c.h.b16 %v8444
      %v9660 = vunpack.c.l.b16 %v8445
      %v9661 = vunpack.c.h.b16 %v8445
      %v9662 = vunpack.c.l.b16 %v8446
      %v9663 = vunpack.c.h.b16 %v8446
      %v9664 = vunpack.c.l.b16 %v8447
      %v9665 = vunpack.c.h.b16 %v8447
      %v9666 = vunpack.c.l.b16 %v8448
      %v9667 = vunpack.c.h.b16 %v8448
      %v9668 = vunpack.c.l.b16 %v8449
      %v9669 = vunpack.c.h.b16 %v8449
      %v9670 = vunpack.c.l.b16 %v8450
      %v9671 = vunpack.c.h.b16 %v8450
      %v9672 = vunpack.c.l.b16 %v8451
      %v9673 = vunpack.c.h.b16 %v8451
      %v9674 = vunpack.c.l.b16 %v8452
      %v9675 = vunpack.c.h.b16 %v8452
      %v9676 = vunpack.c.l.b16 %v8453
      %v9677 = vunpack.c.h.b16 %v8453
      %v9678 = vunpack.c.l.b16 %v8454
      %v9679 = vunpack.c.h.b16 %v8454
      %v9680 = vunpack.c.l.b16 %v8455
      %v9681 = vunpack.c.h.b16 %v8455
      %v9682 = vunpack.c.l.b16 %v8456
      %v9683 = vunpack.c.h.b16 %v8456
      %v9684 = vunpack.c.l.b16 %v8457
      %v9685 = vunpack.c.h.b16 %v8457
      %v9686 = vunpack.c.l.b16 %v8458
      %v9687 = vunpack.c.h.b16 %v8458
      %v9688 = vunpack.c.l.b16 %v8459
      %v9689 = vunpack.c.h.b16 %v8459
      %v9690 = vunpack.c.l.b16 %v8460
      %v9691 = vunpack.c.h.b16 %v8460
      %v9692 = vunpack.c.l.b16 %v8461
      %v9693 = vunpack.c.h.b16 %v8461
      %v9694 = vunpack.c.l.b16 %v8462
      %v9695 = vunpack.c.h.b16 %v8462
      %v9696 = vunpack.c.l.b16 %v8463
      %v9697 = vunpack.c.h.b16 %v8463
      %v9698 = vunpack.c.l.b16 %v8464
      %v9699 = vunpack.c.h.b16 %v8464
      %v9700 = vunpack.c.l.b16 %v8465
      %v9701 = vunpack.c.h.b16 %v8465
      %v9702 = vunpack.c.l.b16 %v8466
      %v9703 = vunpack.c.h.b16 %v8466
      %v9704 = vunpack.c.l.b16 %v8467
      %v9705 = vunpack.c.h.b16 %v8467
      %v9706 = vunpack.c.l.b16 %v8468
      %v9707 = vunpack.c.h.b16 %v8468
      %v9708 = vunpack.c.l.b16 %v8469
      %v9709 = vunpack.c.h.b16 %v8469
      %v9710 = vunpack.c.l.b16 %v8470
      %v9711 = vunpack.c.h.b16 %v8470
      %v9712 = vunpack.c.l.b16 %v8471
      %v9713 = vunpack.c.h.b16 %v8471
      %v9714 = vunpack.c.l.b16 %v8472
      %v9715 = vunpack.c.h.b16 %v8472
      %v9716 = vunpack.c.l.b16 %v8473
      %v9717 = vunpack.c.h.b16 %v8473
      %v9718 = vunpack.c.l.b16 %v8474
      %v9719 = vunpack.c.h.b16 %v8474
      %v9720 = vunpack.c.l.b16 %v8475
      %v9721 = vunpack.c.h.b16 %v8475
      %v9722 = vunpack.c.l.b16 %v8476
      %v9723 = vunpack.c.h.b16 %v8476
      %v9724 = vunpack.c.l.b16 %v8477
      %v9725 = vunpack.c.h.b16 %v8477
      %v9726 = vunpack.c.l.b16 %v8478
      %v9727 = vunpack.c.h.b16 %v8478
      %v9728 = vunpack.c.l.b16 %v8479
      %v9729 = vunpack.c.h.b16 %v8479
      %v9730 = vunpack.c.l.b16 %v8480
      %v9731 = vunpack.c.h.b16 %v8480
      %v9732 = vunpack.c.l.b16 %v8481
      %v9733 = vunpack.c.h.b16 %v8481
      %v9734 = vunpack.c.l.b16 %v8482
      %v9735 = vunpack.c.h.b16 %v8482
      %v9736 = vunpack.c.l.b16 %v8483
      %v9737 = vunpack.c.h.b16 %v8483
      %v9738 = vunpack.c.l.b16 %v8484
      %v9739 = vunpack.c.h.b16 %v8484
      %v9740 = vunpack.c.l.b16 %v8485
      %v9741 = vunpack.c.h.b16 %v8485
      %v9742 = vunpack.c.l.b16 %v8486
      %v9743 = vunpack.c.h.b16 %v8486
      %v9744 = vunpack.c.l.b16 %v8487
      %v9745 = vunpack.c.h.b16 %v8487
      %v9746 = vunpack.c.l.b16 %v8488
      %v9747 = vunpack.c.h.b16 %v8488
      %v9748 = vunpack.c.l.b16 %v8489
      %v9749 = vunpack.c.h.b16 %v8489
      %v9750 = vunpack.c.l.b16 %v8490
      %v9751 = vunpack.c.h.b16 %v8490
      %v9752 = vunpack.c.l.b16 %v8491
      %v9753 = vunpack.c.h.b16 %v8491
      %v9754 = vunpack.c.l.b16 %v8492
      %v9755 = vunpack.c.h.b16 %v8492
      %v9756 = vunpack.c.l.b16 %v8493
      %v9757 = vunpack.c.h.b16 %v8493
      %v9758 = vunpack.c.l.b16 %v8494
      %v9759 = vunpack.c.h.b16 %v8494
      %v9760 = vunpack.c.l.b16 %v8495
      %v9761 = vunpack.c.h.b16 %v8495
      %v9762 = vunpack.c.l.b16 %v8496
      %v9763 = vunpack.c.h.b16 %v8496
      %v9764 = vunpack.c.l.b16 %v8497
      %v9765 = vunpack.c.h.b16 %v8497
      %v9766 = vunpack.c.l.b16 %v8498
      %v9767 = vunpack.c.h.b16 %v8498
      %v9768 = vunpack.c.l.b16 %v8499
      %v9769 = vunpack.c.h.b16 %v8499
      %v9770 = vunpack.c.l.b16 %v8500
      %v9771 = vunpack.c.h.b16 %v8500
      %v9772 = vunpack.c.l.b16 %v8501
      %v9773 = vunpack.c.h.b16 %v8501
      %v9774 = vunpack.c.l.b16 %v8502
      %v9775 = vunpack.c.h.b16 %v8502
      %v9776 = vunpack.c.l.b16 %v8503
      %v9777 = vunpack.c.h.b16 %v8503
      %v9778 = vunpack.c.l.b16 %v8504
      %v9779 = vunpack.c.h.b16 %v8504
      %v9780 = vpack.c.b16 %v8940, %v8930
      %v9781 = vpack.c.b16 %v8941, %v8931
      %v9782 = vpack.c.b16 %v8942, %v8932
      %v9783 = vpack.c.b16 %v8943, %v8933
      %v9784 = vpack.c.b16 %v8944, %v8934
      %v9785 = vpack.c.b16 %v8945, %v8935
      %v9786 = vpack.c.b16 %v8946, %v8936
      %v9787 = vpack.c.b16 %v8947, %v8937
      %v9788 = vpack.c.b16 %v8948, %v8938
      %v9789 = vpack.c.b16 %v8949, %v8939
      %v9790 = vpack.c.b16 %v8960, %v8950
      %v9791 = vpack.c.b16 %v8961, %v8951
      %v9792 = vpack.c.b16 %v8962, %v8952
      %v9793 = vpack.c.b16 %v8963, %v8953
      %v9794 = vpack.c.b16 %v8964, %v8954
      %v9795 = vpack.c.b16 %v8965, %v8955
      %v9796 = vpack.c.b16 %v8966, %v8956
      %v9797 = vpack.c.b16 %v8967, %v8957
      %v9798 = vpack.c.b16 %v8968, %v8958
      %v9799 = vpack.c.b16 %v8969, %v8959
      %v9800 = vpack.c.b16 %v8980, %v8970
      %v9801 = vpack.c.b16 %v8981, %v8971
      %v9802 = vpack.c.b16 %v8982, %v8972
      %v9803 = vpack.c.b16 %v8983, %v8973
      %v9804 = vpack.c.b16 %v8984, %v8974
      %v9805 = vpack.c.b16 %v8985, %v8975
      %v9806 = vpack.c.b16 %v8986, %v8976
      %v9807 = vpack.c.b16 %v8987, %v8977
      %v9808 = vpack.c.b16 %v8988, %v8978
      %v9809 = vpack.c.b16 %v8989, %v8979
      %v9810 = vpack.c.b16 %v9000, %v8990
      %v9811 = vpack.c.b16 %v9001, %v8991
      %v9812 = vpack.c.b16 %v9002, %v8992
      %v9813 = vpack.c.b16 %v9003, %v8993
      %v9814 = vpack.c.b16 %v9004, %v8994
      %v9815 = vpack.c.b16 %v9005, %v8995
      %v9816 = vpack.c.b16 %v9006, %v8996
      %v9817 = vpack.c.b16 %v9007, %v8997
      %v9818 = vpack.c.b16 %v9008, %v8998
      %v9819 = vpack.c.b16 %v9009, %v8999
      %v9820 = vpack.c.b16 %v9020, %v9010
      %v9821 = vpack.c.b16 %v9021, %v9011
      %v9822 = vpack.c.b16 %v9022, %v9012
      %v9823 = vpack.c.b16 %v9023, %v9013
      %v9824 = vpack.c.b16 %v9024, %v9014
      %v9825 = vpack.c.b16 %v9025, %v9015
      %v9826 = vpack.c.b16 %v9026, %v9016
      %v9827 = vpack.c.b16 %v9027, %v9017
      %v9828 = vpack.c.b16 %v9028, %v9018
      %v9829 = vpack.c.b16 %v9029, %v9019
      %v9830 = vpack.c.b16 %v9040, %v9030
      %v9831 = vpack.c.b16 %v9041, %v9031
      %v9832 = vpack.c.b16 %v9042, %v9032
      %v9833 = vpack.c.b16 %v9043, %v9033
      %v9834 = vpack.c.b16 %v9044, %v9034
      %v9835 = vpack.c.b16 %v9045, %v9035
      %v9836 = vpack.c.b16 %v9046, %v9036
      %v9837 = vpack.c.b16 %v9047, %v9037
      %v9838 = vpack.c.b16 %v9048, %v9038
      %v9839 = vpack.c.b16 %v9049, %v9039
      %v9840 = vpack.c.b16 %v9060, %v9050
      %v9841 = vpack.c.b16 %v9061, %v9051
      %v9842 = vpack.c.b16 %v9062, %v9052
      %v9843 = vpack.c.b16 %v9063, %v9053
      %v9844 = vpack.c.b16 %v9064, %v9054
      %v9845 = vpack.c.b16 %v9065, %v9055
      %v9846 = vpack.c.b16 %v9066, %v9056
      %v9847 = vpack.c.b16 %v9067, %v9057
      %v9848 = vpack.c.b16 %v9068, %v9058
      %v9849 = vpack.c.b16 %v9069, %v9059
      %v9850 = vpack.c.b16 %v9080, %v9070
      %v9851 = vpack.c.b16 %v9081, %v9071
      %v9852 = vpack.c.b16 %v9082, %v9072
      %v9853 = vpack.c.b16 %v9083, %v9073
      %v9854 = vpack.c.b16 %v9084, %v9074
      %v9855 = vpack.c.b16 %v9085, %v9075
      %v9856 = vpack.c.b16 %v9086, %v9076
      %v9857 = vpack.c.b16 %v9087, %v9077
      %v9858 = vpack.c.b16 %v9088, %v9078
      %v9859 = vpack.c.b16 %v9089, %v9079
      %v9860 = vpack.c.b16 %v9100, %v9090
      %v9861 = vpack.c.b16 %v9101, %v9091
      %v9862 = vpack.c.b16 %v9102, %v9092
      %v9863 = vpack.c.b16 %v9103, %v9093
      %v9864 = vpack.c.b16 %v9104, %v9094
      %v9865 = vpack.c.b16 %v9105, %v9095
      %v9866 = vpack.c.b16 %v9106, %v9096
      %v9867 = vpack.c.b16 %v9107, %v9097
      %v9868 = vpack.c.b16 %v9108, %v9098
      %v9869 = vpack.c.b16 %v9109, %v9099
      %v9870 = vpack.c.b16 %v9120, %v9110
      %v9871 = vpack.c.b16 %v9121, %v9111
      %v9872 = vpack.c.b16 %v9122, %v9112
      %v9873 = vpack.c.b16 %v9123, %v9113
      %v9874 = vpack.c.b16 %v9124, %v9114
      %v9875 = vpack.c.b16 %v9125, %v9115
      %v9876 = vpack.c.b16 %v9126, %v9116
      %v9877 = vpack.c.b16 %v9127, %v9117
      %v9878 = vpack.c.b16 %v9128, %v9118
      %v9879 = vpack.c.b16 %v9129, %v9119
      %v9880 = vpack.c.b16 %v9140, %v9130
      %v9881 = vpack.c.b16 %v9141, %v9131
      %v9882 = vpack.c.b16 %v9142, %v9132
      %v9883 = vpack.c.b16 %v9143, %v9133
      %v9884 = vpack.c.b16 %v9144, %v9134
      %v9885 = vpack.c.b16 %v9145, %v9135
      %v9886 = vpack.c.b16 %v9146, %v9136
      %v9887 = vpack.c.b16 %v9147, %v9137
      %v9888 = vpack.c.b16 %v9148, %v9138
      %v9889 = vpack.c.b16 %v9149, %v9139
      %v9890 = vpack.c.b16 %v9160, %v9150
      %v9891 = vpack.c.b16 %v9161, %v9151
      %v9892 = vpack.c.b16 %v9162, %v9152
      %v9893 = vpack.c.b16 %v9163, %v9153
      %v9894 = vpack.c.b16 %v9164, %v9154
      %v9895 = vpack.c.b16 %v9165, %v9155
      %v9896 = vpack.c.b16 %v9166, %v9156
      %v9897 = vpack.c.b16 %v9167, %v9157
      %v9898 = vpack.c.b16 %v9168, %v9158
      %v9899 = vpack.c.b16 %v9169, %v9159
      %v9900 = vpack.c.b16 %v9180, %v9170
      %v9901 = vpack.c.b16 %v9181, %v9171
      %v9902 = vpack.c.b16 %v9182, %v9172
      %v9903 = vpack.c.b16 %v9183, %v9173
      %v9904 = vpack.c.b16 %v9184, %v9174
      %v9905 = vpack.c.b16 %v9185, %v9175
      %v9906 = vpack.c.b16 %v9186, %v9176
      %v9907 = vpack.c.b16 %v9187, %v9177
      %v9908 = vpack.c.b16 %v9188, %v9178
      %v9909 = vpack.c.b16 %v9189, %v9179
      %v9910 = vpack.c.b16 %v9200, %v9190
      %v9911 = vpack.c.b16 %v9201, %v9191
      %v9912 = vpack.c.b16 %v9202, %v9192
      %v9913 = vpack.c.b16 %v9203, %v9193
      %v9914 = vpack.c.b16 %v9204, %v9194
      %v9915 = vpack.c.b16 %v9205, %v9195
      %v9916 = vpack.c.b16 %v9206, %v9196
      %v9917 = vpack.c.b16 %v9207, %v9197
      %v9918 = vpack.c.b16 %v9208, %v9198
      %v9919 = vpack.c.b16 %v9209, %v9199
      %v9920 = vpack.c.b16 %v9220, %v9210
      %v9921 = vpack.c.b16 %v9221, %v9211
      %v9922 = vpack.c.b16 %v9222, %v9212
      %v9923 = vpack.c.b16 %v9223, %v9213
      %v9924 = vpack.c.b16 %v9224, %v9214
      %v9925 = vpack.c.b16 %v9225, %v9215
      %v9926 = vpack.c.b16 %v9226, %v9216
      %v9927 = vpack.c.b16 %v9227, %v9217
      %v9928 = vpack.c.b16 %v9228, %v9218
      %v9929 = vpack.c.b16 %v9229, %v9219
      %v9930 = vpack.c.b16 %v9240, %v9230
      %v9931 = vpack.c.b16 %v9241, %v9231
      %v9932 = vpack.c.b16 %v9242, %v9232
      %v9933 = vpack.c.b16 %v9243, %v9233
      %v9934 = vpack.c.b16 %v9244, %v9234
      %v9935 = vpack.c.b16 %v9245, %v9235
      %v9936 = vpack.c.b16 %v9246, %v9236
      %v9937 = vpack.c.b16 %v9247, %v9237
      %v9938 = vpack.c.b16 %v9248, %v9238
      %v9939 = vpack.c.b16 %v9249, %v9239
      %v9940 = vpack.c.b16 %v9260, %v9250
      %v9941 = vpack.c.b16 %v9261, %v9251
      %v9942 = vpack.c.b16 %v9262, %v9252
      %v9943 = vpack.c.b16 %v9263, %v9253
      %v9944 = vpack.c.b16 %v9264, %v9254
      %v9945 = vpack.c.b16 %v9265, %v9255
      %v9946 = vpack.c.b16 %v9266, %v9256
      %v9947 = vpack.c.b16 %v9267, %v9257
      %v9948 = vpack.c.b16 %v9268, %v9258
      %v9949 = vpack.c.b16 %v9269, %v9259
      %v9950 = vpack.c.b16 %v9280, %v9270
      %v9951 = vpack.c.b16 %v9281, %v9271
      %v9952 = vpack.c.b16 %v9282, %v9272
      %v9953 = vpack.c.b16 %v9283, %v9273
      %v9954 = vpack.c.b16 %v9284, %v9274
      %v9955 = vpack.c.b16 %v9285, %v9275
      %v9956 = vpack.c.b16 %v9286, %v9276
      %v9957 = vpack.c.b16 %v9287, %v9277
      %v9958 = vpack.c.b16 %v9288, %v9278
      %v9959 = vpack.c.b16 %v9289, %v9279
      %v9960 = vpack.c.b16 %v9300, %v9290
      %v9961 = vpack.c.b16 %v9301, %v9291
      %v9962 = vpack.c.b16 %v9302, %v9292
      %v9963 = vpack.c.b16 %v9303, %v9293
      %v9964 = vpack.c.b16 %v9304, %v9294
      %v9965 = vpack.c.b16 %v9305, %v9295
      %v9966 = vpack.c.b16 %v9306, %v9296
      %v9967 = vpack.c.b16 %v9307, %v9297
      %v9968 = vpack.c.b16 %v9308, %v9298
      %v9969 = vpack.c.b16 %v9309, %v9299
      %v9970 = vpack.c.b16 %v9320, %v9310
      %v9971 = vpack.c.b16 %v9321, %v9311
      %v9972 = vpack.c.b16 %v9322, %v9312
      %v9973 = vpack.c.b16 %v9323, %v9313
      %v9974 = vpack.c.b16 %v9324, %v9314
      %v9975 = vpack.c.b16 %v9325, %v9315
      %v9976 = vpack.c.b16 %v9326, %v9316
      %v9977 = vpack.c.b16 %v9327, %v9317
      %v9978 = vpack.c.b16 %v9328, %v9318
      %v9979 = vpack.c.b16 %v9329, %v9319
      %v9980 = vpack.c.b16 %v9340, %v9330
      %v9981 = vpack.c.b16 %v9341, %v9331
      %v9982 = vpack.c.b16 %v9342, %v9332
      %v9983 = vpack.c.b16 %v9343, %v9333
      %v9984 = vpack.c.b16 %v9344, %v9334
      %v9985 = vpack.c.b16 %v9345, %v9335
      %v9986 = vpack.c.b16 %v9346, %v9336
      %v9987 = vpack.c.b16 %v9347, %v9337
      %v9988 = vpack.c.b16 %v9348, %v9338
      %v9989 = vpack.c.b16 %v9349, %v9339
      %v9990 = vpack.c.b16 %v9360, %v9350
      %v9991 = vpack.c.b16 %v9361, %v9351
      %v9992 = vpack.c.b16 %v9362, %v9352
      %v9993 = vpack.c.b16 %v9363, %v9353
      %v9994 = vpack.c.b16 %v9364, %v9354
      %v9995 = vpack.c.b16 %v9365, %v9355
      %v9996 = vpack.c.b16 %v9366, %v9356
      %v9997 = vpack.c.b16 %v9367, %v9357
      %v9998 = vpack.c.b16 %v9368, %v9358
      %v9999 = vpack.c.b16 %v9369, %v9359
      %v10000 = vpack.c.b16 %v9380, %v9370
      %v10001 = vpack.c.b16 %v9381, %v9371
      %v10002 = vpack.c.b16 %v9382, %v9372
      %v10003 = vpack.c.b16 %v9383, %v9373
      %v10004 = vpack.c.b16 %v9384, %v9374
      %v10005 = vpack.c.b16 %v9385, %v9375
      %v10006 = vpack.c.b16 %v9386, %v9376
      %v10007 = vpack.c.b16 %v9387, %v9377
      %v10008 = vpack.c.b16 %v9388, %v9378
      %v10009 = vpack.c.b16 %v9389, %v9379
      %v10010 = vpack.c.b16 %v9400, %v9390
      %v10011 = vpack.c.b16 %v9401, %v9391
      %v10012 = vpack.c.b16 %v9402, %v9392
      %v10013 = vpack.c.b16 %v9403, %v9393
      %v10014 = vpack.c.b16 %v9404, %v9394
      %v10015 = vpack.c.b16 %v9405, %v9395
      %v10016 = vpack.c.b16 %v9406, %v9396
      %v10017 = vpack.c.b16 %v9407, %v9397
      %v10018 = vpack.c.b16 %v9408, %v9398
      %v10019 = vpack.c.b16 %v9409, %v9399
      %v10020 = vpack.c.b16 %v9420, %v9410
      %v10021 = vpack.c.b16 %v9421, %v9411
      %v10022 = vpack.c.b16 %v9422, %v9412
      %v10023 = vpack.c.b16 %v9423, %v9413
      %v10024 = vpack.c.b16 %v9424, %v9414
      %v10025 = vpack.c.b16 %v9425, %v9415
      %v10026 = vpack.c.b16 %v9426, %v9416
      %v10027 = vpack.c.b16 %v9427, %v9417
      %v10028 = vpack.c.b16 %v9428, %v9418
      %v10029 = vpack.c.b16 %v9429, %v9419
      %v10030 = vpack.c.b16 %v9440, %v9430
      %v10031 = vpack.c.b16 %v9441, %v9431
      %v10032 = vpack.c.b16 %v9442, %v9432
      %v10033 = vpack.c.b16 %v9443, %v9433
      %v10034 = vpack.c.b16 %v9444, %v9434
      %v10035 = vpack.c.b16 %v9445, %v9435
      %v10036 = vpack.c.b16 %v9446, %v9436
      %v10037 = vpack.c.b16 %v9447, %v9437
      %v10038 = vpack.c.b16 %v9448, %v9438
      %v10039 = vpack.c.b16 %v9449, %v9439
      %v10040 = vpack.c.b16 %v9460, %v9450
      %v10041 = vpack.c.b16 %v9461, %v9451
      %v10042 = vpack.c.b16 %v9462, %v9452
      %v10043 = vpack.c.b16 %v9463, %v9453
      %v10044 = vpack.c.b16 %v9464, %v9454
      %v10045 = vpack.c.b16 %v9465, %v9455
      %v10046 = vpack.c.b16 %v9466, %v9456
      %v10047 = vpack.c.b16 %v9467, %v9457
      %v10048 = vpack.c.b16 %v9468, %v9458
      %v10049 = vpack.c.b16 %v9469, %v9459
      %v10050 = vpack.c.b16 %v9480, %v9470
      %v10051 = vpack.c.b16 %v9481, %v9471
      %v10052 = vpack.c.b16 %v9482, %v9472
      %v10053 = vpack.c.b16 %v9483, %v9473
      %v10054 = vpack.c.b16 %v9484, %v9474
      %v10055 = vpack.c.b16 %v9485, %v9475
      %v10056 = vpack.c.b16 %v9486, %v9476
      %v10057 = vpack.c.b16 %v9487, %v9477
      %v10058 = vpack.c.b16 %v9488, %v9478
      %v10059 = vpack.c.b16 %v9489, %v9479
      %v10060 = vpack.c.b16 %v9500, %v9490
      %v10061 = vpack.c.b16 %v9501, %v9491
      %v10062 = vpack.c.b16 %v9502, %v9492
      %v10063 = vpack.c.b16 %v9503, %v9493
      %v10064 = vpack.c.b16 %v9504, %v9494
      %v10065 = vpack.c.b16 %v9505, %v9495
      %v10066 = vpack.c.b16 %v9506, %v9496
      %v10067 = vpack.c.b16 %v9507, %v9497
      %v10068 = vpack.c.b16 %v9508, %v9498
      %v10069 = vpack.c.b16 %v9509, %v9499
      %v10070 = vpack.c.b16 %v9520, %v9510
      %v10071 = vpack.c.b16 %v9521, %v9511
      %v10072 = vpack.c.b16 %v9522, %v9512
      %v10073 = vpack.c.b16 %v9523, %v9513
      %v10074 = vpack.c.b16 %v9524, %v9514
      %v10075 = vpack.c.b16 %v9525, %v9515
      %v10076 = vpack.c.b16 %v9526, %v9516
      %v10077 = vpack.c.b16 %v9527, %v9517
      %v10078 = vpack.c.b16 %v9528, %v9518
      %v10079 = vpack.c.b16 %v9529, %v9519
      %v10080 = vpack.c.b16 %v9540, %v9530
      %v10081 = vpack.c.b16 %v9541, %v9531
      %v10082 = vpack.c.b16 %v9542, %v9532
      %v10083 = vpack.c.b16 %v9543, %v9533
      %v10084 = vpack.c.b16 %v9544, %v9534
      %v10085 = vpack.c.b16 %v9545, %v9535
      %v10086 = vpack.c.b16 %v9546, %v9536
      %v10087 = vpack.c.b16 %v9547, %v9537
      %v10088 = vpack.c.b16 %v9548, %v9538
      %v10089 = vpack.c.b16 %v9549, %v9539
      %v10090 = vpack.c.b16 %v9560, %v9550
      %v10091 = vpack.c.b16 %v9561, %v9551
      %v10092 = vpack.c.b16 %v9562, %v9552
      %v10093 = vpack.c.b16 %v9563, %v9553
      %v10094 = vpack.c.b16 %v9564, %v9554
      %v10095 = vpack.c.b16 %v9565, %v9555
      %v10096 = vpack.c.b16 %v9566, %v9556
      %v10097 = vpack.c.b16 %v9567, %v9557
      %v10098 = vpack.c.b16 %v9568, %v9558
      %v10099 = vpack.c.b16 %v9569, %v9559
      %v10100 = vpack.c.b16 %v9580, %v9570
      %v10101 = vpack.c.b16 %v9581, %v9571
      %v10102 = vpack.c.b16 %v9582, %v9572
      %v10103 = vpack.c.b16 %v9583, %v9573
      %v10104 = vpack.c.b16 %v9584, %v9574
      %v10105 = vpack.c.b16 %v9585, %v9575
      %v10106 = vpack.c.b16 %v9586, %v9576
      %v10107 = vpack.c.b16 %v9587, %v9577
      %v10108 = vpack.c.b16 %v9588, %v9578
      %v10109 = vpack.c.b16 %v9589, %v9579
      %v10110 = vpack.c.b16 %v9600, %v9590
      %v10111 = vpack.c.b16 %v9601, %v9591
      %v10112 = vpack.c.b16 %v9602, %v9592
      %v10113 = vpack.c.b16 %v9603, %v9593
      %v10114 = vpack.c.b16 %v9604, %v9594
      %v10115 = vpack.c.b16 %v9605, %v9595
      %v10116 = vpack.c.b16 %v9606, %v9596
      %v10117 = vpack.c.b16 %v9607, %v9597
      %v10118 = vpack.c.b16 %v9608, %v9598
      %v10119 = vpack.c.b16 %v9609, %v9599
      %v10120 = vpack.c.b16 %v9620, %v9610
      %v10121 = vpack.c.b16 %v9621, %v9611
      %v10122 = vpack.c.b16 %v9622, %v9612
      %v10123 = vpack.c.b16 %v9623, %v9613
      %v10124 = vpack.c.b16 %v9624, %v9614
      %v10125 = vpack.c.b16 %v9625, %v9615
      %v10126 = vpack.c.b16 %v9626, %v9616
      %v10127 = vpack.c.b16 %v9627, %v9617
      %v10128 = vpack.c.b16 %v9628, %v9618
      %v10129 = vpack.c.b16 %v9629, %v9619
      %v10130 = vpack.c.b16 %v9640, %v9630
      %v10131 = vpack.c.b16 %v9641, %v9631
      %v10132 = vpack.c.b16 %v9642, %v9632
      %v10133 = vpack.c.b16 %v9643, %v9633
      %v10134 = vpack.c.b16 %v9644, %v9634
      %v10135 = vpack.c.b16 %v9645, %v9635
      %v10136 = vpack.c.b16 %v9646, %v9636
      %v10137 = vpack.c.b16 %v9647, %v9637
      %v10138 = vpack.c.b16 %v9648, %v9638
      %v10139 = vpack.c.b16 %v9649, %v9639
      %v10140 = vpack.c.b16 %v9660, %v9650
      %v10141 = vpack.c.b16 %v9661, %v9651
      %v10142 = vpack.c.b16 %v9662, %v9652
      %v10143 = vpack.c.b16 %v9663, %v9653
      %v10144 = vpack.c.b16 %v9664, %v9654
      %v10145 = vpack.c.b16 %v9665, %v9655
      %v10146 = vpack.c.b16 %v9666, %v9656
      %v10147 = vpack.c.b16 %v9667, %v9657
      %v10148 = vpack.c.b16 %v9668, %v9658
      %v10149 = vpack.c.b16 %v9669, %v9659
      %v10150 = vpack.c.b16 %v9680, %v9670
      %v10151 = vpack.c.b16 %v9681, %v9671
      %v10152 = vpack.c.b16 %v9682, %v9672
      %v10153 = vpack.c.b16 %v9683, %v9673
      %v10154 = vpack.c.b16 %v9684, %v9674
      %v10155 = vpack.c.b16 %v9685, %v9675
      %v10156 = vpack.c.b16 %v9686, %v9676
      %v10157 = vpack.c.b16 %v9687, %v9677
      %v10158 = vpack.c.b16 %v9688, %v9678
      %v10159 = vpack.c.b16 %v9689, %v9679
      %v10160 = vpack.c.b16 %v9700, %v9690
      %v10161 = vpack.c.b16 %v9701, %v9691
      %v10162 = vpack.c.b16 %v9702, %v9692
      %v10163 = vpack.c.b16 %v9703, %v9693
      %v10164 = vpack.c.b16 %v9704, %v9694
      %v10165 = vpack.c.b16 %v9705, %v9695
      %v10166 = vpack.c.b16 %v9706, %v9696
      %v10167 = vpack.c.b16 %v9707, %v9697
      %v10168 = vpack.c.b16 %v9708, %v9698
      %v10169 = vpack.c.b16 %v9709, %v9699
      %v10170 = vpack.c.b16 %v9720, %v9710
      %v10171 = vpack.c.b16 %v9721, %v9711
      %v10172 = vpack.c.b16 %v9722, %v9712
      %v10173 = vpack.c.b16 %v9723, %v9713
      %v10174 = vpack.c.b16 %v9724, %v9714
      %v10175 = vpack.c.b16 %v9725, %v9715
      %v10176 = vpack.c.b16 %v9726, %v9716
      %v10177 = vpack.c.b16 %v9727, %v9717
      %v10178 = vpack.c.b16 %v9728, %v9718
      %v10179 = vpack.c.b16 %v9729, %v9719
      %v10180 = vpack.c.b16 %v9740, %v9730
      %v10181 = vpack.c.b16 %v9741, %v9731
      %v10182 = vpack.c.b16 %v9742, %v9732
      %v10183 = vpack.c.b16 %v9743, %v9733
      %v10184 = vpack.c.b16 %v9744, %v9734
      %v10185 = vpack.c.b16 %v9745, %v9735
      %v10186 = vpack.c.b16 %v9746, %v9736
      %v10187 = vpack.c.b16 %v9747, %v9737
      %v10188 = vpack.c.b16 %v9748, %v9738
      %v10189 = vpack.c.b16 %v9749, %v9739
      %v10190 = vpack.c.b16 %v9760, %v9750
      %v10191 = vpack.c.b16 %v9761, %v9751
      %v10192 = vpack.c.b16 %v9762, %v9752
      %v10193 = vpack.c.b16 %v9763, %v9753
      %v10194 = vpack.c.b16 %v9764, %v9754
      %v10195 = vpack.c.b16 %v9765, %v9755
      %v10196 = vpack.c.b16 %v9766, %v9756
      %v10197 = vpack.c.b16 %v9767, %v9757
      %v10198 = vpack.c.b16 %v9768, %v9758
      %v10199 = vpack.c.b16 %v9769, %v9759
      %v10200 = vpack.c.b16 %v9770, %v9770
      %v10201 = vpack.c.b16 %v9771, %v9771
      %v10202 = vpack.c.b16 %v9772, %v9772
      %v10203 = vpack.c.b16 %v9773, %v9773
      %v10204 = vpack.c.b16 %v9774, %v9774
      %v10205 = vpack.c.b16 %v9775, %v9775
      %v10206 = vpack.c.b16 %v9776, %v9776
      %v10207 = vpack.c.b16 %v9777, %v9777
      %v10208 = vpack.c.b16 %v9778, %v9778
      %v10209 = vpack.c.b16 %v9779, %v9779
      %v10631 = vsel %vm2717, %v8079, 0
      %vm10633 = vcmask 1041408
      %v10635 = vsel %vm10633, %v10200, 0
      %v10638 = vsel %vm10633, %v10201, 0
      %v10641 = vsel %vm10633, %v10202, 0
      %v10644 = vsel %vm10633, %v10203, 0
      %v10647 = vsel %vm10633, %v10204, 0
      %v10650 = vsel %vm10633, %v10205, 0
      %v10653 = vsel %vm10633, %v10206, 0
      %v10656 = vsel %vm10633, %v10207, 0
      %v10659 = vsel %vm10633, %v10208, 0
      %v10662 = vsel %vm10633, %v10209, 0
      %10664 = vmatprep.subr.bf16.mxu0 %v9781
      %10665 = vmatpush1.bf16.msra.mxu0 %v9780
      %10666 = vmatprep.subr.bf16.mxu0 %v9791
      %10667 = vmatpush1.bf16.msra.mxu0 %v9790
      %10668 = vmatprep.subr.bf16.mxu0 %v9801
      %10669 = vmatpush1.bf16.msra.mxu0 %v9800
      %10670 = vmatprep.subr.bf16.mxu0 %v9811
      %10671 = vmatpush1.bf16.msra.mxu0 %v9810
      %10672 = vmatprep.subr.bf16.mxu0 %v9821
      %10673 = vmatpush1.bf16.msra.mxu0 %v9820
      %10674 = vmatprep.subr.bf16.mxu0 %v9831
      %10675 = vmatpush1.bf16.msra.mxu0 %v9830
      %10676 = vmatprep.subr.bf16.mxu0 %v9841
      %10677 = vmatpush1.bf16.msra.mxu0 %v9840
      %10678 = vmatprep.subr.bf16.mxu0 %v9851
      %10679 = vmatpush1.bf16.msra.mxu0 %v9850
      %10680 = vmatprep.subr.bf16.mxu0 %v9861
      %10681 = vmatpush1.bf16.msra.mxu0 %v9860
      %10682 = vmatprep.subr.bf16.mxu0 %v9871
      %10683 = vmatpush1.bf16.msra.mxu0 %v9870
      %10684 = vmatprep.subr.bf16.mxu0 %v9881
      %10685 = vmatpush1.bf16.msra.mxu0 %v9880
      %10686 = vmatprep.subr.bf16.mxu0 %v9891
      %10687 = vmatpush1.bf16.msra.mxu0 %v9890
      %10688 = vmatprep.subr.bf16.mxu0 %v9901
      %10689 = vmatpush1.bf16.msra.mxu0 %v9900
      %10690 = vmatprep.subr.bf16.mxu0 %v9911
      %10691 = vmatpush1.bf16.msra.mxu0 %v9910
      %10692 = vmatprep.subr.bf16.mxu0 %v9921
      %10693 = vmatpush1.bf16.msra.mxu0 %v9920
      %10694 = vmatprep.subr.bf16.mxu0 %v9931
      %10695 = vmatpush1.bf16.msra.mxu0 %v9930
      %10696 = vmatprep.mubr.bf16.mxu0 %v8075
      %10697 = vmatmul.mubr.bf16.gmra.mrb[0].mxu0 %v8074
      %v10698 = vpop.f32.mrb[0].mxu0
      %v10699 = vadd.f32 0.0, %v10698
      %v10700 = vpop.f32.mrb[0].mxu0
      %v10701 = vadd.f32 0.0, %v10700
      %v10702 = vpop.f32.mrb[0].mxu0
      %v10703 = vpop.f32.mrb[0].mxu0
      %10704 = vdwg.mxu0
      %10705 = vmatprep.subr.bf16.mxu0 %v9941
      %10706 = vmatpush1.bf16.msra.mxu0 %v9940
      %10707 = vmatprep.subr.bf16.mxu0 %v9951
      %10708 = vmatpush1.bf16.msra.mxu0 %v9950
      %10709 = vmatprep.subr.bf16.mxu0 %v9961
      %10710 = vmatpush1.bf16.msra.mxu0 %v9960
      %10711 = vmatprep.subr.bf16.mxu0 %v9971
      %10712 = vmatpush1.bf16.msra.mxu0 %v9970
      %10713 = vmatprep.subr.bf16.mxu0 %v9981
      %10714 = vmatpush1.bf16.msra.mxu0 %v9980
      %10715 = vmatprep.subr.bf16.mxu0 %v9991
      %10716 = vmatpush1.bf16.msra.mxu0 %v9990
      %10717 = vmatprep.subr.bf16.mxu0 %v10001
      %10718 = vmatpush1.bf16.msra.mxu0 %v10000
      %10719 = vmatprep.subr.bf16.mxu0 %v10011
      %10720 = vmatpush1.bf16.msra.mxu0 %v10010
      %10721 = vmatprep.subr.bf16.mxu0 %v10021
      %10722 = vmatpush1.bf16.msra.mxu0 %v10020
      %10723 = vmatprep.subr.bf16.mxu0 %v10031
      %10724 = vmatpush1.bf16.msra.mxu0 %v10030
      %10725 = vmatprep.subr.bf16.mxu0 %v10041
      %10726 = vmatpush1.bf16.msra.mxu0 %v10040
      %10727 = vmatprep.subr.bf16.mxu0 %v10051
      %10728 = vmatpush1.bf16.msra.mxu0 %v10050
      %10729 = vmatprep.subr.bf16.mxu0 %v10061
      %10730 = vmatpush1.bf16.msra.mxu0 %v10060
      %10731 = vmatprep.subr.bf16.mxu0 %v10071
      %10732 = vmatpush1.bf16.msra.mxu0 %v10070
      %10733 = vmatprep.subr.bf16.mxu0 %v10081
      %10734 = vmatpush1.bf16.msra.mxu0 %v10080
      %10735 = vmatprep.subr.bf16.mxu0 %v10091
      %10736 = vmatpush1.bf16.msra.mxu0 %v10090
      %10737 = vmatprep.mubr.bf16.mxu0 %v8077
      %10738 = vmatmul.mubr.bf16.gmra.mrb[0].mxu0 %v8076
      %v10739 = vpop.f32.mrb[0].mxu0
      %v10740 = vadd.f32 %v10699, %v10739
      %v10741 = vpop.f32.mrb[0].mxu0
      %v10742 = vadd.f32 %v10701, %v10741
      %v10743 = vpop.f32.mrb[0].mxu0
      %v10744 = vpop.f32.mrb[0].mxu0
      %10745 = vdwg.mxu0
      %10746 = vmatprep.subr.bf16.mxu0 %v10101
      %10747 = vmatpush1.bf16.msra.mxu0 %v10100
      %10748 = vmatprep.subr.bf16.mxu0 %v10111
      %10749 = vmatpush1.bf16.msra.mxu0 %v10110
      %10750 = vmatprep.subr.bf16.mxu0 %v10121
      %10751 = vmatpush1.bf16.msra.mxu0 %v10120
      %10752 = vmatprep.subr.bf16.mxu0 %v10131
      %10753 = vmatpush1.bf16.msra.mxu0 %v10130
      %10754 = vmatprep.subr.bf16.mxu0 %v10141
      %10755 = vmatpush1.bf16.msra.mxu0 %v10140
      %10756 = vmatprep.subr.bf16.mxu0 %v10151
      %10757 = vmatpush1.bf16.msra.mxu0 %v10150
      %10758 = vmatprep.subr.bf16.mxu0 %v10161
      %10759 = vmatpush1.bf16.msra.mxu0 %v10160
      %10760 = vmatprep.subr.bf16.mxu0 %v10171
      %10761 = vmatpush1.bf16.msra.mxu0 %v10170
      %10762 = vmatprep.subr.bf16.mxu0 %v10181
      %10763 = vmatpush1.bf16.msra.mxu0 %v10180
      %10764 = vmatprep.subr.bf16.mxu0 %v10191
      %10765 = vmatpush1.bf16.msra.mxu0 %v10190
      %10766 = vmatprep.subr.bf16.mxu0 %v10638
      %10767 = vmatpush1.bf16.msra.mxu0 %v10635
      %10768 = vmatprep.subr.bf16.mxu0 0
      %10769 = vmatpush1.bf16.msra.mxu0 0
      %10770 = vmatprep.subr.bf16.mxu0 0
      %10771 = vmatpush1.bf16.msra.mxu0 0
      %10772 = vmatprep.subr.bf16.mxu0 0
      %10773 = vmatpush1.bf16.msra.mxu0 0
      %10774 = vmatprep.subr.bf16.mxu0 0
      %10775 = vmatpush1.bf16.msra.mxu0 0
      %10776 = vmatprep.subr.bf16.mxu0 0
      %10777 = vmatpush1.bf16.msra.mxu0 0
      %10778 = vmatprep.mubr.bf16.mxu0 %v10631
      %10779 = vmatmul.mubr.bf16.gmra.mrb[0].mxu0 %v8078
      %v10780 = vpop.f32.mrb[0].mxu0
      %v10781 = vadd.f32 %v10740, %v10780
      %v10782 = vpop.f32.mrb[0].mxu0
      %v10783 = vadd.f32 %v10742, %v10782
      %v10784 = vpop.f32.mrb[0].mxu0
      %v10785 = vpop.f32.mrb[0].mxu0
      %10786 = vdwg.mxu0
      %10787 = vmatprep.subr.bf16.mxu0 %v9783
      %10788 = vmatpush1.bf16.msra.mxu0 %v9782
      %10789 = vmatprep.subr.bf16.mxu0 %v9793
      %10790 = vmatpush1.bf16.msra.mxu0 %v9792
      %10791 = vmatprep.subr.bf16.mxu0 %v9803
      %10792 = vmatpush1.bf16.msra.mxu0 %v9802
      %10793 = vmatprep.subr.bf16.mxu0 %v9813
      %10794 = vmatpush1.bf16.msra.mxu0 %v9812
      %10795 = vmatprep.subr.bf16.mxu0 %v9823
      %10796 = vmatpush1.bf16.msra.mxu0 %v9822
      %10797 = vmatprep.subr.bf16.mxu0 %v9833
      %10798 = vmatpush1.bf16.msra.mxu0 %v9832
      %10799 = vmatprep.subr.bf16.mxu0 %v9843
      %10800 = vmatpush1.bf16.msra.mxu0 %v9842
      %10801 = vmatprep.subr.bf16.mxu0 %v9853
      %10802 = vmatpush1.bf16.msra.mxu0 %v9852
      %10803 = vmatprep.subr.bf16.mxu0 %v9863
      %10804 = vmatpush1.bf16.msra.mxu0 %v9862
      %10805 = vmatprep.subr.bf16.mxu0 %v9873
      %10806 = vmatpush1.bf16.msra.mxu0 %v9872
      %10807 = vmatprep.subr.bf16.mxu0 %v9883
      %10808 = vmatpush1.bf16.msra.mxu0 %v9882
      %10809 = vmatprep.subr.bf16.mxu0 %v9893
      %10810 = vmatpush1.bf16.msra.mxu0 %v9892
      %10811 = vmatprep.subr.bf16.mxu0 %v9903
      %10812 = vmatpush1.bf16.msra.mxu0 %v9902
      %10813 = vmatprep.subr.bf16.mxu0 %v9913
      %10814 = vmatpush1.bf16.msra.mxu0 %v9912
      %10815 = vmatprep.subr.bf16.mxu0 %v9923
      %10816 = vmatpush1.bf16.msra.mxu0 %v9922
      %10817 = vmatprep.subr.bf16.mxu0 %v9933
      %10818 = vmatpush1.bf16.msra.mxu0 %v9932
      %10819 = vmatprep.mubr.bf16.mxu0 %v8075
      %10820 = vmatmul.mubr.bf16.gmra.mrb[0].mxu0 %v8074
      %v10821 = vpop.f32.mrb[0].mxu0
      %v10822 = vadd.f32 0.0, %v10821
      %v10823 = vpop.f32.mrb[0].mxu0
      %v10824 = vadd.f32 0.0, %v10823
      %v10825 = vpop.f32.mrb[0].mxu0
      %v10826 = vpop.f32.mrb[0].mxu0
      %10827 = vdwg.mxu0
      %10828 = vmatprep.subr.bf16.mxu0 %v9943
      %10829 = vmatpush1.bf16.msra.mxu0 %v9942
      %10830 = vmatprep.subr.bf16.mxu0 %v9953
      %10831 = vmatpush1.bf16.msra.mxu0 %v9952
      %10832 = vmatprep.subr.bf16.mxu0 %v9963
      %10833 = vmatpush1.bf16.msra.mxu0 %v9962
      %10834 = vmatprep.subr.bf16.mxu0 %v9973
      %10835 = vmatpush1.bf16.msra.mxu0 %v9972
      %10836 = vmatprep.subr.bf16.mxu0 %v9983
      %10837 = vmatpush1.bf16.msra.mxu0 %v9982
      %10838 = vmatprep.subr.bf16.mxu0 %v9993
      %10839 = vmatpush1.bf16.msra.mxu0 %v9992
      %10840 = vmatprep.subr.bf16.mxu0 %v10003
      %10841 = vmatpush1.bf16.msra.mxu0 %v10002
      %10842 = vmatprep.subr.bf16.mxu0 %v10013
      %10843 = vmatpush1.bf16.msra.mxu0 %v10012
      %10844 = vmatprep.subr.bf16.mxu0 %v10023
      %10845 = vmatpush1.bf16.msra.mxu0 %v10022
      %10846 = vmatprep.subr.bf16.mxu0 %v10033
      %10847 = vmatpush1.bf16.msra.mxu0 %v10032
      %10848 = vmatprep.subr.bf16.mxu0 %v10043
      %10849 = vmatpush1.bf16.msra.mxu0 %v10042
      %10850 = vmatprep.subr.bf16.mxu0 %v10053
      %10851 = vmatpush1.bf16.msra.mxu0 %v10052
      %10852 = vmatprep.subr.bf16.mxu0 %v10063
      %10853 = vmatpush1.bf16.msra.mxu0 %v10062
      %10854 = vmatprep.subr.bf16.mxu0 %v10073
      %10855 = vmatpush1.bf16.msra.mxu0 %v10072
      %10856 = vmatprep.subr.bf16.mxu0 %v10083
      %10857 = vmatpush1.bf16.msra.mxu0 %v10082
      %10858 = vmatprep.subr.bf16.mxu0 %v10093
      %10859 = vmatpush1.bf16.msra.mxu0 %v10092
      %10860 = vmatprep.mubr.bf16.mxu0 %v8077
      %10861 = vmatmul.mubr.bf16.gmra.mrb[0].mxu0 %v8076
      %v10862 = vpop.f32.mrb[0].mxu0
      %v10863 = vadd.f32 %v10822, %v10862
      %v10864 = vpop.f32.mrb[0].mxu0
      %v10865 = vadd.f32 %v10824, %v10864
      %v10866 = vpop.f32.mrb[0].mxu0
      %v10867 = vpop.f32.mrb[0].mxu0
      %10868 = vdwg.mxu0
      %10869 = vmatprep.subr.bf16.mxu0 %v10103
      %10870 = vmatpush1.bf16.msra.mxu0 %v10102
      %10871 = vmatprep.subr.bf16.mxu0 %v10113
      %10872 = vmatpush1.bf16.msra.mxu0 %v10112
      %10873 = vmatprep.subr.bf16.mxu0 %v10123
      %10874 = vmatpush1.bf16.msra.mxu0 %v10122
      %10875 = vmatprep.subr.bf16.mxu0 %v10133
      %10876 = vmatpush1.bf16.msra.mxu0 %v10132
      %10877 = vmatprep.subr.bf16.mxu0 %v10143
      %10878 = vmatpush1.bf16.msra.mxu0 %v10142
      %10879 = vmatprep.subr.bf16.mxu0 %v10153
      %10880 = vmatpush1.bf16.msra.mxu0 %v10152
      %10881 = vmatprep.subr.bf16.mxu0 %v10163
      %10882 = vmatpush1.bf16.msra.mxu0 %v10162
      %10883 = vmatprep.subr.bf16.mxu0 %v10173
      %10884 = vmatpush1.bf16.msra.mxu0 %v10172
      %10885 = vmatprep.subr.bf16.mxu0 %v10183
      %10886 = vmatpush1.bf16.msra.mxu0 %v10182
      %10887 = vmatprep.subr.bf16.mxu0 %v10193
      %10888 = vmatpush1.bf16.msra.mxu0 %v10192
      %10889 = vmatprep.subr.bf16.mxu0 %v10644
      %10890 = vmatpush1.bf16.msra.mxu0 %v10641
      %10891 = vmatprep.subr.bf16.mxu0 0
      %10892 = vmatpush1.bf16.msra.mxu0 0
      %10893 = vmatprep.subr.bf16.mxu0 0
      %10894 = vmatpush1.bf16.msra.mxu0 0
      %10895 = vmatprep.subr.bf16.mxu0 0
      %10896 = vmatpush1.bf16.msra.mxu0 0
      %10897 = vmatprep.subr.bf16.mxu0 0
      %10898 = vmatpush1.bf16.msra.mxu0 0
      %10899 = vmatprep.subr.bf16.mxu0 0
      %10900 = vmatpush1.bf16.msra.mxu0 0
      %10901 = vmatprep.mubr.bf16.mxu0 %v10631
      %10902 = vmatmul.mubr.bf16.gmra.mrb[0].mxu0 %v8078
      %v10903 = vpop.f32.mrb[0].mxu0
      %v10904 = vadd.f32 %v10863, %v10903
      %v10905 = vpop.f32.mrb[0].mxu0
      %v10906 = vadd.f32 %v10865, %v10905
      %v10907 = vpop.f32.mrb[0].mxu0
      %v10908 = vpop.f32.mrb[0].mxu0
      %10909 = vdwg.mxu0
      %10910 = vmatprep.subr.bf16.mxu0 %v9785
      %10911 = vmatpush1.bf16.msra.mxu0 %v9784
      %10912 = vmatprep.subr.bf16.mxu0 %v9795
      %10913 = vmatpush1.bf16.msra.mxu0 %v9794
      %10914 = vmatprep.subr.bf16.mxu0 %v9805
      %10915 = vmatpush1.bf16.msra.mxu0 %v9804
      %10916 = vmatprep.subr.bf16.mxu0 %v9815
      %10917 = vmatpush1.bf16.msra.mxu0 %v9814
      %10918 = vmatprep.subr.bf16.mxu0 %v9825
      %10919 = vmatpush1.bf16.msra.mxu0 %v9824
      %10920 = vmatprep.subr.bf16.mxu0 %v9835
      %10921 = vmatpush1.bf16.msra.mxu0 %v9834
      %10922 = vmatprep.subr.bf16.mxu0 %v9845
      %10923 = vmatpush1.bf16.msra.mxu0 %v9844
      %10924 = vmatprep.subr.bf16.mxu0 %v9855
      %10925 = vmatpush1.bf16.msra.mxu0 %v9854
      %10926 = vmatprep.subr.bf16.mxu0 %v9865
      %10927 = vmatpush1.bf16.msra.mxu0 %v9864
      %10928 = vmatprep.subr.bf16.mxu0 %v9875
      %10929 = vmatpush1.bf16.msra.mxu0 %v9874
      %10930 = vmatprep.subr.bf16.mxu0 %v9885
      %10931 = vmatpush1.bf16.msra.mxu0 %v9884
      %10932 = vmatprep.subr.bf16.mxu0 %v9895
      %10933 = vmatpush1.bf16.msra.mxu0 %v9894
      %10934 = vmatprep.subr.bf16.mxu0 %v9905
      %10935 = vmatpush1.bf16.msra.mxu0 %v9904
      %10936 = vmatprep.subr.bf16.mxu0 %v9915
      %10937 = vmatpush1.bf16.msra.mxu0 %v9914
      %10938 = vmatprep.subr.bf16.mxu0 %v9925
      %10939 = vmatpush1.bf16.msra.mxu0 %v9924
      %10940 = vmatprep.subr.bf16.mxu0 %v9935
      %10941 = vmatpush1.bf16.msra.mxu0 %v9934
      %10942 = vmatprep.mubr.bf16.mxu0 %v8075
      %10943 = vmatmul.mubr.bf16.gmra.mrb[0].mxu0 %v8074
      %v10944 = vpop.f32.mrb[0].mxu0
      %v10945 = vadd.f32 0.0, %v10944
      %v10946 = vpop.f32.mrb[0].mxu0
      %v10947 = vadd.f32 0.0, %v10946
      %v10948 = vpop.f32.mrb[0].mxu0
      %v10949 = vpop.f32.mrb[0].mxu0
      %10950 = vdwg.mxu0
      %10951 = vmatprep.subr.bf16.mxu0 %v9945
      %10952 = vmatpush1.bf16.msra.mxu0 %v9944
      %10953 = vmatprep.subr.bf16.mxu0 %v9955
      %10954 = vmatpush1.bf16.msra.mxu0 %v9954
      %10955 = vmatprep.subr.bf16.mxu0 %v9965
      %10956 = vmatpush1.bf16.msra.mxu0 %v9964
      %10957 = vmatprep.subr.bf16.mxu0 %v9975
      %10958 = vmatpush1.bf16.msra.mxu0 %v9974
      %10959 = vmatprep.subr.bf16.mxu0 %v9985
      %10960 = vmatpush1.bf16.msra.mxu0 %v9984
      %10961 = vmatprep.subr.bf16.mxu0 %v9995
      %10962 = vmatpush1.bf16.msra.mxu0 %v9994
      %10963 = vmatprep.subr.bf16.mxu0 %v10005
      %10964 = vmatpush1.bf16.msra.mxu0 %v10004
      %10965 = vmatprep.subr.bf16.mxu0 %v10015
      %10966 = vmatpush1.bf16.msra.mxu0 %v10014
      %10967 = vmatprep.subr.bf16.mxu0 %v10025
      %10968 = vmatpush1.bf16.msra.mxu0 %v10024
      %10969 = vmatprep.subr.bf16.mxu0 %v10035
      %10970 = vmatpush1.bf16.msra.mxu0 %v10034
      %10971 = vmatprep.subr.bf16.mxu0 %v10045
      %10972 = vmatpush1.bf16.msra.mxu0 %v10044
      %10973 = vmatprep.subr.bf16.mxu0 %v10055
      %10974 = vmatpush1.bf16.msra.mxu0 %v10054
      %10975 = vmatprep.subr.bf16.mxu0 %v10065
      %10976 = vmatpush1.bf16.msra.mxu0 %v10064
      %10977 = vmatprep.subr.bf16.mxu0 %v10075
      %10978 = vmatpush1.bf16.msra.mxu0 %v10074
      %10979 = vmatprep.subr.bf16.mxu0 %v10085
      %10980 = vmatpush1.bf16.msra.mxu0 %v10084
      %10981 = vmatprep.subr.bf16.mxu0 %v10095
      %10982 = vmatpush1.bf16.msra.mxu0 %v10094
      %10983 = vmatprep.mubr.bf16.mxu0 %v8077
      %10984 = vmatmul.mubr.bf16.gmra.mrb[0].mxu0 %v8076
      %v10985 = vpop.f32.mrb[0].mxu0
      %v10986 = vadd.f32 %v10945, %v10985
      %v10987 = vpop.f32.mrb[0].mxu0
      %v10988 = vadd.f32 %v10947, %v10987
      %v10989 = vpop.f32.mrb[0].mxu0
      %v10990 = vpop.f32.mrb[0].mxu0
      %10991 = vdwg.mxu0
      %10992 = vmatprep.subr.bf16.mxu0 %v10105
      %10993 = vmatpush1.bf16.msra.mxu0 %v10104
      %10994 = vmatprep.subr.bf16.mxu0 %v10115
      %10995 = vmatpush1.bf16.msra.mxu0 %v10114
      %10996 = vmatprep.subr.bf16.mxu0 %v10125
      %10997 = vmatpush1.bf16.msra.mxu0 %v10124
      %10998 = vmatprep.subr.bf16.mxu0 %v10135
      %10999 = vmatpush1.bf16.msra.mxu0 %v10134
      %11000 = vmatprep.subr.bf16.mxu0 %v10145
      %11001 = vmatpush1.bf16.msra.mxu0 %v10144
      %11002 = vmatprep.subr.bf16.mxu0 %v10155
      %11003 = vmatpush1.bf16.msra.mxu0 %v10154
      %11004 = vmatprep.subr.bf16.mxu0 %v10165
      %11005 = vmatpush1.bf16.msra.mxu0 %v10164
      %11006 = vmatprep.subr.bf16.mxu0 %v10175
      %11007 = vmatpush1.bf16.msra.mxu0 %v10174
      %11008 = vmatprep.subr.bf16.mxu0 %v10185
      %11009 = vmatpush1.bf16.msra.mxu0 %v10184
      %11010 = vmatprep.subr.bf16.mxu0 %v10195
      %11011 = vmatpush1.bf16.msra.mxu0 %v10194
      %11012 = vmatprep.subr.bf16.mxu0 %v10650
      %11013 = vmatpush1.bf16.msra.mxu0 %v10647
      %11014 = vmatprep.subr.bf16.mxu0 0
      %11015 = vmatpush1.bf16.msra.mxu0 0
      %11016 = vmatprep.subr.bf16.mxu0 0
      %11017 = vmatpush1.bf16.msra.mxu0 0
      %11018 = vmatprep.subr.bf16.mxu0 0
      %11019 = vmatpush1.bf16.msra.mxu0 0
      %11020 = vmatprep.subr.bf16.mxu0 0
      %11021 = vmatpush1.bf16.msra.mxu0 0
      %11022 = vmatprep.subr.bf16.mxu0 0
      %11023 = vmatpush1.bf16.msra.mxu0 0
      %11024 = vmatprep.mubr.bf16.mxu0 %v10631
      %11025 = vmatmul.mubr.bf16.gmra.mrb[0].mxu0 %v8078
      %v11026 = vpop.f32.mrb[0].mxu0
      %v11027 = vadd.f32 %v10986, %v11026
      %v11028 = vpop.f32.mrb[0].mxu0
      %v11029 = vadd.f32 %v10988, %v11028
      %v11030 = vpop.f32.mrb[0].mxu0
      %v11031 = vpop.f32.mrb[0].mxu0
      %11032 = vdwg.mxu0
      %11033 = vmatprep.subr.bf16.mxu0 %v9787
      %11034 = vmatpush1.bf16.msra.mxu0 %v9786
      %11035 = vmatprep.subr.bf16.mxu0 %v9797
      %11036 = vmatpush1.bf16.msra.mxu0 %v9796
      %11037 = vmatprep.subr.bf16.mxu0 %v9807
      %11038 = vmatpush1.bf16.msra.mxu0 %v9806
      %11039 = vmatprep.subr.bf16.mxu0 %v9817
      %11040 = vmatpush1.bf16.msra.mxu0 %v9816
      %11041 = vmatprep.subr.bf16.mxu0 %v9827
      %11042 = vmatpush1.bf16.msra.mxu0 %v9826
      %11043 = vmatprep.subr.bf16.mxu0 %v9837
      %11044 = vmatpush1.bf16.msra.mxu0 %v9836
      %11045 = vmatprep.subr.bf16.mxu0 %v9847
      %11046 = vmatpush1.bf16.msra.mxu0 %v9846
      %11047 = vmatprep.subr.bf16.mxu0 %v9857
      %11048 = vmatpush1.bf16.msra.mxu0 %v9856
      %11049 = vmatprep.subr.bf16.mxu0 %v9867
      %11050 = vmatpush1.bf16.msra.mxu0 %v9866
      %11051 = vmatprep.subr.bf16.mxu0 %v9877
      %11052 = vmatpush1.bf16.msra.mxu0 %v9876
      %11053 = vmatprep.subr.bf16.mxu0 %v9887
      %11054 = vmatpush1.bf16.msra.mxu0 %v9886
      %11055 = vmatprep.subr.bf16.mxu0 %v9897
      %11056 = vmatpush1.bf16.msra.mxu0 %v9896
      %11057 = vmatprep.subr.bf16.mxu0 %v9907
      %11058 = vmatpush1.bf16.msra.mxu0 %v9906
      %11059 = vmatprep.subr.bf16.mxu0 %v9917
      %11060 = vmatpush1.bf16.msra.mxu0 %v9916
      %11061 = vmatprep.subr.bf16.mxu0 %v9927
      %11062 = vmatpush1.bf16.msra.mxu0 %v9926
      %11063 = vmatprep.subr.bf16.mxu0 %v9937
      %11064 = vmatpush1.bf16.msra.mxu0 %v9936
      %11065 = vmatprep.mubr.bf16.mxu0 %v8075
      %11066 = vmatmul.mubr.bf16.gmra.mrb[0].mxu0 %v8074
      %v11067 = vpop.f32.mrb[0].mxu0
      %v11068 = vadd.f32 0.0, %v11067
      %v11069 = vpop.f32.mrb[0].mxu0
      %v11070 = vadd.f32 0.0, %v11069
      %v11071 = vpop.f32.mrb[0].mxu0
      %v11072 = vpop.f32.mrb[0].mxu0
      %11073 = vdwg.mxu0
      %11074 = vmatprep.subr.bf16.mxu0 %v9947
      %11075 = vmatpush1.bf16.msra.mxu0 %v9946
      %11076 = vmatprep.subr.bf16.mxu0 %v9957
      %11077 = vmatpush1.bf16.msra.mxu0 %v9956
      %11078 = vmatprep.subr.bf16.mxu0 %v9967
      %11079 = vmatpush1.bf16.msra.mxu0 %v9966
      %11080 = vmatprep.subr.bf16.mxu0 %v9977
      %11081 = vmatpush1.bf16.msra.mxu0 %v9976
      %11082 = vmatprep.subr.bf16.mxu0 %v9987
      %11083 = vmatpush1.bf16.msra.mxu0 %v9986
      %11084 = vmatprep.subr.bf16.mxu0 %v9997
      %11085 = vmatpush1.bf16.msra.mxu0 %v9996
      %11086 = vmatprep.subr.bf16.mxu0 %v10007
      %11087 = vmatpush1.bf16.msra.mxu0 %v10006
      %11088 = vmatprep.subr.bf16.mxu0 %v10017
      %11089 = vmatpush1.bf16.msra.mxu0 %v10016
      %11090 = vmatprep.subr.bf16.mxu0 %v10027
      %11091 = vmatpush1.bf16.msra.mxu0 %v10026
      %11092 = vmatprep.subr.bf16.mxu0 %v10037
      %11093 = vmatpush1.bf16.msra.mxu0 %v10036
      %11094 = vmatprep.subr.bf16.mxu0 %v10047
      %11095 = vmatpush1.bf16.msra.mxu0 %v10046
      %11096 = vmatprep.subr.bf16.mxu0 %v10057
      %11097 = vmatpush1.bf16.msra.mxu0 %v10056
      %11098 = vmatprep.subr.bf16.mxu0 %v10067
      %11099 = vmatpush1.bf16.msra.mxu0 %v10066
      %11100 = vmatprep.subr.bf16.mxu0 %v10077
      %11101 = vmatpush1.bf16.msra.mxu0 %v10076
      %11102 = vmatprep.subr.bf16.mxu0 %v10087
      %11103 = vmatpush1.bf16.msra.mxu0 %v10086
      %11104 = vmatprep.subr.bf16.mxu0 %v10097
      %11105 = vmatpush1.bf16.msra.mxu0 %v10096
      %11106 = vmatprep.mubr.bf16.mxu0 %v8077
      %11107 = vmatmul.mubr.bf16.gmra.mrb[0].mxu0 %v8076
      %v11108 = vpop.f32.mrb[0].mxu0
      %v11109 = vadd.f32 %v11068, %v11108
      %v11110 = vpop.f32.mrb[0].mxu0
      %v11111 = vadd.f32 %v11070, %v11110
      %v11112 = vpop.f32.mrb[0].mxu0
      %v11113 = vpop.f32.mrb[0].mxu0
      %11114 = vdwg.mxu0
      %11115 = vmatprep.subr.bf16.mxu0 %v10107
      %11116 = vmatpush1.bf16.msra.mxu0 %v10106
      %11117 = vmatprep.subr.bf16.mxu0 %v10117
      %11118 = vmatpush1.bf16.msra.mxu0 %v10116
      %11119 = vmatprep.subr.bf16.mxu0 %v10127
      %11120 = vmatpush1.bf16.msra.mxu0 %v10126
      %11121 = vmatprep.subr.bf16.mxu0 %v10137
      %11122 = vmatpush1.bf16.msra.mxu0 %v10136
      %11123 = vmatprep.subr.bf16.mxu0 %v10147
      %11124 = vmatpush1.bf16.msra.mxu0 %v10146
      %11125 = vmatprep.subr.bf16.mxu0 %v10157
      %11126 = vmatpush1.bf16.msra.mxu0 %v10156
      %11127 = vmatprep.subr.bf16.mxu0 %v10167
      %11128 = vmatpush1.bf16.msra.mxu0 %v10166
      %11129 = vmatprep.subr.bf16.mxu0 %v10177
      %11130 = vmatpush1.bf16.msra.mxu0 %v10176
      %11131 = vmatprep.subr.bf16.mxu0 %v10187
      %11132 = vmatpush1.bf16.msra.mxu0 %v10186
      %11133 = vmatprep.subr.bf16.mxu0 %v10197
      %11134 = vmatpush1.bf16.msra.mxu0 %v10196
      %11135 = vmatprep.subr.bf16.mxu0 %v10656
      %11136 = vmatpush1.bf16.msra.mxu0 %v10653
      %11137 = vmatprep.subr.bf16.mxu0 0
      %11138 = vmatpush1.bf16.msra.mxu0 0
      %11139 = vmatprep.subr.bf16.mxu0 0
      %11140 = vmatpush1.bf16.msra.mxu0 0
      %11141 = vmatprep.subr.bf16.mxu0 0
      %11142 = vmatpush1.bf16.msra.mxu0 0
      %11143 = vmatprep.subr.bf16.mxu0 0
      %11144 = vmatpush1.bf16.msra.mxu0 0
      %11145 = vmatprep.subr.bf16.mxu0 0
      %11146 = vmatpush1.bf16.msra.mxu0 0
      %11147 = vmatprep.mubr.bf16.mxu0 %v10631
      %11148 = vmatmul.mubr.bf16.gmra.mrb[0].mxu0 %v8078
      %v11149 = vpop.f32.mrb[0].mxu0
      %v11150 = vadd.f32 %v11109, %v11149
      %v11151 = vpop.f32.mrb[0].mxu0
      %v11152 = vadd.f32 %v11111, %v11151
      %v11153 = vpop.f32.mrb[0].mxu0
      %v11154 = vpop.f32.mrb[0].mxu0
      %11155 = vdwg.mxu0
      %11156 = vmatprep.subr.bf16.mxu0 %v9789
      %11157 = vmatpush1.bf16.msra.mxu0 %v9788
      %11158 = vmatprep.subr.bf16.mxu0 %v9799
      %11159 = vmatpush1.bf16.msra.mxu0 %v9798
      %11160 = vmatprep.subr.bf16.mxu0 %v9809
      %11161 = vmatpush1.bf16.msra.mxu0 %v9808
      %11162 = vmatprep.subr.bf16.mxu0 %v9819
      %11163 = vmatpush1.bf16.msra.mxu0 %v9818
      %11164 = vmatprep.subr.bf16.mxu0 %v9829
      %11165 = vmatpush1.bf16.msra.mxu0 %v9828
      %11166 = vmatprep.subr.bf16.mxu0 %v9839
      %11167 = vmatpush1.bf16.msra.mxu0 %v9838
      %11168 = vmatprep.subr.bf16.mxu0 %v9849
      %11169 = vmatpush1.bf16.msra.mxu0 %v9848
      %11170 = vmatprep.subr.bf16.mxu0 %v9859
      %11171 = vmatpush1.bf16.msra.mxu0 %v9858
      %11172 = vmatprep.subr.bf16.mxu0 %v9869
      %11173 = vmatpush1.bf16.msra.mxu0 %v9868
      %11174 = vmatprep.subr.bf16.mxu0 %v9879
      %11175 = vmatpush1.bf16.msra.mxu0 %v9878
      %11176 = vmatprep.subr.bf16.mxu0 %v9889
      %11177 = vmatpush1.bf16.msra.mxu0 %v9888
      %11178 = vmatprep.subr.bf16.mxu0 %v9899
      %11179 = vmatpush1.bf16.msra.mxu0 %v9898
      %11180 = vmatprep.subr.bf16.mxu0 %v9909
      %11181 = vmatpush1.bf16.msra.mxu0 %v9908
      %11182 = vmatprep.subr.bf16.mxu0 %v9919
      %11183 = vmatpush1.bf16.msra.mxu0 %v9918
      %11184 = vmatprep.subr.bf16.mxu0 %v9929
      %11185 = vmatpush1.bf16.msra.mxu0 %v9928
      %11186 = vmatprep.subr.bf16.mxu0 %v9939
      %11187 = vmatpush1.bf16.msra.mxu0 %v9938
      %11188 = vmatprep.mubr.bf16.mxu0 %v8075
      %11189 = vmatmul.mubr.bf16.gmra.mrb[0].mxu0 %v8074
      %v11190 = vpop.f32.mrb[0].mxu0
      %v11191 = vpop.f32.mrb[0].mxu0
      %v11192 = vpop.f32.mrb[0].mxu0
      %v11193 = vadd.f32 0.0, %v11192
      %v11194 = vpop.f32.mrb[0].mxu0
      %v11195 = vadd.f32 0.0, %v11194
      %11196 = vdwg.mxu0
      %11197 = vmatprep.subr.bf16.mxu0 %v9949
      %11198 = vmatpush1.bf16.msra.mxu0 %v9948
      %11199 = vmatprep.subr.bf16.mxu0 %v9959
      %11200 = vmatpush1.bf16.msra.mxu0 %v9958
      %11201 = vmatprep.subr.bf16.mxu0 %v9969
      %11202 = vmatpush1.bf16.msra.mxu0 %v9968
      %11203 = vmatprep.subr.bf16.mxu0 %v9979
      %11204 = vmatpush1.bf16.msra.mxu0 %v9978
      %11205 = vmatprep.subr.bf16.mxu0 %v9989
      %11206 = vmatpush1.bf16.msra.mxu0 %v9988
      %11207 = vmatprep.subr.bf16.mxu0 %v9999
      %11208 = vmatpush1.bf16.msra.mxu0 %v9998
      %11209 = vmatprep.subr.bf16.mxu0 %v10009
      %11210 = vmatpush1.bf16.msra.mxu0 %v10008
      %11211 = vmatprep.subr.bf16.mxu0 %v10019
      %11212 = vmatpush1.bf16.msra.mxu0 %v10018
      %11213 = vmatprep.subr.bf16.mxu0 %v10029
      %11214 = vmatpush1.bf16.msra.mxu0 %v10028
      %11215 = vmatprep.subr.bf16.mxu0 %v10039
      %11216 = vmatpush1.bf16.msra.mxu0 %v10038
      %11217 = vmatprep.subr.bf16.mxu0 %v10049
      %11218 = vmatpush1.bf16.msra.mxu0 %v10048
      %11219 = vmatprep.subr.bf16.mxu0 %v10059
      %11220 = vmatpush1.bf16.msra.mxu0 %v10058
      %11221 = vmatprep.subr.bf16.mxu0 %v10069
      %11222 = vmatpush1.bf16.msra.mxu0 %v10068
      %11223 = vmatprep.subr.bf16.mxu0 %v10079
      %11224 = vmatpush1.bf16.msra.mxu0 %v10078
      %11225 = vmatprep.subr.bf16.mxu0 %v10089
      %11226 = vmatpush1.bf16.msra.mxu0 %v10088
      %11227 = vmatprep.subr.bf16.mxu0 %v10099
      %11228 = vmatpush1.bf16.msra.mxu0 %v10098
      %11229 = vmatprep.mubr.bf16.mxu0 %v8077
      %11230 = vmatmul.mubr.bf16.gmra.mrb[0].mxu0 %v8076
      %v11231 = vpop.f32.mrb[0].mxu0
      %v11232 = vpop.f32.mrb[0].mxu0
      %v11233 = vpop.f32.mrb[0].mxu0
      %v11234 = vadd.f32 %v11193, %v11233
      %v11235 = vpop.f32.mrb[0].mxu0
      %v11236 = vadd.f32 %v11195, %v11235
      %11237 = vdwg.mxu0
      %11238 = vmatprep.subr.bf16.mxu0 %v10109
      %11239 = vmatpush1.bf16.msra.mxu0 %v10108
      %11240 = vmatprep.subr.bf16.mxu0 %v10119
      %11241 = vmatpush1.bf16.msra.mxu0 %v10118
      %11242 = vmatprep.subr.bf16.mxu0 %v10129
      %11243 = vmatpush1.bf16.msra.mxu0 %v10128
      %11244 = vmatprep.subr.bf16.mxu0 %v10139
      %11245 = vmatpush1.bf16.msra.mxu0 %v10138
      %11246 = vmatprep.subr.bf16.mxu0 %v10149
      %11247 = vmatpush1.bf16.msra.mxu0 %v10148
      %11248 = vmatprep.subr.bf16.mxu0 %v10159
      %11249 = vmatpush1.bf16.msra.mxu0 %v10158
      %11250 = vmatprep.subr.bf16.mxu0 %v10169
      %11251 = vmatpush1.bf16.msra.mxu0 %v10168
      %11252 = vmatprep.subr.bf16.mxu0 %v10179
      %11253 = vmatpush1.bf16.msra.mxu0 %v10178
      %11254 = vmatprep.subr.bf16.mxu0 %v10189
      %11255 = vmatpush1.bf16.msra.mxu0 %v10188
      %11256 = vmatprep.subr.bf16.mxu0 %v10199
      %11257 = vmatpush1.bf16.msra.mxu0 %v10198
      %11258 = vmatprep.subr.bf16.mxu0 %v10662
      %11259 = vmatpush1.bf16.msra.mxu0 %v10659
      %11260 = vmatprep.subr.bf16.mxu0 0
      %11261 = vmatpush1.bf16.msra.mxu0 0
      %11262 = vmatprep.subr.bf16.mxu0 0
      %11263 = vmatpush1.bf16.msra.mxu0 0
      %11264 = vmatprep.subr.bf16.mxu0 0
      %11265 = vmatpush1.bf16.msra.mxu0 0
      %11266 = vmatprep.subr.bf16.mxu0 0
      %11267 = vmatpush1.bf16.msra.mxu0 0
      %11268 = vmatprep.subr.bf16.mxu0 0
      %11269 = vmatpush1.bf16.msra.mxu0 0
      %11270 = vmatprep.mubr.bf16.mxu0 %v10631
      %11271 = vmatmul.mubr.bf16.gmra.mrb[0].mxu0 %v8078
      %v11272 = vpop.f32.mrb[0].mxu0
      %v11273 = vpop.f32.mrb[0].mxu0
      %v11274 = vpop.f32.mrb[0].mxu0
      %v11275 = vadd.f32 %v11234, %v11274
      %v11276 = vpop.f32.mrb[0].mxu0
      %v11277 = vadd.f32 %v11236, %v11276
      %11278 = vdwg.mxu0
      %v11279 = vld [vmem:[%s8] sm:$0x1]
      %v11280 = vadd.f32 %v11279, %v10781
      %v11283 = vunpack.c.l.s4 1966171168
      %v11284 = vunpack.c.0.s8 %v11283
      %v11285 = vlaneseq
      %v11286 = vshrl.u32 %v11285, 7
      %v11287 = vsub.s32 %v11284, %v11286
      %v11288 = vrot.slane %v10783, %v11287
      %v11289 = vcombine.high %v11288, %v11288
      %v11291 = vunpack.c.l.s4 1966171168
      %v11292 = vunpack.c.0.s8 %v11291
      %v11293 = vlaneseq
      %v11294 = vshrl.u32 %v11293, 7
      %v11295 = vsub.s32 %v11292, %v11294
      %v11296 = vrot.slane %v11289, %v11295
      %v11298 = vadd.f32 %v11280, %v11296
      %v11301 = vunpack.c.l.s4 1966171168
      %v11302 = vunpack.c.0.s8 %v11301
      %v11303 = vlaneseq
      %v11304 = vshrl.u32 %v11303, 7
      %v11305 = vsub.s32 %v11302, %v11304
      %v11306 = vrot.slane %v10904, %v11305
      %v11308 = vunpack.c.l.s4 1966171168
      %v11309 = vunpack.c.0.s8 %v11308
      %v11310 = vlaneseq
      %v11311 = vshrl.u32 %v11310, 7
      %v11312 = vsub.s32 %v11309, %v11311
      %v11313 = vrot.slane %v11306, %v11312
      %v11314 = vcombine.high %v11313, %v11313
      %v11316 = vadd.f32 %v11298, %v11314
      %v11319 = vunpack.c.l.s4 1966171168
      %v11320 = vunpack.c.0.s8 %v11319
      %v11321 = vlaneseq
      %v11322 = vshrl.u32 %v11321, 7
      %v11323 = vsub.s32 %v11320, %v11322
      %v11324 = vrot.slane %v10906, %v11323
      %v11325 = vcombine.high %v11324, %v11324
      %v11327 = vunpack.c.l.s4 1966171168
      %v11328 = vunpack.c.0.s8 %v11327
      %v11329 = vlaneseq
      %v11330 = vshrl.u32 %v11329, 7
      %v11331 = vsub.s32 %v11328, %v11330
      %v11332 = vrot.slane %v11325, %v11331
      %v11333 = vcombine.high %v11332, %v11332
      %v11335 = vadd.f32 %v11316, %v11333
      %v11337 = vcombine.high %v11027, %v11027
      %v11339 = vunpack.c.l.s4 1966171168
      %v11340 = vunpack.c.0.s8 %v11339
      %v11341 = vlaneseq
      %v11342 = vshrl.u32 %v11341, 7
      %v11343 = vsub.s32 %v11340, %v11342
      %v11344 = vrot.slane %v11337, %v11343
      %v11346 = vunpack.c.l.s4 1966171168
      %v11347 = vunpack.c.0.s8 %v11346
      %v11348 = vlaneseq
      %v11349 = vshrl.u32 %v11348, 7
      %v11350 = vsub.s32 %v11347, %v11349
      %v11351 = vrot.slane %v11344, %v11350
      %v11353 = vadd.f32 %v11335, %v11351
      %v11355 = vcombine.high %v11029, %v11029
      %v11357 = vunpack.c.l.s4 1966171168
      %v11358 = vunpack.c.0.s8 %v11357
      %v11359 = vlaneseq
      %v11360 = vshrl.u32 %v11359, 7
      %v11361 = vsub.s32 %v11358, %v11360
      %v11362 = vrot.slane %v11355, %v11361
      %v11363 = vcombine.high %v11362, %v11362
      %v11365 = vunpack.c.l.s4 1966171168
      %v11366 = vunpack.c.0.s8 %v11365
      %v11367 = vlaneseq
      %v11368 = vshrl.u32 %v11367, 7
      %v11369 = vsub.s32 %v11366, %v11368
      %v11370 = vrot.slane %v11363, %v11369
      %v11372 = vadd.f32 %v11353, %v11370
      %v11374 = vcombine.high %v11150, %v11150
      %v11376 = vunpack.c.l.s4 1966171168
      %v11377 = vunpack.c.0.s8 %v11376
      %v11378 = vlaneseq
      %v11379 = vshrl.u32 %v11378, 7
      %v11380 = vsub.s32 %v11377, %v11379
      %v11381 = vrot.slane %v11374, %v11380
      %v11383 = vunpack.c.l.s4 1966171168
      %v11384 = vunpack.c.0.s8 %v11383
      %v11385 = vlaneseq
      %v11386 = vshrl.u32 %v11385, 7
      %v11387 = vsub.s32 %v11384, %v11386
      %v11388 = vrot.slane %v11381, %v11387
      %v11389 = vcombine.high %v11388, %v11388
      %v11391 = vadd.f32 %v11372, %v11389
      %v11393 = vcombine.high %v11152, %v11152
      %v11395 = vunpack.c.l.s4 1966171168
      %v11396 = vunpack.c.0.s8 %v11395
      %v11397 = vlaneseq
      %v11398 = vshrl.u32 %v11397, 7
      %v11399 = vsub.s32 %v11396, %v11398
      %v11400 = vrot.slane %v11393, %v11399
      %v11401 = vcombine.high %v11400, %v11400
      %v11403 = vunpack.c.l.s4 1966171168
      %v11404 = vunpack.c.0.s8 %v11403
      %v11405 = vlaneseq
      %v11406 = vshrl.u32 %v11405, 7
      %v11407 = vsub.s32 %v11404, %v11406
      %v11408 = vrot.slane %v11401, %v11407
      %v11409 = vcombine.high %v11408, %v11408
      %v11411 = vadd.f32 %v11391, %v11409
      %v11412 = vadd.f32 %v11411, %v11275
      %v11415 = vunpack.c.l.s4 1966171168
      %v11416 = vunpack.c.0.s8 %v11415
      %v11417 = vlaneseq
      %v11418 = vshrl.u32 %v11417, 7
      %v11419 = vsub.s32 %v11416, %v11418
      %v11420 = vrot.slane %v11277, %v11419
      %v11421 = vcombine.high %v11420, %v11420
      %v11423 = vunpack.c.l.s4 1966171168
      %v11424 = vunpack.c.0.s8 %v11423
      %v11425 = vlaneseq
      %v11426 = vshrl.u32 %v11425, 7
      %v11427 = vsub.s32 %v11424, %v11426
      %v11428 = vrot.slane %v11421, %v11427
      %v11430 = vadd.f32 %v11412, %v11428
      %v11431 = vmax.f32 %v11430, 0.0
      %v11432 = vld [vmem:[%s9] sm:$0xff]
      %v11433 = vld [vmem:[%s9 + $0x8] sm:$0xff]
      %v11434 = vld [vmem:[%s9 + $0x10] sm:$0xff]
      %v11435 = vld [vmem:[%s9 + $0x18] sm:$0xff]
      %v11436 = vld [vmem:[%s9 + $0x20] sm:$0xff]
      %v11437 = vld [vmem:[%s9 + $0x28] sm:$0xff]
      %v11438 = vld [vmem:[%s9 + $0x30] sm:$0xff]
      %v11439 = vld [vmem:[%s9 + $0x38] sm:$0xff]
      %v11440 = vld [vmem:[%s9 + $0x40] sm:$0xff]
      %v11441 = vld [vmem:[%s9 + $0x48] sm:$0xff]
      %v11442 = vld [vmem:[%s9 + $0x50] sm:$0xff]
      %v11443 = vld [vmem:[%s9 + $0x58] sm:$0xff]
      %v11444 = vld [vmem:[%s9 + $0x60] sm:$0xff]
      %v11445 = vld [vmem:[%s9 + $0x68] sm:$0xff]
      %v11446 = vld [vmem:[%s9 + $0x70] sm:$0xff]
      %v11447 = vld [vmem:[%s9 + $0x78] sm:$0xff]
      %v11448 = vld [vmem:[%s10] sm:$0x1]
      %11449 = vmatprep.subr.mxu0 0.0
      %11450 = vmatpush1.msra.mxu0 %v11432
      %11451 = vmatprep.subr.mxu0 0.0
      %11452 = vmatpush1.msra.mxu0 %v11433
      %11453 = vmatprep.subr.mxu0 0.0
      %11454 = vmatpush1.msra.mxu0 %v11434
      %11455 = vmatprep.subr.mxu0 0.0
      %11456 = vmatpush1.msra.mxu0 %v11435
      %11457 = vmatprep.subr.mxu0 0.0
      %11458 = vmatpush1.msra.mxu0 %v11436
      %11459 = vmatprep.subr.mxu0 0.0
      %11460 = vmatpush1.msra.mxu0 %v11437
      %11461 = vmatprep.subr.mxu0 0.0
      %11462 = vmatpush1.msra.mxu0 %v11438
      %11463 = vmatprep.subr.mxu0 0.0
      %11464 = vmatpush1.msra.mxu0 %v11439
      %11465 = vmatprep.subr.mxu0 0.0
      %11466 = vmatpush1.msra.mxu0 %v11440
      %11467 = vmatprep.subr.mxu0 0.0
      %11468 = vmatpush1.msra.mxu0 %v11441
      %11469 = vmatprep.subr.mxu0 0.0
      %11470 = vmatpush1.msra.mxu0 %v11442
      %11471 = vmatprep.subr.mxu0 0.0
      %11472 = vmatpush1.msra.mxu0 %v11443
      %11473 = vmatprep.subr.mxu0 0.0
      %11474 = vmatpush1.msra.mxu0 %v11444
      %11475 = vmatprep.subr.mxu0 0.0
      %11476 = vmatpush1.msra.mxu0 %v11445
      %11477 = vmatprep.subr.mxu0 0.0
      %11478 = vmatpush1.msra.mxu0 %v11446
      %11479 = vmatprep.subr.mxu0 0.0
      %11480 = vmatpush1.msra.mxu0 %v11447
      %11481 = vmatprep.subr.mxu0 0.0
      %11482 = vmatpush1.msra.mxu0 0.0
      %11483 = vmatprep.subr.mxu0 0.0
      %11484 = vmatpush1.msra.mxu0 0.0
      %11485 = vmatprep.subr.mxu0 0.0
      %11486 = vmatpush1.msra.mxu0 0.0
      %11487 = vmatprep.subr.mxu0 0.0
      %11488 = vmatpush1.msra.mxu0 0.0
      %11489 = vmatprep.subr.mxu0 0.0
      %11490 = vmatpush1.msra.mxu0 0.0
      %11491 = vmatprep.subr.mxu0 0.0
      %11492 = vmatpush1.msra.mxu0 0.0
      %11493 = vmatprep.subr.mxu0 0.0
      %11494 = vmatpush1.msra.mxu0 0.0
      %11495 = vmatprep.subr.mxu0 0.0
      %11496 = vmatpush1.msra.mxu0 0.0
      %11497 = vmatprep.subr.mxu0 0.0
      %11498 = vmatpush1.msra.mxu0 0.0
      %11499 = vmatprep.subr.mxu0 0.0
      %11500 = vmatpush1.msra.mxu0 0.0
      %11501 = vmatprep.subr.mxu0 0.0
      %11502 = vmatpush1.msra.mxu0 0.0
      %11503 = vmatprep.subr.mxu0 0.0
      %11504 = vmatpush1.msra.mxu0 0.0
      %11505 = vmatprep.subr.mxu0 0.0
      %11506 = vmatpush1.msra.mxu0 0.0
      %11507 = vmatprep.subr.mxu0 0.0
      %11508 = vmatpush1.msra.mxu0 0.0
      %11509 = vmatprep.subr.mxu0 0.0
      %11510 = vmatpush1.msra.mxu0 0.0
      %11511 = vmatprep.subr.mxu0 0.0
      %11512 = vmatpush1.msra.mxu0 0.0
      %11513 = vmatprep.mubr.f32.mxu0 0.0
      %11514 = vmatmul.mubr.f32.gmra.mrb[0].mxu0 %v11431
      %v11515 = vpop.f32.mrb[0].mxu0
      %v11516 = vadd.f32 %v11448, %v11515
      %v11517 = vpop.f32.mrb[0].mxu0
      %11518 = vdwg.mxu0
      %vm11519 = vcmask 40960
      %11520 = vst.msk [vmem:[%s382] sm:$0x1] %vm11519, %v11516
      %p11521 = scmp.lt.s32.totalorder %s22, 1
      %s11522 = scalar_select %p11521, %s22, 1
      %s11523 = scalar_lea.vmem %s11, %s11522
      // Predicated region
      $region65: #{localization_forward.1} parent=63 // pred_check
        %p11524 = pneg %p276
      $region66: #{localization_forward.1} parent=63 // pred_check_branch
        %11526 = sbr.rel (%p11524) target = $region68
      $region67: #{localization_forward.1} parent=63 // pred_region
        _
      $region68: #{localization_forward.1} parent=63 // pred_fallthru
        _
    $region64: #{localization_forward.1} parent=5 // pred_fallthru
      _
    %p11527 = scmp.le.s32.totalorder 2, %s17
    // Predicated region
    $region69: #{localization_forward.1} parent=5 // pred_check
      %p11528 = pneg %p11527
    $region70: #{localization_forward.1} parent=5 // pred_check_branch
      %11530 = sbr.rel (%p11528) target = $region72
    $region71: #{localization_forward.1} parent=5 // pred_region
      %s11531 = ssub.s32 %s17, 2
      // Predicated region
      $region73: #{localization_forward.1} parent=71 // pred_check
        %p11532 = pneg %p282
      $region74: #{localization_forward.1} parent=71 // pred_check_branch
        %11534 = sbr.rel (%p11532) target = $region76
      $region75: #{localization_forward.1} parent=71 // pred_region
        %p11535 = scmp.lt.s32.totalorder %s23, 1
        %s11536 = scalar_select %p11535, %s23, 1
        %s11537 = scalar_lea.vmem %s11, %s11536
      $region76: #{localization_forward.1} parent=71 // pred_fallthru
        _
    $region72: #{localization_forward.1} parent=5 // pred_fallthru
      _
  $region6: #{localization_forward.1} parent=0 // loop_footer
    %s21 = sadd.s32 1, %s17
  $region7: #{localization_forward.1} parent=0 // loop_footer_branch
    %16 = sbr.rel target = $region3
  $region8: #{localization_forward.1} parent=0 // loop_exit
    _

</llo_original>
